<compile_context>
chip_gen: v7x
topology: tpu7x:2x2x1
jax: 0.10.0
libtpu: 0.0.40
codegen_flags: <defaults>
</compile_context>

<pallas_src>
import math
import numpy as np
import jax
import jax.numpy as jnp
from jax import lax
from jax.experimental import pallas as pl
from jax.experimental.pallas import tpu as pltpu

NODE_DIM = 32          # d_model of the transformer encoder
N_HEADS = 4
NODE_HID = 64          # dim_feedforward
N_ENC_LAYERS = 4       # nn.TransformerEncoder(num_layers=4)
IMG_FEAT_DIM = 3072    # self.fc = Linear(3072, node_dim)
HEAD_OUT = 5           # self.head = Linear(node_dim, 5)
LN_EPS = 1e-5
LEAKY_SLOPE = 0.01     # nn.LeakyReLU default


def _layernorm(x, w, b):
    mu = jnp.mean(x, axis=-1, keepdims=True)
    var = jnp.mean((x - mu) ** 2, axis=-1, keepdims=True)
    return (x - mu) * lax.rsqrt(var + LN_EPS) * w + b


# ---------------------------------------------------------------------------
# One fused kernel: gather groups -> 4-layer post-norm TransformerEncoder
# (batched over groups, heads statically unrolled) -> token-0 extraction ->
# fc(img) -> concat -> Unit1/2/3 -> head.  Starts live in SMEM, everything
# else in VMEM.
# ---------------------------------------------------------------------------
def _make_router_kernel(batch: int, s_pad: int):
    B, S = batch, s_pad
    D, H, dh = NODE_DIM, N_HEADS, NODE_DIM // N_HEADS
    BS = B * S

    def kernel(starts_ref, lens_ref, node_ref, img_ref,
               wqkv_ref, bqkv_ref, wo_ref, bo_ref,
               w1_ref, b1_ref, w2_ref, b2_ref,
               n1w_ref, n1b_ref, n2w_ref, n2b_ref,
               wfct_ref, bfc_ref,
               u1nw_ref, u1nb_ref, u1w_ref, u1b_ref,
               u2nw_ref, u2nb_ref, u2w_ref, u2b_ref,
               u3nw_ref, u3nb_ref, u3w_ref, u3b_ref,
               wh_ref, bh_ref,
               feat_ref, logits_ref, xg_ref):
        # ---- gather the B variable-length groups straight from VMEM --------
        # node_ref is padded by >= S rows so the dynamic loads never go OOB.
        # Per-group stores into a preallocated (B*S, D) scratch (no B-way
        # concatenate of dynamic slices -> half the copy traffic).
        for b in range(B):
            xg_ref[b * S:(b + 1) * S, :] = node_ref[pl.ds(starts_ref[b], S), :]
        x = xg_ref[...]                                                    # (BS, D)

        # Additive key-padding mask, built once & vectorized, broadcast over
        # heads and layers.  A fully-masked (empty) group degenerates to a
        # uniform softmax, so the result stays finite (PyTorch would NaN).
        valid = lax.broadcasted_iota(jnp.int32, (B, S), 1) < lens_ref[...]  # (B,S)
        mask = jnp.where(valid, 0.0, -1e30).reshape(1, B, 1, S)            # (1,B,1,S)

        for l in range(N_ENC_LAYERS):              # static unroll over layers
            # ---- multi-head self-attention (post-norm; dropout = identity) -
            # 1/sqrt(dh) is already folded into the Q projection weights.
            qkv = jnp.dot(x, wqkv_ref[l],
                          preferred_element_type=jnp.float32) + bqkv_ref[l]  # (BS, 3D)

            # Per-head QK^T batched over groups; heads stay a static unroll
            # (Mosaic dot_general has no multi-batch-dim support and a
            # (0,2,1,3) relayout would cost more than H tiny dh=8 einsums).
            scores = [
                jnp.einsum('bsd,btd->bst',
                           qkv[:, h * dh:(h + 1) * dh].reshape(B, S, dh),
                           qkv[:, D + h * dh:D + (h + 1) * dh].reshape(B, S, dh),
                           preferred_element_type=jnp.float32)
                for h in range(H)]
            s4 = jnp.stack(scores, axis=0) + mask                          # (H,B,S,S)
            s4 = s4 - jnp.max(s4, axis=-1, keepdims=True)
            p4 = jnp.exp(s4)
            p4 = p4 * pl.reciprocal(jnp.sum(p4, axis=-1, keepdims=True),
                                    approx=True)

            ctx = [
                jnp.einsum('bst,btd->bsd', p4[h],
                           qkv[:, 2 * D + h * dh:2 * D + (h + 1) * dh].reshape(B, S, dh),
                           preferred_element_type=jnp.float32)
                for h in range(H)]
            attn = jnp.concatenate(ctx, axis=-1).reshape(BS, D)
            attn = jnp.dot(attn, wo_ref[l],
                           preferred_element_type=jnp.float32) + bo_ref[l]
            x = _layernorm(x + attn, n1w_ref[l], n1b_ref[l])

            # ---- feed-forward (ReLU), batched over all groups --------------
            hid = jnp.dot(x, w1_ref[l],
                          preferred_element_type=jnp.float32) + b1_ref[l]
            hid = jnp.maximum(hid, 0.0)
            ff = jnp.dot(hid, w2_ref[l],
                         preferred_element_type=jnp.float32) + b2_ref[l]
            x = _layernorm(x + ff, n2w_ref[l], n2b_ref[l])

        # token 0 of every group: one strided read (S is a multiple of 8).
        node0 = x.reshape(B, S, D)[:, 0, :]                                # (B, D)

        # ---- head: fc(img) -> concat -> Unit1/2/3 -> Linear(.,5) -----------
        # fc weight stored transposed (D, 3072) bf16 -> lane-dense DMA; bf16 x
        # bf16 on the MXU with f32 accumulation (no in-kernel upcast).
        out_img = lax.dot_general(img_ref[...], wfct_ref[...],
                                  dimension_numbers=(((1,), (1,)), ((), ())),
                                  preferred_element_type=jnp.float32) + bfc_ref[...]
        xh = jnp.concatenate([node0, out_img], axis=-1)                    # (B, 2D)

        def unit(z, nw, nb, w, b):
            z = _layernorm(z, nw[...], nb[...])
            z = jnp.dot(z, w[...], preferred_element_type=jnp.float32) + b[...]
            return jnp.where(z > 0, z, LEAKY_SLOPE * z)                    # LeakyReLU

        xh = unit(xh, u1nw_ref, u1nb_ref, u1w_ref, u1b_ref)    # 2D -> 4D
        xh = unit(xh, u2nw_ref, u2nb_ref, u2w_ref, u2b_ref)    # 4D -> 2D
        xh = unit(xh, u3nw_ref, u3nb_ref, u3w_ref, u3b_ref)    # 2D -> D
        feat_ref[...] = xh
        logits_ref[...] = jnp.dot(xh, wh_ref[...],
                                  preferred_element_type=jnp.float32) + bh_ref[...]

    return kernel


def _router_pallas(node_padded, img_bf16, starts, lens_col, enc_params,
                   head_params, s_pad):
    B = img_bf16.shape[0]
    kernel = _make_router_kernel(B, s_pad)
    smem = pl.BlockSpec(memory_space=pltpu.MemorySpace.SMEM)
    vmem = pl.BlockSpec(memory_space=pltpu.MemorySpace.VMEM)
    n_vmem = 3 + len(enc_params) + len(head_params)
    # Single gridless invocation: every operand is far below one MXU tile, so
    # the kernel is issue/latency bound and one launch beats a grid.
    # TODO(synk): for large B reintroduce grid=(B,) with
    # dimension_semantics=("parallel",) (v7x dual-TC); for large node counts
    # keep the node tensor in HBM (memory_space=pl.ANY) and DMA-gather groups.
    return pl.pallas_call(
        kernel,
        out_shape=(jax.ShapeDtypeStruct((B, NODE_DIM), jnp.float32),
                   jax.ShapeDtypeStruct((B, HEAD_OUT), jnp.float32)),
        in_specs=[smem] + [vmem] * n_vmem,
        out_specs=(vmem, vmem),
        scratch_shapes=[pltpu.VMEM((B * s_pad, NODE_DIM), jnp.float32)],
        compiler_params=pltpu.CompilerParams(vmem_limit_bytes=32 * 1024 * 1024),
    )(starts, lens_col, node_padded, img_bf16, *enc_params, *head_params)


# ---------------------------------------------------------------------------
# Deterministic parameter init (synthetic weights, PyTorch-like uniform bounds)
# ---------------------------------------------------------------------------
def _linear_params(key, fan_in, fan_out):
    kw, kb = jax.random.split(key)
    bound = 1.0 / math.sqrt(fan_in)
    w = jax.random.uniform(kw, (fan_in, fan_out), jnp.float32, -bound, bound)
    b = jax.random.uniform(kb, (1, fan_out), jnp.float32, -bound, bound)
    return w, b


def init_encoder_params(key):
    D, Hd, L = NODE_DIM, NODE_HID, N_ENC_LAYERS
    dh = D // N_HEADS
    scale = 1.0 / math.sqrt(dh)
    wqkv, bqkv, wo, bo, w1, b1, w2, b2 = ([] for _ in range(8))
    n1w, n1b, n2w, n2b = ([] for _ in range(4))
    for kl in jax.random.split(key, L):
        k1, k2, k3, k4 = jax.random.split(kl, 4)
        w, b = _linear_params(k1, D, 3 * D)
        # fold the softmax 1/sqrt(dh) scale into the Q projection (exact);
        # do the same once at conversion time when importing real weights.
        w = w.at[:, :D].multiply(scale)
        b = b.at[:, :D].multiply(scale)
        wqkv.append(w); bqkv.append(b)
        w, b = _linear_params(k2, D, D);  wo.append(w); bo.append(b)
        w, b = _linear_params(k3, D, Hd); w1.append(w); b1.append(b)
        w, b = _linear_params(k4, Hd, D); w2.append(w); b2.append(b)
        n1w.append(jnp.ones((1, D), jnp.float32)); n1b.append(jnp.zeros((1, D), jnp.float32))
        n2w.append(jnp.ones((1, D), jnp.float32)); n2b.append(jnp.zeros((1, D), jnp.float32))
    stack = lambda xs: jnp.stack(xs, axis=0)
    return tuple(map(stack, (wqkv, bqkv, wo, bo, w1, b1, w2, b2,
                             n1w, n1b, n2w, n2b)))


def init_head_params(key):
    D = NODE_DIM
    k = jax.random.split(key, 5)
    wfc, bfc = _linear_params(k[0], IMG_FEAT_DIM, D)
    # Store transposed (D, 3072): last dim is a multiple of 128 -> dense DMA,
    # ~4x smaller VMEM footprint than the lane-padded (3072, 32) layout.
    # bf16 storage: ~bf16-level numerics on the fc path (fine for inference).
    wfct = wfc.T.astype(jnp.bfloat16)
    u1w, u1b = _linear_params(k[1], 2 * D, 4 * D)
    u2w, u2b = _linear_params(k[2], 4 * D, 2 * D)
    u3w, u3b = _linear_params(k[3], 2 * D, D)
    wh, bh = _linear_params(k[4], D, HEAD_OUT)
    ones = lambda n: jnp.ones((1, n), jnp.float32)
    zeros = lambda n: jnp.zeros((1, n), jnp.float32)
    return (wfct, bfc,
            ones(2 * D), zeros(2 * D), u1w, u1b,
            ones(4 * D), zeros(4 * D), u2w, u2b,
            ones(2 * D), zeros(2 * D), u3w, u3b,
            wh, bh)


# ---------------------------------------------------------------------------
def router_forward(node_tensors, edge_tensors, img_feat, node_bid,
                   enc_params, head_params):
    # edge_tensors is unused by the PyTorch forward as well.
    del edge_tensors
    # Group bookkeeping (torch.bincount / cumsum) is inherently shape
    # determining, so node_bid is treated as host metadata.  Pass it as a host
    # ndarray (as in __main__) to avoid a device->host sync per call.  Like the
    # PyTorch reference, nodes are assumed contiguous & sorted by group id.
    bid_np = np.asarray(node_bid)
    counts = np.bincount(bid_np).astype(np.int32)
    starts_np = np.concatenate([[0], np.cumsum(counts)[:-1]]).astype(np.int32)
    B = int(counts.shape[0])
    assert B == img_feat.shape[0], "node_bid groups must align with img_feat batch"

    # Bucket padded sizes to powers of two so new max group lengths / node
    # counts don't force a Mosaic recompile on every call.
    s_pad = max(8, pl.next_power_of_2(int(counts.max())))
    N = node_tensors.shape[0]
    n_pad = max(8, pl.next_power_of_2(N + s_pad))      # slack so pl.ds never OOBs
    node_padded = jnp.pad(node_tensors.astype(jnp.float32),
                          ((0, n_pad - N), (0, 0)))    # stays on device

    starts = jnp.asarray(starts_np, jnp.int32)                      # SMEM scalars
    lens_col = jnp.asarray(counts, jnp.int32).reshape(B, 1)         # VMEM vector
    img_bf16 = img_feat.astype(jnp.bfloat16)           # bf16 x bf16 MXU path

    features, logits = _router_pallas(node_padded, img_bf16, starts, lens_col,
                                      enc_params, head_params, s_pad)
    return features, logits


if __name__ == "__main__":
    key = jax.random.PRNGKey(0)
    k_node, k_img, k_enc, k_head = jax.random.split(key, 4)

    B = 2
    group_sizes = np.array([6, 8])                 # variable-length groups
    node_bid = np.repeat(np.arange(B), group_sizes).astype(np.int32)  # host-resident
    N = int(group_sizes.sum())

    node_tensors = jax.random.normal(k_node, (N, NODE_DIM), jnp.float32)
    edge_tensors = jnp.zeros((N, N, 4), jnp.float32)   # unused by forward
    img_feat = jax.random.normal(k_img, (B, IMG_FEAT_DIM), jnp.float32)

    enc_params = init_encoder_params(k_enc)
    head_params = init_head_params(k_head)

    features, logits = router_forward(node_tensors, edge_tensors, img_feat,
                                      node_bid, enc_params, head_params)
    jax.block_until_ready((features, logits))

    assert features.shape == (B, NODE_DIM)
    assert logits.shape == (B, HEAD_OUT)
    assert bool(jnp.all(jnp.isfinite(features))) and bool(jnp.all(jnp.isfinite(logits)))
    print("KERNEL_OK")
</pallas_src>

<mosaic_0001>
module attributes {stable_mosaic.version = 11 : i64} {
  func.func @kernel(%arg0: memref<2xi32, #tpu.memory_space<smem>>, %arg1: memref<2x1xi32, #tpu.memory_space<vmem>>, %arg2: memref<32x32xf32, #tpu.memory_space<vmem>>, %arg3: memref<2x3072xbf16, #tpu.memory_space<vmem>>, %arg4: memref<4x32x96xf32, #tpu.memory_space<vmem>>, %arg5: memref<4x1x96xf32, #tpu.memory_space<vmem>>, %arg6: memref<4x32x32xf32, #tpu.memory_space<vmem>>, %arg7: memref<4x1x32xf32, #tpu.memory_space<vmem>>, %arg8: memref<4x32x64xf32, #tpu.memory_space<vmem>>, %arg9: memref<4x1x64xf32, #tpu.memory_space<vmem>>, %arg10: memref<4x64x32xf32, #tpu.memory_space<vmem>>, %arg11: memref<4x1x32xf32, #tpu.memory_space<vmem>>, %arg12: memref<4x1x32xf32, #tpu.memory_space<vmem>>, %arg13: memref<4x1x32xf32, #tpu.memory_space<vmem>>, %arg14: memref<4x1x32xf32, #tpu.memory_space<vmem>>, %arg15: memref<4x1x32xf32, #tpu.memory_space<vmem>>, %arg16: memref<32x3072xbf16, #tpu.memory_space<vmem>>, %arg17: memref<1x32xf32, #tpu.memory_space<vmem>>, %arg18: memref<1x64xf32, #tpu.memory_space<vmem>>, %arg19: memref<1x64xf32, #tpu.memory_space<vmem>>, %arg20: memref<64x128xf32, #tpu.memory_space<vmem>>, %arg21: memref<1x128xf32, #tpu.memory_space<vmem>>, %arg22: memref<1x128xf32, #tpu.memory_space<vmem>>, %arg23: memref<1x128xf32, #tpu.memory_space<vmem>>, %arg24: memref<128x64xf32, #tpu.memory_space<vmem>>, %arg25: memref<1x64xf32, #tpu.memory_space<vmem>>, %arg26: memref<1x64xf32, #tpu.memory_space<vmem>>, %arg27: memref<1x64xf32, #tpu.memory_space<vmem>>, %arg28: memref<64x32xf32, #tpu.memory_space<vmem>>, %arg29: memref<1x32xf32, #tpu.memory_space<vmem>>, %arg30: memref<32x5xf32, #tpu.memory_space<vmem>>, %arg31: memref<1x5xf32, #tpu.memory_space<vmem>>, %arg32: memref<2x32xf32, #tpu.memory_space<vmem>>, %arg33: memref<2x5xf32, #tpu.memory_space<vmem>>, %arg34: memref<16x32xf32, #tpu.memory_space<vmem>>) attributes {dimension_semantics = [], scalar_prefetch = 0 : i64, scratch_operands = 1 : i64, tpu.core_type = #tpu.core_type<tc>} {
    %c0 = arith.constant 0 : index
    %0 = memref.load %arg0[%c0] : memref<2xi32, #tpu.memory_space<smem>>
    %1 = arith.index_cast %0 : i32 to index
    %c0_0 = arith.constant 0 : index
    %2 = vector.load %arg2[%1, %c0_0] : memref<32x32xf32, #tpu.memory_space<vmem>>, vector<8x32xf32>
    %c0_1 = arith.constant 0 : index
    %c0_2 = arith.constant 0 : index
    %3 = vector.load %arg34[%c0_1, %c0_2] : memref<16x32xf32, #tpu.memory_space<vmem>>, vector<8x32xf32>
    tpu.vector_store %arg34[%c0_1, %c0_2], %2 {strides = array<i32>} : memref<16x32xf32, #tpu.memory_space<vmem>>, vector<8x32xf32>,
    %c1 = arith.constant 1 : index
    %4 = memref.load %arg0[%c1] : memref<2xi32, #tpu.memory_space<smem>>
    %5 = arith.index_cast %4 : i32 to index
    %c0_3 = arith.constant 0 : index
    %6 = vector.load %arg2[%5, %c0_3] : memref<32x32xf32, #tpu.memory_space<vmem>>, vector<8x32xf32>
    %c8 = arith.constant 8 : index
    %c0_4 = arith.constant 0 : index
    %7 = vector.load %arg34[%c8, %c0_4] : memref<16x32xf32, #tpu.memory_space<vmem>>, vector<8x32xf32>
    tpu.vector_store %arg34[%c8, %c0_4], %6 {strides = array<i32>} : memref<16x32xf32, #tpu.memory_space<vmem>>, vector<8x32xf32>,
    %c0_5 = arith.constant 0 : index
    %c0_6 = arith.constant 0 : index
    %8 = vector.load %arg34[%c0_5, %c0_6] : memref<16x32xf32, #tpu.memory_space<vmem>>, vector<16x32xf32>
    %9 = tpu.iota {dimensions = array<i32: 1>} : vector<2x8xi32>
    %c0_7 = arith.constant 0 : index
    %c0_8 = arith.constant 0 : index
    %10 = vector.load %arg1[%c0_7, %c0_8] : memref<2x1xi32, #tpu.memory_space<vmem>>, vector<2x1xi32>
    %11 = vector.broadcast %10 : vector<2x1xi32> to vector<2x8xi32>
    %12 = arith.cmpi slt, %9, %11 : vector<2x8xi32>
    %cst = arith.constant 0.000000e+00 : f32
    %cst_9 = arith.constant -1.000000e+30 : f32
    %13 = vector.broadcast %cst : f32 to vector<2x8xf32>
    %14 = vector.broadcast %cst_9 : f32 to vector<2x8xf32>
    %15 = arith.select %12, %13, %14 : vector<2x8xi1>, vector<2x8xf32>
    %16 = vector.shape_cast %15 : vector<2x8xf32> to vector<1x2x1x8xf32>
    %c0_10 = arith.constant 0 : index
    %c0_11 = arith.constant 0 : index
    %c0_12 = arith.constant 0 : index
    %17 = vector.load %arg4[%c0_10, %c0_11, %c0_12] : memref<4x32x96xf32, #tpu.memory_space<vmem>>, vector<1x32x96xf32>
    %18 = vector.shape_cast %17 : vector<1x32x96xf32> to vector<32x96xf32>
    %cst_13 = arith.constant dense<0.000000e+00> : vector<16x96xf32>
    %19 = tpu.matmul %8, %18, %cst_13 {dimension_numbers = #tpu.dot_dimension_numbers<[1], [0], [0], [1], [0, 0, 1, 1], [], []>} : vector<16x32xf32>, vector<32x96xf32>, vector<16x96xf32> -> vector<16x96xf32>
    %c0_14 = arith.constant 0 : index
    %c0_15 = arith.constant 0 : index
    %c0_16 = arith.constant 0 : index
    %20 = vector.load %arg5[%c0_14, %c0_15, %c0_16] : memref<4x1x96xf32, #tpu.memory_space<vmem>>, vector<1x1x96xf32>
    %21 = vector.shape_cast %20 : vector<1x1x96xf32> to vector<1x96xf32>
    %22 = vector.broadcast %21 : vector<1x96xf32> to vector<16x96xf32>
    %23 = arith.addf %19, %22 : vector<16x96xf32>
    %24 = vector.extract_strided_slice %23 {offsets = [0, 0], sizes = [16, 8], strides = [1, 1]} : vector<16x96xf32> to vector<16x8xf32>
    %25 = vector.shape_cast %24 : vector<16x8xf32> to vector<2x8x8xf32>
    %26 = vector.extract_strided_slice %23 {offsets = [0, 32], sizes = [16, 8], strides = [1, 1]} : vector<16x96xf32> to vector<16x8xf32>
    %27 = vector.shape_cast %26 : vector<16x8xf32> to vector<2x8x8xf32>
    "tpu.trace_start"() <{level = 10 : i32, message = "bsd,btd->bst"}> : () -> ()
    %cst_17 = arith.constant dense<0.000000e+00> : vector<2x8x8xf32>
    %28 = tpu.matmul %25, %27, %cst_17 {dimension_numbers = #tpu.dot_dimension_numbers<[2], [2], [1], [1], [0, 0, 0, 1, 1, 1], [0], [0]>} : vector<2x8x8xf32>, vector<2x8x8xf32>, vector<2x8x8xf32> -> vector<2x8x8xf32>
    "tpu.trace_stop"() : () -> ()
    %29 = vector.extract_strided_slice %23 {offsets = [0, 8], sizes = [16, 8], strides = [1, 1]} : vector<16x96xf32> to vector<16x8xf32>
    %30 = vector.shape_cast %29 : vector<16x8xf32> to vector<2x8x8xf32>
    %31 = vector.extract_strided_slice %23 {offsets = [0, 40], sizes = [16, 8], strides = [1, 1]} : vector<16x96xf32> to vector<16x8xf32>
    %32 = vector.shape_cast %31 : vector<16x8xf32> to vector<2x8x8xf32>
    "tpu.trace_start"() <{level = 10 : i32, message = "bsd,btd->bst"}> : () -> ()
    %cst_18 = arith.constant dense<0.000000e+00> : vector<2x8x8xf32>
    %33 = tpu.matmul %30, %32, %cst_18 {dimension_numbers = #tpu.dot_dimension_numbers<[2], [2], [1], [1], [0, 0, 0, 1, 1, 1], [0], [0]>} : vector<2x8x8xf32>, vector<2x8x8xf32>, vector<2x8x8xf32> -> vector<2x8x8xf32>
    "tpu.trace_stop"() : () -> ()
    %34 = vector.extract_strided_slice %23 {offsets = [0, 16], sizes = [16, 8], strides = [1, 1]} : vector<16x96xf32> to vector<16x8xf32>
    %35 = vector.shape_cast %34 : vector<16x8xf32> to vector<2x8x8xf32>
    %36 = vector.extract_strided_slice %23 {offsets = [0, 48], sizes = [16, 8], strides = [1, 1]} : vector<16x96xf32> to vector<16x8xf32>
    %37 = vector.shape_cast %36 : vector<16x8xf32> to vector<2x8x8xf32>
    "tpu.trace_start"() <{level = 10 : i32, message = "bsd,btd->bst"}> : () -> ()
    %cst_19 = arith.constant dense<0.000000e+00> : vector<2x8x8xf32>
    %38 = tpu.matmul %35, %37, %cst_19 {dimension_numbers = #tpu.dot_dimension_numbers<[2], [2], [1], [1], [0, 0, 0, 1, 1, 1], [0], [0]>} : vector<2x8x8xf32>, vector<2x8x8xf32>, vector<2x8x8xf32> -> vector<2x8x8xf32>
    "tpu.trace_stop"() : () -> ()
    %39 = vector.extract_strided_slice %23 {offsets = [0, 24], sizes = [16, 8], strides = [1, 1]} : vector<16x96xf32> to vector<16x8xf32>
    %40 = vector.shape_cast %39 : vector<16x8xf32> to vector<2x8x8xf32>
    %41 = vector.extract_strided_slice %23 {offsets = [0, 56], sizes = [16, 8], strides = [1, 1]} : vector<16x96xf32> to vector<16x8xf32>
    %42 = vector.shape_cast %41 : vector<16x8xf32> to vector<2x8x8xf32>
    "tpu.trace_start"() <{level = 10 : i32, message = "bsd,btd->bst"}> : () -> ()
    %cst_20 = arith.constant dense<0.000000e+00> : vector<2x8x8xf32>
    %43 = tpu.matmul %40, %42, %cst_20 {dimension_numbers = #tpu.dot_dimension_numbers<[2], [2], [1], [1], [0, 0, 0, 1, 1, 1], [0], [0]>} : vector<2x8x8xf32>, vector<2x8x8xf32>, vector<2x8x8xf32> -> vector<2x8x8xf32>
    "tpu.trace_stop"() : () -> ()
    %44 = vector.shape_cast %28 : vector<2x8x8xf32> to vector<1x2x8x8xf32>
    %45 = vector.shape_cast %33 : vector<2x8x8xf32> to vector<1x2x8x8xf32>
    %46 = vector.shape_cast %38 : vector<2x8x8xf32> to vector<1x2x8x8xf32>
    %47 = vector.shape_cast %43 : vector<2x8x8xf32> to vector<1x2x8x8xf32>
    %48 = tpu.concatenate %44, %45, %46, %47 in 0 : vector<1x2x8x8xf32>, vector<1x2x8x8xf32>, vector<1x2x8x8xf32>, vector<1x2x8x8xf32> -> vector<4x2x8x8xf32>
    %49 = vector.broadcast %16 : vector<1x2x1x8xf32> to vector<4x2x8x8xf32>
    %50 = arith.addf %48, %49 : vector<4x2x8x8xf32>
    %cst_21 = arith.constant dense<0xFF800000> : vector<4x2x8xf32>
    %51 = vector.multi_reduction <maximumf>, %50, %cst_21 [3] : vector<4x2x8x8xf32> to vector<4x2x8xf32>
    %52 = vector.shape_cast %51 : vector<4x2x8xf32> to vector<4x2x8x1xf32>
    %53 = vector.broadcast %52 : vector<4x2x8x1xf32> to vector<4x2x8x8xf32>
    %54 = arith.subf %50, %53 : vector<4x2x8x8xf32>
    %55 = math.exp %54 : vector<4x2x8x8xf32>
    %cst_22 = arith.constant dense<0.000000e+00> : vector<4x2x8xf32>
    %56 = vector.multi_reduction <add>, %55, %cst_22 [3] : vector<4x2x8x8xf32> to vector<4x2x8xf32>
    %57 = vector.shape_cast %56 : vector<4x2x8xf32> to vector<4x2x8x1xf32>
    %58 = tpu.reciprocal %57 {approx = true} : vector<4x2x8x1xf32> -> vector<4x2x8x1xf32>
    %59 = vector.broadcast %58 : vector<4x2x8x1xf32> to vector<4x2x8x8xf32>
    %60 = arith.mulf %55, %59 : vector<4x2x8x8xf32>
    %61 = vector.extract_strided_slice %60 {offsets = [0, 0, 0, 0], sizes = [1, 2, 8, 8], strides = [1, 1, 1, 1]} : vector<4x2x8x8xf32> to vector<1x2x8x8xf32>
    %62 = vector.shape_cast %61 : vector<1x2x8x8xf32> to vector<2x8x8xf32>
    %63 = vector.extract_strided_slice %23 {offsets = [0, 64], sizes = [16, 8], strides = [1, 1]} : vector<16x96xf32> to vector<16x8xf32>
    %64 = vector.shape_cast %63 : vector<16x8xf32> to vector<2x8x8xf32>
    "tpu.trace_start"() <{level = 10 : i32, message = "bst,btd->bsd"}> : () -> ()
    %cst_23 = arith.constant dense<0.000000e+00> : vector<2x8x8xf32>
    %65 = tpu.matmul %62, %64, %cst_23 {dimension_numbers = #tpu.dot_dimension_numbers<[2], [1], [1], [2], [0, 0, 0, 1, 1, 2], [0], [0]>} : vector<2x8x8xf32>, vector<2x8x8xf32>, vector<2x8x8xf32> -> vector<2x8x8xf32>
    "tpu.trace_stop"() : () -> ()
    %66 = vector.extract_strided_slice %60 {offsets = [1, 0, 0, 0], sizes = [1, 2, 8, 8], strides = [1, 1, 1, 1]} : vector<4x2x8x8xf32> to vector<1x2x8x8xf32>
    %67 = vector.shape_cast %66 : vector<1x2x8x8xf32> to vector<2x8x8xf32>
    %68 = vector.extract_strided_slice %23 {offsets = [0, 72], sizes = [16, 8], strides = [1, 1]} : vector<16x96xf32> to vector<16x8xf32>
    %69 = vector.shape_cast %68 : vector<16x8xf32> to vector<2x8x8xf32>
    "tpu.trace_start"() <{level = 10 : i32, message = "bst,btd->bsd"}> : () -> ()
    %cst_24 = arith.constant dense<0.000000e+00> : vector<2x8x8xf32>
    %70 = tpu.matmul %67, %69, %cst_24 {dimension_numbers = #tpu.dot_dimension_numbers<[2], [1], [1], [2], [0, 0, 0, 1, 1, 2], [0], [0]>} : vector<2x8x8xf32>, vector<2x8x8xf32>, vector<2x8x8xf32> -> vector<2x8x8xf32>
    "tpu.trace_stop"() : () -> ()
    %71 = vector.extract_strided_slice %60 {offsets = [2, 0, 0, 0], sizes = [1, 2, 8, 8], strides = [1, 1, 1, 1]} : vector<4x2x8x8xf32> to vector<1x2x8x8xf32>
    %72 = vector.shape_cast %71 : vector<1x2x8x8xf32> to vector<2x8x8xf32>
    %73 = vector.extract_strided_slice %23 {offsets = [0, 80], sizes = [16, 8], strides = [1, 1]} : vector<16x96xf32> to vector<16x8xf32>
    %74 = vector.shape_cast %73 : vector<16x8xf32> to vector<2x8x8xf32>
    "tpu.trace_start"() <{level = 10 : i32, message = "bst,btd->bsd"}> : () -> ()
    %cst_25 = arith.constant dense<0.000000e+00> : vector<2x8x8xf32>
    %75 = tpu.matmul %72, %74, %cst_25 {dimension_numbers = #tpu.dot_dimension_numbers<[2], [1], [1], [2], [0, 0, 0, 1, 1, 2], [0], [0]>} : vector<2x8x8xf32>, vector<2x8x8xf32>, vector<2x8x8xf32> -> vector<2x8x8xf32>
    "tpu.trace_stop"() : () -> ()
    %76 = vector.extract_strided_slice %60 {offsets = [3, 0, 0, 0], sizes = [1, 2, 8, 8], strides = [1, 1, 1, 1]} : vector<4x2x8x8xf32> to vector<1x2x8x8xf32>
    %77 = vector.shape_cast %76 : vector<1x2x8x8xf32> to vector<2x8x8xf32>
    %78 = vector.extract_strided_slice %23 {offsets = [0, 88], sizes = [16, 8], strides = [1, 1]} : vector<16x96xf32> to vector<16x8xf32>
    %79 = vector.shape_cast %78 : vector<16x8xf32> to vector<2x8x8xf32>
    "tpu.trace_start"() <{level = 10 : i32, message = "bst,btd->bsd"}> : () -> ()
    %cst_26 = arith.constant dense<0.000000e+00> : vector<2x8x8xf32>
    %80 = tpu.matmul %77, %79, %cst_26 {dimension_numbers = #tpu.dot_dimension_numbers<[2], [1], [1], [2], [0, 0, 0, 1, 1, 2], [0], [0]>} : vector<2x8x8xf32>, vector<2x8x8xf32>, vector<2x8x8xf32> -> vector<2x8x8xf32>
    "tpu.trace_stop"() : () -> ()
    %81 = tpu.concatenate %65, %70, %75, %80 in 2 : vector<2x8x8xf32>, vector<2x8x8xf32>, vector<2x8x8xf32>, vector<2x8x8xf32> -> vector<2x8x32xf32>
    %82 = vector.shape_cast %81 : vector<2x8x32xf32> to vector<16x32xf32>
    %c0_27 = arith.constant 0 : index
    %c0_28 = arith.constant 0 : index
    %c0_29 = arith.constant 0 : index
    %83 = vector.load %arg6[%c0_27, %c0_28, %c0_29] : memref<4x32x32xf32, #tpu.memory_space<vmem>>, vector<1x32x32xf32>
    %84 = vector.shape_cast %83 : vector<1x32x32xf32> to vector<32x32xf32>
    %cst_30 = arith.constant dense<0.000000e+00> : vector<16x32xf32>
    %85 = tpu.matmul %82, %84, %cst_30 {dimension_numbers = #tpu.dot_dimension_numbers<[1], [0], [0], [1], [0, 0, 1, 1], [], []>} : vector<16x32xf32>, vector<32x32xf32>, vector<16x32xf32> -> vector<16x32xf32>
    %c0_31 = arith.constant 0 : index
    %c0_32 = arith.constant 0 : index
    %c0_33 = arith.constant 0 : index
    %86 = vector.load %arg7[%c0_31, %c0_32, %c0_33] : memref<4x1x32xf32, #tpu.memory_space<vmem>>, vector<1x1x32xf32>
    %87 = vector.shape_cast %86 : vector<1x1x32xf32> to vector<1x32xf32>
    %88 = vector.broadcast %87 : vector<1x32xf32> to vector<16x32xf32>
    %89 = arith.addf %85, %88 : vector<16x32xf32>
    %90 = arith.addf %8, %89 : vector<16x32xf32>
    %c0_34 = arith.constant 0 : index
    %c0_35 = arith.constant 0 : index
    %c0_36 = arith.constant 0 : index
    %91 = vector.load %arg12[%c0_34, %c0_35, %c0_36] : memref<4x1x32xf32, #tpu.memory_space<vmem>>, vector<1x1x32xf32>
    %92 = vector.shape_cast %91 : vector<1x1x32xf32> to vector<1x32xf32>
    %c0_37 = arith.constant 0 : index
    %c0_38 = arith.constant 0 : index
    %c0_39 = arith.constant 0 : index
    %93 = vector.load %arg13[%c0_37, %c0_38, %c0_39] : memref<4x1x32xf32, #tpu.memory_space<vmem>>, vector<1x1x32xf32>
    %94 = vector.shape_cast %93 : vector<1x1x32xf32> to vector<1x32xf32>
    %cst_40 = arith.constant dense<0.000000e+00> : vector<16xf32>
    %95 = vector.multi_reduction <add>, %90, %cst_40 [1] : vector<16x32xf32> to vector<16xf32>
    %96 = vector.shape_cast %95 : vector<16xf32> to vector<16x1xf32>
    %cst_41 = arith.constant 3.200000e+01 : f32
    %97 = vector.broadcast %cst_41 : f32 to vector<16x1xf32>
    %98 = arith.divf %96, %97 : vector<16x1xf32>
    %99 = vector.broadcast %98 : vector<16x1xf32> to vector<16x32xf32>
    %100 = arith.subf %90, %99 : vector<16x32xf32>
    %101 = arith.mulf %100, %100 : vector<16x32xf32>
    %cst_42 = arith.constant dense<0.000000e+00> : vector<16xf32>
    %102 = vector.multi_reduction <add>, %101, %cst_42 [1] : vector<16x32xf32> to vector<16xf32>
    %103 = vector.shape_cast %102 : vector<16xf32> to vector<16x1xf32>
    %cst_43 = arith.constant 3.200000e+01 : f32
    %104 = vector.broadcast %cst_43 : f32 to vector<16x1xf32>
    %105 = arith.divf %103, %104 : vector<16x1xf32>
    %106 = vector.broadcast %98 : vector<16x1xf32> to vector<16x32xf32>
    %107 = arith.subf %90, %106 : vector<16x32xf32>
    %cst_44 = arith.constant 9.99999974E-6 : f32
    %108 = vector.broadcast %cst_44 : f32 to vector<16x1xf32>
    %109 = arith.addf %105, %108 : vector<16x1xf32>
    %110 = math.rsqrt %109 : vector<16x1xf32>
    %111 = vector.broadcast %110 : vector<16x1xf32> to vector<16x32xf32>
    %112 = arith.mulf %107, %111 : vector<16x32xf32>
    %113 = vector.broadcast %92 : vector<1x32xf32> to vector<16x32xf32>
    %114 = arith.mulf %112, %113 : vector<16x32xf32>
    %115 = vector.broadcast %94 : vector<1x32xf32> to vector<16x32xf32>
    %116 = arith.addf %114, %115 : vector<16x32xf32>
    %c0_45 = arith.constant 0 : index
    %c0_46 = arith.constant 0 : index
    %c0_47 = arith.constant 0 : index
    %117 = vector.load %arg8[%c0_45, %c0_46, %c0_47] : memref<4x32x64xf32, #tpu.memory_space<vmem>>, vector<1x32x64xf32>
    %118 = vector.shape_cast %117 : vector<1x32x64xf32> to vector<32x64xf32>
    %cst_48 = arith.constant dense<0.000000e+00> : vector<16x64xf32>
    %119 = tpu.matmul %116, %118, %cst_48 {dimension_numbers = #tpu.dot_dimension_numbers<[1], [0], [0], [1], [0, 0, 1, 1], [], []>} : vector<16x32xf32>, vector<32x64xf32>, vector<16x64xf32> -> vector<16x64xf32>
    %c0_49 = arith.constant 0 : index
    %c0_50 = arith.constant 0 : index
    %c0_51 = arith.constant 0 : index
    %120 = vector.load %arg9[%c0_49, %c0_50, %c0_51] : memref<4x1x64xf32, #tpu.memory_space<vmem>>, vector<1x1x64xf32>
    %121 = vector.shape_cast %120 : vector<1x1x64xf32> to vector<1x64xf32>
    %122 = vector.broadcast %121 : vector<1x64xf32> to vector<16x64xf32>
    %123 = arith.addf %119, %122 : vector<16x64xf32>
    %cst_52 = arith.constant 0.000000e+00 : f32
    %124 = vector.broadcast %cst_52 : f32 to vector<16x64xf32>
    %125 = arith.maximumf %123, %124 : vector<16x64xf32>
    %c0_53 = arith.constant 0 : index
    %c0_54 = arith.constant 0 : index
    %c0_55 = arith.constant 0 : index
    %126 = vector.load %arg10[%c0_53, %c0_54, %c0_55] : memref<4x64x32xf32, #tpu.memory_space<vmem>>, vector<1x64x32xf32>
    %127 = vector.shape_cast %126 : vector<1x64x32xf32> to vector<64x32xf32>
    %cst_56 = arith.constant dense<0.000000e+00> : vector<16x32xf32>
    %128 = tpu.matmul %125, %127, %cst_56 {dimension_numbers = #tpu.dot_dimension_numbers<[1], [0], [0], [1], [0, 0, 1, 1], [], []>} : vector<16x64xf32>, vector<64x32xf32>, vector<16x32xf32> -> vector<16x32xf32>
    %c0_57 = arith.constant 0 : index
    %c0_58 = arith.constant 0 : index
    %c0_59 = arith.constant 0 : index
    %129 = vector.load %arg11[%c0_57, %c0_58, %c0_59] : memref<4x1x32xf32, #tpu.memory_space<vmem>>, vector<1x1x32xf32>
    %130 = vector.shape_cast %129 : vector<1x1x32xf32> to vector<1x32xf32>
    %131 = vector.broadcast %130 : vector<1x32xf32> to vector<16x32xf32>
    %132 = arith.addf %128, %131 : vector<16x32xf32>
    %133 = arith.addf %116, %132 : vector<16x32xf32>
    %c0_60 = arith.constant 0 : index
    %c0_61 = arith.constant 0 : index
    %c0_62 = arith.constant 0 : index
    %134 = vector.load %arg14[%c0_60, %c0_61, %c0_62] : memref<4x1x32xf32, #tpu.memory_space<vmem>>, vector<1x1x32xf32>
    %135 = vector.shape_cast %134 : vector<1x1x32xf32> to vector<1x32xf32>
    %c0_63 = arith.constant 0 : index
    %c0_64 = arith.constant 0 : index
    %c0_65 = arith.constant 0 : index
    %136 = vector.load %arg15[%c0_63, %c0_64, %c0_65] : memref<4x1x32xf32, #tpu.memory_space<vmem>>, vector<1x1x32xf32>
    %137 = vector.shape_cast %136 : vector<1x1x32xf32> to vector<1x32xf32>
    %cst_66 = arith.constant dense<0.000000e+00> : vector<16xf32>
    %138 = vector.multi_reduction <add>, %133, %cst_66 [1] : vector<16x32xf32> to vector<16xf32>
    %139 = vector.shape_cast %138 : vector<16xf32> to vector<16x1xf32>
    %cst_67 = arith.constant 3.200000e+01 : f32
    %140 = vector.broadcast %cst_67 : f32 to vector<16x1xf32>
    %141 = arith.divf %139, %140 : vector<16x1xf32>
    %142 = vector.broadcast %141 : vector<16x1xf32> to vector<16x32xf32>
    %143 = arith.subf %133, %142 : vector<16x32xf32>
    %144 = arith.mulf %143, %143 : vector<16x32xf32>
    %cst_68 = arith.constant dense<0.000000e+00> : vector<16xf32>
    %145 = vector.multi_reduction <add>, %144, %cst_68 [1] : vector<16x32xf32> to vector<16xf32>
    %146 = vector.shape_cast %145 : vector<16xf32> to vector<16x1xf32>
    %cst_69 = arith.constant 3.200000e+01 : f32
    %147 = vector.broadcast %cst_69 : f32 to vector<16x1xf32>
    %148 = arith.divf %146, %147 : vector<16x1xf32>
    %149 = vector.broadcast %141 : vector<16x1xf32> to vector<16x32xf32>
    %150 = arith.subf %133, %149 : vector<16x32xf32>
    %cst_70 = arith.constant 9.99999974E-6 : f32
    %151 = vector.broadcast %cst_70 : f32 to vector<16x1xf32>
    %152 = arith.addf %148, %151 : vector<16x1xf32>
    %153 = math.rsqrt %152 : vector<16x1xf32>
    %154 = vector.broadcast %153 : vector<16x1xf32> to vector<16x32xf32>
    %155 = arith.mulf %150, %154 : vector<16x32xf32>
    %156 = vector.broadcast %135 : vector<1x32xf32> to vector<16x32xf32>
    %157 = arith.mulf %155, %156 : vector<16x32xf32>
    %158 = vector.broadcast %137 : vector<1x32xf32> to vector<16x32xf32>
    %159 = arith.addf %157, %158 : vector<16x32xf32>
    %c1_71 = arith.constant 1 : index
    %c0_72 = arith.constant 0 : index
    %c0_73 = arith.constant 0 : index
    %160 = vector.load %arg4[%c1_71, %c0_72, %c0_73] : memref<4x32x96xf32, #tpu.memory_space<vmem>>, vector<1x32x96xf32>
    %161 = vector.shape_cast %160 : vector<1x32x96xf32> to vector<32x96xf32>
    %cst_74 = arith.constant dense<0.000000e+00> : vector<16x96xf32>
    %162 = tpu.matmul %159, %161, %cst_74 {dimension_numbers = #tpu.dot_dimension_numbers<[1], [0], [0], [1], [0, 0, 1, 1], [], []>} : vector<16x32xf32>, vector<32x96xf32>, vector<16x96xf32> -> vector<16x96xf32>
    %c1_75 = arith.constant 1 : index
    %c0_76 = arith.constant 0 : index
    %c0_77 = arith.constant 0 : index
    %163 = vector.load %arg5[%c1_75, %c0_76, %c0_77] : memref<4x1x96xf32, #tpu.memory_space<vmem>>, vector<1x1x96xf32>
    %164 = vector.shape_cast %163 : vector<1x1x96xf32> to vector<1x96xf32>
    %165 = vector.broadcast %164 : vector<1x96xf32> to vector<16x96xf32>
    %166 = arith.addf %162, %165 : vector<16x96xf32>
    %167 = vector.extract_strided_slice %166 {offsets = [0, 0], sizes = [16, 8], strides = [1, 1]} : vector<16x96xf32> to vector<16x8xf32>
    %168 = vector.shape_cast %167 : vector<16x8xf32> to vector<2x8x8xf32>
    %169 = vector.extract_strided_slice %166 {offsets = [0, 32], sizes = [16, 8], strides = [1, 1]} : vector<16x96xf32> to vector<16x8xf32>
    %170 = vector.shape_cast %169 : vector<16x8xf32> to vector<2x8x8xf32>
    "tpu.trace_start"() <{level = 10 : i32, message = "bsd,btd->bst"}> : () -> ()
    %cst_78 = arith.constant dense<0.000000e+00> : vector<2x8x8xf32>
    %171 = tpu.matmul %168, %170, %cst_78 {dimension_numbers = #tpu.dot_dimension_numbers<[2], [2], [1], [1], [0, 0, 0, 1, 1, 1], [0], [0]>} : vector<2x8x8xf32>, vector<2x8x8xf32>, vector<2x8x8xf32> -> vector<2x8x8xf32>
    "tpu.trace_stop"() : () -> ()
    %172 = vector.extract_strided_slice %166 {offsets = [0, 8], sizes = [16, 8], strides = [1, 1]} : vector<16x96xf32> to vector<16x8xf32>
    %173 = vector.shape_cast %172 : vector<16x8xf32> to vector<2x8x8xf32>
    %174 = vector.extract_strided_slice %166 {offsets = [0, 40], sizes = [16, 8], strides = [1, 1]} : vector<16x96xf32> to vector<16x8xf32>
    %175 = vector.shape_cast %174 : vector<16x8xf32> to vector<2x8x8xf32>
    "tpu.trace_start"() <{level = 10 : i32, message = "bsd,btd->bst"}> : () -> ()
    %cst_79 = arith.constant dense<0.000000e+00> : vector<2x8x8xf32>
    %176 = tpu.matmul %173, %175, %cst_79 {dimension_numbers = #tpu.dot_dimension_numbers<[2], [2], [1], [1], [0, 0, 0, 1, 1, 1], [0], [0]>} : vector<2x8x8xf32>, vector<2x8x8xf32>, vector<2x8x8xf32> -> vector<2x8x8xf32>
    "tpu.trace_stop"() : () -> ()
    %177 = vector.extract_strided_slice %166 {offsets = [0, 16], sizes = [16, 8], strides = [1, 1]} : vector<16x96xf32> to vector<16x8xf32>
    %178 = vector.shape_cast %177 : vector<16x8xf32> to vector<2x8x8xf32>
    %179 = vector.extract_strided_slice %166 {offsets = [0, 48], sizes = [16, 8], strides = [1, 1]} : vector<16x96xf32> to vector<16x8xf32>
    %180 = vector.shape_cast %179 : vector<16x8xf32> to vector<2x8x8xf32>
    "tpu.trace_start"() <{level = 10 : i32, message = "bsd,btd->bst"}> : () -> ()
    %cst_80 = arith.constant dense<0.000000e+00> : vector<2x8x8xf32>
    %181 = tpu.matmul %178, %180, %cst_80 {dimension_numbers = #tpu.dot_dimension_numbers<[2], [2], [1], [1], [0, 0, 0, 1, 1, 1], [0], [0]>} : vector<2x8x8xf32>, vector<2x8x8xf32>, vector<2x8x8xf32> -> vector<2x8x8xf32>
    "tpu.trace_stop"() : () -> ()
    %182 = vector.extract_strided_slice %166 {offsets = [0, 24], sizes = [16, 8], strides = [1, 1]} : vector<16x96xf32> to vector<16x8xf32>
    %183 = vector.shape_cast %182 : vector<16x8xf32> to vector<2x8x8xf32>
    %184 = vector.extract_strided_slice %166 {offsets = [0, 56], sizes = [16, 8], strides = [1, 1]} : vector<16x96xf32> to vector<16x8xf32>
    %185 = vector.shape_cast %184 : vector<16x8xf32> to vector<2x8x8xf32>
    "tpu.trace_start"() <{level = 10 : i32, message = "bsd,btd->bst"}> : () -> ()
    %cst_81 = arith.constant dense<0.000000e+00> : vector<2x8x8xf32>
    %186 = tpu.matmul %183, %185, %cst_81 {dimension_numbers = #tpu.dot_dimension_numbers<[2], [2], [1], [1], [0, 0, 0, 1, 1, 1], [0], [0]>} : vector<2x8x8xf32>, vector<2x8x8xf32>, vector<2x8x8xf32> -> vector<2x8x8xf32>
    "tpu.trace_stop"() : () -> ()
    %187 = vector.shape_cast %171 : vector<2x8x8xf32> to vector<1x2x8x8xf32>
    %188 = vector.shape_cast %176 : vector<2x8x8xf32> to vector<1x2x8x8xf32>
    %189 = vector.shape_cast %181 : vector<2x8x8xf32> to vector<1x2x8x8xf32>
    %190 = vector.shape_cast %186 : vector<2x8x8xf32> to vector<1x2x8x8xf32>
    %191 = tpu.concatenate %187, %188, %189, %190 in 0 : vector<1x2x8x8xf32>, vector<1x2x8x8xf32>, vector<1x2x8x8xf32>, vector<1x2x8x8xf32> -> vector<4x2x8x8xf32>
    %192 = vector.broadcast %16 : vector<1x2x1x8xf32> to vector<4x2x8x8xf32>
    %193 = arith.addf %191, %192 : vector<4x2x8x8xf32>
    %cst_82 = arith.constant dense<0xFF800000> : vector<4x2x8xf32>
    %194 = vector.multi_reduction <maximumf>, %193, %cst_82 [3] : vector<4x2x8x8xf32> to vector<4x2x8xf32>
    %195 = vector.shape_cast %194 : vector<4x2x8xf32> to vector<4x2x8x1xf32>
    %196 = vector.broadcast %195 : vector<4x2x8x1xf32> to vector<4x2x8x8xf32>
    %197 = arith.subf %193, %196 : vector<4x2x8x8xf32>
    %198 = math.exp %197 : vector<4x2x8x8xf32>
    %cst_83 = arith.constant dense<0.000000e+00> : vector<4x2x8xf32>
    %199 = vector.multi_reduction <add>, %198, %cst_83 [3] : vector<4x2x8x8xf32> to vector<4x2x8xf32>
    %200 = vector.shape_cast %199 : vector<4x2x8xf32> to vector<4x2x8x1xf32>
    %201 = tpu.reciprocal %200 {approx = true} : vector<4x2x8x1xf32> -> vector<4x2x8x1xf32>
    %202 = vector.broadcast %201 : vector<4x2x8x1xf32> to vector<4x2x8x8xf32>
    %203 = arith.mulf %198, %202 : vector<4x2x8x8xf32>
    %204 = vector.extract_strided_slice %203 {offsets = [0, 0, 0, 0], sizes = [1, 2, 8, 8], strides = [1, 1, 1, 1]} : vector<4x2x8x8xf32> to vector<1x2x8x8xf32>
    %205 = vector.shape_cast %204 : vector<1x2x8x8xf32> to vector<2x8x8xf32>
    %206 = vector.extract_strided_slice %166 {offsets = [0, 64], sizes = [16, 8], strides = [1, 1]} : vector<16x96xf32> to vector<16x8xf32>
    %207 = vector.shape_cast %206 : vector<16x8xf32> to vector<2x8x8xf32>
    "tpu.trace_start"() <{level = 10 : i32, message = "bst,btd->bsd"}> : () -> ()
    %cst_84 = arith.constant dense<0.000000e+00> : vector<2x8x8xf32>
    %208 = tpu.matmul %205, %207, %cst_84 {dimension_numbers = #tpu.dot_dimension_numbers<[2], [1], [1], [2], [0, 0, 0, 1, 1, 2], [0], [0]>} : vector<2x8x8xf32>, vector<2x8x8xf32>, vector<2x8x8xf32> -> vector<2x8x8xf32>
    "tpu.trace_stop"() : () -> ()
    %209 = vector.extract_strided_slice %203 {offsets = [1, 0, 0, 0], sizes = [1, 2, 8, 8], strides = [1, 1, 1, 1]} : vector<4x2x8x8xf32> to vector<1x2x8x8xf32>
    %210 = vector.shape_cast %209 : vector<1x2x8x8xf32> to vector<2x8x8xf32>
    %211 = vector.extract_strided_slice %166 {offsets = [0, 72], sizes = [16, 8], strides = [1, 1]} : vector<16x96xf32> to vector<16x8xf32>
    %212 = vector.shape_cast %211 : vector<16x8xf32> to vector<2x8x8xf32>
    "tpu.trace_start"() <{level = 10 : i32, message = "bst,btd->bsd"}> : () -> ()
    %cst_85 = arith.constant dense<0.000000e+00> : vector<2x8x8xf32>
    %213 = tpu.matmul %210, %212, %cst_85 {dimension_numbers = #tpu.dot_dimension_numbers<[2], [1], [1], [2], [0, 0, 0, 1, 1, 2], [0], [0]>} : vector<2x8x8xf32>, vector<2x8x8xf32>, vector<2x8x8xf32> -> vector<2x8x8xf32>
    "tpu.trace_stop"() : () -> ()
    %214 = vector.extract_strided_slice %203 {offsets = [2, 0, 0, 0], sizes = [1, 2, 8, 8], strides = [1, 1, 1, 1]} : vector<4x2x8x8xf32> to vector<1x2x8x8xf32>
    %215 = vector.shape_cast %214 : vector<1x2x8x8xf32> to vector<2x8x8xf32>
    %216 = vector.extract_strided_slice %166 {offsets = [0, 80], sizes = [16, 8], strides = [1, 1]} : vector<16x96xf32> to vector<16x8xf32>
    %217 = vector.shape_cast %216 : vector<16x8xf32> to vector<2x8x8xf32>
    "tpu.trace_start"() <{level = 10 : i32, message = "bst,btd->bsd"}> : () -> ()
    %cst_86 = arith.constant dense<0.000000e+00> : vector<2x8x8xf32>
    %218 = tpu.matmul %215, %217, %cst_86 {dimension_numbers = #tpu.dot_dimension_numbers<[2], [1], [1], [2], [0, 0, 0, 1, 1, 2], [0], [0]>} : vector<2x8x8xf32>, vector<2x8x8xf32>, vector<2x8x8xf32> -> vector<2x8x8xf32>
    "tpu.trace_stop"() : () -> ()
    %219 = vector.extract_strided_slice %203 {offsets = [3, 0, 0, 0], sizes = [1, 2, 8, 8], strides = [1, 1, 1, 1]} : vector<4x2x8x8xf32> to vector<1x2x8x8xf32>
    %220 = vector.shape_cast %219 : vector<1x2x8x8xf32> to vector<2x8x8xf32>
    %221 = vector.extract_strided_slice %166 {offsets = [0, 88], sizes = [16, 8], strides = [1, 1]} : vector<16x96xf32> to vector<16x8xf32>
    %222 = vector.shape_cast %221 : vector<16x8xf32> to vector<2x8x8xf32>
    "tpu.trace_start"() <{level = 10 : i32, message = "bst,btd->bsd"}> : () -> ()
    %cst_87 = arith.constant dense<0.000000e+00> : vector<2x8x8xf32>
    %223 = tpu.matmul %220, %222, %cst_87 {dimension_numbers = #tpu.dot_dimension_numbers<[2], [1], [1], [2], [0, 0, 0, 1, 1, 2], [0], [0]>} : vector<2x8x8xf32>, vector<2x8x8xf32>, vector<2x8x8xf32> -> vector<2x8x8xf32>
    "tpu.trace_stop"() : () -> ()
    %224 = tpu.concatenate %208, %213, %218, %223 in 2 : vector<2x8x8xf32>, vector<2x8x8xf32>, vector<2x8x8xf32>, vector<2x8x8xf32> -> vector<2x8x32xf32>
    %225 = vector.shape_cast %224 : vector<2x8x32xf32> to vector<16x32xf32>
    %c1_88 = arith.constant 1 : index
    %c0_89 = arith.constant 0 : index
    %c0_90 = arith.constant 0 : index
    %226 = vector.load %arg6[%c1_88, %c0_89, %c0_90] : memref<4x32x32xf32, #tpu.memory_space<vmem>>, vector<1x32x32xf32>
    %227 = vector.shape_cast %226 : vector<1x32x32xf32> to vector<32x32xf32>
    %cst_91 = arith.constant dense<0.000000e+00> : vector<16x32xf32>
    %228 = tpu.matmul %225, %227, %cst_91 {dimension_numbers = #tpu.dot_dimension_numbers<[1], [0], [0], [1], [0, 0, 1, 1], [], []>} : vector<16x32xf32>, vector<32x32xf32>, vector<16x32xf32> -> vector<16x32xf32>
    %c1_92 = arith.constant 1 : index
    %c0_93 = arith.constant 0 : index
    %c0_94 = arith.constant 0 : index
    %229 = vector.load %arg7[%c1_92, %c0_93, %c0_94] : memref<4x1x32xf32, #tpu.memory_space<vmem>>, vector<1x1x32xf32>
    %230 = vector.shape_cast %229 : vector<1x1x32xf32> to vector<1x32xf32>
    %231 = vector.broadcast %230 : vector<1x32xf32> to vector<16x32xf32>
    %232 = arith.addf %228, %231 : vector<16x32xf32>
    %233 = arith.addf %159, %232 : vector<16x32xf32>
    %c1_95 = arith.constant 1 : index
    %c0_96 = arith.constant 0 : index
    %c0_97 = arith.constant 0 : index
    %234 = vector.load %arg12[%c1_95, %c0_96, %c0_97] : memref<4x1x32xf32, #tpu.memory_space<vmem>>, vector<1x1x32xf32>
    %235 = vector.shape_cast %234 : vector<1x1x32xf32> to vector<1x32xf32>
    %c1_98 = arith.constant 1 : index
    %c0_99 = arith.constant 0 : index
    %c0_100 = arith.constant 0 : index
    %236 = vector.load %arg13[%c1_98, %c0_99, %c0_100] : memref<4x1x32xf32, #tpu.memory_space<vmem>>, vector<1x1x32xf32>
    %237 = vector.shape_cast %236 : vector<1x1x32xf32> to vector<1x32xf32>
    %cst_101 = arith.constant dense<0.000000e+00> : vector<16xf32>
    %238 = vector.multi_reduction <add>, %233, %cst_101 [1] : vector<16x32xf32> to vector<16xf32>
    %239 = vector.shape_cast %238 : vector<16xf32> to vector<16x1xf32>
    %cst_102 = arith.constant 3.200000e+01 : f32
    %240 = vector.broadcast %cst_102 : f32 to vector<16x1xf32>
    %241 = arith.divf %239, %240 : vector<16x1xf32>
    %242 = vector.broadcast %241 : vector<16x1xf32> to vector<16x32xf32>
    %243 = arith.subf %233, %242 : vector<16x32xf32>
    %244 = arith.mulf %243, %243 : vector<16x32xf32>
    %cst_103 = arith.constant dense<0.000000e+00> : vector<16xf32>
    %245 = vector.multi_reduction <add>, %244, %cst_103 [1] : vector<16x32xf32> to vector<16xf32>
    %246 = vector.shape_cast %245 : vector<16xf32> to vector<16x1xf32>
    %cst_104 = arith.constant 3.200000e+01 : f32
    %247 = vector.broadcast %cst_104 : f32 to vector<16x1xf32>
    %248 = arith.divf %246, %247 : vector<16x1xf32>
    %249 = vector.broadcast %241 : vector<16x1xf32> to vector<16x32xf32>
    %250 = arith.subf %233, %249 : vector<16x32xf32>
    %cst_105 = arith.constant 9.99999974E-6 : f32
    %251 = vector.broadcast %cst_105 : f32 to vector<16x1xf32>
    %252 = arith.addf %248, %251 : vector<16x1xf32>
    %253 = math.rsqrt %252 : vector<16x1xf32>
    %254 = vector.broadcast %253 : vector<16x1xf32> to vector<16x32xf32>
    %255 = arith.mulf %250, %254 : vector<16x32xf32>
    %256 = vector.broadcast %235 : vector<1x32xf32> to vector<16x32xf32>
    %257 = arith.mulf %255, %256 : vector<16x32xf32>
    %258 = vector.broadcast %237 : vector<1x32xf32> to vector<16x32xf32>
    %259 = arith.addf %257, %258 : vector<16x32xf32>
    %c1_106 = arith.constant 1 : index
    %c0_107 = arith.constant 0 : index
    %c0_108 = arith.constant 0 : index
    %260 = vector.load %arg8[%c1_106, %c0_107, %c0_108] : memref<4x32x64xf32, #tpu.memory_space<vmem>>, vector<1x32x64xf32>
    %261 = vector.shape_cast %260 : vector<1x32x64xf32> to vector<32x64xf32>
    %cst_109 = arith.constant dense<0.000000e+00> : vector<16x64xf32>
    %262 = tpu.matmul %259, %261, %cst_109 {dimension_numbers = #tpu.dot_dimension_numbers<[1], [0], [0], [1], [0, 0, 1, 1], [], []>} : vector<16x32xf32>, vector<32x64xf32>, vector<16x64xf32> -> vector<16x64xf32>
    %c1_110 = arith.constant 1 : index
    %c0_111 = arith.constant 0 : index
    %c0_112 = arith.constant 0 : index
    %263 = vector.load %arg9[%c1_110, %c0_111, %c0_112] : memref<4x1x64xf32, #tpu.memory_space<vmem>>, vector<1x1x64xf32>
    %264 = vector.shape_cast %263 : vector<1x1x64xf32> to vector<1x64xf32>
    %265 = vector.broadcast %264 : vector<1x64xf32> to vector<16x64xf32>
    %266 = arith.addf %262, %265 : vector<16x64xf32>
    %cst_113 = arith.constant 0.000000e+00 : f32
    %267 = vector.broadcast %cst_113 : f32 to vector<16x64xf32>
    %268 = arith.maximumf %266, %267 : vector<16x64xf32>
    %c1_114 = arith.constant 1 : index
    %c0_115 = arith.constant 0 : index
    %c0_116 = arith.constant 0 : index
    %269 = vector.load %arg10[%c1_114, %c0_115, %c0_116] : memref<4x64x32xf32, #tpu.memory_space<vmem>>, vector<1x64x32xf32>
    %270 = vector.shape_cast %269 : vector<1x64x32xf32> to vector<64x32xf32>
    %cst_117 = arith.constant dense<0.000000e+00> : vector<16x32xf32>
    %271 = tpu.matmul %268, %270, %cst_117 {dimension_numbers = #tpu.dot_dimension_numbers<[1], [0], [0], [1], [0, 0, 1, 1], [], []>} : vector<16x64xf32>, vector<64x32xf32>, vector<16x32xf32> -> vector<16x32xf32>
    %c1_118 = arith.constant 1 : index
    %c0_119 = arith.constant 0 : index
    %c0_120 = arith.constant 0 : index
    %272 = vector.load %arg11[%c1_118, %c0_119, %c0_120] : memref<4x1x32xf32, #tpu.memory_space<vmem>>, vector<1x1x32xf32>
    %273 = vector.shape_cast %272 : vector<1x1x32xf32> to vector<1x32xf32>
    %274 = vector.broadcast %273 : vector<1x32xf32> to vector<16x32xf32>
    %275 = arith.addf %271, %274 : vector<16x32xf32>
    %276 = arith.addf %259, %275 : vector<16x32xf32>
    %c1_121 = arith.constant 1 : index
    %c0_122 = arith.constant 0 : index
    %c0_123 = arith.constant 0 : index
    %277 = vector.load %arg14[%c1_121, %c0_122, %c0_123] : memref<4x1x32xf32, #tpu.memory_space<vmem>>, vector<1x1x32xf32>
    %278 = vector.shape_cast %277 : vector<1x1x32xf32> to vector<1x32xf32>
    %c1_124 = arith.constant 1 : index
    %c0_125 = arith.constant 0 : index
    %c0_126 = arith.constant 0 : index
    %279 = vector.load %arg15[%c1_124, %c0_125, %c0_126] : memref<4x1x32xf32, #tpu.memory_space<vmem>>, vector<1x1x32xf32>
    %280 = vector.shape_cast %279 : vector<1x1x32xf32> to vector<1x32xf32>
    %cst_127 = arith.constant dense<0.000000e+00> : vector<16xf32>
    %281 = vector.multi_reduction <add>, %276, %cst_127 [1] : vector<16x32xf32> to vector<16xf32>
    %282 = vector.shape_cast %281 : vector<16xf32> to vector<16x1xf32>
    %cst_128 = arith.constant 3.200000e+01 : f32
    %283 = vector.broadcast %cst_128 : f32 to vector<16x1xf32>
    %284 = arith.divf %282, %283 : vector<16x1xf32>
    %285 = vector.broadcast %284 : vector<16x1xf32> to vector<16x32xf32>
    %286 = arith.subf %276, %285 : vector<16x32xf32>
    %287 = arith.mulf %286, %286 : vector<16x32xf32>
    %cst_129 = arith.constant dense<0.000000e+00> : vector<16xf32>
    %288 = vector.multi_reduction <add>, %287, %cst_129 [1] : vector<16x32xf32> to vector<16xf32>
    %289 = vector.shape_cast %288 : vector<16xf32> to vector<16x1xf32>
    %cst_130 = arith.constant 3.200000e+01 : f32
    %290 = vector.broadcast %cst_130 : f32 to vector<16x1xf32>
    %291 = arith.divf %289, %290 : vector<16x1xf32>
    %292 = vector.broadcast %284 : vector<16x1xf32> to vector<16x32xf32>
    %293 = arith.subf %276, %292 : vector<16x32xf32>
    %cst_131 = arith.constant 9.99999974E-6 : f32
    %294 = vector.broadcast %cst_131 : f32 to vector<16x1xf32>
    %295 = arith.addf %291, %294 : vector<16x1xf32>
    %296 = math.rsqrt %295 : vector<16x1xf32>
    %297 = vector.broadcast %296 : vector<16x1xf32> to vector<16x32xf32>
    %298 = arith.mulf %293, %297 : vector<16x32xf32>
    %299 = vector.broadcast %278 : vector<1x32xf32> to vector<16x32xf32>
    %300 = arith.mulf %298, %299 : vector<16x32xf32>
    %301 = vector.broadcast %280 : vector<1x32xf32> to vector<16x32xf32>
    %302 = arith.addf %300, %301 : vector<16x32xf32>
    %c2 = arith.constant 2 : index
    %c0_132 = arith.constant 0 : index
    %c0_133 = arith.constant 0 : index
    %303 = vector.load %arg4[%c2, %c0_132, %c0_133] : memref<4x32x96xf32, #tpu.memory_space<vmem>>, vector<1x32x96xf32>
    %304 = vector.shape_cast %303 : vector<1x32x96xf32> to vector<32x96xf32>
    %cst_134 = arith.constant dense<0.000000e+00> : vector<16x96xf32>
    %305 = tpu.matmul %302, %304, %cst_134 {dimension_numbers = #tpu.dot_dimension_numbers<[1], [0], [0], [1], [0, 0, 1, 1], [], []>} : vector<16x32xf32>, vector<32x96xf32>, vector<16x96xf32> -> vector<16x96xf32>
    %c2_135 = arith.constant 2 : index
    %c0_136 = arith.constant 0 : index
    %c0_137 = arith.constant 0 : index
    %306 = vector.load %arg5[%c2_135, %c0_136, %c0_137] : memref<4x1x96xf32, #tpu.memory_space<vmem>>, vector<1x1x96xf32>
    %307 = vector.shape_cast %306 : vector<1x1x96xf32> to vector<1x96xf32>
    %308 = vector.broadcast %307 : vector<1x96xf32> to vector<16x96xf32>
    %309 = arith.addf %305, %308 : vector<16x96xf32>
    %310 = vector.extract_strided_slice %309 {offsets = [0, 0], sizes = [16, 8], strides = [1, 1]} : vector<16x96xf32> to vector<16x8xf32>
    %311 = vector.shape_cast %310 : vector<16x8xf32> to vector<2x8x8xf32>
    %312 = vector.extract_strided_slice %309 {offsets = [0, 32], sizes = [16, 8], strides = [1, 1]} : vector<16x96xf32> to vector<16x8xf32>
    %313 = vector.shape_cast %312 : vector<16x8xf32> to vector<2x8x8xf32>
    "tpu.trace_start"() <{level = 10 : i32, message = "bsd,btd->bst"}> : () -> ()
    %cst_138 = arith.constant dense<0.000000e+00> : vector<2x8x8xf32>
    %314 = tpu.matmul %311, %313, %cst_138 {dimension_numbers = #tpu.dot_dimension_numbers<[2], [2], [1], [1], [0, 0, 0, 1, 1, 1], [0], [0]>} : vector<2x8x8xf32>, vector<2x8x8xf32>, vector<2x8x8xf32> -> vector<2x8x8xf32>
    "tpu.trace_stop"() : () -> ()
    %315 = vector.extract_strided_slice %309 {offsets = [0, 8], sizes = [16, 8], strides = [1, 1]} : vector<16x96xf32> to vector<16x8xf32>
    %316 = vector.shape_cast %315 : vector<16x8xf32> to vector<2x8x8xf32>
    %317 = vector.extract_strided_slice %309 {offsets = [0, 40], sizes = [16, 8], strides = [1, 1]} : vector<16x96xf32> to vector<16x8xf32>
    %318 = vector.shape_cast %317 : vector<16x8xf32> to vector<2x8x8xf32>
    "tpu.trace_start"() <{level = 10 : i32, message = "bsd,btd->bst"}> : () -> ()
    %cst_139 = arith.constant dense<0.000000e+00> : vector<2x8x8xf32>
    %319 = tpu.matmul %316, %318, %cst_139 {dimension_numbers = #tpu.dot_dimension_numbers<[2], [2], [1], [1], [0, 0, 0, 1, 1, 1], [0], [0]>} : vector<2x8x8xf32>, vector<2x8x8xf32>, vector<2x8x8xf32> -> vector<2x8x8xf32>
    "tpu.trace_stop"() : () -> ()
    %320 = vector.extract_strided_slice %309 {offsets = [0, 16], sizes = [16, 8], strides = [1, 1]} : vector<16x96xf32> to vector<16x8xf32>
    %321 = vector.shape_cast %320 : vector<16x8xf32> to vector<2x8x8xf32>
    %322 = vector.extract_strided_slice %309 {offsets = [0, 48], sizes = [16, 8], strides = [1, 1]} : vector<16x96xf32> to vector<16x8xf32>
    %323 = vector.shape_cast %322 : vector<16x8xf32> to vector<2x8x8xf32>
    "tpu.trace_start"() <{level = 10 : i32, message = "bsd,btd->bst"}> : () -> ()
    %cst_140 = arith.constant dense<0.000000e+00> : vector<2x8x8xf32>
    %324 = tpu.matmul %321, %323, %cst_140 {dimension_numbers = #tpu.dot_dimension_numbers<[2], [2], [1], [1], [0, 0, 0, 1, 1, 1], [0], [0]>} : vector<2x8x8xf32>, vector<2x8x8xf32>, vector<2x8x8xf32> -> vector<2x8x8xf32>
    "tpu.trace_stop"() : () -> ()
    %325 = vector.extract_strided_slice %309 {offsets = [0, 24], sizes = [16, 8], strides = [1, 1]} : vector<16x96xf32> to vector<16x8xf32>
    %326 = vector.shape_cast %325 : vector<16x8xf32> to vector<2x8x8xf32>
    %327 = vector.extract_strided_slice %309 {offsets = [0, 56], sizes = [16, 8], strides = [1, 1]} : vector<16x96xf32> to vector<16x8xf32>
    %328 = vector.shape_cast %327 : vector<16x8xf32> to vector<2x8x8xf32>
    "tpu.trace_start"() <{level = 10 : i32, message = "bsd,btd->bst"}> : () -> ()
    %cst_141 = arith.constant dense<0.000000e+00> : vector<2x8x8xf32>
    %329 = tpu.matmul %326, %328, %cst_141 {dimension_numbers = #tpu.dot_dimension_numbers<[2], [2], [1], [1], [0, 0, 0, 1, 1, 1], [0], [0]>} : vector<2x8x8xf32>, vector<2x8x8xf32>, vector<2x8x8xf32> -> vector<2x8x8xf32>
    "tpu.trace_stop"() : () -> ()
    %330 = vector.shape_cast %314 : vector<2x8x8xf32> to vector<1x2x8x8xf32>
    %331 = vector.shape_cast %319 : vector<2x8x8xf32> to vector<1x2x8x8xf32>
    %332 = vector.shape_cast %324 : vector<2x8x8xf32> to vector<1x2x8x8xf32>
    %333 = vector.shape_cast %329 : vector<2x8x8xf32> to vector<1x2x8x8xf32>
    %334 = tpu.concatenate %330, %331, %332, %333 in 0 : vector<1x2x8x8xf32>, vector<1x2x8x8xf32>, vector<1x2x8x8xf32>, vector<1x2x8x8xf32> -> vector<4x2x8x8xf32>
    %335 = vector.broadcast %16 : vector<1x2x1x8xf32> to vector<4x2x8x8xf32>
    %336 = arith.addf %334, %335 : vector<4x2x8x8xf32>
    %cst_142 = arith.constant dense<0xFF800000> : vector<4x2x8xf32>
    %337 = vector.multi_reduction <maximumf>, %336, %cst_142 [3] : vector<4x2x8x8xf32> to vector<4x2x8xf32>
    %338 = vector.shape_cast %337 : vector<4x2x8xf32> to vector<4x2x8x1xf32>
    %339 = vector.broadcast %338 : vector<4x2x8x1xf32> to vector<4x2x8x8xf32>
    %340 = arith.subf %336, %339 : vector<4x2x8x8xf32>
    %341 = math.exp %340 : vector<4x2x8x8xf32>
    %cst_143 = arith.constant dense<0.000000e+00> : vector<4x2x8xf32>
    %342 = vector.multi_reduction <add>, %341, %cst_143 [3] : vector<4x2x8x8xf32> to vector<4x2x8xf32>
    %343 = vector.shape_cast %342 : vector<4x2x8xf32> to vector<4x2x8x1xf32>
    %344 = tpu.reciprocal %343 {approx = true} : vector<4x2x8x1xf32> -> vector<4x2x8x1xf32>
    %345 = vector.broadcast %344 : vector<4x2x8x1xf32> to vector<4x2x8x8xf32>
    %346 = arith.mulf %341, %345 : vector<4x2x8x8xf32>
    %347 = vector.extract_strided_slice %346 {offsets = [0, 0, 0, 0], sizes = [1, 2, 8, 8], strides = [1, 1, 1, 1]} : vector<4x2x8x8xf32> to vector<1x2x8x8xf32>
    %348 = vector.shape_cast %347 : vector<1x2x8x8xf32> to vector<2x8x8xf32>
    %349 = vector.extract_strided_slice %309 {offsets = [0, 64], sizes = [16, 8], strides = [1, 1]} : vector<16x96xf32> to vector<16x8xf32>
    %350 = vector.shape_cast %349 : vector<16x8xf32> to vector<2x8x8xf32>
    "tpu.trace_start"() <{level = 10 : i32, message = "bst,btd->bsd"}> : () -> ()
    %cst_144 = arith.constant dense<0.000000e+00> : vector<2x8x8xf32>
    %351 = tpu.matmul %348, %350, %cst_144 {dimension_numbers = #tpu.dot_dimension_numbers<[2], [1], [1], [2], [0, 0, 0, 1, 1, 2], [0], [0]>} : vector<2x8x8xf32>, vector<2x8x8xf32>, vector<2x8x8xf32> -> vector<2x8x8xf32>
    "tpu.trace_stop"() : () -> ()
    %352 = vector.extract_strided_slice %346 {offsets = [1, 0, 0, 0], sizes = [1, 2, 8, 8], strides = [1, 1, 1, 1]} : vector<4x2x8x8xf32> to vector<1x2x8x8xf32>
    %353 = vector.shape_cast %352 : vector<1x2x8x8xf32> to vector<2x8x8xf32>
    %354 = vector.extract_strided_slice %309 {offsets = [0, 72], sizes = [16, 8], strides = [1, 1]} : vector<16x96xf32> to vector<16x8xf32>
    %355 = vector.shape_cast %354 : vector<16x8xf32> to vector<2x8x8xf32>
    "tpu.trace_start"() <{level = 10 : i32, message = "bst,btd->bsd"}> : () -> ()
    %cst_145 = arith.constant dense<0.000000e+00> : vector<2x8x8xf32>
    %356 = tpu.matmul %353, %355, %cst_145 {dimension_numbers = #tpu.dot_dimension_numbers<[2], [1], [1], [2], [0, 0, 0, 1, 1, 2], [0], [0]>} : vector<2x8x8xf32>, vector<2x8x8xf32>, vector<2x8x8xf32> -> vector<2x8x8xf32>
    "tpu.trace_stop"() : () -> ()
    %357 = vector.extract_strided_slice %346 {offsets = [2, 0, 0, 0], sizes = [1, 2, 8, 8], strides = [1, 1, 1, 1]} : vector<4x2x8x8xf32> to vector<1x2x8x8xf32>
    %358 = vector.shape_cast %357 : vector<1x2x8x8xf32> to vector<2x8x8xf32>
    %359 = vector.extract_strided_slice %309 {offsets = [0, 80], sizes = [16, 8], strides = [1, 1]} : vector<16x96xf32> to vector<16x8xf32>
    %360 = vector.shape_cast %359 : vector<16x8xf32> to vector<2x8x8xf32>
    "tpu.trace_start"() <{level = 10 : i32, message = "bst,btd->bsd"}> : () -> ()
    %cst_146 = arith.constant dense<0.000000e+00> : vector<2x8x8xf32>
    %361 = tpu.matmul %358, %360, %cst_146 {dimension_numbers = #tpu.dot_dimension_numbers<[2], [1], [1], [2], [0, 0, 0, 1, 1, 2], [0], [0]>} : vector<2x8x8xf32>, vector<2x8x8xf32>, vector<2x8x8xf32> -> vector<2x8x8xf32>
    "tpu.trace_stop"() : () -> ()
    %362 = vector.extract_strided_slice %346 {offsets = [3, 0, 0, 0], sizes = [1, 2, 8, 8], strides = [1, 1, 1, 1]} : vector<4x2x8x8xf32> to vector<1x2x8x8xf32>
    %363 = vector.shape_cast %362 : vector<1x2x8x8xf32> to vector<2x8x8xf32>
    %364 = vector.extract_strided_slice %309 {offsets = [0, 88], sizes = [16, 8], strides = [1, 1]} : vector<16x96xf32> to vector<16x8xf32>
    %365 = vector.shape_cast %364 : vector<16x8xf32> to vector<2x8x8xf32>
    "tpu.trace_start"() <{level = 10 : i32, message = "bst,btd->bsd"}> : () -> ()
    %cst_147 = arith.constant dense<0.000000e+00> : vector<2x8x8xf32>
    %366 = tpu.matmul %363, %365, %cst_147 {dimension_numbers = #tpu.dot_dimension_numbers<[2], [1], [1], [2], [0, 0, 0, 1, 1, 2], [0], [0]>} : vector<2x8x8xf32>, vector<2x8x8xf32>, vector<2x8x8xf32> -> vector<2x8x8xf32>
    "tpu.trace_stop"() : () -> ()
    %367 = tpu.concatenate %351, %356, %361, %366 in 2 : vector<2x8x8xf32>, vector<2x8x8xf32>, vector<2x8x8xf32>, vector<2x8x8xf32> -> vector<2x8x32xf32>
    %368 = vector.shape_cast %367 : vector<2x8x32xf32> to vector<16x32xf32>
    %c2_148 = arith.constant 2 : index
    %c0_149 = arith.constant 0 : index
    %c0_150 = arith.constant 0 : index
    %369 = vector.load %arg6[%c2_148, %c0_149, %c0_150] : memref<4x32x32xf32, #tpu.memory_space<vmem>>, vector<1x32x32xf32>
    %370 = vector.shape_cast %369 : vector<1x32x32xf32> to vector<32x32xf32>
    %cst_151 = arith.constant dense<0.000000e+00> : vector<16x32xf32>
    %371 = tpu.matmul %368, %370, %cst_151 {dimension_numbers = #tpu.dot_dimension_numbers<[1], [0], [0], [1], [0, 0, 1, 1], [], []>} : vector<16x32xf32>, vector<32x32xf32>, vector<16x32xf32> -> vector<16x32xf32>
    %c2_152 = arith.constant 2 : index
    %c0_153 = arith.constant 0 : index
    %c0_154 = arith.constant 0 : index
    %372 = vector.load %arg7[%c2_152, %c0_153, %c0_154] : memref<4x1x32xf32, #tpu.memory_space<vmem>>, vector<1x1x32xf32>
    %373 = vector.shape_cast %372 : vector<1x1x32xf32> to vector<1x32xf32>
    %374 = vector.broadcast %373 : vector<1x32xf32> to vector<16x32xf32>
    %375 = arith.addf %371, %374 : vector<16x32xf32>
    %376 = arith.addf %302, %375 : vector<16x32xf32>
    %c2_155 = arith.constant 2 : index
    %c0_156 = arith.constant 0 : index
    %c0_157 = arith.constant 0 : index
    %377 = vector.load %arg12[%c2_155, %c0_156, %c0_157] : memref<4x1x32xf32, #tpu.memory_space<vmem>>, vector<1x1x32xf32>
    %378 = vector.shape_cast %377 : vector<1x1x32xf32> to vector<1x32xf32>
    %c2_158 = arith.constant 2 : index
    %c0_159 = arith.constant 0 : index
    %c0_160 = arith.constant 0 : index
    %379 = vector.load %arg13[%c2_158, %c0_159, %c0_160] : memref<4x1x32xf32, #tpu.memory_space<vmem>>, vector<1x1x32xf32>
    %380 = vector.shape_cast %379 : vector<1x1x32xf32> to vector<1x32xf32>
    %cst_161 = arith.constant dense<0.000000e+00> : vector<16xf32>
    %381 = vector.multi_reduction <add>, %376, %cst_161 [1] : vector<16x32xf32> to vector<16xf32>
    %382 = vector.shape_cast %381 : vector<16xf32> to vector<16x1xf32>
    %cst_162 = arith.constant 3.200000e+01 : f32
    %383 = vector.broadcast %cst_162 : f32 to vector<16x1xf32>
    %384 = arith.divf %382, %383 : vector<16x1xf32>
    %385 = vector.broadcast %384 : vector<16x1xf32> to vector<16x32xf32>
    %386 = arith.subf %376, %385 : vector<16x32xf32>
    %387 = arith.mulf %386, %386 : vector<16x32xf32>
    %cst_163 = arith.constant dense<0.000000e+00> : vector<16xf32>
    %388 = vector.multi_reduction <add>, %387, %cst_163 [1] : vector<16x32xf32> to vector<16xf32>
    %389 = vector.shape_cast %388 : vector<16xf32> to vector<16x1xf32>
    %cst_164 = arith.constant 3.200000e+01 : f32
    %390 = vector.broadcast %cst_164 : f32 to vector<16x1xf32>
    %391 = arith.divf %389, %390 : vector<16x1xf32>
    %392 = vector.broadcast %384 : vector<16x1xf32> to vector<16x32xf32>
    %393 = arith.subf %376, %392 : vector<16x32xf32>
    %cst_165 = arith.constant 9.99999974E-6 : f32
    %394 = vector.broadcast %cst_165 : f32 to vector<16x1xf32>
    %395 = arith.addf %391, %394 : vector<16x1xf32>
    %396 = math.rsqrt %395 : vector<16x1xf32>
    %397 = vector.broadcast %396 : vector<16x1xf32> to vector<16x32xf32>
    %398 = arith.mulf %393, %397 : vector<16x32xf32>
    %399 = vector.broadcast %378 : vector<1x32xf32> to vector<16x32xf32>
    %400 = arith.mulf %398, %399 : vector<16x32xf32>
    %401 = vector.broadcast %380 : vector<1x32xf32> to vector<16x32xf32>
    %402 = arith.addf %400, %401 : vector<16x32xf32>
    %c2_166 = arith.constant 2 : index
    %c0_167 = arith.constant 0 : index
    %c0_168 = arith.constant 0 : index
    %403 = vector.load %arg8[%c2_166, %c0_167, %c0_168] : memref<4x32x64xf32, #tpu.memory_space<vmem>>, vector<1x32x64xf32>
    %404 = vector.shape_cast %403 : vector<1x32x64xf32> to vector<32x64xf32>
    %cst_169 = arith.constant dense<0.000000e+00> : vector<16x64xf32>
    %405 = tpu.matmul %402, %404, %cst_169 {dimension_numbers = #tpu.dot_dimension_numbers<[1], [0], [0], [1], [0, 0, 1, 1], [], []>} : vector<16x32xf32>, vector<32x64xf32>, vector<16x64xf32> -> vector<16x64xf32>
    %c2_170 = arith.constant 2 : index
    %c0_171 = arith.constant 0 : index
    %c0_172 = arith.constant 0 : index
    %406 = vector.load %arg9[%c2_170, %c0_171, %c0_172] : memref<4x1x64xf32, #tpu.memory_space<vmem>>, vector<1x1x64xf32>
    %407 = vector.shape_cast %406 : vector<1x1x64xf32> to vector<1x64xf32>
    %408 = vector.broadcast %407 : vector<1x64xf32> to vector<16x64xf32>
    %409 = arith.addf %405, %408 : vector<16x64xf32>
    %cst_173 = arith.constant 0.000000e+00 : f32
    %410 = vector.broadcast %cst_173 : f32 to vector<16x64xf32>
    %411 = arith.maximumf %409, %410 : vector<16x64xf32>
    %c2_174 = arith.constant 2 : index
    %c0_175 = arith.constant 0 : index
    %c0_176 = arith.constant 0 : index
    %412 = vector.load %arg10[%c2_174, %c0_175, %c0_176] : memref<4x64x32xf32, #tpu.memory_space<vmem>>, vector<1x64x32xf32>
    %413 = vector.shape_cast %412 : vector<1x64x32xf32> to vector<64x32xf32>
    %cst_177 = arith.constant dense<0.000000e+00> : vector<16x32xf32>
    %414 = tpu.matmul %411, %413, %cst_177 {dimension_numbers = #tpu.dot_dimension_numbers<[1], [0], [0], [1], [0, 0, 1, 1], [], []>} : vector<16x64xf32>, vector<64x32xf32>, vector<16x32xf32> -> vector<16x32xf32>
    %c2_178 = arith.constant 2 : index
    %c0_179 = arith.constant 0 : index
    %c0_180 = arith.constant 0 : index
    %415 = vector.load %arg11[%c2_178, %c0_179, %c0_180] : memref<4x1x32xf32, #tpu.memory_space<vmem>>, vector<1x1x32xf32>
    %416 = vector.shape_cast %415 : vector<1x1x32xf32> to vector<1x32xf32>
    %417 = vector.broadcast %416 : vector<1x32xf32> to vector<16x32xf32>
    %418 = arith.addf %414, %417 : vector<16x32xf32>
    %419 = arith.addf %402, %418 : vector<16x32xf32>
    %c2_181 = arith.constant 2 : index
    %c0_182 = arith.constant 0 : index
    %c0_183 = arith.constant 0 : index
    %420 = vector.load %arg14[%c2_181, %c0_182, %c0_183] : memref<4x1x32xf32, #tpu.memory_space<vmem>>, vector<1x1x32xf32>
    %421 = vector.shape_cast %420 : vector<1x1x32xf32> to vector<1x32xf32>
    %c2_184 = arith.constant 2 : index
    %c0_185 = arith.constant 0 : index
    %c0_186 = arith.constant 0 : index
    %422 = vector.load %arg15[%c2_184, %c0_185, %c0_186] : memref<4x1x32xf32, #tpu.memory_space<vmem>>, vector<1x1x32xf32>
    %423 = vector.shape_cast %422 : vector<1x1x32xf32> to vector<1x32xf32>
    %cst_187 = arith.constant dense<0.000000e+00> : vector<16xf32>
    %424 = vector.multi_reduction <add>, %419, %cst_187 [1] : vector<16x32xf32> to vector<16xf32>
    %425 = vector.shape_cast %424 : vector<16xf32> to vector<16x1xf32>
    %cst_188 = arith.constant 3.200000e+01 : f32
    %426 = vector.broadcast %cst_188 : f32 to vector<16x1xf32>
    %427 = arith.divf %425, %426 : vector<16x1xf32>
    %428 = vector.broadcast %427 : vector<16x1xf32> to vector<16x32xf32>
    %429 = arith.subf %419, %428 : vector<16x32xf32>
    %430 = arith.mulf %429, %429 : vector<16x32xf32>
    %cst_189 = arith.constant dense<0.000000e+00> : vector<16xf32>
    %431 = vector.multi_reduction <add>, %430, %cst_189 [1] : vector<16x32xf32> to vector<16xf32>
    %432 = vector.shape_cast %431 : vector<16xf32> to vector<16x1xf32>
    %cst_190 = arith.constant 3.200000e+01 : f32
    %433 = vector.broadcast %cst_190 : f32 to vector<16x1xf32>
    %434 = arith.divf %432, %433 : vector<16x1xf32>
    %435 = vector.broadcast %427 : vector<16x1xf32> to vector<16x32xf32>
    %436 = arith.subf %419, %435 : vector<16x32xf32>
    %cst_191 = arith.constant 9.99999974E-6 : f32
    %437 = vector.broadcast %cst_191 : f32 to vector<16x1xf32>
    %438 = arith.addf %434, %437 : vector<16x1xf32>
    %439 = math.rsqrt %438 : vector<16x1xf32>
    %440 = vector.broadcast %439 : vector<16x1xf32> to vector<16x32xf32>
    %441 = arith.mulf %436, %440 : vector<16x32xf32>
    %442 = vector.broadcast %421 : vector<1x32xf32> to vector<16x32xf32>
    %443 = arith.mulf %441, %442 : vector<16x32xf32>
    %444 = vector.broadcast %423 : vector<1x32xf32> to vector<16x32xf32>
    %445 = arith.addf %443, %444 : vector<16x32xf32>
    %c3 = arith.constant 3 : index
    %c0_192 = arith.constant 0 : index
    %c0_193 = arith.constant 0 : index
    %446 = vector.load %arg4[%c3, %c0_192, %c0_193] : memref<4x32x96xf32, #tpu.memory_space<vmem>>, vector<1x32x96xf32>
    %447 = vector.shape_cast %446 : vector<1x32x96xf32> to vector<32x96xf32>
    %cst_194 = arith.constant dense<0.000000e+00> : vector<16x96xf32>
    %448 = tpu.matmul %445, %447, %cst_194 {dimension_numbers = #tpu.dot_dimension_numbers<[1], [0], [0], [1], [0, 0, 1, 1], [], []>} : vector<16x32xf32>, vector<32x96xf32>, vector<16x96xf32> -> vector<16x96xf32>
    %c3_195 = arith.constant 3 : index
    %c0_196 = arith.constant 0 : index
    %c0_197 = arith.constant 0 : index
    %449 = vector.load %arg5[%c3_195, %c0_196, %c0_197] : memref<4x1x96xf32, #tpu.memory_space<vmem>>, vector<1x1x96xf32>
    %450 = vector.shape_cast %449 : vector<1x1x96xf32> to vector<1x96xf32>
    %451 = vector.broadcast %450 : vector<1x96xf32> to vector<16x96xf32>
    %452 = arith.addf %448, %451 : vector<16x96xf32>
    %453 = vector.extract_strided_slice %452 {offsets = [0, 0], sizes = [16, 8], strides = [1, 1]} : vector<16x96xf32> to vector<16x8xf32>
    %454 = vector.shape_cast %453 : vector<16x8xf32> to vector<2x8x8xf32>
    %455 = vector.extract_strided_slice %452 {offsets = [0, 32], sizes = [16, 8], strides = [1, 1]} : vector<16x96xf32> to vector<16x8xf32>
    %456 = vector.shape_cast %455 : vector<16x8xf32> to vector<2x8x8xf32>
    "tpu.trace_start"() <{level = 10 : i32, message = "bsd,btd->bst"}> : () -> ()
    %cst_198 = arith.constant dense<0.000000e+00> : vector<2x8x8xf32>
    %457 = tpu.matmul %454, %456, %cst_198 {dimension_numbers = #tpu.dot_dimension_numbers<[2], [2], [1], [1], [0, 0, 0, 1, 1, 1], [0], [0]>} : vector<2x8x8xf32>, vector<2x8x8xf32>, vector<2x8x8xf32> -> vector<2x8x8xf32>
    "tpu.trace_stop"() : () -> ()
    %458 = vector.extract_strided_slice %452 {offsets = [0, 8], sizes = [16, 8], strides = [1, 1]} : vector<16x96xf32> to vector<16x8xf32>
    %459 = vector.shape_cast %458 : vector<16x8xf32> to vector<2x8x8xf32>
    %460 = vector.extract_strided_slice %452 {offsets = [0, 40], sizes = [16, 8], strides = [1, 1]} : vector<16x96xf32> to vector<16x8xf32>
    %461 = vector.shape_cast %460 : vector<16x8xf32> to vector<2x8x8xf32>
    "tpu.trace_start"() <{level = 10 : i32, message = "bsd,btd->bst"}> : () -> ()
    %cst_199 = arith.constant dense<0.000000e+00> : vector<2x8x8xf32>
    %462 = tpu.matmul %459, %461, %cst_199 {dimension_numbers = #tpu.dot_dimension_numbers<[2], [2], [1], [1], [0, 0, 0, 1, 1, 1], [0], [0]>} : vector<2x8x8xf32>, vector<2x8x8xf32>, vector<2x8x8xf32> -> vector<2x8x8xf32>
    "tpu.trace_stop"() : () -> ()
    %463 = vector.extract_strided_slice %452 {offsets = [0, 16], sizes = [16, 8], strides = [1, 1]} : vector<16x96xf32> to vector<16x8xf32>
    %464 = vector.shape_cast %463 : vector<16x8xf32> to vector<2x8x8xf32>
    %465 = vector.extract_strided_slice %452 {offsets = [0, 48], sizes = [16, 8], strides = [1, 1]} : vector<16x96xf32> to vector<16x8xf32>
    %466 = vector.shape_cast %465 : vector<16x8xf32> to vector<2x8x8xf32>
    "tpu.trace_start"() <{level = 10 : i32, message = "bsd,btd->bst"}> : () -> ()
    %cst_200 = arith.constant dense<0.000000e+00> : vector<2x8x8xf32>
    %467 = tpu.matmul %464, %466, %cst_200 {dimension_numbers = #tpu.dot_dimension_numbers<[2], [2], [1], [1], [0, 0, 0, 1, 1, 1], [0], [0]>} : vector<2x8x8xf32>, vector<2x8x8xf32>, vector<2x8x8xf32> -> vector<2x8x8xf32>
    "tpu.trace_stop"() : () -> ()
    %468 = vector.extract_strided_slice %452 {offsets = [0, 24], sizes = [16, 8], strides = [1, 1]} : vector<16x96xf32> to vector<16x8xf32>
    %469 = vector.shape_cast %468 : vector<16x8xf32> to vector<2x8x8xf32>
    %470 = vector.extract_strided_slice %452 {offsets = [0, 56], sizes = [16, 8], strides = [1, 1]} : vector<16x96xf32> to vector<16x8xf32>
    %471 = vector.shape_cast %470 : vector<16x8xf32> to vector<2x8x8xf32>
    "tpu.trace_start"() <{level = 10 : i32, message = "bsd,btd->bst"}> : () -> ()
    %cst_201 = arith.constant dense<0.000000e+00> : vector<2x8x8xf32>
    %472 = tpu.matmul %469, %471, %cst_201 {dimension_numbers = #tpu.dot_dimension_numbers<[2], [2], [1], [1], [0, 0, 0, 1, 1, 1], [0], [0]>} : vector<2x8x8xf32>, vector<2x8x8xf32>, vector<2x8x8xf32> -> vector<2x8x8xf32>
    "tpu.trace_stop"() : () -> ()
    %473 = vector.shape_cast %457 : vector<2x8x8xf32> to vector<1x2x8x8xf32>
    %474 = vector.shape_cast %462 : vector<2x8x8xf32> to vector<1x2x8x8xf32>
    %475 = vector.shape_cast %467 : vector<2x8x8xf32> to vector<1x2x8x8xf32>
    %476 = vector.shape_cast %472 : vector<2x8x8xf32> to vector<1x2x8x8xf32>
    %477 = tpu.concatenate %473, %474, %475, %476 in 0 : vector<1x2x8x8xf32>, vector<1x2x8x8xf32>, vector<1x2x8x8xf32>, vector<1x2x8x8xf32> -> vector<4x2x8x8xf32>
    %478 = vector.broadcast %16 : vector<1x2x1x8xf32> to vector<4x2x8x8xf32>
    %479 = arith.addf %477, %478 : vector<4x2x8x8xf32>
    %cst_202 = arith.constant dense<0xFF800000> : vector<4x2x8xf32>
    %480 = vector.multi_reduction <maximumf>, %479, %cst_202 [3] : vector<4x2x8x8xf32> to vector<4x2x8xf32>
    %481 = vector.shape_cast %480 : vector<4x2x8xf32> to vector<4x2x8x1xf32>
    %482 = vector.broadcast %481 : vector<4x2x8x1xf32> to vector<4x2x8x8xf32>
    %483 = arith.subf %479, %482 : vector<4x2x8x8xf32>
    %484 = math.exp %483 : vector<4x2x8x8xf32>
    %cst_203 = arith.constant dense<0.000000e+00> : vector<4x2x8xf32>
    %485 = vector.multi_reduction <add>, %484, %cst_203 [3] : vector<4x2x8x8xf32> to vector<4x2x8xf32>
    %486 = vector.shape_cast %485 : vector<4x2x8xf32> to vector<4x2x8x1xf32>
    %487 = tpu.reciprocal %486 {approx = true} : vector<4x2x8x1xf32> -> vector<4x2x8x1xf32>
    %488 = vector.broadcast %487 : vector<4x2x8x1xf32> to vector<4x2x8x8xf32>
    %489 = arith.mulf %484, %488 : vector<4x2x8x8xf32>
    %490 = vector.extract_strided_slice %489 {offsets = [0, 0, 0, 0], sizes = [1, 2, 8, 8], strides = [1, 1, 1, 1]} : vector<4x2x8x8xf32> to vector<1x2x8x8xf32>
    %491 = vector.shape_cast %490 : vector<1x2x8x8xf32> to vector<2x8x8xf32>
    %492 = vector.extract_strided_slice %452 {offsets = [0, 64], sizes = [16, 8], strides = [1, 1]} : vector<16x96xf32> to vector<16x8xf32>
    %493 = vector.shape_cast %492 : vector<16x8xf32> to vector<2x8x8xf32>
    "tpu.trace_start"() <{level = 10 : i32, message = "bst,btd->bsd"}> : () -> ()
    %cst_204 = arith.constant dense<0.000000e+00> : vector<2x8x8xf32>
    %494 = tpu.matmul %491, %493, %cst_204 {dimension_numbers = #tpu.dot_dimension_numbers<[2], [1], [1], [2], [0, 0, 0, 1, 1, 2], [0], [0]>} : vector<2x8x8xf32>, vector<2x8x8xf32>, vector<2x8x8xf32> -> vector<2x8x8xf32>
    "tpu.trace_stop"() : () -> ()
    %495 = vector.extract_strided_slice %489 {offsets = [1, 0, 0, 0], sizes = [1, 2, 8, 8], strides = [1, 1, 1, 1]} : vector<4x2x8x8xf32> to vector<1x2x8x8xf32>
    %496 = vector.shape_cast %495 : vector<1x2x8x8xf32> to vector<2x8x8xf32>
    %497 = vector.extract_strided_slice %452 {offsets = [0, 72], sizes = [16, 8], strides = [1, 1]} : vector<16x96xf32> to vector<16x8xf32>
    %498 = vector.shape_cast %497 : vector<16x8xf32> to vector<2x8x8xf32>
    "tpu.trace_start"() <{level = 10 : i32, message = "bst,btd->bsd"}> : () -> ()
    %cst_205 = arith.constant dense<0.000000e+00> : vector<2x8x8xf32>
    %499 = tpu.matmul %496, %498, %cst_205 {dimension_numbers = #tpu.dot_dimension_numbers<[2], [1], [1], [2], [0, 0, 0, 1, 1, 2], [0], [0]>} : vector<2x8x8xf32>, vector<2x8x8xf32>, vector<2x8x8xf32> -> vector<2x8x8xf32>
    "tpu.trace_stop"() : () -> ()
    %500 = vector.extract_strided_slice %489 {offsets = [2, 0, 0, 0], sizes = [1, 2, 8, 8], strides = [1, 1, 1, 1]} : vector<4x2x8x8xf32> to vector<1x2x8x8xf32>
    %501 = vector.shape_cast %500 : vector<1x2x8x8xf32> to vector<2x8x8xf32>
    %502 = vector.extract_strided_slice %452 {offsets = [0, 80], sizes = [16, 8], strides = [1, 1]} : vector<16x96xf32> to vector<16x8xf32>
    %503 = vector.shape_cast %502 : vector<16x8xf32> to vector<2x8x8xf32>
    "tpu.trace_start"() <{level = 10 : i32, message = "bst,btd->bsd"}> : () -> ()
    %cst_206 = arith.constant dense<0.000000e+00> : vector<2x8x8xf32>
    %504 = tpu.matmul %501, %503, %cst_206 {dimension_numbers = #tpu.dot_dimension_numbers<[2], [1], [1], [2], [0, 0, 0, 1, 1, 2], [0], [0]>} : vector<2x8x8xf32>, vector<2x8x8xf32>, vector<2x8x8xf32> -> vector<2x8x8xf32>
    "tpu.trace_stop"() : () -> ()
    %505 = vector.extract_strided_slice %489 {offsets = [3, 0, 0, 0], sizes = [1, 2, 8, 8], strides = [1, 1, 1, 1]} : vector<4x2x8x8xf32> to vector<1x2x8x8xf32>
    %506 = vector.shape_cast %505 : vector<1x2x8x8xf32> to vector<2x8x8xf32>
    %507 = vector.extract_strided_slice %452 {offsets = [0, 88], sizes = [16, 8], strides = [1, 1]} : vector<16x96xf32> to vector<16x8xf32>
    %508 = vector.shape_cast %507 : vector<16x8xf32> to vector<2x8x8xf32>
    "tpu.trace_start"() <{level = 10 : i32, message = "bst,btd->bsd"}> : () -> ()
    %cst_207 = arith.constant dense<0.000000e+00> : vector<2x8x8xf32>
    %509 = tpu.matmul %506, %508, %cst_207 {dimension_numbers = #tpu.dot_dimension_numbers<[2], [1], [1], [2], [0, 0, 0, 1, 1, 2], [0], [0]>} : vector<2x8x8xf32>, vector<2x8x8xf32>, vector<2x8x8xf32> -> vector<2x8x8xf32>
    "tpu.trace_stop"() : () -> ()
    %510 = tpu.concatenate %494, %499, %504, %509 in 2 : vector<2x8x8xf32>, vector<2x8x8xf32>, vector<2x8x8xf32>, vector<2x8x8xf32> -> vector<2x8x32xf32>
    %511 = vector.shape_cast %510 : vector<2x8x32xf32> to vector<16x32xf32>
    %c3_208 = arith.constant 3 : index
    %c0_209 = arith.constant 0 : index
    %c0_210 = arith.constant 0 : index
    %512 = vector.load %arg6[%c3_208, %c0_209, %c0_210] : memref<4x32x32xf32, #tpu.memory_space<vmem>>, vector<1x32x32xf32>
    %513 = vector.shape_cast %512 : vector<1x32x32xf32> to vector<32x32xf32>
    %cst_211 = arith.constant dense<0.000000e+00> : vector<16x32xf32>
    %514 = tpu.matmul %511, %513, %cst_211 {dimension_numbers = #tpu.dot_dimension_numbers<[1], [0], [0], [1], [0, 0, 1, 1], [], []>} : vector<16x32xf32>, vector<32x32xf32>, vector<16x32xf32> -> vector<16x32xf32>
    %c3_212 = arith.constant 3 : index
    %c0_213 = arith.constant 0 : index
    %c0_214 = arith.constant 0 : index
    %515 = vector.load %arg7[%c3_212, %c0_213, %c0_214] : memref<4x1x32xf32, #tpu.memory_space<vmem>>, vector<1x1x32xf32>
    %516 = vector.shape_cast %515 : vector<1x1x32xf32> to vector<1x32xf32>
    %517 = vector.broadcast %516 : vector<1x32xf32> to vector<16x32xf32>
    %518 = arith.addf %514, %517 : vector<16x32xf32>
    %519 = arith.addf %445, %518 : vector<16x32xf32>
    %c3_215 = arith.constant 3 : index
    %c0_216 = arith.constant 0 : index
    %c0_217 = arith.constant 0 : index
    %520 = vector.load %arg12[%c3_215, %c0_216, %c0_217] : memref<4x1x32xf32, #tpu.memory_space<vmem>>, vector<1x1x32xf32>
    %521 = vector.shape_cast %520 : vector<1x1x32xf32> to vector<1x32xf32>
    %c3_218 = arith.constant 3 : index
    %c0_219 = arith.constant 0 : index
    %c0_220 = arith.constant 0 : index
    %522 = vector.load %arg13[%c3_218, %c0_219, %c0_220] : memref<4x1x32xf32, #tpu.memory_space<vmem>>, vector<1x1x32xf32>
    %523 = vector.shape_cast %522 : vector<1x1x32xf32> to vector<1x32xf32>
    %cst_221 = arith.constant dense<0.000000e+00> : vector<16xf32>
    %524 = vector.multi_reduction <add>, %519, %cst_221 [1] : vector<16x32xf32> to vector<16xf32>
    %525 = vector.shape_cast %524 : vector<16xf32> to vector<16x1xf32>
    %cst_222 = arith.constant 3.200000e+01 : f32
    %526 = vector.broadcast %cst_222 : f32 to vector<16x1xf32>
    %527 = arith.divf %525, %526 : vector<16x1xf32>
    %528 = vector.broadcast %527 : vector<16x1xf32> to vector<16x32xf32>
    %529 = arith.subf %519, %528 : vector<16x32xf32>
    %530 = arith.mulf %529, %529 : vector<16x32xf32>
    %cst_223 = arith.constant dense<0.000000e+00> : vector<16xf32>
    %531 = vector.multi_reduction <add>, %530, %cst_223 [1] : vector<16x32xf32> to vector<16xf32>
    %532 = vector.shape_cast %531 : vector<16xf32> to vector<16x1xf32>
    %cst_224 = arith.constant 3.200000e+01 : f32
    %533 = vector.broadcast %cst_224 : f32 to vector<16x1xf32>
    %534 = arith.divf %532, %533 : vector<16x1xf32>
    %535 = vector.broadcast %527 : vector<16x1xf32> to vector<16x32xf32>
    %536 = arith.subf %519, %535 : vector<16x32xf32>
    %cst_225 = arith.constant 9.99999974E-6 : f32
    %537 = vector.broadcast %cst_225 : f32 to vector<16x1xf32>
    %538 = arith.addf %534, %537 : vector<16x1xf32>
    %539 = math.rsqrt %538 : vector<16x1xf32>
    %540 = vector.broadcast %539 : vector<16x1xf32> to vector<16x32xf32>
    %541 = arith.mulf %536, %540 : vector<16x32xf32>
    %542 = vector.broadcast %521 : vector<1x32xf32> to vector<16x32xf32>
    %543 = arith.mulf %541, %542 : vector<16x32xf32>
    %544 = vector.broadcast %523 : vector<1x32xf32> to vector<16x32xf32>
    %545 = arith.addf %543, %544 : vector<16x32xf32>
    %c3_226 = arith.constant 3 : index
    %c0_227 = arith.constant 0 : index
    %c0_228 = arith.constant 0 : index
    %546 = vector.load %arg8[%c3_226, %c0_227, %c0_228] : memref<4x32x64xf32, #tpu.memory_space<vmem>>, vector<1x32x64xf32>
    %547 = vector.shape_cast %546 : vector<1x32x64xf32> to vector<32x64xf32>
    %cst_229 = arith.constant dense<0.000000e+00> : vector<16x64xf32>
    %548 = tpu.matmul %545, %547, %cst_229 {dimension_numbers = #tpu.dot_dimension_numbers<[1], [0], [0], [1], [0, 0, 1, 1], [], []>} : vector<16x32xf32>, vector<32x64xf32>, vector<16x64xf32> -> vector<16x64xf32>
    %c3_230 = arith.constant 3 : index
    %c0_231 = arith.constant 0 : index
    %c0_232 = arith.constant 0 : index
    %549 = vector.load %arg9[%c3_230, %c0_231, %c0_232] : memref<4x1x64xf32, #tpu.memory_space<vmem>>, vector<1x1x64xf32>
    %550 = vector.shape_cast %549 : vector<1x1x64xf32> to vector<1x64xf32>
    %551 = vector.broadcast %550 : vector<1x64xf32> to vector<16x64xf32>
    %552 = arith.addf %548, %551 : vector<16x64xf32>
    %cst_233 = arith.constant 0.000000e+00 : f32
    %553 = vector.broadcast %cst_233 : f32 to vector<16x64xf32>
    %554 = arith.maximumf %552, %553 : vector<16x64xf32>
    %c3_234 = arith.constant 3 : index
    %c0_235 = arith.constant 0 : index
    %c0_236 = arith.constant 0 : index
    %555 = vector.load %arg10[%c3_234, %c0_235, %c0_236] : memref<4x64x32xf32, #tpu.memory_space<vmem>>, vector<1x64x32xf32>
    %556 = vector.shape_cast %555 : vector<1x64x32xf32> to vector<64x32xf32>
    %cst_237 = arith.constant dense<0.000000e+00> : vector<16x32xf32>
    %557 = tpu.matmul %554, %556, %cst_237 {dimension_numbers = #tpu.dot_dimension_numbers<[1], [0], [0], [1], [0, 0, 1, 1], [], []>} : vector<16x64xf32>, vector<64x32xf32>, vector<16x32xf32> -> vector<16x32xf32>
    %c3_238 = arith.constant 3 : index
    %c0_239 = arith.constant 0 : index
    %c0_240 = arith.constant 0 : index
    %558 = vector.load %arg11[%c3_238, %c0_239, %c0_240] : memref<4x1x32xf32, #tpu.memory_space<vmem>>, vector<1x1x32xf32>
    %559 = vector.shape_cast %558 : vector<1x1x32xf32> to vector<1x32xf32>
    %560 = vector.broadcast %559 : vector<1x32xf32> to vector<16x32xf32>
    %561 = arith.addf %557, %560 : vector<16x32xf32>
    %562 = arith.addf %545, %561 : vector<16x32xf32>
    %c3_241 = arith.constant 3 : index
    %c0_242 = arith.constant 0 : index
    %c0_243 = arith.constant 0 : index
    %563 = vector.load %arg14[%c3_241, %c0_242, %c0_243] : memref<4x1x32xf32, #tpu.memory_space<vmem>>, vector<1x1x32xf32>
    %564 = vector.shape_cast %563 : vector<1x1x32xf32> to vector<1x32xf32>
    %c3_244 = arith.constant 3 : index
    %c0_245 = arith.constant 0 : index
    %c0_246 = arith.constant 0 : index
    %565 = vector.load %arg15[%c3_244, %c0_245, %c0_246] : memref<4x1x32xf32, #tpu.memory_space<vmem>>, vector<1x1x32xf32>
    %566 = vector.shape_cast %565 : vector<1x1x32xf32> to vector<1x32xf32>
    %cst_247 = arith.constant dense<0.000000e+00> : vector<16xf32>
    %567 = vector.multi_reduction <add>, %562, %cst_247 [1] : vector<16x32xf32> to vector<16xf32>
    %568 = vector.shape_cast %567 : vector<16xf32> to vector<16x1xf32>
    %cst_248 = arith.constant 3.200000e+01 : f32
    %569 = vector.broadcast %cst_248 : f32 to vector<16x1xf32>
    %570 = arith.divf %568, %569 : vector<16x1xf32>
    %571 = vector.broadcast %570 : vector<16x1xf32> to vector<16x32xf32>
    %572 = arith.subf %562, %571 : vector<16x32xf32>
    %573 = arith.mulf %572, %572 : vector<16x32xf32>
    %cst_249 = arith.constant dense<0.000000e+00> : vector<16xf32>
    %574 = vector.multi_reduction <add>, %573, %cst_249 [1] : vector<16x32xf32> to vector<16xf32>
    %575 = vector.shape_cast %574 : vector<16xf32> to vector<16x1xf32>
    %cst_250 = arith.constant 3.200000e+01 : f32
    %576 = vector.broadcast %cst_250 : f32 to vector<16x1xf32>
    %577 = arith.divf %575, %576 : vector<16x1xf32>
    %578 = vector.broadcast %570 : vector<16x1xf32> to vector<16x32xf32>
    %579 = arith.subf %562, %578 : vector<16x32xf32>
    %cst_251 = arith.constant 9.99999974E-6 : f32
    %580 = vector.broadcast %cst_251 : f32 to vector<16x1xf32>
    %581 = arith.addf %577, %580 : vector<16x1xf32>
    %582 = math.rsqrt %581 : vector<16x1xf32>
    %583 = vector.broadcast %582 : vector<16x1xf32> to vector<16x32xf32>
    %584 = arith.mulf %579, %583 : vector<16x32xf32>
    %585 = vector.broadcast %564 : vector<1x32xf32> to vector<16x32xf32>
    %586 = arith.mulf %584, %585 : vector<16x32xf32>
    %587 = vector.broadcast %566 : vector<1x32xf32> to vector<16x32xf32>
    %588 = arith.addf %586, %587 : vector<16x32xf32>
    %589 = vector.shape_cast %588 : vector<16x32xf32> to vector<2x8x32xf32>
    %590 = vector.extract_strided_slice %589 {offsets = [0, 0, 0], sizes = [2, 1, 32], strides = [1, 1, 1]} : vector<2x8x32xf32> to vector<2x1x32xf32>
    %591 = vector.shape_cast %590 : vector<2x1x32xf32> to vector<2x32xf32>
    %c0_252 = arith.constant 0 : index
    %c0_253 = arith.constant 0 : index
    %592 = vector.load %arg3[%c0_252, %c0_253] : memref<2x3072xbf16, #tpu.memory_space<vmem>>, vector<2x3072xbf16>
    %c0_254 = arith.constant 0 : index
    %c0_255 = arith.constant 0 : index
    %593 = vector.load %arg16[%c0_254, %c0_255] : memref<32x3072xbf16, #tpu.memory_space<vmem>>, vector<32x3072xbf16>
    %cst_256 = arith.constant dense<0.000000e+00> : vector<2x32xf32>
    %594 = tpu.matmul %592, %593, %cst_256 {dimension_numbers = #tpu.dot_dimension_numbers<[1], [1], [0], [0], [0, 0, 1, 0], [], []>} : vector<2x3072xbf16>, vector<32x3072xbf16>, vector<2x32xf32> -> vector<2x32xf32>
    %c0_257 = arith.constant 0 : index
    %c0_258 = arith.constant 0 : index
    %595 = vector.load %arg17[%c0_257, %c0_258] : memref<1x32xf32, #tpu.memory_space<vmem>>, vector<1x32xf32>
    %596 = vector.broadcast %595 : vector<1x32xf32> to vector<2x32xf32>
    %597 = arith.addf %594, %596 : vector<2x32xf32>
    %598 = tpu.concatenate %591, %597 in 1 : vector<2x32xf32>, vector<2x32xf32> -> vector<2x64xf32>
    %c0_259 = arith.constant 0 : index
    %c0_260 = arith.constant 0 : index
    %599 = vector.load %arg18[%c0_259, %c0_260] : memref<1x64xf32, #tpu.memory_space<vmem>>, vector<1x64xf32>
    %c0_261 = arith.constant 0 : index
    %c0_262 = arith.constant 0 : index
    %600 = vector.load %arg19[%c0_261, %c0_262] : memref<1x64xf32, #tpu.memory_space<vmem>>, vector<1x64xf32>
    %cst_263 = arith.constant dense<0.000000e+00> : vector<2xf32>
    %601 = vector.multi_reduction <add>, %598, %cst_263 [1] : vector<2x64xf32> to vector<2xf32>
    %602 = vector.shape_cast %601 : vector<2xf32> to vector<2x1xf32>
    %cst_264 = arith.constant 6.400000e+01 : f32
    %603 = vector.broadcast %cst_264 : f32 to vector<2x1xf32>
    %604 = arith.divf %602, %603 : vector<2x1xf32>
    %605 = vector.broadcast %604 : vector<2x1xf32> to vector<2x64xf32>
    %606 = arith.subf %598, %605 : vector<2x64xf32>
    %607 = arith.mulf %606, %606 : vector<2x64xf32>
    %cst_265 = arith.constant dense<0.000000e+00> : vector<2xf32>
    %608 = vector.multi_reduction <add>, %607, %cst_265 [1] : vector<2x64xf32> to vector<2xf32>
    %609 = vector.shape_cast %608 : vector<2xf32> to vector<2x1xf32>
    %cst_266 = arith.constant 6.400000e+01 : f32
    %610 = vector.broadcast %cst_266 : f32 to vector<2x1xf32>
    %611 = arith.divf %609, %610 : vector<2x1xf32>
    %612 = vector.broadcast %604 : vector<2x1xf32> to vector<2x64xf32>
    %613 = arith.subf %598, %612 : vector<2x64xf32>
    %cst_267 = arith.constant 9.99999974E-6 : f32
    %614 = vector.broadcast %cst_267 : f32 to vector<2x1xf32>
    %615 = arith.addf %611, %614 : vector<2x1xf32>
    %616 = math.rsqrt %615 : vector<2x1xf32>
    %617 = vector.broadcast %616 : vector<2x1xf32> to vector<2x64xf32>
    %618 = arith.mulf %613, %617 : vector<2x64xf32>
    %619 = vector.broadcast %599 : vector<1x64xf32> to vector<2x64xf32>
    %620 = arith.mulf %618, %619 : vector<2x64xf32>
    %621 = vector.broadcast %600 : vector<1x64xf32> to vector<2x64xf32>
    %622 = arith.addf %620, %621 : vector<2x64xf32>
    %c0_268 = arith.constant 0 : index
    %c0_269 = arith.constant 0 : index
    %623 = vector.load %arg20[%c0_268, %c0_269] : memref<64x128xf32, #tpu.memory_space<vmem>>, vector<64x128xf32>
    %cst_270 = arith.constant dense<0.000000e+00> : vector<2x128xf32>
    %624 = tpu.matmul %622, %623, %cst_270 {dimension_numbers = #tpu.dot_dimension_numbers<[1], [0], [0], [1], [0, 0, 1, 1], [], []>} : vector<2x64xf32>, vector<64x128xf32>, vector<2x128xf32> -> vector<2x128xf32>
    %c0_271 = arith.constant 0 : index
    %c0_272 = arith.constant 0 : index
    %625 = vector.load %arg21[%c0_271, %c0_272] : memref<1x128xf32, #tpu.memory_space<vmem>>, vector<1x128xf32>
    %626 = vector.broadcast %625 : vector<1x128xf32> to vector<2x128xf32>
    %627 = arith.addf %624, %626 : vector<2x128xf32>
    %cst_273 = arith.constant 0.000000e+00 : f32
    %628 = vector.broadcast %cst_273 : f32 to vector<2x128xf32>
    %629 = arith.cmpf ogt, %627, %628 : vector<2x128xf32>
    %cst_274 = arith.constant 0.00999999977 : f32
    %630 = vector.broadcast %cst_274 : f32 to vector<2x128xf32>
    %631 = arith.mulf %630, %627 : vector<2x128xf32>
    %632 = arith.select %629, %627, %631 : vector<2x128xi1>, vector<2x128xf32>
    %c0_275 = arith.constant 0 : index
    %c0_276 = arith.constant 0 : index
    %633 = vector.load %arg22[%c0_275, %c0_276] : memref<1x128xf32, #tpu.memory_space<vmem>>, vector<1x128xf32>
    %c0_277 = arith.constant 0 : index
    %c0_278 = arith.constant 0 : index
    %634 = vector.load %arg23[%c0_277, %c0_278] : memref<1x128xf32, #tpu.memory_space<vmem>>, vector<1x128xf32>
    %cst_279 = arith.constant dense<0.000000e+00> : vector<2xf32>
    %635 = vector.multi_reduction <add>, %632, %cst_279 [1] : vector<2x128xf32> to vector<2xf32>
    %636 = vector.shape_cast %635 : vector<2xf32> to vector<2x1xf32>
    %cst_280 = arith.constant 1.280000e+02 : f32
    %637 = vector.broadcast %cst_280 : f32 to vector<2x1xf32>
    %638 = arith.divf %636, %637 : vector<2x1xf32>
    %639 = vector.broadcast %638 : vector<2x1xf32> to vector<2x128xf32>
    %640 = arith.subf %632, %639 : vector<2x128xf32>
    %641 = arith.mulf %640, %640 : vector<2x128xf32>
    %cst_281 = arith.constant dense<0.000000e+00> : vector<2xf32>
    %642 = vector.multi_reduction <add>, %641, %cst_281 [1] : vector<2x128xf32> to vector<2xf32>
    %643 = vector.shape_cast %642 : vector<2xf32> to vector<2x1xf32>
    %cst_282 = arith.constant 1.280000e+02 : f32
    %644 = vector.broadcast %cst_282 : f32 to vector<2x1xf32>
    %645 = arith.divf %643, %644 : vector<2x1xf32>
    %646 = vector.broadcast %638 : vector<2x1xf32> to vector<2x128xf32>
    %647 = arith.subf %632, %646 : vector<2x128xf32>
    %cst_283 = arith.constant 9.99999974E-6 : f32
    %648 = vector.broadcast %cst_283 : f32 to vector<2x1xf32>
    %649 = arith.addf %645, %648 : vector<2x1xf32>
    %650 = math.rsqrt %649 : vector<2x1xf32>
    %651 = vector.broadcast %650 : vector<2x1xf32> to vector<2x128xf32>
    %652 = arith.mulf %647, %651 : vector<2x128xf32>
    %653 = vector.broadcast %633 : vector<1x128xf32> to vector<2x128xf32>
    %654 = arith.mulf %652, %653 : vector<2x128xf32>
    %655 = vector.broadcast %634 : vector<1x128xf32> to vector<2x128xf32>
    %656 = arith.addf %654, %655 : vector<2x128xf32>
    %c0_284 = arith.constant 0 : index
    %c0_285 = arith.constant 0 : index
    %657 = vector.load %arg24[%c0_284, %c0_285] : memref<128x64xf32, #tpu.memory_space<vmem>>, vector<128x64xf32>
    %cst_286 = arith.constant dense<0.000000e+00> : vector<2x64xf32>
    %658 = tpu.matmul %656, %657, %cst_286 {dimension_numbers = #tpu.dot_dimension_numbers<[1], [0], [0], [1], [0, 0, 1, 1], [], []>} : vector<2x128xf32>, vector<128x64xf32>, vector<2x64xf32> -> vector<2x64xf32>
    %c0_287 = arith.constant 0 : index
    %c0_288 = arith.constant 0 : index
    %659 = vector.load %arg25[%c0_287, %c0_288] : memref<1x64xf32, #tpu.memory_space<vmem>>, vector<1x64xf32>
    %660 = vector.broadcast %659 : vector<1x64xf32> to vector<2x64xf32>
    %661 = arith.addf %658, %660 : vector<2x64xf32>
    %cst_289 = arith.constant 0.000000e+00 : f32
    %662 = vector.broadcast %cst_289 : f32 to vector<2x64xf32>
    %663 = arith.cmpf ogt, %661, %662 : vector<2x64xf32>
    %cst_290 = arith.constant 0.00999999977 : f32
    %664 = vector.broadcast %cst_290 : f32 to vector<2x64xf32>
    %665 = arith.mulf %664, %661 : vector<2x64xf32>
    %666 = arith.select %663, %661, %665 : vector<2x64xi1>, vector<2x64xf32>
    %c0_291 = arith.constant 0 : index
    %c0_292 = arith.constant 0 : index
    %667 = vector.load %arg26[%c0_291, %c0_292] : memref<1x64xf32, #tpu.memory_space<vmem>>, vector<1x64xf32>
    %c0_293 = arith.constant 0 : index
    %c0_294 = arith.constant 0 : index
    %668 = vector.load %arg27[%c0_293, %c0_294] : memref<1x64xf32, #tpu.memory_space<vmem>>, vector<1x64xf32>
    %cst_295 = arith.constant dense<0.000000e+00> : vector<2xf32>
    %669 = vector.multi_reduction <add>, %666, %cst_295 [1] : vector<2x64xf32> to vector<2xf32>
    %670 = vector.shape_cast %669 : vector<2xf32> to vector<2x1xf32>
    %cst_296 = arith.constant 6.400000e+01 : f32
    %671 = vector.broadcast %cst_296 : f32 to vector<2x1xf32>
    %672 = arith.divf %670, %671 : vector<2x1xf32>
    %673 = vector.broadcast %672 : vector<2x1xf32> to vector<2x64xf32>
    %674 = arith.subf %666, %673 : vector<2x64xf32>
    %675 = arith.mulf %674, %674 : vector<2x64xf32>
    %cst_297 = arith.constant dense<0.000000e+00> : vector<2xf32>
    %676 = vector.multi_reduction <add>, %675, %cst_297 [1] : vector<2x64xf32> to vector<2xf32>
    %677 = vector.shape_cast %676 : vector<2xf32> to vector<2x1xf32>
    %cst_298 = arith.constant 6.400000e+01 : f32
    %678 = vector.broadcast %cst_298 : f32 to vector<2x1xf32>
    %679 = arith.divf %677, %678 : vector<2x1xf32>
    %680 = vector.broadcast %672 : vector<2x1xf32> to vector<2x64xf32>
    %681 = arith.subf %666, %680 : vector<2x64xf32>
    %cst_299 = arith.constant 9.99999974E-6 : f32
    %682 = vector.broadcast %cst_299 : f32 to vector<2x1xf32>
    %683 = arith.addf %679, %682 : vector<2x1xf32>
    %684 = math.rsqrt %683 : vector<2x1xf32>
    %685 = vector.broadcast %684 : vector<2x1xf32> to vector<2x64xf32>
    %686 = arith.mulf %681, %685 : vector<2x64xf32>
    %687 = vector.broadcast %667 : vector<1x64xf32> to vector<2x64xf32>
    %688 = arith.mulf %686, %687 : vector<2x64xf32>
    %689 = vector.broadcast %668 : vector<1x64xf32> to vector<2x64xf32>
    %690 = arith.addf %688, %689 : vector<2x64xf32>
    %c0_300 = arith.constant 0 : index
    %c0_301 = arith.constant 0 : index
    %691 = vector.load %arg28[%c0_300, %c0_301] : memref<64x32xf32, #tpu.memory_space<vmem>>, vector<64x32xf32>
    %cst_302 = arith.constant dense<0.000000e+00> : vector<2x32xf32>
    %692 = tpu.matmul %690, %691, %cst_302 {dimension_numbers = #tpu.dot_dimension_numbers<[1], [0], [0], [1], [0, 0, 1, 1], [], []>} : vector<2x64xf32>, vector<64x32xf32>, vector<2x32xf32> -> vector<2x32xf32>
    %c0_303 = arith.constant 0 : index
    %c0_304 = arith.constant 0 : index
    %693 = vector.load %arg29[%c0_303, %c0_304] : memref<1x32xf32, #tpu.memory_space<vmem>>, vector<1x32xf32>
    %694 = vector.broadcast %693 : vector<1x32xf32> to vector<2x32xf32>
    %695 = arith.addf %692, %694 : vector<2x32xf32>
    %cst_305 = arith.constant 0.000000e+00 : f32
    %696 = vector.broadcast %cst_305 : f32 to vector<2x32xf32>
    %697 = arith.cmpf ogt, %695, %696 : vector<2x32xf32>
    %cst_306 = arith.constant 0.00999999977 : f32
    %698 = vector.broadcast %cst_306 : f32 to vector<2x32xf32>
    %699 = arith.mulf %698, %695 : vector<2x32xf32>
    %700 = arith.select %697, %695, %699 : vector<2x32xi1>, vector<2x32xf32>
    %c0_307 = arith.constant 0 : index
    %c0_308 = arith.constant 0 : index
    %701 = vector.load %arg32[%c0_307, %c0_308] : memref<2x32xf32, #tpu.memory_space<vmem>>, vector<2x32xf32>
    tpu.vector_store %arg32[%c0_307, %c0_308], %700 {strides = array<i32>} : memref<2x32xf32, #tpu.memory_space<vmem>>, vector<2x32xf32>,
    %c0_309 = arith.constant 0 : index
    %c0_310 = arith.constant 0 : index
    %702 = vector.load %arg30[%c0_309, %c0_310] : memref<32x5xf32, #tpu.memory_space<vmem>>, vector<32x5xf32>
    %cst_311 = arith.constant dense<0.000000e+00> : vector<2x5xf32>
    %703 = tpu.matmul %700, %702, %cst_311 {dimension_numbers = #tpu.dot_dimension_numbers<[1], [0], [0], [1], [0, 0, 1, 1], [], []>} : vector<2x32xf32>, vector<32x5xf32>, vector<2x5xf32> -> vector<2x5xf32>
    %c0_312 = arith.constant 0 : index
    %c0_313 = arith.constant 0 : index
    %704 = vector.load %arg31[%c0_312, %c0_313] : memref<1x5xf32, #tpu.memory_space<vmem>>, vector<1x5xf32>
    %705 = vector.broadcast %704 : vector<1x5xf32> to vector<2x5xf32>
    %706 = arith.addf %703, %705 : vector<2x5xf32>
    %c0_314 = arith.constant 0 : index
    %c0_315 = arith.constant 0 : index
    %707 = vector.load %arg33[%c0_314, %c0_315] : memref<2x5xf32, #tpu.memory_space<vmem>>, vector<2x5xf32>
    tpu.vector_store %arg33[%c0_314, %c0_315], %706 {strides = array<i32>} : memref<2x5xf32, #tpu.memory_space<vmem>>, vector<2x5xf32>,
    return
  }
}

</mosaic_0001>

<llo_original>
// kernel: tpu_custom_call.1
$region0: #{tpu_custom_call.1}
  #allocation0 [shape = 'u32[]', space=smem, size = 0x4, offset = 0x4, fixed_abs, tag = 'smem constant byte address 0x4 - core index']
  #allocation1 [shape = 'u32[144,128]{1,0:T(1,128)}', space=vmem, size = 0x12000, scoped, tag = 'internal scratch']
  #allocation2 [shape = 'f32[16,32]{1,0:T(8,128)}', space=vmem, size = 0x2000, scoped, tag = 'scratch operand']
  %s0 = inlined_call_operand.smem [shape: u32[34], index: -1, kind: input, shape index: {}]
  %s1 = sld [smem:[%s0]]
  %s2 = scalar_lea.smem %s0, 1
  %s3 = sld [smem:[%s2]]
  %s4 = scalar_lea.smem %s0, 2
  %s5 = sld [smem:[%s4]]
  %s6 = scalar_lea.smem %s0, 3
  %s7 = sld [smem:[%s6]]
  %s8 = scalar_lea.smem %s0, 4
  %s9 = sld [smem:[%s8]]
  %s10 = scalar_lea.smem %s0, 5
  %s11 = sld [smem:[%s10]]
  %s12 = scalar_lea.smem %s0, 6
  %s13 = sld [smem:[%s12]]
  %s14 = scalar_lea.smem %s0, 7
  %s15 = sld [smem:[%s14]]
  %s16 = scalar_lea.smem %s0, 8
  %s17 = sld [smem:[%s16]]
  %s18 = scalar_lea.smem %s0, 9
  %s19 = sld [smem:[%s18]]
  %s20 = scalar_lea.smem %s0, 10
  %s21 = sld [smem:[%s20]]
  %s22 = scalar_lea.smem %s0, 11
  %s23 = sld [smem:[%s22]]
  %s24 = scalar_lea.smem %s0, 12
  %s25 = sld [smem:[%s24]]
  %s26 = scalar_lea.smem %s0, 13
  %s27 = sld [smem:[%s26]]
  %s28 = scalar_lea.smem %s0, 14
  %s29 = sld [smem:[%s28]]
  %s30 = scalar_lea.smem %s0, 15
  %s31 = sld [smem:[%s30]]
  %s32 = scalar_lea.smem %s0, 16
  %s33 = sld [smem:[%s32]]
  %s34 = scalar_lea.smem %s0, 17
  %s35 = sld [smem:[%s34]]
  %s36 = scalar_lea.smem %s0, 18
  %s37 = sld [smem:[%s36]]
  %s38 = scalar_lea.smem %s0, 19
  %s39 = sld [smem:[%s38]]
  %s40 = scalar_lea.smem %s0, 20
  %s41 = sld [smem:[%s40]]
  %s42 = scalar_lea.smem %s0, 21
  %s43 = sld [smem:[%s42]]
  %s44 = scalar_lea.smem %s0, 22
  %s45 = sld [smem:[%s44]]
  %s46 = scalar_lea.smem %s0, 23
  %s47 = sld [smem:[%s46]]
  %s48 = scalar_lea.smem %s0, 24
  %s49 = sld [smem:[%s48]]
  %s50 = scalar_lea.smem %s0, 25
  %s51 = sld [smem:[%s50]]
  %s52 = scalar_lea.smem %s0, 26
  %s53 = sld [smem:[%s52]]
  %s54 = scalar_lea.smem %s0, 27
  %s55 = sld [smem:[%s54]]
  %s56 = scalar_lea.smem %s0, 28
  %s57 = sld [smem:[%s56]]
  %s58 = scalar_lea.smem %s0, 29
  %s59 = sld [smem:[%s58]]
  %s60 = scalar_lea.smem %s0, 30
  %s61 = sld [smem:[%s60]]
  %s62 = scalar_lea.smem %s0, 31
  %s63 = sld [smem:[%s62]]
  %s64 = scalar_lea.smem %s0, 32
  %s65 = sld [smem:[%s64]]
  %s66 = scalar_lea.smem %s0, 33
  %s67 = sld [smem:[%s66]]
  %68 = xla_tuple %s65, %s67
  %s69 = sld [smem:[#allocation0]]
  $region214: #{tpu_custom_call.1} parent=0
    _
  %s71 = ssub.s32 1, %s69
  %s72 = scalar_select 0, %s71, %s69
  $region1: #{tpu_custom_call.1} parent=0
    #allocation3 [shape = 'u8[512]{0}', space=smem, size = 0x200, scoped, tag = 'input window, operand 0, single buffered']
    #allocation4 [shape = 's32[1]{0}', space=sflag, size = 0x4, scoped, tag = 'scoped memory for tpu_custom_call.1']
    #allocation5 [shape = 's32[1]{0}', space=sflag, size = 0x4, scoped, tag = 'scoped memory for tpu_custom_call.1']
    #allocation6 [shape = 's32[1]{0}', space=sflag, size = 0x4, scoped, tag = 'scoped memory for tpu_custom_call.1']
    #allocation7 [shape = 'u8[16384]{0}', space=vmem, size = 0x4000, scoped, tag = 'input window, operand 2, single buffered']
    #allocation8 [shape = 'u8[12288]{0}', space=vmem, size = 0x3000, scoped, tag = 'input window, operand 3, single buffered']
    #allocation9 [shape = 's32[1]{0}', space=sflag, size = 0x4, scoped, tag = 'scoped memory for tpu_custom_call.1']
    #allocation10 [shape = 'u8[2048]{0}', space=vmem, size = 0x800, scoped, tag = 'input window, operand 5, single buffered']
    #allocation11 [shape = 'u8[2048]{0}', space=vmem, size = 0x800, scoped, tag = 'input window, operand 7, single buffered']
    #allocation12 [shape = 's32[1]{0}', space=sflag, size = 0x4, scoped, tag = 'scoped memory for tpu_custom_call.1']
    #allocation13 [shape = 'u8[2048]{0}', space=vmem, size = 0x800, scoped, tag = 'input window, operand 9, single buffered']
    #allocation14 [shape = 'u8[2048]{0}', space=vmem, size = 0x800, scoped, tag = 'input window, operand 11, single buffered']
    #allocation15 [shape = 's32[1]{0}', space=sflag, size = 0x4, scoped, tag = 'scoped memory for tpu_custom_call.1']
    #allocation16 [shape = 'u8[2048]{0}', space=vmem, size = 0x800, scoped, tag = 'input window, operand 12, single buffered']
    #allocation17 [shape = 'u8[2048]{0}', space=vmem, size = 0x800, scoped, tag = 'input window, operand 13, single buffered']
    #allocation18 [shape = 's32[1]{0}', space=sflag, size = 0x4, scoped, tag = 'scoped memory for tpu_custom_call.1']
    #allocation19 [shape = 'u8[2048]{0}', space=vmem, size = 0x800, scoped, tag = 'input window, operand 14, single buffered']
    #allocation20 [shape = 'u8[2048]{0}', space=vmem, size = 0x800, scoped, tag = 'input window, operand 15, single buffered']
    #allocation21 [shape = 's32[1]{0}', space=sflag, size = 0x4, scoped, tag = 'scoped memory for tpu_custom_call.1']
    #allocation22 [shape = 'u8[512]{0}', space=vmem, size = 0x400, scoped, tag = 'input window, operand 19, single buffered']
    #allocation23 [shape = 'u8[32768]{0}', space=vmem, size = 0x8000, scoped, tag = 'input window, operand 20, single buffered']
    #allocation24 [shape = 's32[1]{0}', space=sflag, size = 0x4, scoped, tag = 'scoped memory for tpu_custom_call.1']
    #allocation25 [shape = 'u8[512]{0}', space=vmem, size = 0x400, scoped, tag = 'input window, operand 21, single buffered']
    #allocation26 [shape = 'u8[512]{0}', space=vmem, size = 0x400, scoped, tag = 'input window, operand 22, single buffered']
    #allocation27 [shape = 's32[1]{0}', space=sflag, size = 0x4, scoped, tag = 'scoped memory for tpu_custom_call.1']
    #allocation28 [shape = 'u8[512]{0}', space=vmem, size = 0x400, scoped, tag = 'input window, operand 23, single buffered']
    #allocation29 [shape = 'u8[512]{0}', space=vmem, size = 0x400, scoped, tag = 'input window, operand 25, single buffered']
    #allocation30 [shape = 's32[1]{0}', space=sflag, size = 0x4, scoped, tag = 'scoped memory for tpu_custom_call.1']
    #allocation31 [shape = 'u8[1024]{0}', space=vmem, size = 0x400, scoped, tag = 'output window, operand 0, single buffered']
    #allocation32 [shape = 'u8[1024]{0}', space=vmem, size = 0x400, scoped, tag = 'output window, operand 1, single buffered']
    #allocation33 [shape = 's32[1]{0}', space=sflag, size = 0x4, scoped, tag = 'scoped memory for tpu_custom_call.1']
    %73 = vsyncpa [#allocation6], 0
    %74 = vsyncpa [#allocation4], 0
    %75 = vsyncpa [#allocation9], 0
    %76 = vsyncpa [#allocation12], 0
    %77 = vsyncpa [#allocation15], 0
    %78 = vsyncpa [#allocation18], 0
    %79 = vsyncpa [#allocation21], 0
    %80 = vsyncpa [#allocation24], 0
    %81 = vsyncpa [#allocation27], 0
    %82 = vsyncpa [#allocation30], 0
    %83 = vsyncpa [#allocation5], 0
    %84 = vsyncpa [#allocation33], 0
    // Predicated region
    $region2: #{tpu_custom_call.1} parent=1 // pred_check
      _
    $region3: #{tpu_custom_call.1} parent=1 // pred_check_branch
      %86 = sbr.rel (0) target = $region5
    $region4: #{tpu_custom_call.1} parent=1 // pred_region
      %s88 = ssub.s32 16, 16
      %89 = vsyncadd [#allocation6], %s88
      %92 = dma.hbm_to_smem %s1, 16, [#allocation3], [#allocation6]
    $region5: #{tpu_custom_call.1} parent=1 // pred_fallthru
      _
    // Predicated region
    $region6: #{tpu_custom_call.1} parent=1 // pred_check
      _
    $region7: #{tpu_custom_call.1} parent=1 // pred_check_branch
      %94 = sbr.rel (0) target = $region9
    $region8: #{tpu_custom_call.1} parent=1 // pred_region
      _
    $region9: #{tpu_custom_call.1} parent=1 // pred_fallthru
      _
    // Predicated region
    $region10: #{tpu_custom_call.1} parent=1 // pred_check
      _
    $region11: #{tpu_custom_call.1} parent=1 // pred_check_branch
      %96 = sbr.rel (0) target = $region13
    $region12: #{tpu_custom_call.1} parent=1 // pred_region
      %s98 = ssub.s32 512, 512
      %99 = vsyncadd [#allocation4], %s98
      %s100 = sshll.u32 [#allocation7], 4
      %s101 = int_to_ptr.vmem [resolvable:$true] %s100
      %106 = dma.hbm_to_vmem [thread:$0]  %s5, 512, %s101, [#allocation4], 128, 128, 8
    $region13: #{tpu_custom_call.1} parent=1 // pred_fallthru
      _
    // Predicated region
    $region14: #{tpu_custom_call.1} parent=1 // pred_check
      _
    $region15: #{tpu_custom_call.1} parent=1 // pred_check_branch
      %108 = sbr.rel (0) target = $region17
    $region16: #{tpu_custom_call.1} parent=1 // pred_region
      %s110 = ssub.s32 384, 384
      %111 = vsyncadd [#allocation9], %s110
      %s113 = sshll.u32 [#allocation8], 4
      %s114 = int_to_ptr.vmem [resolvable:$true] %s113
      %116 = dma.hbm_to_vmem [thread:$0]  %s7, 384, %s114, [#allocation9]
    $region17: #{tpu_custom_call.1} parent=1 // pred_fallthru
      _
    // Predicated region
    $region18: #{tpu_custom_call.1} parent=1 // pred_check
      _
    $region19: #{tpu_custom_call.1} parent=1 // pred_check_branch
      %118 = sbr.rel (0) target = $region21
    $region20: #{tpu_custom_call.1} parent=1 // pred_region
      _
    $region21: #{tpu_custom_call.1} parent=1 // pred_fallthru
      _
    // Predicated region
    $region22: #{tpu_custom_call.1} parent=1 // pred_check
      _
    $region23: #{tpu_custom_call.1} parent=1 // pred_check_branch
      %120 = sbr.rel (0) target = $region25
    $region24: #{tpu_custom_call.1} parent=1 // pred_region
      %s122 = ssub.s32 64, 64
      %123 = vsyncadd [#allocation9], %s122
      %s124 = sshll.u32 [#allocation10], 4
      %s125 = int_to_ptr.vmem [resolvable:$true] %s124
      %130 = dma.hbm_to_vmem [thread:$0]  %s11, 64, %s125, [#allocation9], 16, 16, 1
    $region25: #{tpu_custom_call.1} parent=1 // pred_fallthru
      _
    // Predicated region
    $region26: #{tpu_custom_call.1} parent=1 // pred_check
      _
    $region27: #{tpu_custom_call.1} parent=1 // pred_check_branch
      %132 = sbr.rel (0) target = $region29
    $region28: #{tpu_custom_call.1} parent=1 // pred_region
      _
    $region29: #{tpu_custom_call.1} parent=1 // pred_fallthru
      _
    // Predicated region
    $region30: #{tpu_custom_call.1} parent=1 // pred_check
      _
    $region31: #{tpu_custom_call.1} parent=1 // pred_check_branch
      %134 = sbr.rel (0) target = $region33
    $region32: #{tpu_custom_call.1} parent=1 // pred_region
      %s136 = ssub.s32 64, 64
      %137 = vsyncadd [#allocation12], %s136
      %s138 = sshll.u32 [#allocation11], 4
      %s139 = int_to_ptr.vmem [resolvable:$true] %s138
      %144 = dma.hbm_to_vmem [thread:$0]  %s15, 64, %s139, [#allocation12], 16, 16, 1
    $region33: #{tpu_custom_call.1} parent=1 // pred_fallthru
      _
    // Predicated region
    $region34: #{tpu_custom_call.1} parent=1 // pred_check
      _
    $region35: #{tpu_custom_call.1} parent=1 // pred_check_branch
      %146 = sbr.rel (0) target = $region37
    $region36: #{tpu_custom_call.1} parent=1 // pred_region
      _
    $region37: #{tpu_custom_call.1} parent=1 // pred_fallthru
      _
    // Predicated region
    $region38: #{tpu_custom_call.1} parent=1 // pred_check
      _
    $region39: #{tpu_custom_call.1} parent=1 // pred_check_branch
      %148 = sbr.rel (0) target = $region41
    $region40: #{tpu_custom_call.1} parent=1 // pred_region
      %s150 = ssub.s32 64, 64
      %151 = vsyncadd [#allocation12], %s150
      %s152 = sshll.u32 [#allocation13], 4
      %s153 = int_to_ptr.vmem [resolvable:$true] %s152
      %158 = dma.hbm_to_vmem [thread:$0]  %s19, 64, %s153, [#allocation12], 16, 16, 1
    $region41: #{tpu_custom_call.1} parent=1 // pred_fallthru
      _
    // Predicated region
    $region42: #{tpu_custom_call.1} parent=1 // pred_check
      _
    $region43: #{tpu_custom_call.1} parent=1 // pred_check_branch
      %160 = sbr.rel (0) target = $region45
    $region44: #{tpu_custom_call.1} parent=1 // pred_region
      _
    $region45: #{tpu_custom_call.1} parent=1 // pred_fallthru
      _
    // Predicated region
    $region46: #{tpu_custom_call.1} parent=1 // pred_check
      _
    $region47: #{tpu_custom_call.1} parent=1 // pred_check_branch
      %162 = sbr.rel (0) target = $region49
    $region48: #{tpu_custom_call.1} parent=1 // pred_region
      %s164 = ssub.s32 64, 64
      %165 = vsyncadd [#allocation15], %s164
      %s166 = sshll.u32 [#allocation14], 4
      %s167 = int_to_ptr.vmem [resolvable:$true] %s166
      %172 = dma.hbm_to_vmem [thread:$0]  %s23, 64, %s167, [#allocation15], 16, 16, 1
    $region49: #{tpu_custom_call.1} parent=1 // pred_fallthru
      _
    // Predicated region
    $region50: #{tpu_custom_call.1} parent=1 // pred_check
      _
    $region51: #{tpu_custom_call.1} parent=1 // pred_check_branch
      %174 = sbr.rel (0) target = $region53
    $region52: #{tpu_custom_call.1} parent=1 // pred_region
      %s176 = ssub.s32 64, 64
      %177 = vsyncadd [#allocation15], %s176
      %s178 = sshll.u32 [#allocation16], 4
      %s179 = int_to_ptr.vmem [resolvable:$true] %s178
      %184 = dma.hbm_to_vmem [thread:$0]  %s25, 64, %s179, [#allocation15], 16, 16, 1
    $region53: #{tpu_custom_call.1} parent=1 // pred_fallthru
      _
    // Predicated region
    $region54: #{tpu_custom_call.1} parent=1 // pred_check
      _
    $region55: #{tpu_custom_call.1} parent=1 // pred_check_branch
      %186 = sbr.rel (0) target = $region57
    $region56: #{tpu_custom_call.1} parent=1 // pred_region
      %s188 = ssub.s32 64, 64
      %189 = vsyncadd [#allocation18], %s188
      %s190 = sshll.u32 [#allocation17], 4
      %s191 = int_to_ptr.vmem [resolvable:$true] %s190
      %196 = dma.hbm_to_vmem [thread:$0]  %s27, 64, %s191, [#allocation18], 16, 16, 1
    $region57: #{tpu_custom_call.1} parent=1 // pred_fallthru
      _
    // Predicated region
    $region58: #{tpu_custom_call.1} parent=1 // pred_check
      _
    $region59: #{tpu_custom_call.1} parent=1 // pred_check_branch
      %198 = sbr.rel (0) target = $region61
    $region60: #{tpu_custom_call.1} parent=1 // pred_region
      %s200 = ssub.s32 64, 64
      %201 = vsyncadd [#allocation18], %s200
      %s202 = sshll.u32 [#allocation19], 4
      %s203 = int_to_ptr.vmem [resolvable:$true] %s202
      %208 = dma.hbm_to_vmem [thread:$0]  %s29, 64, %s203, [#allocation18], 16, 16, 1
    $region61: #{tpu_custom_call.1} parent=1 // pred_fallthru
      _
    // Predicated region
    $region62: #{tpu_custom_call.1} parent=1 // pred_check
      _
    $region63: #{tpu_custom_call.1} parent=1 // pred_check_branch
      %210 = sbr.rel (0) target = $region65
    $region64: #{tpu_custom_call.1} parent=1 // pred_region
      %s212 = ssub.s32 64, 64
      %213 = vsyncadd [#allocation21], %s212
      %s214 = sshll.u32 [#allocation20], 4
      %s215 = int_to_ptr.vmem [resolvable:$true] %s214
      %220 = dma.hbm_to_vmem [thread:$0]  %s31, 64, %s215, [#allocation21], 16, 16, 1
    $region65: #{tpu_custom_call.1} parent=1 // pred_fallthru
      _
    // Predicated region
    $region66: #{tpu_custom_call.1} parent=1 // pred_check
      _
    $region67: #{tpu_custom_call.1} parent=1 // pred_check_branch
      %222 = sbr.rel (0) target = $region69
    $region68: #{tpu_custom_call.1} parent=1 // pred_region
      _
    $region69: #{tpu_custom_call.1} parent=1 // pred_fallthru
      _
    // Predicated region
    $region70: #{tpu_custom_call.1} parent=1 // pred_check
      _
    $region71: #{tpu_custom_call.1} parent=1 // pred_check_branch
      %224 = sbr.rel (0) target = $region73
    $region72: #{tpu_custom_call.1} parent=1 // pred_region
      _
    $region73: #{tpu_custom_call.1} parent=1 // pred_fallthru
      _
    // Predicated region
    $region74: #{tpu_custom_call.1} parent=1 // pred_check
      _
    $region75: #{tpu_custom_call.1} parent=1 // pred_check_branch
      %226 = sbr.rel (0) target = $region77
    $region76: #{tpu_custom_call.1} parent=1 // pred_region
      _
    $region77: #{tpu_custom_call.1} parent=1 // pred_fallthru
      _
    // Predicated region
    $region78: #{tpu_custom_call.1} parent=1 // pred_check
      _
    $region79: #{tpu_custom_call.1} parent=1 // pred_check_branch
      %228 = sbr.rel (0) target = $region81
    $region80: #{tpu_custom_call.1} parent=1 // pred_region
      %s230 = ssub.s32 16, 16
      %231 = vsyncadd [#allocation21], %s230
      %s233 = sshll.u32 [#allocation22], 4
      %s234 = int_to_ptr.vmem [resolvable:$true] %s233
      %236 = dma.hbm_to_vmem [thread:$0]  %s39, 16, %s234, [#allocation21]
    $region81: #{tpu_custom_call.1} parent=1 // pred_fallthru
      _
    // Predicated region
    $region82: #{tpu_custom_call.1} parent=1 // pred_check
      _
    $region83: #{tpu_custom_call.1} parent=1 // pred_check_branch
      %238 = sbr.rel (0) target = $region85
    $region84: #{tpu_custom_call.1} parent=1 // pred_region
      %s240 = ssub.s32 1024, 1024
      %241 = vsyncadd [#allocation24], %s240
      %s242 = sshll.u32 [#allocation23], 4
      %s243 = int_to_ptr.vmem [resolvable:$true] %s242
      %248 = dma.hbm_to_vmem [thread:$0]  %s41, 1024, %s243, [#allocation24], 128, 128, 8
    $region85: #{tpu_custom_call.1} parent=1 // pred_fallthru
      _
    // Predicated region
    $region86: #{tpu_custom_call.1} parent=1 // pred_check
      _
    $region87: #{tpu_custom_call.1} parent=1 // pred_check_branch
      %250 = sbr.rel (0) target = $region89
    $region88: #{tpu_custom_call.1} parent=1 // pred_region
      %s252 = ssub.s32 16, 16
      %253 = vsyncadd [#allocation24], %s252
      %s255 = sshll.u32 [#allocation25], 4
      %s256 = int_to_ptr.vmem [resolvable:$true] %s255
      %258 = dma.hbm_to_vmem [thread:$0]  %s43, 16, %s256, [#allocation24]
    $region89: #{tpu_custom_call.1} parent=1 // pred_fallthru
      _
    // Predicated region
    $region90: #{tpu_custom_call.1} parent=1 // pred_check
      _
    $region91: #{tpu_custom_call.1} parent=1 // pred_check_branch
      %260 = sbr.rel (0) target = $region93
    $region92: #{tpu_custom_call.1} parent=1 // pred_region
      %s262 = ssub.s32 16, 16
      %263 = vsyncadd [#allocation27], %s262
      %s265 = sshll.u32 [#allocation26], 4
      %s266 = int_to_ptr.vmem [resolvable:$true] %s265
      %268 = dma.hbm_to_vmem [thread:$0]  %s45, 16, %s266, [#allocation27]
    $region93: #{tpu_custom_call.1} parent=1 // pred_fallthru
      _
    // Predicated region
    $region94: #{tpu_custom_call.1} parent=1 // pred_check
      _
    $region95: #{tpu_custom_call.1} parent=1 // pred_check_branch
      %270 = sbr.rel (0) target = $region97
    $region96: #{tpu_custom_call.1} parent=1 // pred_region
      %s272 = ssub.s32 16, 16
      %273 = vsyncadd [#allocation27], %s272
      %s275 = sshll.u32 [#allocation28], 4
      %s276 = int_to_ptr.vmem [resolvable:$true] %s275
      %278 = dma.hbm_to_vmem [thread:$0]  %s47, 16, %s276, [#allocation27]
    $region97: #{tpu_custom_call.1} parent=1 // pred_fallthru
      _
    // Predicated region
    $region98: #{tpu_custom_call.1} parent=1 // pred_check
      _
    $region99: #{tpu_custom_call.1} parent=1 // pred_check_branch
      %280 = sbr.rel (0) target = $region101
    $region100: #{tpu_custom_call.1} parent=1 // pred_region
      _
    $region101: #{tpu_custom_call.1} parent=1 // pred_fallthru
      _
    // Predicated region
    $region102: #{tpu_custom_call.1} parent=1 // pred_check
      _
    $region103: #{tpu_custom_call.1} parent=1 // pred_check_branch
      %282 = sbr.rel (0) target = $region105
    $region104: #{tpu_custom_call.1} parent=1 // pred_region
      %s284 = ssub.s32 16, 16
      %285 = vsyncadd [#allocation30], %s284
      %s287 = sshll.u32 [#allocation29], 4
      %s288 = int_to_ptr.vmem [resolvable:$true] %s287
      %290 = dma.hbm_to_vmem [thread:$0]  %s51, 16, %s288, [#allocation30]
    $region105: #{tpu_custom_call.1} parent=1 // pred_fallthru
      _
    // Predicated region
    $region106: #{tpu_custom_call.1} parent=1 // pred_check
      _
    $region107: #{tpu_custom_call.1} parent=1 // pred_check_branch
      %292 = sbr.rel (0) target = $region109
    $region108: #{tpu_custom_call.1} parent=1 // pred_region
      _
    $region109: #{tpu_custom_call.1} parent=1 // pred_fallthru
      _
    // Predicated region
    $region110: #{tpu_custom_call.1} parent=1 // pred_check
      _
    $region111: #{tpu_custom_call.1} parent=1 // pred_check_branch
      %294 = sbr.rel (0) target = $region113
    $region112: #{tpu_custom_call.1} parent=1 // pred_region
      _
    $region113: #{tpu_custom_call.1} parent=1 // pred_fallthru
      _
    // Predicated region
    $region114: #{tpu_custom_call.1} parent=1 // pred_check
      _
    $region115: #{tpu_custom_call.1} parent=1 // pred_check_branch
      %296 = sbr.rel (0) target = $region117
    $region116: #{tpu_custom_call.1} parent=1 // pred_region
      _
    $region117: #{tpu_custom_call.1} parent=1 // pred_fallthru
      _
    // Predicated region
    $region118: #{tpu_custom_call.1} parent=1 // pred_check
      _
    $region119: #{tpu_custom_call.1} parent=1 // pred_check_branch
      %298 = sbr.rel (0) target = $region121
    $region120: #{tpu_custom_call.1} parent=1 // pred_region
      _
    $region121: #{tpu_custom_call.1} parent=1 // pred_fallthru
      _
    // Predicated region
    $region122: #{tpu_custom_call.1} parent=1 // pred_check
      _
    $region123: #{tpu_custom_call.1} parent=1 // pred_check_branch
      %300 = sbr.rel (0) target = $region125
    $region124: #{tpu_custom_call.1} parent=1 // pred_region
      _
    $region125: #{tpu_custom_call.1} parent=1 // pred_fallthru
      _
    // Predicated region
    $region126: #{tpu_custom_call.1} parent=1 // pred_check
      _
    $region127: #{tpu_custom_call.1} parent=1 // pred_check_branch
      %302 = sbr.rel (0) target = $region129
    $region128: #{tpu_custom_call.1} parent=1 // pred_region
      _
    $region129: #{tpu_custom_call.1} parent=1 // pred_fallthru
      _
    // Predicated region
    $region130: #{tpu_custom_call.1} parent=1 // pred_check
      _
    $region131: #{tpu_custom_call.1} parent=1 // pred_check_branch
      %304 = sbr.rel (0) target = $region133
    $region132: #{tpu_custom_call.1} parent=1 // pred_region
      %305 = dma.done [#allocation6], 16
    $region133: #{tpu_custom_call.1} parent=1 // pred_fallthru
      _
    // Predicated region
    $region134: #{tpu_custom_call.1} parent=1 // pred_check
      _
    $region135: #{tpu_custom_call.1} parent=1 // pred_check_branch
      %307 = sbr.rel (0) target = $region137
    $region136: #{tpu_custom_call.1} parent=1 // pred_region
      %308 = dma.done [#allocation4], 512
    $region137: #{tpu_custom_call.1} parent=1 // pred_fallthru
      _
    // Predicated region
    $region138: #{tpu_custom_call.1} parent=1 // pred_check
      _
    $region139: #{tpu_custom_call.1} parent=1 // pred_check_branch
      %310 = sbr.rel (0) target = $region141
    $region140: #{tpu_custom_call.1} parent=1 // pred_region
      %311 = dma.done [#allocation9], 384
    $region141: #{tpu_custom_call.1} parent=1 // pred_fallthru
      _
    // Predicated region
    $region142: #{tpu_custom_call.1} parent=1 // pred_check
      _
    $region143: #{tpu_custom_call.1} parent=1 // pred_check_branch
      %313 = sbr.rel (0) target = $region145
    $region144: #{tpu_custom_call.1} parent=1 // pred_region
      %314 = dma.done [#allocation9], 64
    $region145: #{tpu_custom_call.1} parent=1 // pred_fallthru
      _
    // Predicated region
    $region146: #{tpu_custom_call.1} parent=1 // pred_check
      _
    $region147: #{tpu_custom_call.1} parent=1 // pred_check_branch
      %316 = sbr.rel (0) target = $region149
    $region148: #{tpu_custom_call.1} parent=1 // pred_region
      %317 = dma.done [#allocation12], 64
    $region149: #{tpu_custom_call.1} parent=1 // pred_fallthru
      _
    // Predicated region
    $region150: #{tpu_custom_call.1} parent=1 // pred_check
      _
    $region151: #{tpu_custom_call.1} parent=1 // pred_check_branch
      %319 = sbr.rel (0) target = $region153
    $region152: #{tpu_custom_call.1} parent=1 // pred_region
      %320 = dma.done [#allocation12], 64
    $region153: #{tpu_custom_call.1} parent=1 // pred_fallthru
      _
    // Predicated region
    $region154: #{tpu_custom_call.1} parent=1 // pred_check
      _
    $region155: #{tpu_custom_call.1} parent=1 // pred_check_branch
      %322 = sbr.rel (0) target = $region157
    $region156: #{tpu_custom_call.1} parent=1 // pred_region
      %323 = dma.done [#allocation15], 64
    $region157: #{tpu_custom_call.1} parent=1 // pred_fallthru
      _
    // Predicated region
    $region158: #{tpu_custom_call.1} parent=1 // pred_check
      _
    $region159: #{tpu_custom_call.1} parent=1 // pred_check_branch
      %325 = sbr.rel (0) target = $region161
    $region160: #{tpu_custom_call.1} parent=1 // pred_region
      %326 = dma.done [#allocation15], 64
    $region161: #{tpu_custom_call.1} parent=1 // pred_fallthru
      _
    // Predicated region
    $region162: #{tpu_custom_call.1} parent=1 // pred_check
      _
    $region163: #{tpu_custom_call.1} parent=1 // pred_check_branch
      %328 = sbr.rel (0) target = $region165
    $region164: #{tpu_custom_call.1} parent=1 // pred_region
      %329 = dma.done [#allocation18], 64
    $region165: #{tpu_custom_call.1} parent=1 // pred_fallthru
      _
    // Predicated region
    $region166: #{tpu_custom_call.1} parent=1 // pred_check
      _
    $region167: #{tpu_custom_call.1} parent=1 // pred_check_branch
      %331 = sbr.rel (0) target = $region169
    $region168: #{tpu_custom_call.1} parent=1 // pred_region
      %332 = dma.done [#allocation18], 64
    $region169: #{tpu_custom_call.1} parent=1 // pred_fallthru
      _
    // Predicated region
    $region170: #{tpu_custom_call.1} parent=1 // pred_check
      _
    $region171: #{tpu_custom_call.1} parent=1 // pred_check_branch
      %334 = sbr.rel (0) target = $region173
    $region172: #{tpu_custom_call.1} parent=1 // pred_region
      %335 = dma.done [#allocation21], 64
    $region173: #{tpu_custom_call.1} parent=1 // pred_fallthru
      _
    // Predicated region
    $region174: #{tpu_custom_call.1} parent=1 // pred_check
      _
    $region175: #{tpu_custom_call.1} parent=1 // pred_check_branch
      %337 = sbr.rel (0) target = $region177
    $region176: #{tpu_custom_call.1} parent=1 // pred_region
      %338 = dma.done [#allocation21], 16
    $region177: #{tpu_custom_call.1} parent=1 // pred_fallthru
      _
    // Predicated region
    $region178: #{tpu_custom_call.1} parent=1 // pred_check
      _
    $region179: #{tpu_custom_call.1} parent=1 // pred_check_branch
      %340 = sbr.rel (0) target = $region181
    $region180: #{tpu_custom_call.1} parent=1 // pred_region
      %341 = dma.done [#allocation24], 1024
    $region181: #{tpu_custom_call.1} parent=1 // pred_fallthru
      _
    // Predicated region
    $region182: #{tpu_custom_call.1} parent=1 // pred_check
      _
    $region183: #{tpu_custom_call.1} parent=1 // pred_check_branch
      %343 = sbr.rel (0) target = $region185
    $region184: #{tpu_custom_call.1} parent=1 // pred_region
      %344 = dma.done [#allocation24], 16
    $region185: #{tpu_custom_call.1} parent=1 // pred_fallthru
      _
    // Predicated region
    $region186: #{tpu_custom_call.1} parent=1 // pred_check
      _
    $region187: #{tpu_custom_call.1} parent=1 // pred_check_branch
      %346 = sbr.rel (0) target = $region189
    $region188: #{tpu_custom_call.1} parent=1 // pred_region
      %347 = dma.done [#allocation27], 16
    $region189: #{tpu_custom_call.1} parent=1 // pred_fallthru
      _
    // Predicated region
    $region190: #{tpu_custom_call.1} parent=1 // pred_check
      _
    $region191: #{tpu_custom_call.1} parent=1 // pred_check_branch
      %349 = sbr.rel (0) target = $region193
    $region192: #{tpu_custom_call.1} parent=1 // pred_region
      %350 = dma.done [#allocation27], 16
    $region193: #{tpu_custom_call.1} parent=1 // pred_fallthru
      _
    // Predicated region
    $region194: #{tpu_custom_call.1} parent=1 // pred_check
      _
    $region195: #{tpu_custom_call.1} parent=1 // pred_check_branch
      %352 = sbr.rel (0) target = $region197
    $region196: #{tpu_custom_call.1} parent=1 // pred_region
      %353 = dma.done [#allocation30], 16
    $region197: #{tpu_custom_call.1} parent=1 // pred_fallthru
      _
    %354 = sfence
    %s356 = sld [smem:[#allocation3]]
    %s357 = scalar_lea.vmem [#allocation7], %s356
    %v358 = vld [vmem:[%s357] sm:$0xff]
    %vm359 = vcmask 261120
    %360 = vst.msk [vmem:[#allocation2] sm:$0xff] %vm359, %v358
    %s361 = sld [smem:[#allocation3 + $0x1]]
    %s362 = scalar_lea.vmem [#allocation7], %s361
    %v363 = vld [vmem:[%s362] sm:$0xff]
    %364 = vst.msk [vmem:[#allocation2 + $0x8] sm:$0xff] %vm359, %v363
    %v365 = vld [vmem:[#allocation2] sm:$0xff]
    %v366 = vld [vmem:[#allocation2 + $0x8] sm:$0xff]
    %v367 = vlaneseq
    %v368 = vand.u32 %v367, 127
    %v369 = vld [vmem:[%s3] sm:$0x3]
    %370 = vset.pattern.permute.xlu0 0
    %371 = vperm.xlu0 %370, %v369
    %v372 = vpop.permute.xlu0 %371
    %vm373 = vcmp.lt.s32.totalorder %v368, %v372
    %v374 = vsel %vm373, 0.0, -1e+30
    %v377 = vunpack.c.l.s4 1966171168
    %v378 = vunpack.c.0.s8 %v377
    %v379 = vlaneseq
    %v380 = vshrl.u32 %v379, 7
    %v381 = vsub.s32 %v378, %v380
    %v382 = vrot.slane %v374, %v381
    %v383 = vcombine.high %v382, %v382
    %v385 = vunpack.c.l.s4 1966171168
    %v386 = vunpack.c.0.s8 %v385
    %v387 = vlaneseq
    %v388 = vshrl.u32 %v387, 7
    %v389 = vsub.s32 %v386, %v388
    %v390 = vrot.slane %v382, %v389
    %v392 = vunpack.c.l.s4 1966171168
    %v393 = vunpack.c.0.s8 %v392
    %v394 = vlaneseq
    %v395 = vshrl.u32 %v394, 7
    %v396 = vsub.s32 %v393, %v395
    %v397 = vrot.slane %v383, %v396
    %v398 = vld [vmem:[%s9] sm:$0xff]
    %v399 = vld [vmem:[%s9 + $0x8] sm:$0xff]
    %v400 = vld [vmem:[%s9 + $0x10] sm:$0xff]
    %v401 = vld [vmem:[%s9 + $0x18] sm:$0xff]
    %v402 = vld [vmem:[#allocation10] sm:$0x1]
    %v404 = vlaneseq
    %v405 = vshrl.u32 %v404, 7
    %v406 = vsub.s32 0, %v405
    %v407 = vrot.slane %v402, %v406
    %v410 = vsel %vm359, %v365, 0
    %v413 = vsel %vm359, %v366, 0
    %415 = vmatprep.subr.mxu0 0.0
    %416 = vmatpush1.msra.mxu0 %v398
    %417 = vmatprep.subr.mxu0 0.0
    %418 = vmatpush1.msra.mxu0 %v399
    %419 = vmatprep.subr.mxu0 0.0
    %420 = vmatpush1.msra.mxu0 %v400
    %421 = vmatprep.subr.mxu0 0.0
    %422 = vmatpush1.msra.mxu0 %v401
    %423 = vmatprep.subr.mxu0 0.0
    %424 = vmatpush1.msra.mxu0 0.0
    %425 = vmatprep.subr.mxu0 0.0
    %426 = vmatpush1.msra.mxu0 0.0
    %427 = vmatprep.subr.mxu0 0.0
    %428 = vmatpush1.msra.mxu0 0.0
    %429 = vmatprep.subr.mxu0 0.0
    %430 = vmatpush1.msra.mxu0 0.0
    %431 = vmatprep.subr.mxu0 0.0
    %432 = vmatpush1.msra.mxu0 0.0
    %433 = vmatprep.subr.mxu0 0.0
    %434 = vmatpush1.msra.mxu0 0.0
    %435 = vmatprep.subr.mxu0 0.0
    %436 = vmatpush1.msra.mxu0 0.0
    %437 = vmatprep.subr.mxu0 0.0
    %438 = vmatpush1.msra.mxu0 0.0
    %439 = vmatprep.subr.mxu0 0.0
    %440 = vmatpush1.msra.mxu0 0.0
    %441 = vmatprep.subr.mxu0 0.0
    %442 = vmatpush1.msra.mxu0 0.0
    %443 = vmatprep.subr.mxu0 0.0
    %444 = vmatpush1.msra.mxu0 0.0
    %445 = vmatprep.subr.mxu0 0.0
    %446 = vmatpush1.msra.mxu0 0.0
    %447 = vmatprep.subr.mxu0 0.0
    %448 = vmatpush1.msra.mxu0 0.0
    %449 = vmatprep.subr.mxu0 0.0
    %450 = vmatpush1.msra.mxu0 0.0
    %451 = vmatprep.subr.mxu0 0.0
    %452 = vmatpush1.msra.mxu0 0.0
    %453 = vmatprep.subr.mxu0 0.0
    %454 = vmatpush1.msra.mxu0 0.0
    %455 = vmatprep.subr.mxu0 0.0
    %456 = vmatpush1.msra.mxu0 0.0
    %457 = vmatprep.subr.mxu0 0.0
    %458 = vmatpush1.msra.mxu0 0.0
    %459 = vmatprep.subr.mxu0 0.0
    %460 = vmatpush1.msra.mxu0 0.0
    %461 = vmatprep.subr.mxu0 0.0
    %462 = vmatpush1.msra.mxu0 0.0
    %463 = vmatprep.subr.mxu0 0.0
    %464 = vmatpush1.msra.mxu0 0.0
    %465 = vmatprep.subr.mxu0 0.0
    %466 = vmatpush1.msra.mxu0 0.0
    %467 = vmatprep.subr.mxu0 0.0
    %468 = vmatpush1.msra.mxu0 0.0
    %469 = vmatprep.subr.mxu0 0.0
    %470 = vmatpush1.msra.mxu0 0.0
    %471 = vmatprep.subr.mxu0 0.0
    %472 = vmatpush1.msra.mxu0 0.0
    %473 = vmatprep.subr.mxu0 0.0
    %474 = vmatpush1.msra.mxu0 0.0
    %475 = vmatprep.subr.mxu0 0.0
    %476 = vmatpush1.msra.mxu0 0.0
    %477 = vmatprep.subr.mxu0 0.0
    %478 = vmatpush1.msra.mxu0 0.0
    %479 = vmatprep.mubr.f32.mxu0 0.0
    %480 = vmatmul.mubr.f32.gmra.mrb[0].mxu0 %v410
    %v481 = vpop.f32.mrb[0].mxu0
    %v482 = vadd.f32 %v407, %v481
    %v483 = vpop.f32.mrb[0].mxu0
    %484 = vmatprep.mubr.f32.mxu0 0.0
    %485 = vmatmul.mubr.f32.gmra.mrb[0].mxu0 %v413
    %v486 = vpop.f32.mrb[0].mxu0
    %v487 = vadd.f32 %v407, %v486
    %v488 = vpop.f32.mrb[0].mxu0
    %489 = vdwg.mxu0
    %491 = vrot.lane.b32.xlu0 %v482, 96
    %v492 = vpop.permute.xlu0 %491
    %vm493 = vcmask 64512
    %v494 = vsel %vm493, %v482, 0
    %v496 = vsel %vm493, %v492, 0
    %498 = vmatprep.subr.mxu0 0.0
    %499 = vmatpush1.xpose.msra.mxu0 %v496
    %500 = vmatprep.subr.mxu0 0.0
    %501 = vmatpush1.xpose.msra.mxu0 0.0
    %502 = vmatprep.subr.mxu0 0.0
    %503 = vmatpush1.xpose.msra.mxu0 0.0
    %504 = vmatprep.subr.mxu0 0.0
    %505 = vmatpush1.xpose.msra.mxu0 0.0
    %506 = vmatprep.subr.mxu0 0.0
    %507 = vmatpush1.xpose.msra.mxu0 0.0
    %508 = vmatprep.subr.mxu0 0.0
    %509 = vmatpush1.xpose.msra.mxu0 0.0
    %510 = vmatprep.subr.mxu0 0.0
    %511 = vmatpush1.xpose.msra.mxu0 0.0
    %512 = vmatprep.subr.mxu0 0.0
    %513 = vmatpush1.xpose.msra.mxu0 0.0
    %514 = vmatprep.subr.mxu0 0.0
    %515 = vmatpush1.xpose.msra.mxu0 0.0
    %516 = vmatprep.subr.mxu0 0.0
    %517 = vmatpush1.xpose.msra.mxu0 0.0
    %518 = vmatprep.subr.mxu0 0.0
    %519 = vmatpush1.xpose.msra.mxu0 0.0
    %520 = vmatprep.subr.mxu0 0.0
    %521 = vmatpush1.xpose.msra.mxu0 0.0
    %522 = vmatprep.subr.mxu0 0.0
    %523 = vmatpush1.xpose.msra.mxu0 0.0
    %524 = vmatprep.subr.mxu0 0.0
    %525 = vmatpush1.xpose.msra.mxu0 0.0
    %526 = vmatprep.subr.mxu0 0.0
    %527 = vmatpush1.xpose.msra.mxu0 0.0
    %528 = vmatprep.subr.mxu0 0.0
    %529 = vmatpush1.xpose.msra.mxu0 0.0
    %530 = vmatprep.subr.mxu0 0.0
    %531 = vmatpush1.xpose.msra.mxu0 0.0
    %532 = vmatprep.subr.mxu0 0.0
    %533 = vmatpush1.xpose.msra.mxu0 0.0
    %534 = vmatprep.subr.mxu0 0.0
    %535 = vmatpush1.xpose.msra.mxu0 0.0
    %536 = vmatprep.subr.mxu0 0.0
    %537 = vmatpush1.xpose.msra.mxu0 0.0
    %538 = vmatprep.subr.mxu0 0.0
    %539 = vmatpush1.xpose.msra.mxu0 0.0
    %540 = vmatprep.subr.mxu0 0.0
    %541 = vmatpush1.xpose.msra.mxu0 0.0
    %542 = vmatprep.subr.mxu0 0.0
    %543 = vmatpush1.xpose.msra.mxu0 0.0
    %544 = vmatprep.subr.mxu0 0.0
    %545 = vmatpush1.xpose.msra.mxu0 0.0
    %546 = vmatprep.subr.mxu0 0.0
    %547 = vmatpush1.xpose.msra.mxu0 0.0
    %548 = vmatprep.subr.mxu0 0.0
    %549 = vmatpush1.xpose.msra.mxu0 0.0
    %550 = vmatprep.subr.mxu0 0.0
    %551 = vmatpush1.xpose.msra.mxu0 0.0
    %552 = vmatprep.subr.mxu0 0.0
    %553 = vmatpush1.xpose.msra.mxu0 0.0
    %554 = vmatprep.subr.mxu0 0.0
    %555 = vmatpush1.xpose.msra.mxu0 0.0
    %556 = vmatprep.subr.mxu0 0.0
    %557 = vmatpush1.xpose.msra.mxu0 0.0
    %558 = vmatprep.subr.mxu0 0.0
    %559 = vmatpush1.xpose.msra.mxu0 0.0
    %560 = vmatprep.subr.mxu0 0.0
    %561 = vmatpush1.xpose.msra.mxu0 0.0
    %562 = vmatprep.mubr.f32.mxu0 0.0
    %563 = vmatmul.mubr.f32.gmra.mrb[0].mxu0 %v494
    %v564 = vpop.f32.mrb[0].mxu0
    %v565 = vadd.f32 0.0, %v564
    %v566 = vpop.f32.mrb[0].mxu0
    %567 = vdwg.mxu0
    %569 = vrot.lane.b32.xlu0 %v487, 96
    %v570 = vpop.permute.xlu0 %569
    %v571 = vsel %vm493, %v487, 0
    %v573 = vsel %vm493, %v570, 0
    %575 = vmatprep.subr.mxu0 0.0
    %576 = vmatpush1.xpose.msra.mxu0 %v573
    %577 = vmatprep.subr.mxu0 0.0
    %578 = vmatpush1.xpose.msra.mxu0 0.0
    %579 = vmatprep.subr.mxu0 0.0
    %580 = vmatpush1.xpose.msra.mxu0 0.0
    %581 = vmatprep.subr.mxu0 0.0
    %582 = vmatpush1.xpose.msra.mxu0 0.0
    %583 = vmatprep.subr.mxu0 0.0
    %584 = vmatpush1.xpose.msra.mxu0 0.0
    %585 = vmatprep.subr.mxu0 0.0
    %586 = vmatpush1.xpose.msra.mxu0 0.0
    %587 = vmatprep.subr.mxu0 0.0
    %588 = vmatpush1.xpose.msra.mxu0 0.0
    %589 = vmatprep.subr.mxu0 0.0
    %590 = vmatpush1.xpose.msra.mxu0 0.0
    %591 = vmatprep.subr.mxu0 0.0
    %592 = vmatpush1.xpose.msra.mxu0 0.0
    %593 = vmatprep.subr.mxu0 0.0
    %594 = vmatpush1.xpose.msra.mxu0 0.0
    %595 = vmatprep.subr.mxu0 0.0
    %596 = vmatpush1.xpose.msra.mxu0 0.0
    %597 = vmatprep.subr.mxu0 0.0
    %598 = vmatpush1.xpose.msra.mxu0 0.0
    %599 = vmatprep.subr.mxu0 0.0
    %600 = vmatpush1.xpose.msra.mxu0 0.0
    %601 = vmatprep.subr.mxu0 0.0
    %602 = vmatpush1.xpose.msra.mxu0 0.0
    %603 = vmatprep.subr.mxu0 0.0
    %604 = vmatpush1.xpose.msra.mxu0 0.0
    %605 = vmatprep.subr.mxu0 0.0
    %606 = vmatpush1.xpose.msra.mxu0 0.0
    %607 = vmatprep.subr.mxu0 0.0
    %608 = vmatpush1.xpose.msra.mxu0 0.0
    %609 = vmatprep.subr.mxu0 0.0
    %610 = vmatpush1.xpose.msra.mxu0 0.0
    %611 = vmatprep.subr.mxu0 0.0
    %612 = vmatpush1.xpose.msra.mxu0 0.0
    %613 = vmatprep.subr.mxu0 0.0
    %614 = vmatpush1.xpose.msra.mxu0 0.0
    %615 = vmatprep.subr.mxu0 0.0
    %616 = vmatpush1.xpose.msra.mxu0 0.0
    %617 = vmatprep.subr.mxu0 0.0
    %618 = vmatpush1.xpose.msra.mxu0 0.0
    %619 = vmatprep.subr.mxu0 0.0
    %620 = vmatpush1.xpose.msra.mxu0 0.0
    %621 = vmatprep.subr.mxu0 0.0
    %622 = vmatpush1.xpose.msra.mxu0 0.0
    %623 = vmatprep.subr.mxu0 0.0
    %624 = vmatpush1.xpose.msra.mxu0 0.0
    %625 = vmatprep.subr.mxu0 0.0
    %626 = vmatpush1.xpose.msra.mxu0 0.0
    %627 = vmatprep.subr.mxu0 0.0
    %628 = vmatpush1.xpose.msra.mxu0 0.0
    %629 = vmatprep.subr.mxu0 0.0
    %630 = vmatpush1.xpose.msra.mxu0 0.0
    %631 = vmatprep.subr.mxu0 0.0
    %632 = vmatpush1.xpose.msra.mxu0 0.0
    %633 = vmatprep.subr.mxu0 0.0
    %634 = vmatpush1.xpose.msra.mxu0 0.0
    %635 = vmatprep.subr.mxu0 0.0
    %636 = vmatpush1.xpose.msra.mxu0 0.0
    %637 = vmatprep.subr.mxu0 0.0
    %638 = vmatpush1.xpose.msra.mxu0 0.0
    %639 = vmatprep.mubr.f32.mxu0 0.0
    %640 = vmatmul.mubr.f32.gmra.mrb[0].mxu0 %v571
    %v641 = vpop.f32.mrb[0].mxu0
    %v642 = vadd.f32 0.0, %v641
    %v643 = vpop.f32.mrb[0].mxu0
    %644 = vdwg.mxu0
    %645 = vrot.lane.b32.xlu0 %v482, 120
    %v646 = vpop.permute.xlu0 %645
    %647 = vrot.lane.b32.xlu0 %v482, 88
    %v648 = vpop.permute.xlu0 %647
    %v649 = vsel %vm493, %v646, 0
    %v651 = vsel %vm493, %v648, 0
    %653 = vmatprep.subr.mxu0 0.0
    %654 = vmatpush1.xpose.msra.mxu0 %v651
    %655 = vmatprep.subr.mxu0 0.0
    %656 = vmatpush1.xpose.msra.mxu0 0.0
    %657 = vmatprep.subr.mxu0 0.0
    %658 = vmatpush1.xpose.msra.mxu0 0.0
    %659 = vmatprep.subr.mxu0 0.0
    %660 = vmatpush1.xpose.msra.mxu0 0.0
    %661 = vmatprep.subr.mxu0 0.0
    %662 = vmatpush1.xpose.msra.mxu0 0.0
    %663 = vmatprep.subr.mxu0 0.0
    %664 = vmatpush1.xpose.msra.mxu0 0.0
    %665 = vmatprep.subr.mxu0 0.0
    %666 = vmatpush1.xpose.msra.mxu0 0.0
    %667 = vmatprep.subr.mxu0 0.0
    %668 = vmatpush1.xpose.msra.mxu0 0.0
    %669 = vmatprep.subr.mxu0 0.0
    %670 = vmatpush1.xpose.msra.mxu0 0.0
    %671 = vmatprep.subr.mxu0 0.0
    %672 = vmatpush1.xpose.msra.mxu0 0.0
    %673 = vmatprep.subr.mxu0 0.0
    %674 = vmatpush1.xpose.msra.mxu0 0.0
    %675 = vmatprep.subr.mxu0 0.0
    %676 = vmatpush1.xpose.msra.mxu0 0.0
    %677 = vmatprep.subr.mxu0 0.0
    %678 = vmatpush1.xpose.msra.mxu0 0.0
    %679 = vmatprep.subr.mxu0 0.0
    %680 = vmatpush1.xpose.msra.mxu0 0.0
    %681 = vmatprep.subr.mxu0 0.0
    %682 = vmatpush1.xpose.msra.mxu0 0.0
    %683 = vmatprep.subr.mxu0 0.0
    %684 = vmatpush1.xpose.msra.mxu0 0.0
    %685 = vmatprep.subr.mxu0 0.0
    %686 = vmatpush1.xpose.msra.mxu0 0.0
    %687 = vmatprep.subr.mxu0 0.0
    %688 = vmatpush1.xpose.msra.mxu0 0.0
    %689 = vmatprep.subr.mxu0 0.0
    %690 = vmatpush1.xpose.msra.mxu0 0.0
    %691 = vmatprep.subr.mxu0 0.0
    %692 = vmatpush1.xpose.msra.mxu0 0.0
    %693 = vmatprep.subr.mxu0 0.0
    %694 = vmatpush1.xpose.msra.mxu0 0.0
    %695 = vmatprep.subr.mxu0 0.0
    %696 = vmatpush1.xpose.msra.mxu0 0.0
    %697 = vmatprep.subr.mxu0 0.0
    %698 = vmatpush1.xpose.msra.mxu0 0.0
    %699 = vmatprep.subr.mxu0 0.0
    %700 = vmatpush1.xpose.msra.mxu0 0.0
    %701 = vmatprep.subr.mxu0 0.0
    %702 = vmatpush1.xpose.msra.mxu0 0.0
    %703 = vmatprep.subr.mxu0 0.0
    %704 = vmatpush1.xpose.msra.mxu0 0.0
    %705 = vmatprep.subr.mxu0 0.0
    %706 = vmatpush1.xpose.msra.mxu0 0.0
    %707 = vmatprep.subr.mxu0 0.0
    %708 = vmatpush1.xpose.msra.mxu0 0.0
    %709 = vmatprep.subr.mxu0 0.0
    %710 = vmatpush1.xpose.msra.mxu0 0.0
    %711 = vmatprep.subr.mxu0 0.0
    %712 = vmatpush1.xpose.msra.mxu0 0.0
    %713 = vmatprep.subr.mxu0 0.0
    %714 = vmatpush1.xpose.msra.mxu0 0.0
    %715 = vmatprep.subr.mxu0 0.0
    %716 = vmatpush1.xpose.msra.mxu0 0.0
    %717 = vmatprep.mubr.f32.mxu0 0.0
    %718 = vmatmul.mubr.f32.gmra.mrb[0].mxu0 %v649
    %v719 = vpop.f32.mrb[0].mxu0
    %v720 = vadd.f32 0.0, %v719
    %v721 = vpop.f32.mrb[0].mxu0
    %722 = vdwg.mxu0
    %723 = vrot.lane.b32.xlu0 %v487, 120
    %v724 = vpop.permute.xlu0 %723
    %725 = vrot.lane.b32.xlu0 %v487, 88
    %v726 = vpop.permute.xlu0 %725
    %v727 = vsel %vm493, %v724, 0
    %v729 = vsel %vm493, %v726, 0
    %731 = vmatprep.subr.mxu0 0.0
    %732 = vmatpush1.xpose.msra.mxu0 %v729
    %733 = vmatprep.subr.mxu0 0.0
    %734 = vmatpush1.xpose.msra.mxu0 0.0
    %735 = vmatprep.subr.mxu0 0.0
    %736 = vmatpush1.xpose.msra.mxu0 0.0
    %737 = vmatprep.subr.mxu0 0.0
    %738 = vmatpush1.xpose.msra.mxu0 0.0
    %739 = vmatprep.subr.mxu0 0.0
    %740 = vmatpush1.xpose.msra.mxu0 0.0
    %741 = vmatprep.subr.mxu0 0.0
    %742 = vmatpush1.xpose.msra.mxu0 0.0
    %743 = vmatprep.subr.mxu0 0.0
    %744 = vmatpush1.xpose.msra.mxu0 0.0
    %745 = vmatprep.subr.mxu0 0.0
    %746 = vmatpush1.xpose.msra.mxu0 0.0
    %747 = vmatprep.subr.mxu0 0.0
    %748 = vmatpush1.xpose.msra.mxu0 0.0
    %749 = vmatprep.subr.mxu0 0.0
    %750 = vmatpush1.xpose.msra.mxu0 0.0
    %751 = vmatprep.subr.mxu0 0.0
    %752 = vmatpush1.xpose.msra.mxu0 0.0
    %753 = vmatprep.subr.mxu0 0.0
    %754 = vmatpush1.xpose.msra.mxu0 0.0
    %755 = vmatprep.subr.mxu0 0.0
    %756 = vmatpush1.xpose.msra.mxu0 0.0
    %757 = vmatprep.subr.mxu0 0.0
    %758 = vmatpush1.xpose.msra.mxu0 0.0
    %759 = vmatprep.subr.mxu0 0.0
    %760 = vmatpush1.xpose.msra.mxu0 0.0
    %761 = vmatprep.subr.mxu0 0.0
    %762 = vmatpush1.xpose.msra.mxu0 0.0
    %763 = vmatprep.subr.mxu0 0.0
    %764 = vmatpush1.xpose.msra.mxu0 0.0
    %765 = vmatprep.subr.mxu0 0.0
    %766 = vmatpush1.xpose.msra.mxu0 0.0
    %767 = vmatprep.subr.mxu0 0.0
    %768 = vmatpush1.xpose.msra.mxu0 0.0
    %769 = vmatprep.subr.mxu0 0.0
    %770 = vmatpush1.xpose.msra.mxu0 0.0
    %771 = vmatprep.subr.mxu0 0.0
    %772 = vmatpush1.xpose.msra.mxu0 0.0
    %773 = vmatprep.subr.mxu0 0.0
    %774 = vmatpush1.xpose.msra.mxu0 0.0
    %775 = vmatprep.subr.mxu0 0.0
    %776 = vmatpush1.xpose.msra.mxu0 0.0
    %777 = vmatprep.subr.mxu0 0.0
    %778 = vmatpush1.xpose.msra.mxu0 0.0
    %779 = vmatprep.subr.mxu0 0.0
    %780 = vmatpush1.xpose.msra.mxu0 0.0
    %781 = vmatprep.subr.mxu0 0.0
    %782 = vmatpush1.xpose.msra.mxu0 0.0
    %783 = vmatprep.subr.mxu0 0.0
    %784 = vmatpush1.xpose.msra.mxu0 0.0
    %785 = vmatprep.subr.mxu0 0.0
    %786 = vmatpush1.xpose.msra.mxu0 0.0
    %787 = vmatprep.subr.mxu0 0.0
    %788 = vmatpush1.xpose.msra.mxu0 0.0
    %789 = vmatprep.subr.mxu0 0.0
    %790 = vmatpush1.xpose.msra.mxu0 0.0
    %791 = vmatprep.subr.mxu0 0.0
    %792 = vmatpush1.xpose.msra.mxu0 0.0
    %793 = vmatprep.subr.mxu0 0.0
    %794 = vmatpush1.xpose.msra.mxu0 0.0
    %795 = vmatprep.mubr.f32.mxu0 0.0
    %796 = vmatmul.mubr.f32.gmra.mrb[0].mxu0 %v727
    %v797 = vpop.f32.mrb[0].mxu0
    %v798 = vadd.f32 0.0, %v797
    %v799 = vpop.f32.mrb[0].mxu0
    %800 = vdwg.mxu0
    %801 = vrot.lane.b32.xlu0 %v482, 112
    %v802 = vpop.permute.xlu0 %801
    %803 = vrot.lane.b32.xlu0 %v482, 80
    %v804 = vpop.permute.xlu0 %803
    %v805 = vsel %vm493, %v802, 0
    %v807 = vsel %vm493, %v804, 0
    %809 = vmatprep.subr.mxu0 0.0
    %810 = vmatpush1.xpose.msra.mxu0 %v807
    %811 = vmatprep.subr.mxu0 0.0
    %812 = vmatpush1.xpose.msra.mxu0 0.0
    %813 = vmatprep.subr.mxu0 0.0
    %814 = vmatpush1.xpose.msra.mxu0 0.0
    %815 = vmatprep.subr.mxu0 0.0
    %816 = vmatpush1.xpose.msra.mxu0 0.0
    %817 = vmatprep.subr.mxu0 0.0
    %818 = vmatpush1.xpose.msra.mxu0 0.0
    %819 = vmatprep.subr.mxu0 0.0
    %820 = vmatpush1.xpose.msra.mxu0 0.0
    %821 = vmatprep.subr.mxu0 0.0
    %822 = vmatpush1.xpose.msra.mxu0 0.0
    %823 = vmatprep.subr.mxu0 0.0
    %824 = vmatpush1.xpose.msra.mxu0 0.0
    %825 = vmatprep.subr.mxu0 0.0
    %826 = vmatpush1.xpose.msra.mxu0 0.0
    %827 = vmatprep.subr.mxu0 0.0
    %828 = vmatpush1.xpose.msra.mxu0 0.0
    %829 = vmatprep.subr.mxu0 0.0
    %830 = vmatpush1.xpose.msra.mxu0 0.0
    %831 = vmatprep.subr.mxu0 0.0
    %832 = vmatpush1.xpose.msra.mxu0 0.0
    %833 = vmatprep.subr.mxu0 0.0
    %834 = vmatpush1.xpose.msra.mxu0 0.0
    %835 = vmatprep.subr.mxu0 0.0
    %836 = vmatpush1.xpose.msra.mxu0 0.0
    %837 = vmatprep.subr.mxu0 0.0
    %838 = vmatpush1.xpose.msra.mxu0 0.0
    %839 = vmatprep.subr.mxu0 0.0
    %840 = vmatpush1.xpose.msra.mxu0 0.0
    %841 = vmatprep.subr.mxu0 0.0
    %842 = vmatpush1.xpose.msra.mxu0 0.0
    %843 = vmatprep.subr.mxu0 0.0
    %844 = vmatpush1.xpose.msra.mxu0 0.0
    %845 = vmatprep.subr.mxu0 0.0
    %846 = vmatpush1.xpose.msra.mxu0 0.0
    %847 = vmatprep.subr.mxu0 0.0
    %848 = vmatpush1.xpose.msra.mxu0 0.0
    %849 = vmatprep.subr.mxu0 0.0
    %850 = vmatpush1.xpose.msra.mxu0 0.0
    %851 = vmatprep.subr.mxu0 0.0
    %852 = vmatpush1.xpose.msra.mxu0 0.0
    %853 = vmatprep.subr.mxu0 0.0
    %854 = vmatpush1.xpose.msra.mxu0 0.0
    %855 = vmatprep.subr.mxu0 0.0
    %856 = vmatpush1.xpose.msra.mxu0 0.0
    %857 = vmatprep.subr.mxu0 0.0
    %858 = vmatpush1.xpose.msra.mxu0 0.0
    %859 = vmatprep.subr.mxu0 0.0
    %860 = vmatpush1.xpose.msra.mxu0 0.0
    %861 = vmatprep.subr.mxu0 0.0
    %862 = vmatpush1.xpose.msra.mxu0 0.0
    %863 = vmatprep.subr.mxu0 0.0
    %864 = vmatpush1.xpose.msra.mxu0 0.0
    %865 = vmatprep.subr.mxu0 0.0
    %866 = vmatpush1.xpose.msra.mxu0 0.0
    %867 = vmatprep.subr.mxu0 0.0
    %868 = vmatpush1.xpose.msra.mxu0 0.0
    %869 = vmatprep.subr.mxu0 0.0
    %870 = vmatpush1.xpose.msra.mxu0 0.0
    %871 = vmatprep.subr.mxu0 0.0
    %872 = vmatpush1.xpose.msra.mxu0 0.0
    %873 = vmatprep.mubr.f32.mxu0 0.0
    %874 = vmatmul.mubr.f32.gmra.mrb[0].mxu0 %v805
    %v875 = vpop.f32.mrb[0].mxu0
    %v876 = vadd.f32 0.0, %v875
    %v877 = vpop.f32.mrb[0].mxu0
    %878 = vdwg.mxu0
    %879 = vrot.lane.b32.xlu0 %v487, 112
    %v880 = vpop.permute.xlu0 %879
    %881 = vrot.lane.b32.xlu0 %v487, 80
    %v882 = vpop.permute.xlu0 %881
    %v883 = vsel %vm493, %v880, 0
    %v885 = vsel %vm493, %v882, 0
    %887 = vmatprep.subr.mxu0 0.0
    %888 = vmatpush1.xpose.msra.mxu0 %v885
    %889 = vmatprep.subr.mxu0 0.0
    %890 = vmatpush1.xpose.msra.mxu0 0.0
    %891 = vmatprep.subr.mxu0 0.0
    %892 = vmatpush1.xpose.msra.mxu0 0.0
    %893 = vmatprep.subr.mxu0 0.0
    %894 = vmatpush1.xpose.msra.mxu0 0.0
    %895 = vmatprep.subr.mxu0 0.0
    %896 = vmatpush1.xpose.msra.mxu0 0.0
    %897 = vmatprep.subr.mxu0 0.0
    %898 = vmatpush1.xpose.msra.mxu0 0.0
    %899 = vmatprep.subr.mxu0 0.0
    %900 = vmatpush1.xpose.msra.mxu0 0.0
    %901 = vmatprep.subr.mxu0 0.0
    %902 = vmatpush1.xpose.msra.mxu0 0.0
    %903 = vmatprep.subr.mxu0 0.0
    %904 = vmatpush1.xpose.msra.mxu0 0.0
    %905 = vmatprep.subr.mxu0 0.0
    %906 = vmatpush1.xpose.msra.mxu0 0.0
    %907 = vmatprep.subr.mxu0 0.0
    %908 = vmatpush1.xpose.msra.mxu0 0.0
    %909 = vmatprep.subr.mxu0 0.0
    %910 = vmatpush1.xpose.msra.mxu0 0.0
    %911 = vmatprep.subr.mxu0 0.0
    %912 = vmatpush1.xpose.msra.mxu0 0.0
    %913 = vmatprep.subr.mxu0 0.0
    %914 = vmatpush1.xpose.msra.mxu0 0.0
    %915 = vmatprep.subr.mxu0 0.0
    %916 = vmatpush1.xpose.msra.mxu0 0.0
    %917 = vmatprep.subr.mxu0 0.0
    %918 = vmatpush1.xpose.msra.mxu0 0.0
    %919 = vmatprep.subr.mxu0 0.0
    %920 = vmatpush1.xpose.msra.mxu0 0.0
    %921 = vmatprep.subr.mxu0 0.0
    %922 = vmatpush1.xpose.msra.mxu0 0.0
    %923 = vmatprep.subr.mxu0 0.0
    %924 = vmatpush1.xpose.msra.mxu0 0.0
    %925 = vmatprep.subr.mxu0 0.0
    %926 = vmatpush1.xpose.msra.mxu0 0.0
    %927 = vmatprep.subr.mxu0 0.0
    %928 = vmatpush1.xpose.msra.mxu0 0.0
    %929 = vmatprep.subr.mxu0 0.0
    %930 = vmatpush1.xpose.msra.mxu0 0.0
    %931 = vmatprep.subr.mxu0 0.0
    %932 = vmatpush1.xpose.msra.mxu0 0.0
    %933 = vmatprep.subr.mxu0 0.0
    %934 = vmatpush1.xpose.msra.mxu0 0.0
    %935 = vmatprep.subr.mxu0 0.0
    %936 = vmatpush1.xpose.msra.mxu0 0.0
    %937 = vmatprep.subr.mxu0 0.0
    %938 = vmatpush1.xpose.msra.mxu0 0.0
    %939 = vmatprep.subr.mxu0 0.0
    %940 = vmatpush1.xpose.msra.mxu0 0.0
    %941 = vmatprep.subr.mxu0 0.0
    %942 = vmatpush1.xpose.msra.mxu0 0.0
    %943 = vmatprep.subr.mxu0 0.0
    %944 = vmatpush1.xpose.msra.mxu0 0.0
    %945 = vmatprep.subr.mxu0 0.0
    %946 = vmatpush1.xpose.msra.mxu0 0.0
    %947 = vmatprep.subr.mxu0 0.0
    %948 = vmatpush1.xpose.msra.mxu0 0.0
    %949 = vmatprep.subr.mxu0 0.0
    %950 = vmatpush1.xpose.msra.mxu0 0.0
    %951 = vmatprep.mubr.f32.mxu0 0.0
    %952 = vmatmul.mubr.f32.gmra.mrb[0].mxu0 %v883
    %v953 = vpop.f32.mrb[0].mxu0
    %v954 = vadd.f32 0.0, %v953
    %v955 = vpop.f32.mrb[0].mxu0
    %956 = vdwg.mxu0
    %957 = vrot.lane.b32.xlu0 %v482, 104
    %v958 = vpop.permute.xlu0 %957
    %959 = vrot.lane.b32.xlu0 %v482, 72
    %v960 = vpop.permute.xlu0 %959
    %v961 = vsel %vm493, %v958, 0
    %v963 = vsel %vm493, %v960, 0
    %965 = vmatprep.subr.mxu0 0.0
    %966 = vmatpush1.xpose.msra.mxu0 %v963
    %967 = vmatprep.subr.mxu0 0.0
    %968 = vmatpush1.xpose.msra.mxu0 0.0
    %969 = vmatprep.subr.mxu0 0.0
    %970 = vmatpush1.xpose.msra.mxu0 0.0
    %971 = vmatprep.subr.mxu0 0.0
    %972 = vmatpush1.xpose.msra.mxu0 0.0
    %973 = vmatprep.subr.mxu0 0.0
    %974 = vmatpush1.xpose.msra.mxu0 0.0
    %975 = vmatprep.subr.mxu0 0.0
    %976 = vmatpush1.xpose.msra.mxu0 0.0
    %977 = vmatprep.subr.mxu0 0.0
    %978 = vmatpush1.xpose.msra.mxu0 0.0
    %979 = vmatprep.subr.mxu0 0.0
    %980 = vmatpush1.xpose.msra.mxu0 0.0
    %981 = vmatprep.subr.mxu0 0.0
    %982 = vmatpush1.xpose.msra.mxu0 0.0
    %983 = vmatprep.subr.mxu0 0.0
    %984 = vmatpush1.xpose.msra.mxu0 0.0
    %985 = vmatprep.subr.mxu0 0.0
    %986 = vmatpush1.xpose.msra.mxu0 0.0
    %987 = vmatprep.subr.mxu0 0.0
    %988 = vmatpush1.xpose.msra.mxu0 0.0
    %989 = vmatprep.subr.mxu0 0.0
    %990 = vmatpush1.xpose.msra.mxu0 0.0
    %991 = vmatprep.subr.mxu0 0.0
    %992 = vmatpush1.xpose.msra.mxu0 0.0
    %993 = vmatprep.subr.mxu0 0.0
    %994 = vmatpush1.xpose.msra.mxu0 0.0
    %995 = vmatprep.subr.mxu0 0.0
    %996 = vmatpush1.xpose.msra.mxu0 0.0
    %997 = vmatprep.subr.mxu0 0.0
    %998 = vmatpush1.xpose.msra.mxu0 0.0
    %999 = vmatprep.subr.mxu0 0.0
    %1000 = vmatpush1.xpose.msra.mxu0 0.0
    %1001 = vmatprep.subr.mxu0 0.0
    %1002 = vmatpush1.xpose.msra.mxu0 0.0
    %1003 = vmatprep.subr.mxu0 0.0
    %1004 = vmatpush1.xpose.msra.mxu0 0.0
    %1005 = vmatprep.subr.mxu0 0.0
    %1006 = vmatpush1.xpose.msra.mxu0 0.0
    %1007 = vmatprep.subr.mxu0 0.0
    %1008 = vmatpush1.xpose.msra.mxu0 0.0
    %1009 = vmatprep.subr.mxu0 0.0
    %1010 = vmatpush1.xpose.msra.mxu0 0.0
    %1011 = vmatprep.subr.mxu0 0.0
    %1012 = vmatpush1.xpose.msra.mxu0 0.0
    %1013 = vmatprep.subr.mxu0 0.0
    %1014 = vmatpush1.xpose.msra.mxu0 0.0
    %1015 = vmatprep.subr.mxu0 0.0
    %1016 = vmatpush1.xpose.msra.mxu0 0.0
    %1017 = vmatprep.subr.mxu0 0.0
    %1018 = vmatpush1.xpose.msra.mxu0 0.0
    %1019 = vmatprep.subr.mxu0 0.0
    %1020 = vmatpush1.xpose.msra.mxu0 0.0
    %1021 = vmatprep.subr.mxu0 0.0
    %1022 = vmatpush1.xpose.msra.mxu0 0.0
    %1023 = vmatprep.subr.mxu0 0.0
    %1024 = vmatpush1.xpose.msra.mxu0 0.0
    %1025 = vmatprep.subr.mxu0 0.0
    %1026 = vmatpush1.xpose.msra.mxu0 0.0
    %1027 = vmatprep.subr.mxu0 0.0
    %1028 = vmatpush1.xpose.msra.mxu0 0.0
    %1029 = vmatprep.mubr.f32.mxu0 0.0
    %1030 = vmatmul.mubr.f32.gmra.mrb[0].mxu0 %v961
    %v1031 = vpop.f32.mrb[0].mxu0
    %v1032 = vadd.f32 0.0, %v1031
    %v1033 = vpop.f32.mrb[0].mxu0
    %1034 = vdwg.mxu0
    %1035 = vrot.lane.b32.xlu0 %v487, 104
    %v1036 = vpop.permute.xlu0 %1035
    %1037 = vrot.lane.b32.xlu0 %v487, 72
    %v1038 = vpop.permute.xlu0 %1037
    %v1039 = vsel %vm493, %v1036, 0
    %v1041 = vsel %vm493, %v1038, 0
    %1043 = vmatprep.subr.mxu0 0.0
    %1044 = vmatpush1.xpose.msra.mxu0 %v1041
    %1045 = vmatprep.subr.mxu0 0.0
    %1046 = vmatpush1.xpose.msra.mxu0 0.0
    %1047 = vmatprep.subr.mxu0 0.0
    %1048 = vmatpush1.xpose.msra.mxu0 0.0
    %1049 = vmatprep.subr.mxu0 0.0
    %1050 = vmatpush1.xpose.msra.mxu0 0.0
    %1051 = vmatprep.subr.mxu0 0.0
    %1052 = vmatpush1.xpose.msra.mxu0 0.0
    %1053 = vmatprep.subr.mxu0 0.0
    %1054 = vmatpush1.xpose.msra.mxu0 0.0
    %1055 = vmatprep.subr.mxu0 0.0
    %1056 = vmatpush1.xpose.msra.mxu0 0.0
    %1057 = vmatprep.subr.mxu0 0.0
    %1058 = vmatpush1.xpose.msra.mxu0 0.0
    %1059 = vmatprep.subr.mxu0 0.0
    %1060 = vmatpush1.xpose.msra.mxu0 0.0
    %1061 = vmatprep.subr.mxu0 0.0
    %1062 = vmatpush1.xpose.msra.mxu0 0.0
    %1063 = vmatprep.subr.mxu0 0.0
    %1064 = vmatpush1.xpose.msra.mxu0 0.0
    %1065 = vmatprep.subr.mxu0 0.0
    %1066 = vmatpush1.xpose.msra.mxu0 0.0
    %1067 = vmatprep.subr.mxu0 0.0
    %1068 = vmatpush1.xpose.msra.mxu0 0.0
    %1069 = vmatprep.subr.mxu0 0.0
    %1070 = vmatpush1.xpose.msra.mxu0 0.0
    %1071 = vmatprep.subr.mxu0 0.0
    %1072 = vmatpush1.xpose.msra.mxu0 0.0
    %1073 = vmatprep.subr.mxu0 0.0
    %1074 = vmatpush1.xpose.msra.mxu0 0.0
    %1075 = vmatprep.subr.mxu0 0.0
    %1076 = vmatpush1.xpose.msra.mxu0 0.0
    %1077 = vmatprep.subr.mxu0 0.0
    %1078 = vmatpush1.xpose.msra.mxu0 0.0
    %1079 = vmatprep.subr.mxu0 0.0
    %1080 = vmatpush1.xpose.msra.mxu0 0.0
    %1081 = vmatprep.subr.mxu0 0.0
    %1082 = vmatpush1.xpose.msra.mxu0 0.0
    %1083 = vmatprep.subr.mxu0 0.0
    %1084 = vmatpush1.xpose.msra.mxu0 0.0
    %1085 = vmatprep.subr.mxu0 0.0
    %1086 = vmatpush1.xpose.msra.mxu0 0.0
    %1087 = vmatprep.subr.mxu0 0.0
    %1088 = vmatpush1.xpose.msra.mxu0 0.0
    %1089 = vmatprep.subr.mxu0 0.0
    %1090 = vmatpush1.xpose.msra.mxu0 0.0
    %1091 = vmatprep.subr.mxu0 0.0
    %1092 = vmatpush1.xpose.msra.mxu0 0.0
    %1093 = vmatprep.subr.mxu0 0.0
    %1094 = vmatpush1.xpose.msra.mxu0 0.0
    %1095 = vmatprep.subr.mxu0 0.0
    %1096 = vmatpush1.xpose.msra.mxu0 0.0
    %1097 = vmatprep.subr.mxu0 0.0
    %1098 = vmatpush1.xpose.msra.mxu0 0.0
    %1099 = vmatprep.subr.mxu0 0.0
    %1100 = vmatpush1.xpose.msra.mxu0 0.0
    %1101 = vmatprep.subr.mxu0 0.0
    %1102 = vmatpush1.xpose.msra.mxu0 0.0
    %1103 = vmatprep.subr.mxu0 0.0
    %1104 = vmatpush1.xpose.msra.mxu0 0.0
    %1105 = vmatprep.subr.mxu0 0.0
    %1106 = vmatpush1.xpose.msra.mxu0 0.0
    %1107 = vmatprep.mubr.f32.mxu0 0.0
    %1108 = vmatmul.mubr.f32.gmra.mrb[0].mxu0 %v1039
    %v1109 = vpop.f32.mrb[0].mxu0
    %v1110 = vadd.f32 0.0, %v1109
    %v1111 = vpop.f32.mrb[0].mxu0
    %1112 = vdwg.mxu0
    %v1113 = vlaneseq
    %v1114 = vshrl.u32 %v1113, 7
    %v1115 = vsub.s32 0, %v1114
    %v1116 = vrot.slane %v390, %v1115
    %v1117 = vlaneseq
    %v1118 = vshrl.u32 %v1117, 7
    %v1119 = vsub.s32 0, %v1118
    %v1120 = vrot.slane %v397, %v1119
    %v1123 = vadd.f32 %v565, %v1116
    %v1124 = vadd.f32 %v642, %v1120
    %v1125 = vadd.f32 %v720, %v1116
    %v1126 = vadd.f32 %v798, %v1120
    %v1127 = vadd.f32 %v876, %v1116
    %v1128 = vadd.f32 %v954, %v1120
    %v1129 = vadd.f32 %v1032, %v1116
    %v1130 = vadd.f32 %v1110, %v1120
    %v1131 = vsel %vm493, %v1123, -inf
    %1132 = vmax.xlane.f32.xlu0 %v1131
    %v1133 = vpop.xlane.xlu0 %1132
    %v1134 = vsel %vm493, %v1124, -inf
    %1135 = vmax.xlane.f32.xlu0 %v1134
    %v1136 = vpop.xlane.xlu0 %1135
    %v1137 = vsel %vm493, %v1125, -inf
    %1138 = vmax.xlane.f32.xlu0 %v1137
    %v1139 = vpop.xlane.xlu0 %1138
    %v1140 = vsel %vm493, %v1126, -inf
    %1141 = vmax.xlane.f32.xlu0 %v1140
    %v1142 = vpop.xlane.xlu0 %1141
    %v1143 = vsel %vm493, %v1127, -inf
    %1144 = vmax.xlane.f32.xlu0 %v1143
    %v1145 = vpop.xlane.xlu0 %1144
    %v1146 = vsel %vm493, %v1128, -inf
    %1147 = vmax.xlane.f32.xlu0 %v1146
    %v1148 = vpop.xlane.xlu0 %1147
    %v1149 = vsel %vm493, %v1129, -inf
    %1150 = vmax.xlane.f32.xlu0 %v1149
    %v1151 = vpop.xlane.xlu0 %1150
    %v1152 = vsel %vm493, %v1130, -inf
    %1153 = vmax.xlane.f32.xlu0 %v1152
    %v1154 = vpop.xlane.xlu0 %1153
    %v1155 = vsub.f32 %v1123, %v1133
    %v1156 = vsub.f32 %v1124, %v1136
    %v1157 = vsub.f32 %v1125, %v1139
    %v1158 = vsub.f32 %v1126, %v1142
    %v1159 = vsub.f32 %v1127, %v1145
    %v1160 = vsub.f32 %v1128, %v1148
    %v1161 = vsub.f32 %v1129, %v1151
    %v1162 = vsub.f32 %v1130, %v1154
    %v1163 = vmul.f32 %v1155, 1.442695
    %v1164 = vpow.pop %v1163
    %v1165 = vmul.f32 %v1156, 1.442695
    %v1166 = vpow.pop %v1165
    %v1167 = vmul.f32 %v1157, 1.442695
    %v1168 = vpow.pop %v1167
    %v1169 = vmul.f32 %v1158, 1.442695
    %v1170 = vpow.pop %v1169
    %v1171 = vmul.f32 %v1159, 1.442695
    %v1172 = vpow.pop %v1171
    %v1173 = vmul.f32 %v1160, 1.442695
    %v1174 = vpow.pop %v1173
    %v1175 = vmul.f32 %v1161, 1.442695
    %v1176 = vpow.pop %v1175
    %v1177 = vmul.f32 %v1162, 1.442695
    %v1178 = vpow.pop %v1177
    %v1179 = vsel %vm493, %v1164, 0.0
    %1180 = vadd.xlane.f32.xlu0 %v1179
    %v1181 = vpop.xlane.xlu0 %1180
    %v1182 = vsel %vm493, %v1166, 0.0
    %1183 = vadd.xlane.f32.xlu0 %v1182
    %v1184 = vpop.xlane.xlu0 %1183
    %v1185 = vsel %vm493, %v1168, 0.0
    %1186 = vadd.xlane.f32.xlu0 %v1185
    %v1187 = vpop.xlane.xlu0 %1186
    %v1188 = vsel %vm493, %v1170, 0.0
    %1189 = vadd.xlane.f32.xlu0 %v1188
    %v1190 = vpop.xlane.xlu0 %1189
    %v1191 = vsel %vm493, %v1172, 0.0
    %1192 = vadd.xlane.f32.xlu0 %v1191
    %v1193 = vpop.xlane.xlu0 %1192
    %v1194 = vsel %vm493, %v1174, 0.0
    %1195 = vadd.xlane.f32.xlu0 %v1194
    %v1196 = vpop.xlane.xlu0 %1195
    %v1197 = vsel %vm493, %v1176, 0.0
    %1198 = vadd.xlane.f32.xlu0 %v1197
    %v1199 = vpop.xlane.xlu0 %1198
    %v1200 = vsel %vm493, %v1178, 0.0
    %1201 = vadd.xlane.f32.xlu0 %v1200
    %v1202 = vpop.xlane.xlu0 %1201
    %v1203 = vrcp.pop %v1181
    %v1204 = vrcp.pop %v1184
    %v1205 = vrcp.pop %v1187
    %v1206 = vrcp.pop %v1190
    %v1207 = vrcp.pop %v1193
    %v1208 = vrcp.pop %v1196
    %v1209 = vrcp.pop %v1199
    %v1210 = vrcp.pop %v1202
    %v1211 = vmul.f32 %v1164, %v1203
    %v1212 = vmul.f32 %v1166, %v1204
    %v1213 = vmul.f32 %v1168, %v1205
    %v1214 = vmul.f32 %v1170, %v1206
    %v1215 = vmul.f32 %v1172, %v1207
    %v1216 = vmul.f32 %v1174, %v1208
    %v1217 = vmul.f32 %v1176, %v1209
    %v1218 = vmul.f32 %v1178, %v1210
    %1219 = vrot.lane.b32.xlu0 %v482, 64
    %v1220 = vpop.permute.xlu0 %1219
    %v1223 = vsel %vm493, %v1211, 0
    %1225 = vmatprep.subr.mxu0 0.0
    %1226 = vmatpush1.msra.mxu0 %v1220
    %1227 = vmatprep.subr.mxu0 0.0
    %1228 = vmatpush1.msra.mxu0 0.0
    %1229 = vmatprep.subr.mxu0 0.0
    %1230 = vmatpush1.msra.mxu0 0.0
    %1231 = vmatprep.subr.mxu0 0.0
    %1232 = vmatpush1.msra.mxu0 0.0
    %1233 = vmatprep.subr.mxu0 0.0
    %1234 = vmatpush1.msra.mxu0 0.0
    %1235 = vmatprep.subr.mxu0 0.0
    %1236 = vmatpush1.msra.mxu0 0.0
    %1237 = vmatprep.subr.mxu0 0.0
    %1238 = vmatpush1.msra.mxu0 0.0
    %1239 = vmatprep.subr.mxu0 0.0
    %1240 = vmatpush1.msra.mxu0 0.0
    %1241 = vmatprep.subr.mxu0 0.0
    %1242 = vmatpush1.msra.mxu0 0.0
    %1243 = vmatprep.subr.mxu0 0.0
    %1244 = vmatpush1.msra.mxu0 0.0
    %1245 = vmatprep.subr.mxu0 0.0
    %1246 = vmatpush1.msra.mxu0 0.0
    %1247 = vmatprep.subr.mxu0 0.0
    %1248 = vmatpush1.msra.mxu0 0.0
    %1249 = vmatprep.subr.mxu0 0.0
    %1250 = vmatpush1.msra.mxu0 0.0
    %1251 = vmatprep.subr.mxu0 0.0
    %1252 = vmatpush1.msra.mxu0 0.0
    %1253 = vmatprep.subr.mxu0 0.0
    %1254 = vmatpush1.msra.mxu0 0.0
    %1255 = vmatprep.subr.mxu0 0.0
    %1256 = vmatpush1.msra.mxu0 0.0
    %1257 = vmatprep.subr.mxu0 0.0
    %1258 = vmatpush1.msra.mxu0 0.0
    %1259 = vmatprep.subr.mxu0 0.0
    %1260 = vmatpush1.msra.mxu0 0.0
    %1261 = vmatprep.subr.mxu0 0.0
    %1262 = vmatpush1.msra.mxu0 0.0
    %1263 = vmatprep.subr.mxu0 0.0
    %1264 = vmatpush1.msra.mxu0 0.0
    %1265 = vmatprep.subr.mxu0 0.0
    %1266 = vmatpush1.msra.mxu0 0.0
    %1267 = vmatprep.subr.mxu0 0.0
    %1268 = vmatpush1.msra.mxu0 0.0
    %1269 = vmatprep.subr.mxu0 0.0
    %1270 = vmatpush1.msra.mxu0 0.0
    %1271 = vmatprep.subr.mxu0 0.0
    %1272 = vmatpush1.msra.mxu0 0.0
    %1273 = vmatprep.subr.mxu0 0.0
    %1274 = vmatpush1.msra.mxu0 0.0
    %1275 = vmatprep.subr.mxu0 0.0
    %1276 = vmatpush1.msra.mxu0 0.0
    %1277 = vmatprep.subr.mxu0 0.0
    %1278 = vmatpush1.msra.mxu0 0.0
    %1279 = vmatprep.subr.mxu0 0.0
    %1280 = vmatpush1.msra.mxu0 0.0
    %1281 = vmatprep.subr.mxu0 0.0
    %1282 = vmatpush1.msra.mxu0 0.0
    %1283 = vmatprep.subr.mxu0 0.0
    %1284 = vmatpush1.msra.mxu0 0.0
    %1285 = vmatprep.subr.mxu0 0.0
    %1286 = vmatpush1.msra.mxu0 0.0
    %1287 = vmatprep.subr.mxu0 0.0
    %1288 = vmatpush1.msra.mxu0 0.0
    %1289 = vmatprep.mubr.f32.mxu0 0.0
    %1290 = vmatmul.mubr.f32.gmra.mrb[0].mxu0 %v1223
    %v1291 = vpop.f32.mrb[0].mxu0
    %v1292 = vadd.f32 0.0, %v1291
    %v1293 = vpop.f32.mrb[0].mxu0
    %1294 = vdwg.mxu0
    %1295 = vrot.lane.b32.xlu0 %v487, 64
    %v1296 = vpop.permute.xlu0 %1295
    %v1299 = vsel %vm493, %v1212, 0
    %1301 = vmatprep.subr.mxu0 0.0
    %1302 = vmatpush1.msra.mxu0 %v1296
    %1303 = vmatprep.subr.mxu0 0.0
    %1304 = vmatpush1.msra.mxu0 0.0
    %1305 = vmatprep.subr.mxu0 0.0
    %1306 = vmatpush1.msra.mxu0 0.0
    %1307 = vmatprep.subr.mxu0 0.0
    %1308 = vmatpush1.msra.mxu0 0.0
    %1309 = vmatprep.subr.mxu0 0.0
    %1310 = vmatpush1.msra.mxu0 0.0
    %1311 = vmatprep.subr.mxu0 0.0
    %1312 = vmatpush1.msra.mxu0 0.0
    %1313 = vmatprep.subr.mxu0 0.0
    %1314 = vmatpush1.msra.mxu0 0.0
    %1315 = vmatprep.subr.mxu0 0.0
    %1316 = vmatpush1.msra.mxu0 0.0
    %1317 = vmatprep.subr.mxu0 0.0
    %1318 = vmatpush1.msra.mxu0 0.0
    %1319 = vmatprep.subr.mxu0 0.0
    %1320 = vmatpush1.msra.mxu0 0.0
    %1321 = vmatprep.subr.mxu0 0.0
    %1322 = vmatpush1.msra.mxu0 0.0
    %1323 = vmatprep.subr.mxu0 0.0
    %1324 = vmatpush1.msra.mxu0 0.0
    %1325 = vmatprep.subr.mxu0 0.0
    %1326 = vmatpush1.msra.mxu0 0.0
    %1327 = vmatprep.subr.mxu0 0.0
    %1328 = vmatpush1.msra.mxu0 0.0
    %1329 = vmatprep.subr.mxu0 0.0
    %1330 = vmatpush1.msra.mxu0 0.0
    %1331 = vmatprep.subr.mxu0 0.0
    %1332 = vmatpush1.msra.mxu0 0.0
    %1333 = vmatprep.subr.mxu0 0.0
    %1334 = vmatpush1.msra.mxu0 0.0
    %1335 = vmatprep.subr.mxu0 0.0
    %1336 = vmatpush1.msra.mxu0 0.0
    %1337 = vmatprep.subr.mxu0 0.0
    %1338 = vmatpush1.msra.mxu0 0.0
    %1339 = vmatprep.subr.mxu0 0.0
    %1340 = vmatpush1.msra.mxu0 0.0
    %1341 = vmatprep.subr.mxu0 0.0
    %1342 = vmatpush1.msra.mxu0 0.0
    %1343 = vmatprep.subr.mxu0 0.0
    %1344 = vmatpush1.msra.mxu0 0.0
    %1345 = vmatprep.subr.mxu0 0.0
    %1346 = vmatpush1.msra.mxu0 0.0
    %1347 = vmatprep.subr.mxu0 0.0
    %1348 = vmatpush1.msra.mxu0 0.0
    %1349 = vmatprep.subr.mxu0 0.0
    %1350 = vmatpush1.msra.mxu0 0.0
    %1351 = vmatprep.subr.mxu0 0.0
    %1352 = vmatpush1.msra.mxu0 0.0
    %1353 = vmatprep.subr.mxu0 0.0
    %1354 = vmatpush1.msra.mxu0 0.0
    %1355 = vmatprep.subr.mxu0 0.0
    %1356 = vmatpush1.msra.mxu0 0.0
    %1357 = vmatprep.subr.mxu0 0.0
    %1358 = vmatpush1.msra.mxu0 0.0
    %1359 = vmatprep.subr.mxu0 0.0
    %1360 = vmatpush1.msra.mxu0 0.0
    %1361 = vmatprep.subr.mxu0 0.0
    %1362 = vmatpush1.msra.mxu0 0.0
    %1363 = vmatprep.subr.mxu0 0.0
    %1364 = vmatpush1.msra.mxu0 0.0
    %1365 = vmatprep.mubr.f32.mxu0 0.0
    %1366 = vmatmul.mubr.f32.gmra.mrb[0].mxu0 %v1299
    %v1367 = vpop.f32.mrb[0].mxu0
    %v1368 = vadd.f32 0.0, %v1367
    %v1369 = vpop.f32.mrb[0].mxu0
    %1370 = vdwg.mxu0
    %1371 = vrot.lane.b32.xlu0 %v482, 56
    %v1372 = vpop.permute.xlu0 %1371
    %v1375 = vsel %vm493, %v1213, 0
    %1377 = vmatprep.subr.mxu0 0.0
    %1378 = vmatpush1.msra.mxu0 %v1372
    %1379 = vmatprep.subr.mxu0 0.0
    %1380 = vmatpush1.msra.mxu0 0.0
    %1381 = vmatprep.subr.mxu0 0.0
    %1382 = vmatpush1.msra.mxu0 0.0
    %1383 = vmatprep.subr.mxu0 0.0
    %1384 = vmatpush1.msra.mxu0 0.0
    %1385 = vmatprep.subr.mxu0 0.0
    %1386 = vmatpush1.msra.mxu0 0.0
    %1387 = vmatprep.subr.mxu0 0.0
    %1388 = vmatpush1.msra.mxu0 0.0
    %1389 = vmatprep.subr.mxu0 0.0
    %1390 = vmatpush1.msra.mxu0 0.0
    %1391 = vmatprep.subr.mxu0 0.0
    %1392 = vmatpush1.msra.mxu0 0.0
    %1393 = vmatprep.subr.mxu0 0.0
    %1394 = vmatpush1.msra.mxu0 0.0
    %1395 = vmatprep.subr.mxu0 0.0
    %1396 = vmatpush1.msra.mxu0 0.0
    %1397 = vmatprep.subr.mxu0 0.0
    %1398 = vmatpush1.msra.mxu0 0.0
    %1399 = vmatprep.subr.mxu0 0.0
    %1400 = vmatpush1.msra.mxu0 0.0
    %1401 = vmatprep.subr.mxu0 0.0
    %1402 = vmatpush1.msra.mxu0 0.0
    %1403 = vmatprep.subr.mxu0 0.0
    %1404 = vmatpush1.msra.mxu0 0.0
    %1405 = vmatprep.subr.mxu0 0.0
    %1406 = vmatpush1.msra.mxu0 0.0
    %1407 = vmatprep.subr.mxu0 0.0
    %1408 = vmatpush1.msra.mxu0 0.0
    %1409 = vmatprep.subr.mxu0 0.0
    %1410 = vmatpush1.msra.mxu0 0.0
    %1411 = vmatprep.subr.mxu0 0.0
    %1412 = vmatpush1.msra.mxu0 0.0
    %1413 = vmatprep.subr.mxu0 0.0
    %1414 = vmatpush1.msra.mxu0 0.0
    %1415 = vmatprep.subr.mxu0 0.0
    %1416 = vmatpush1.msra.mxu0 0.0
    %1417 = vmatprep.subr.mxu0 0.0
    %1418 = vmatpush1.msra.mxu0 0.0
    %1419 = vmatprep.subr.mxu0 0.0
    %1420 = vmatpush1.msra.mxu0 0.0
    %1421 = vmatprep.subr.mxu0 0.0
    %1422 = vmatpush1.msra.mxu0 0.0
    %1423 = vmatprep.subr.mxu0 0.0
    %1424 = vmatpush1.msra.mxu0 0.0
    %1425 = vmatprep.subr.mxu0 0.0
    %1426 = vmatpush1.msra.mxu0 0.0
    %1427 = vmatprep.subr.mxu0 0.0
    %1428 = vmatpush1.msra.mxu0 0.0
    %1429 = vmatprep.subr.mxu0 0.0
    %1430 = vmatpush1.msra.mxu0 0.0
    %1431 = vmatprep.subr.mxu0 0.0
    %1432 = vmatpush1.msra.mxu0 0.0
    %1433 = vmatprep.subr.mxu0 0.0
    %1434 = vmatpush1.msra.mxu0 0.0
    %1435 = vmatprep.subr.mxu0 0.0
    %1436 = vmatpush1.msra.mxu0 0.0
    %1437 = vmatprep.subr.mxu0 0.0
    %1438 = vmatpush1.msra.mxu0 0.0
    %1439 = vmatprep.subr.mxu0 0.0
    %1440 = vmatpush1.msra.mxu0 0.0
    %1441 = vmatprep.mubr.f32.mxu0 0.0
    %1442 = vmatmul.mubr.f32.gmra.mrb[0].mxu0 %v1375
    %v1443 = vpop.f32.mrb[0].mxu0
    %v1444 = vadd.f32 0.0, %v1443
    %v1445 = vpop.f32.mrb[0].mxu0
    %1446 = vdwg.mxu0
    %1447 = vrot.lane.b32.xlu0 %v487, 56
    %v1448 = vpop.permute.xlu0 %1447
    %v1451 = vsel %vm493, %v1214, 0
    %1453 = vmatprep.subr.mxu0 0.0
    %1454 = vmatpush1.msra.mxu0 %v1448
    %1455 = vmatprep.subr.mxu0 0.0
    %1456 = vmatpush1.msra.mxu0 0.0
    %1457 = vmatprep.subr.mxu0 0.0
    %1458 = vmatpush1.msra.mxu0 0.0
    %1459 = vmatprep.subr.mxu0 0.0
    %1460 = vmatpush1.msra.mxu0 0.0
    %1461 = vmatprep.subr.mxu0 0.0
    %1462 = vmatpush1.msra.mxu0 0.0
    %1463 = vmatprep.subr.mxu0 0.0
    %1464 = vmatpush1.msra.mxu0 0.0
    %1465 = vmatprep.subr.mxu0 0.0
    %1466 = vmatpush1.msra.mxu0 0.0
    %1467 = vmatprep.subr.mxu0 0.0
    %1468 = vmatpush1.msra.mxu0 0.0
    %1469 = vmatprep.subr.mxu0 0.0
    %1470 = vmatpush1.msra.mxu0 0.0
    %1471 = vmatprep.subr.mxu0 0.0
    %1472 = vmatpush1.msra.mxu0 0.0
    %1473 = vmatprep.subr.mxu0 0.0
    %1474 = vmatpush1.msra.mxu0 0.0
    %1475 = vmatprep.subr.mxu0 0.0
    %1476 = vmatpush1.msra.mxu0 0.0
    %1477 = vmatprep.subr.mxu0 0.0
    %1478 = vmatpush1.msra.mxu0 0.0
    %1479 = vmatprep.subr.mxu0 0.0
    %1480 = vmatpush1.msra.mxu0 0.0
    %1481 = vmatprep.subr.mxu0 0.0
    %1482 = vmatpush1.msra.mxu0 0.0
    %1483 = vmatprep.subr.mxu0 0.0
    %1484 = vmatpush1.msra.mxu0 0.0
    %1485 = vmatprep.subr.mxu0 0.0
    %1486 = vmatpush1.msra.mxu0 0.0
    %1487 = vmatprep.subr.mxu0 0.0
    %1488 = vmatpush1.msra.mxu0 0.0
    %1489 = vmatprep.subr.mxu0 0.0
    %1490 = vmatpush1.msra.mxu0 0.0
    %1491 = vmatprep.subr.mxu0 0.0
    %1492 = vmatpush1.msra.mxu0 0.0
    %1493 = vmatprep.subr.mxu0 0.0
    %1494 = vmatpush1.msra.mxu0 0.0
    %1495 = vmatprep.subr.mxu0 0.0
    %1496 = vmatpush1.msra.mxu0 0.0
    %1497 = vmatprep.subr.mxu0 0.0
    %1498 = vmatpush1.msra.mxu0 0.0
    %1499 = vmatprep.subr.mxu0 0.0
    %1500 = vmatpush1.msra.mxu0 0.0
    %1501 = vmatprep.subr.mxu0 0.0
    %1502 = vmatpush1.msra.mxu0 0.0
    %1503 = vmatprep.subr.mxu0 0.0
    %1504 = vmatpush1.msra.mxu0 0.0
    %1505 = vmatprep.subr.mxu0 0.0
    %1506 = vmatpush1.msra.mxu0 0.0
    %1507 = vmatprep.subr.mxu0 0.0
    %1508 = vmatpush1.msra.mxu0 0.0
    %1509 = vmatprep.subr.mxu0 0.0
    %1510 = vmatpush1.msra.mxu0 0.0
    %1511 = vmatprep.subr.mxu0 0.0
    %1512 = vmatpush1.msra.mxu0 0.0
    %1513 = vmatprep.subr.mxu0 0.0
    %1514 = vmatpush1.msra.mxu0 0.0
    %1515 = vmatprep.subr.mxu0 0.0
    %1516 = vmatpush1.msra.mxu0 0.0
    %1517 = vmatprep.mubr.f32.mxu0 0.0
    %1518 = vmatmul.mubr.f32.gmra.mrb[0].mxu0 %v1451
    %v1519 = vpop.f32.mrb[0].mxu0
    %v1520 = vadd.f32 0.0, %v1519
    %v1521 = vpop.f32.mrb[0].mxu0
    %1522 = vdwg.mxu0
    %1523 = vrot.lane.b32.xlu0 %v482, 48
    %v1524 = vpop.permute.xlu0 %1523
    %v1527 = vsel %vm493, %v1215, 0
    %1529 = vmatprep.subr.mxu0 0.0
    %1530 = vmatpush1.msra.mxu0 %v1524
    %1531 = vmatprep.subr.mxu0 0.0
    %1532 = vmatpush1.msra.mxu0 0.0
    %1533 = vmatprep.subr.mxu0 0.0
    %1534 = vmatpush1.msra.mxu0 0.0
    %1535 = vmatprep.subr.mxu0 0.0
    %1536 = vmatpush1.msra.mxu0 0.0
    %1537 = vmatprep.subr.mxu0 0.0
    %1538 = vmatpush1.msra.mxu0 0.0
    %1539 = vmatprep.subr.mxu0 0.0
    %1540 = vmatpush1.msra.mxu0 0.0
    %1541 = vmatprep.subr.mxu0 0.0
    %1542 = vmatpush1.msra.mxu0 0.0
    %1543 = vmatprep.subr.mxu0 0.0
    %1544 = vmatpush1.msra.mxu0 0.0
    %1545 = vmatprep.subr.mxu0 0.0
    %1546 = vmatpush1.msra.mxu0 0.0
    %1547 = vmatprep.subr.mxu0 0.0
    %1548 = vmatpush1.msra.mxu0 0.0
    %1549 = vmatprep.subr.mxu0 0.0
    %1550 = vmatpush1.msra.mxu0 0.0
    %1551 = vmatprep.subr.mxu0 0.0
    %1552 = vmatpush1.msra.mxu0 0.0
    %1553 = vmatprep.subr.mxu0 0.0
    %1554 = vmatpush1.msra.mxu0 0.0
    %1555 = vmatprep.subr.mxu0 0.0
    %1556 = vmatpush1.msra.mxu0 0.0
    %1557 = vmatprep.subr.mxu0 0.0
    %1558 = vmatpush1.msra.mxu0 0.0
    %1559 = vmatprep.subr.mxu0 0.0
    %1560 = vmatpush1.msra.mxu0 0.0
    %1561 = vmatprep.subr.mxu0 0.0
    %1562 = vmatpush1.msra.mxu0 0.0
    %1563 = vmatprep.subr.mxu0 0.0
    %1564 = vmatpush1.msra.mxu0 0.0
    %1565 = vmatprep.subr.mxu0 0.0
    %1566 = vmatpush1.msra.mxu0 0.0
    %1567 = vmatprep.subr.mxu0 0.0
    %1568 = vmatpush1.msra.mxu0 0.0
    %1569 = vmatprep.subr.mxu0 0.0
    %1570 = vmatpush1.msra.mxu0 0.0
    %1571 = vmatprep.subr.mxu0 0.0
    %1572 = vmatpush1.msra.mxu0 0.0
    %1573 = vmatprep.subr.mxu0 0.0
    %1574 = vmatpush1.msra.mxu0 0.0
    %1575 = vmatprep.subr.mxu0 0.0
    %1576 = vmatpush1.msra.mxu0 0.0
    %1577 = vmatprep.subr.mxu0 0.0
    %1578 = vmatpush1.msra.mxu0 0.0
    %1579 = vmatprep.subr.mxu0 0.0
    %1580 = vmatpush1.msra.mxu0 0.0
    %1581 = vmatprep.subr.mxu0 0.0
    %1582 = vmatpush1.msra.mxu0 0.0
    %1583 = vmatprep.subr.mxu0 0.0
    %1584 = vmatpush1.msra.mxu0 0.0
    %1585 = vmatprep.subr.mxu0 0.0
    %1586 = vmatpush1.msra.mxu0 0.0
    %1587 = vmatprep.subr.mxu0 0.0
    %1588 = vmatpush1.msra.mxu0 0.0
    %1589 = vmatprep.subr.mxu0 0.0
    %1590 = vmatpush1.msra.mxu0 0.0
    %1591 = vmatprep.subr.mxu0 0.0
    %1592 = vmatpush1.msra.mxu0 0.0
    %1593 = vmatprep.mubr.f32.mxu0 0.0
    %1594 = vmatmul.mubr.f32.gmra.mrb[0].mxu0 %v1527
    %v1595 = vpop.f32.mrb[0].mxu0
    %v1596 = vadd.f32 0.0, %v1595
    %v1597 = vpop.f32.mrb[0].mxu0
    %1598 = vdwg.mxu0
    %1599 = vrot.lane.b32.xlu0 %v487, 48
    %v1600 = vpop.permute.xlu0 %1599
    %v1603 = vsel %vm493, %v1216, 0
    %1605 = vmatprep.subr.mxu0 0.0
    %1606 = vmatpush1.msra.mxu0 %v1600
    %1607 = vmatprep.subr.mxu0 0.0
    %1608 = vmatpush1.msra.mxu0 0.0
    %1609 = vmatprep.subr.mxu0 0.0
    %1610 = vmatpush1.msra.mxu0 0.0
    %1611 = vmatprep.subr.mxu0 0.0
    %1612 = vmatpush1.msra.mxu0 0.0
    %1613 = vmatprep.subr.mxu0 0.0
    %1614 = vmatpush1.msra.mxu0 0.0
    %1615 = vmatprep.subr.mxu0 0.0
    %1616 = vmatpush1.msra.mxu0 0.0
    %1617 = vmatprep.subr.mxu0 0.0
    %1618 = vmatpush1.msra.mxu0 0.0
    %1619 = vmatprep.subr.mxu0 0.0
    %1620 = vmatpush1.msra.mxu0 0.0
    %1621 = vmatprep.subr.mxu0 0.0
    %1622 = vmatpush1.msra.mxu0 0.0
    %1623 = vmatprep.subr.mxu0 0.0
    %1624 = vmatpush1.msra.mxu0 0.0
    %1625 = vmatprep.subr.mxu0 0.0
    %1626 = vmatpush1.msra.mxu0 0.0
    %1627 = vmatprep.subr.mxu0 0.0
    %1628 = vmatpush1.msra.mxu0 0.0
    %1629 = vmatprep.subr.mxu0 0.0
    %1630 = vmatpush1.msra.mxu0 0.0
    %1631 = vmatprep.subr.mxu0 0.0
    %1632 = vmatpush1.msra.mxu0 0.0
    %1633 = vmatprep.subr.mxu0 0.0
    %1634 = vmatpush1.msra.mxu0 0.0
    %1635 = vmatprep.subr.mxu0 0.0
    %1636 = vmatpush1.msra.mxu0 0.0
    %1637 = vmatprep.subr.mxu0 0.0
    %1638 = vmatpush1.msra.mxu0 0.0
    %1639 = vmatprep.subr.mxu0 0.0
    %1640 = vmatpush1.msra.mxu0 0.0
    %1641 = vmatprep.subr.mxu0 0.0
    %1642 = vmatpush1.msra.mxu0 0.0
    %1643 = vmatprep.subr.mxu0 0.0
    %1644 = vmatpush1.msra.mxu0 0.0
    %1645 = vmatprep.subr.mxu0 0.0
    %1646 = vmatpush1.msra.mxu0 0.0
    %1647 = vmatprep.subr.mxu0 0.0
    %1648 = vmatpush1.msra.mxu0 0.0
    %1649 = vmatprep.subr.mxu0 0.0
    %1650 = vmatpush1.msra.mxu0 0.0
    %1651 = vmatprep.subr.mxu0 0.0
    %1652 = vmatpush1.msra.mxu0 0.0
    %1653 = vmatprep.subr.mxu0 0.0
    %1654 = vmatpush1.msra.mxu0 0.0
    %1655 = vmatprep.subr.mxu0 0.0
    %1656 = vmatpush1.msra.mxu0 0.0
    %1657 = vmatprep.subr.mxu0 0.0
    %1658 = vmatpush1.msra.mxu0 0.0
    %1659 = vmatprep.subr.mxu0 0.0
    %1660 = vmatpush1.msra.mxu0 0.0
    %1661 = vmatprep.subr.mxu0 0.0
    %1662 = vmatpush1.msra.mxu0 0.0
    %1663 = vmatprep.subr.mxu0 0.0
    %1664 = vmatpush1.msra.mxu0 0.0
    %1665 = vmatprep.subr.mxu0 0.0
    %1666 = vmatpush1.msra.mxu0 0.0
    %1667 = vmatprep.subr.mxu0 0.0
    %1668 = vmatpush1.msra.mxu0 0.0
    %1669 = vmatprep.mubr.f32.mxu0 0.0
    %1670 = vmatmul.mubr.f32.gmra.mrb[0].mxu0 %v1603
    %v1671 = vpop.f32.mrb[0].mxu0
    %v1672 = vadd.f32 0.0, %v1671
    %v1673 = vpop.f32.mrb[0].mxu0
    %1674 = vdwg.mxu0
    %1675 = vrot.lane.b32.xlu0 %v482, 40
    %v1676 = vpop.permute.xlu0 %1675
    %v1679 = vsel %vm493, %v1217, 0
    %1681 = vmatprep.subr.mxu0 0.0
    %1682 = vmatpush1.msra.mxu0 %v1676
    %1683 = vmatprep.subr.mxu0 0.0
    %1684 = vmatpush1.msra.mxu0 0.0
    %1685 = vmatprep.subr.mxu0 0.0
    %1686 = vmatpush1.msra.mxu0 0.0
    %1687 = vmatprep.subr.mxu0 0.0
    %1688 = vmatpush1.msra.mxu0 0.0
    %1689 = vmatprep.subr.mxu0 0.0
    %1690 = vmatpush1.msra.mxu0 0.0
    %1691 = vmatprep.subr.mxu0 0.0
    %1692 = vmatpush1.msra.mxu0 0.0
    %1693 = vmatprep.subr.mxu0 0.0
    %1694 = vmatpush1.msra.mxu0 0.0
    %1695 = vmatprep.subr.mxu0 0.0
    %1696 = vmatpush1.msra.mxu0 0.0
    %1697 = vmatprep.subr.mxu0 0.0
    %1698 = vmatpush1.msra.mxu0 0.0
    %1699 = vmatprep.subr.mxu0 0.0
    %1700 = vmatpush1.msra.mxu0 0.0
    %1701 = vmatprep.subr.mxu0 0.0
    %1702 = vmatpush1.msra.mxu0 0.0
    %1703 = vmatprep.subr.mxu0 0.0
    %1704 = vmatpush1.msra.mxu0 0.0
    %1705 = vmatprep.subr.mxu0 0.0
    %1706 = vmatpush1.msra.mxu0 0.0
    %1707 = vmatprep.subr.mxu0 0.0
    %1708 = vmatpush1.msra.mxu0 0.0
    %1709 = vmatprep.subr.mxu0 0.0
    %1710 = vmatpush1.msra.mxu0 0.0
    %1711 = vmatprep.subr.mxu0 0.0
    %1712 = vmatpush1.msra.mxu0 0.0
    %1713 = vmatprep.subr.mxu0 0.0
    %1714 = vmatpush1.msra.mxu0 0.0
    %1715 = vmatprep.subr.mxu0 0.0
    %1716 = vmatpush1.msra.mxu0 0.0
    %1717 = vmatprep.subr.mxu0 0.0
    %1718 = vmatpush1.msra.mxu0 0.0
    %1719 = vmatprep.subr.mxu0 0.0
    %1720 = vmatpush1.msra.mxu0 0.0
    %1721 = vmatprep.subr.mxu0 0.0
    %1722 = vmatpush1.msra.mxu0 0.0
    %1723 = vmatprep.subr.mxu0 0.0
    %1724 = vmatpush1.msra.mxu0 0.0
    %1725 = vmatprep.subr.mxu0 0.0
    %1726 = vmatpush1.msra.mxu0 0.0
    %1727 = vmatprep.subr.mxu0 0.0
    %1728 = vmatpush1.msra.mxu0 0.0
    %1729 = vmatprep.subr.mxu0 0.0
    %1730 = vmatpush1.msra.mxu0 0.0
    %1731 = vmatprep.subr.mxu0 0.0
    %1732 = vmatpush1.msra.mxu0 0.0
    %1733 = vmatprep.subr.mxu0 0.0
    %1734 = vmatpush1.msra.mxu0 0.0
    %1735 = vmatprep.subr.mxu0 0.0
    %1736 = vmatpush1.msra.mxu0 0.0
    %1737 = vmatprep.subr.mxu0 0.0
    %1738 = vmatpush1.msra.mxu0 0.0
    %1739 = vmatprep.subr.mxu0 0.0
    %1740 = vmatpush1.msra.mxu0 0.0
    %1741 = vmatprep.subr.mxu0 0.0
    %1742 = vmatpush1.msra.mxu0 0.0
    %1743 = vmatprep.subr.mxu0 0.0
    %1744 = vmatpush1.msra.mxu0 0.0
    %1745 = vmatprep.mubr.f32.mxu0 0.0
    %1746 = vmatmul.mubr.f32.gmra.mrb[0].mxu0 %v1679
    %v1747 = vpop.f32.mrb[0].mxu0
    %v1748 = vadd.f32 0.0, %v1747
    %v1749 = vpop.f32.mrb[0].mxu0
    %1750 = vdwg.mxu0
    %1751 = vrot.lane.b32.xlu0 %v487, 40
    %v1752 = vpop.permute.xlu0 %1751
    %v1755 = vsel %vm493, %v1218, 0
    %1757 = vmatprep.subr.mxu0 0.0
    %1758 = vmatpush1.msra.mxu0 %v1752
    %1759 = vmatprep.subr.mxu0 0.0
    %1760 = vmatpush1.msra.mxu0 0.0
    %1761 = vmatprep.subr.mxu0 0.0
    %1762 = vmatpush1.msra.mxu0 0.0
    %1763 = vmatprep.subr.mxu0 0.0
    %1764 = vmatpush1.msra.mxu0 0.0
    %1765 = vmatprep.subr.mxu0 0.0
    %1766 = vmatpush1.msra.mxu0 0.0
    %1767 = vmatprep.subr.mxu0 0.0
    %1768 = vmatpush1.msra.mxu0 0.0
    %1769 = vmatprep.subr.mxu0 0.0
    %1770 = vmatpush1.msra.mxu0 0.0
    %1771 = vmatprep.subr.mxu0 0.0
    %1772 = vmatpush1.msra.mxu0 0.0
    %1773 = vmatprep.subr.mxu0 0.0
    %1774 = vmatpush1.msra.mxu0 0.0
    %1775 = vmatprep.subr.mxu0 0.0
    %1776 = vmatpush1.msra.mxu0 0.0
    %1777 = vmatprep.subr.mxu0 0.0
    %1778 = vmatpush1.msra.mxu0 0.0
    %1779 = vmatprep.subr.mxu0 0.0
    %1780 = vmatpush1.msra.mxu0 0.0
    %1781 = vmatprep.subr.mxu0 0.0
    %1782 = vmatpush1.msra.mxu0 0.0
    %1783 = vmatprep.subr.mxu0 0.0
    %1784 = vmatpush1.msra.mxu0 0.0
    %1785 = vmatprep.subr.mxu0 0.0
    %1786 = vmatpush1.msra.mxu0 0.0
    %1787 = vmatprep.subr.mxu0 0.0
    %1788 = vmatpush1.msra.mxu0 0.0
    %1789 = vmatprep.subr.mxu0 0.0
    %1790 = vmatpush1.msra.mxu0 0.0
    %1791 = vmatprep.subr.mxu0 0.0
    %1792 = vmatpush1.msra.mxu0 0.0
    %1793 = vmatprep.subr.mxu0 0.0
    %1794 = vmatpush1.msra.mxu0 0.0
    %1795 = vmatprep.subr.mxu0 0.0
    %1796 = vmatpush1.msra.mxu0 0.0
    %1797 = vmatprep.subr.mxu0 0.0
    %1798 = vmatpush1.msra.mxu0 0.0
    %1799 = vmatprep.subr.mxu0 0.0
    %1800 = vmatpush1.msra.mxu0 0.0
    %1801 = vmatprep.subr.mxu0 0.0
    %1802 = vmatpush1.msra.mxu0 0.0
    %1803 = vmatprep.subr.mxu0 0.0
    %1804 = vmatpush1.msra.mxu0 0.0
    %1805 = vmatprep.subr.mxu0 0.0
    %1806 = vmatpush1.msra.mxu0 0.0
    %1807 = vmatprep.subr.mxu0 0.0
    %1808 = vmatpush1.msra.mxu0 0.0
    %1809 = vmatprep.subr.mxu0 0.0
    %1810 = vmatpush1.msra.mxu0 0.0
    %1811 = vmatprep.subr.mxu0 0.0
    %1812 = vmatpush1.msra.mxu0 0.0
    %1813 = vmatprep.subr.mxu0 0.0
    %1814 = vmatpush1.msra.mxu0 0.0
    %1815 = vmatprep.subr.mxu0 0.0
    %1816 = vmatpush1.msra.mxu0 0.0
    %1817 = vmatprep.subr.mxu0 0.0
    %1818 = vmatpush1.msra.mxu0 0.0
    %1819 = vmatprep.subr.mxu0 0.0
    %1820 = vmatpush1.msra.mxu0 0.0
    %1821 = vmatprep.mubr.f32.mxu0 0.0
    %1822 = vmatmul.mubr.f32.gmra.mrb[0].mxu0 %v1755
    %v1823 = vpop.f32.mrb[0].mxu0
    %v1824 = vadd.f32 0.0, %v1823
    %v1825 = vpop.f32.mrb[0].mxu0
    %1826 = vdwg.mxu0
    %1829 = vrot.lane.b32.xlu0 %v1444, 8
    %v1830 = vpop.permute.xlu0 %1829
    %1831 = vrot.lane.b32.xlu0 %v1520, 8
    %v1832 = vpop.permute.xlu0 %1831
    %1837 = vrot.lane.b32.xlu0 %v1596, 16
    %v1838 = vpop.permute.xlu0 %1837
    %1839 = vrot.lane.b32.xlu0 %v1672, 16
    %v1840 = vpop.permute.xlu0 %1839
    %1845 = vrot.lane.b32.xlu0 %v1748, 24
    %v1846 = vpop.permute.xlu0 %1845
    %1847 = vrot.lane.b32.xlu0 %v1824, 24
    %v1848 = vpop.permute.xlu0 %1847
    %v1851 = vsel %vm493, %v1292, %v1830
    %v1852 = vsel %vm493, %v1368, %v1832
    %vm1853 = vcmask 130048
    %v1854 = vsel %vm1853, %v1851, %v1838
    %v1855 = vsel %vm1853, %v1852, %v1840
    %vm1856 = vcmask 195584
    %v1857 = vsel %vm1856, %v1854, %v1846
    %v1858 = vsel %vm1856, %v1855, %v1848
    %v1859 = vld [vmem:[%s13] sm:$0xff]
    %v1860 = vld [vmem:[%s13 + $0x8] sm:$0xff]
    %v1861 = vld [vmem:[%s13 + $0x10] sm:$0xff]
    %v1862 = vld [vmem:[%s13 + $0x18] sm:$0xff]
    %v1863 = vld [vmem:[#allocation11] sm:$0x1]
    %v1865 = vlaneseq
    %v1866 = vshrl.u32 %v1865, 7
    %v1867 = vsub.s32 0, %v1866
    %v1868 = vrot.slane %v1863, %v1867
    %v1871 = vsel %vm359, %v1857, 0
    %v1874 = vsel %vm359, %v1858, 0
    %1876 = vmatprep.subr.mxu0 0.0
    %1877 = vmatpush1.msra.mxu0 %v1859
    %1878 = vmatprep.subr.mxu0 0.0
    %1879 = vmatpush1.msra.mxu0 %v1860
    %1880 = vmatprep.subr.mxu0 0.0
    %1881 = vmatpush1.msra.mxu0 %v1861
    %1882 = vmatprep.subr.mxu0 0.0
    %1883 = vmatpush1.msra.mxu0 %v1862
    %1884 = vmatprep.subr.mxu0 0.0
    %1885 = vmatpush1.msra.mxu0 0.0
    %1886 = vmatprep.subr.mxu0 0.0
    %1887 = vmatpush1.msra.mxu0 0.0
    %1888 = vmatprep.subr.mxu0 0.0
    %1889 = vmatpush1.msra.mxu0 0.0
    %1890 = vmatprep.subr.mxu0 0.0
    %1891 = vmatpush1.msra.mxu0 0.0
    %1892 = vmatprep.subr.mxu0 0.0
    %1893 = vmatpush1.msra.mxu0 0.0
    %1894 = vmatprep.subr.mxu0 0.0
    %1895 = vmatpush1.msra.mxu0 0.0
    %1896 = vmatprep.subr.mxu0 0.0
    %1897 = vmatpush1.msra.mxu0 0.0
    %1898 = vmatprep.subr.mxu0 0.0
    %1899 = vmatpush1.msra.mxu0 0.0
    %1900 = vmatprep.subr.mxu0 0.0
    %1901 = vmatpush1.msra.mxu0 0.0
    %1902 = vmatprep.subr.mxu0 0.0
    %1903 = vmatpush1.msra.mxu0 0.0
    %1904 = vmatprep.subr.mxu0 0.0
    %1905 = vmatpush1.msra.mxu0 0.0
    %1906 = vmatprep.subr.mxu0 0.0
    %1907 = vmatpush1.msra.mxu0 0.0
    %1908 = vmatprep.subr.mxu0 0.0
    %1909 = vmatpush1.msra.mxu0 0.0
    %1910 = vmatprep.subr.mxu0 0.0
    %1911 = vmatpush1.msra.mxu0 0.0
    %1912 = vmatprep.subr.mxu0 0.0
    %1913 = vmatpush1.msra.mxu0 0.0
    %1914 = vmatprep.subr.mxu0 0.0
    %1915 = vmatpush1.msra.mxu0 0.0
    %1916 = vmatprep.subr.mxu0 0.0
    %1917 = vmatpush1.msra.mxu0 0.0
    %1918 = vmatprep.subr.mxu0 0.0
    %1919 = vmatpush1.msra.mxu0 0.0
    %1920 = vmatprep.subr.mxu0 0.0
    %1921 = vmatpush1.msra.mxu0 0.0
    %1922 = vmatprep.subr.mxu0 0.0
    %1923 = vmatpush1.msra.mxu0 0.0
    %1924 = vmatprep.subr.mxu0 0.0
    %1925 = vmatpush1.msra.mxu0 0.0
    %1926 = vmatprep.subr.mxu0 0.0
    %1927 = vmatpush1.msra.mxu0 0.0
    %1928 = vmatprep.subr.mxu0 0.0
    %1929 = vmatpush1.msra.mxu0 0.0
    %1930 = vmatprep.subr.mxu0 0.0
    %1931 = vmatpush1.msra.mxu0 0.0
    %1932 = vmatprep.subr.mxu0 0.0
    %1933 = vmatpush1.msra.mxu0 0.0
    %1934 = vmatprep.subr.mxu0 0.0
    %1935 = vmatpush1.msra.mxu0 0.0
    %1936 = vmatprep.subr.mxu0 0.0
    %1937 = vmatpush1.msra.mxu0 0.0
    %1938 = vmatprep.subr.mxu0 0.0
    %1939 = vmatpush1.msra.mxu0 0.0
    %1940 = vmatprep.mubr.f32.mxu0 0.0
    %1941 = vmatmul.mubr.f32.gmra.mrb[0].mxu0 %v1871
    %v1942 = vpop.f32.mrb[0].mxu0
    %v1943 = vadd.f32 %v1868, %v1942
    %v1944 = vpop.f32.mrb[0].mxu0
    %1945 = vmatprep.mubr.f32.mxu0 0.0
    %1946 = vmatmul.mubr.f32.gmra.mrb[0].mxu0 %v1874
    %v1947 = vpop.f32.mrb[0].mxu0
    %v1948 = vadd.f32 %v1868, %v1947
    %v1949 = vpop.f32.mrb[0].mxu0
    %1950 = vdwg.mxu0
    %v1951 = vadd.f32 %v365, %v1943
    %v1952 = vadd.f32 %v366, %v1948
    %v1953 = vld [vmem:[#allocation16] sm:$0x1]
    %v1954 = vld [vmem:[#allocation17] sm:$0x1]
    %v1955 = vsel %vm359, %v1951, 0.0
    %1956 = vadd.xlane.f32.xlu0 %v1955
    %v1957 = vpop.xlane.xlu0 %1956
    %v1958 = vsel %vm359, %v1952, 0.0
    %1959 = vadd.xlane.f32.xlu0 %v1958
    %v1960 = vpop.xlane.xlu0 %1959
    %v1961 = vrcp.pop 32.0
    %v1962 = vmul.f32 %v1957, %v1961
    %v1963 = vmul.f32 %v1960, %v1961
    %v1964 = vsub.f32 %v1951, %v1962
    %v1965 = vsub.f32 %v1952, %v1963
    %v1966 = vmul.f32 %v1964, %v1964
    %v1967 = vmul.f32 %v1965, %v1965
    %v1968 = vsel %vm359, %v1966, 0.0
    %1969 = vadd.xlane.f32.xlu0 %v1968
    %v1970 = vpop.xlane.xlu0 %1969
    %v1971 = vsel %vm359, %v1967, 0.0
    %1972 = vadd.xlane.f32.xlu0 %v1971
    %v1973 = vpop.xlane.xlu0 %1972
    %v1974 = vmul.f32 %v1970, %v1961
    %v1975 = vmul.f32 %v1973, %v1961
    %v1976 = vadd.f32 %v1974, 1e-05
    %v1977 = vadd.f32 %v1975, 1e-05
    %v1978 = vrsqrt.pop %v1976
    %v1979 = vrsqrt.pop %v1977
    %v1980 = vmul.f32 %v1964, %v1978
    %v1981 = vmul.f32 %v1965, %v1979
    %v1983 = vlaneseq
    %v1984 = vshrl.u32 %v1983, 7
    %v1985 = vsub.s32 0, %v1984
    %v1986 = vrot.slane %v1953, %v1985
    %v1988 = vmul.f32 %v1980, %v1986
    %v1989 = vmul.f32 %v1981, %v1986
    %v1991 = vlaneseq
    %v1992 = vshrl.u32 %v1991, 7
    %v1993 = vsub.s32 0, %v1992
    %v1994 = vrot.slane %v1954, %v1993
    %v1996 = vadd.f32 %v1988, %v1994
    %v1997 = vadd.f32 %v1989, %v1994
    %v1998 = vld [vmem:[%s17] sm:$0xff]
    %v1999 = vld [vmem:[%s17 + $0x8] sm:$0xff]
    %v2000 = vld [vmem:[%s17 + $0x10] sm:$0xff]
    %v2001 = vld [vmem:[%s17 + $0x18] sm:$0xff]
    %v2002 = vld [vmem:[#allocation13] sm:$0x1]
    %v2004 = vlaneseq
    %v2005 = vshrl.u32 %v2004, 7
    %v2006 = vsub.s32 0, %v2005
    %v2007 = vrot.slane %v2002, %v2006
    %v2010 = vsel %vm359, %v1996, 0
    %v2013 = vsel %vm359, %v1997, 0
    %2015 = vmatprep.subr.mxu0 0.0
    %2016 = vmatpush1.msra.mxu0 %v1998
    %2017 = vmatprep.subr.mxu0 0.0
    %2018 = vmatpush1.msra.mxu0 %v1999
    %2019 = vmatprep.subr.mxu0 0.0
    %2020 = vmatpush1.msra.mxu0 %v2000
    %2021 = vmatprep.subr.mxu0 0.0
    %2022 = vmatpush1.msra.mxu0 %v2001
    %2023 = vmatprep.subr.mxu0 0.0
    %2024 = vmatpush1.msra.mxu0 0.0
    %2025 = vmatprep.subr.mxu0 0.0
    %2026 = vmatpush1.msra.mxu0 0.0
    %2027 = vmatprep.subr.mxu0 0.0
    %2028 = vmatpush1.msra.mxu0 0.0
    %2029 = vmatprep.subr.mxu0 0.0
    %2030 = vmatpush1.msra.mxu0 0.0
    %2031 = vmatprep.subr.mxu0 0.0
    %2032 = vmatpush1.msra.mxu0 0.0
    %2033 = vmatprep.subr.mxu0 0.0
    %2034 = vmatpush1.msra.mxu0 0.0
    %2035 = vmatprep.subr.mxu0 0.0
    %2036 = vmatpush1.msra.mxu0 0.0
    %2037 = vmatprep.subr.mxu0 0.0
    %2038 = vmatpush1.msra.mxu0 0.0
    %2039 = vmatprep.subr.mxu0 0.0
    %2040 = vmatpush1.msra.mxu0 0.0
    %2041 = vmatprep.subr.mxu0 0.0
    %2042 = vmatpush1.msra.mxu0 0.0
    %2043 = vmatprep.subr.mxu0 0.0
    %2044 = vmatpush1.msra.mxu0 0.0
    %2045 = vmatprep.subr.mxu0 0.0
    %2046 = vmatpush1.msra.mxu0 0.0
    %2047 = vmatprep.subr.mxu0 0.0
    %2048 = vmatpush1.msra.mxu0 0.0
    %2049 = vmatprep.subr.mxu0 0.0
    %2050 = vmatpush1.msra.mxu0 0.0
    %2051 = vmatprep.subr.mxu0 0.0
    %2052 = vmatpush1.msra.mxu0 0.0
    %2053 = vmatprep.subr.mxu0 0.0
    %2054 = vmatpush1.msra.mxu0 0.0
    %2055 = vmatprep.subr.mxu0 0.0
    %2056 = vmatpush1.msra.mxu0 0.0
    %2057 = vmatprep.subr.mxu0 0.0
    %2058 = vmatpush1.msra.mxu0 0.0
    %2059 = vmatprep.subr.mxu0 0.0
    %2060 = vmatpush1.msra.mxu0 0.0
    %2061 = vmatprep.subr.mxu0 0.0
    %2062 = vmatpush1.msra.mxu0 0.0
    %2063 = vmatprep.subr.mxu0 0.0
    %2064 = vmatpush1.msra.mxu0 0.0
    %2065 = vmatprep.subr.mxu0 0.0
    %2066 = vmatpush1.msra.mxu0 0.0
    %2067 = vmatprep.subr.mxu0 0.0
    %2068 = vmatpush1.msra.mxu0 0.0
    %2069 = vmatprep.subr.mxu0 0.0
    %2070 = vmatpush1.msra.mxu0 0.0
    %2071 = vmatprep.subr.mxu0 0.0
    %2072 = vmatpush1.msra.mxu0 0.0
    %2073 = vmatprep.subr.mxu0 0.0
    %2074 = vmatpush1.msra.mxu0 0.0
    %2075 = vmatprep.subr.mxu0 0.0
    %2076 = vmatpush1.msra.mxu0 0.0
    %2077 = vmatprep.subr.mxu0 0.0
    %2078 = vmatpush1.msra.mxu0 0.0
    %2079 = vmatprep.mubr.f32.mxu0 0.0
    %2080 = vmatmul.mubr.f32.gmra.mrb[0].mxu0 %v2010
    %v2081 = vpop.f32.mrb[0].mxu0
    %v2082 = vadd.f32 %v2007, %v2081
    %v2083 = vpop.f32.mrb[0].mxu0
    %2084 = vmatprep.mubr.f32.mxu0 0.0
    %2085 = vmatmul.mubr.f32.gmra.mrb[0].mxu0 %v2013
    %v2086 = vpop.f32.mrb[0].mxu0
    %v2087 = vadd.f32 %v2007, %v2086
    %v2088 = vpop.f32.mrb[0].mxu0
    %2089 = vdwg.mxu0
    %v2090 = vmax.f32 %v2082, 0.0
    %v2091 = vmax.f32 %v2087, 0.0
    %v2092 = vld [vmem:[%s21] sm:$0xff]
    %v2093 = vld [vmem:[%s21 + $0x8] sm:$0xff]
    %v2094 = vld [vmem:[%s21 + $0x10] sm:$0xff]
    %v2095 = vld [vmem:[%s21 + $0x18] sm:$0xff]
    %v2096 = vld [vmem:[%s21 + $0x20] sm:$0xff]
    %v2097 = vld [vmem:[%s21 + $0x28] sm:$0xff]
    %v2098 = vld [vmem:[%s21 + $0x30] sm:$0xff]
    %v2099 = vld [vmem:[%s21 + $0x38] sm:$0xff]
    %v2100 = vld [vmem:[#allocation14] sm:$0x1]
    %v2102 = vlaneseq
    %v2103 = vshrl.u32 %v2102, 7
    %v2104 = vsub.s32 0, %v2103
    %v2105 = vrot.slane %v2100, %v2104
    %vm2107 = vcmask 523264
    %v2109 = vsel %vm2107, %v2090, 0
    %v2112 = vsel %vm2107, %v2091, 0
    %2114 = vmatprep.subr.mxu0 0.0
    %2115 = vmatpush1.msra.mxu0 %v2092
    %2116 = vmatprep.subr.mxu0 0.0
    %2117 = vmatpush1.msra.mxu0 %v2093
    %2118 = vmatprep.subr.mxu0 0.0
    %2119 = vmatpush1.msra.mxu0 %v2094
    %2120 = vmatprep.subr.mxu0 0.0
    %2121 = vmatpush1.msra.mxu0 %v2095
    %2122 = vmatprep.subr.mxu0 0.0
    %2123 = vmatpush1.msra.mxu0 %v2096
    %2124 = vmatprep.subr.mxu0 0.0
    %2125 = vmatpush1.msra.mxu0 %v2097
    %2126 = vmatprep.subr.mxu0 0.0
    %2127 = vmatpush1.msra.mxu0 %v2098
    %2128 = vmatprep.subr.mxu0 0.0
    %2129 = vmatpush1.msra.mxu0 %v2099
    %2130 = vmatprep.subr.mxu0 0.0
    %2131 = vmatpush1.msra.mxu0 0.0
    %2132 = vmatprep.subr.mxu0 0.0
    %2133 = vmatpush1.msra.mxu0 0.0
    %2134 = vmatprep.subr.mxu0 0.0
    %2135 = vmatpush1.msra.mxu0 0.0
    %2136 = vmatprep.subr.mxu0 0.0
    %2137 = vmatpush1.msra.mxu0 0.0
    %2138 = vmatprep.subr.mxu0 0.0
    %2139 = vmatpush1.msra.mxu0 0.0
    %2140 = vmatprep.subr.mxu0 0.0
    %2141 = vmatpush1.msra.mxu0 0.0
    %2142 = vmatprep.subr.mxu0 0.0
    %2143 = vmatpush1.msra.mxu0 0.0
    %2144 = vmatprep.subr.mxu0 0.0
    %2145 = vmatpush1.msra.mxu0 0.0
    %2146 = vmatprep.subr.mxu0 0.0
    %2147 = vmatpush1.msra.mxu0 0.0
    %2148 = vmatprep.subr.mxu0 0.0
    %2149 = vmatpush1.msra.mxu0 0.0
    %2150 = vmatprep.subr.mxu0 0.0
    %2151 = vmatpush1.msra.mxu0 0.0
    %2152 = vmatprep.subr.mxu0 0.0
    %2153 = vmatpush1.msra.mxu0 0.0
    %2154 = vmatprep.subr.mxu0 0.0
    %2155 = vmatpush1.msra.mxu0 0.0
    %2156 = vmatprep.subr.mxu0 0.0
    %2157 = vmatpush1.msra.mxu0 0.0
    %2158 = vmatprep.subr.mxu0 0.0
    %2159 = vmatpush1.msra.mxu0 0.0
    %2160 = vmatprep.subr.mxu0 0.0
    %2161 = vmatpush1.msra.mxu0 0.0
    %2162 = vmatprep.subr.mxu0 0.0
    %2163 = vmatpush1.msra.mxu0 0.0
    %2164 = vmatprep.subr.mxu0 0.0
    %2165 = vmatpush1.msra.mxu0 0.0
    %2166 = vmatprep.subr.mxu0 0.0
    %2167 = vmatpush1.msra.mxu0 0.0
    %2168 = vmatprep.subr.mxu0 0.0
    %2169 = vmatpush1.msra.mxu0 0.0
    %2170 = vmatprep.subr.mxu0 0.0
    %2171 = vmatpush1.msra.mxu0 0.0
    %2172 = vmatprep.subr.mxu0 0.0
    %2173 = vmatpush1.msra.mxu0 0.0
    %2174 = vmatprep.subr.mxu0 0.0
    %2175 = vmatpush1.msra.mxu0 0.0
    %2176 = vmatprep.subr.mxu0 0.0
    %2177 = vmatpush1.msra.mxu0 0.0
    %2178 = vmatprep.mubr.f32.mxu0 0.0
    %2179 = vmatmul.mubr.f32.gmra.mrb[0].mxu0 %v2109
    %v2180 = vpop.f32.mrb[0].mxu0
    %v2181 = vadd.f32 %v2105, %v2180
    %v2182 = vpop.f32.mrb[0].mxu0
    %2183 = vmatprep.mubr.f32.mxu0 0.0
    %2184 = vmatmul.mubr.f32.gmra.mrb[0].mxu0 %v2112
    %v2185 = vpop.f32.mrb[0].mxu0
    %v2186 = vadd.f32 %v2105, %v2185
    %v2187 = vpop.f32.mrb[0].mxu0
    %2188 = vdwg.mxu0
    %v2189 = vadd.f32 %v1996, %v2181
    %v2190 = vadd.f32 %v1997, %v2186
    %v2191 = vld [vmem:[#allocation19] sm:$0x1]
    %v2192 = vld [vmem:[#allocation20] sm:$0x1]
    %v2193 = vsel %vm359, %v2189, 0.0
    %2194 = vadd.xlane.f32.xlu0 %v2193
    %v2195 = vpop.xlane.xlu0 %2194
    %v2196 = vsel %vm359, %v2190, 0.0
    %2197 = vadd.xlane.f32.xlu0 %v2196
    %v2198 = vpop.xlane.xlu0 %2197
    %v2199 = vmul.f32 %v2195, %v1961
    %v2200 = vmul.f32 %v2198, %v1961
    %v2201 = vsub.f32 %v2189, %v2199
    %v2202 = vsub.f32 %v2190, %v2200
    %v2203 = vmul.f32 %v2201, %v2201
    %v2204 = vmul.f32 %v2202, %v2202
    %v2205 = vsel %vm359, %v2203, 0.0
    %2206 = vadd.xlane.f32.xlu0 %v2205
    %v2207 = vpop.xlane.xlu0 %2206
    %v2208 = vsel %vm359, %v2204, 0.0
    %2209 = vadd.xlane.f32.xlu0 %v2208
    %v2210 = vpop.xlane.xlu0 %2209
    %v2211 = vmul.f32 %v2207, %v1961
    %v2212 = vmul.f32 %v2210, %v1961
    %v2213 = vadd.f32 %v2211, 1e-05
    %v2214 = vadd.f32 %v2212, 1e-05
    %v2215 = vrsqrt.pop %v2213
    %v2216 = vrsqrt.pop %v2214
    %v2217 = vmul.f32 %v2201, %v2215
    %v2218 = vmul.f32 %v2202, %v2216
    %v2220 = vlaneseq
    %v2221 = vshrl.u32 %v2220, 7
    %v2222 = vsub.s32 0, %v2221
    %v2223 = vrot.slane %v2191, %v2222
    %v2225 = vmul.f32 %v2217, %v2223
    %v2226 = vmul.f32 %v2218, %v2223
    %v2228 = vlaneseq
    %v2229 = vshrl.u32 %v2228, 7
    %v2230 = vsub.s32 0, %v2229
    %v2231 = vrot.slane %v2192, %v2230
    %v2233 = vadd.f32 %v2225, %v2231
    %v2234 = vadd.f32 %v2226, %v2231
    %s2235 = scalar_lea.vmem %s9, 32
    %v2236 = vld [vmem:[%s2235] sm:$0xff]
    %v2237 = vld [vmem:[%s2235 + $0x8] sm:$0xff]
    %v2238 = vld [vmem:[%s2235 + $0x10] sm:$0xff]
    %v2239 = vld [vmem:[%s2235 + $0x18] sm:$0xff]
    %s2240 = scalar_lea.vmem [#allocation10], 1
    %v2241 = vld [vmem:[%s2240] sm:$0x1]
    %v2243 = vlaneseq
    %v2244 = vshrl.u32 %v2243, 7
    %v2245 = vsub.s32 0, %v2244
    %v2246 = vrot.slane %v2241, %v2245
    %v2249 = vsel %vm359, %v2233, 0
    %v2252 = vsel %vm359, %v2234, 0
    %2254 = vmatprep.subr.mxu0 0.0
    %2255 = vmatpush1.msra.mxu0 %v2236
    %2256 = vmatprep.subr.mxu0 0.0
    %2257 = vmatpush1.msra.mxu0 %v2237
    %2258 = vmatprep.subr.mxu0 0.0
    %2259 = vmatpush1.msra.mxu0 %v2238
    %2260 = vmatprep.subr.mxu0 0.0
    %2261 = vmatpush1.msra.mxu0 %v2239
    %2262 = vmatprep.subr.mxu0 0.0
    %2263 = vmatpush1.msra.mxu0 0.0
    %2264 = vmatprep.subr.mxu0 0.0
    %2265 = vmatpush1.msra.mxu0 0.0
    %2266 = vmatprep.subr.mxu0 0.0
    %2267 = vmatpush1.msra.mxu0 0.0
    %2268 = vmatprep.subr.mxu0 0.0
    %2269 = vmatpush1.msra.mxu0 0.0
    %2270 = vmatprep.subr.mxu0 0.0
    %2271 = vmatpush1.msra.mxu0 0.0
    %2272 = vmatprep.subr.mxu0 0.0
    %2273 = vmatpush1.msra.mxu0 0.0
    %2274 = vmatprep.subr.mxu0 0.0
    %2275 = vmatpush1.msra.mxu0 0.0
    %2276 = vmatprep.subr.mxu0 0.0
    %2277 = vmatpush1.msra.mxu0 0.0
    %2278 = vmatprep.subr.mxu0 0.0
    %2279 = vmatpush1.msra.mxu0 0.0
    %2280 = vmatprep.subr.mxu0 0.0
    %2281 = vmatpush1.msra.mxu0 0.0
    %2282 = vmatprep.subr.mxu0 0.0
    %2283 = vmatpush1.msra.mxu0 0.0
    %2284 = vmatprep.subr.mxu0 0.0
    %2285 = vmatpush1.msra.mxu0 0.0
    %2286 = vmatprep.subr.mxu0 0.0
    %2287 = vmatpush1.msra.mxu0 0.0
    %2288 = vmatprep.subr.mxu0 0.0
    %2289 = vmatpush1.msra.mxu0 0.0
    %2290 = vmatprep.subr.mxu0 0.0
    %2291 = vmatpush1.msra.mxu0 0.0
    %2292 = vmatprep.subr.mxu0 0.0
    %2293 = vmatpush1.msra.mxu0 0.0
    %2294 = vmatprep.subr.mxu0 0.0
    %2295 = vmatpush1.msra.mxu0 0.0
    %2296 = vmatprep.subr.mxu0 0.0
    %2297 = vmatpush1.msra.mxu0 0.0
    %2298 = vmatprep.subr.mxu0 0.0
    %2299 = vmatpush1.msra.mxu0 0.0
    %2300 = vmatprep.subr.mxu0 0.0
    %2301 = vmatpush1.msra.mxu0 0.0
    %2302 = vmatprep.subr.mxu0 0.0
    %2303 = vmatpush1.msra.mxu0 0.0
    %2304 = vmatprep.subr.mxu0 0.0
    %2305 = vmatpush1.msra.mxu0 0.0
    %2306 = vmatprep.subr.mxu0 0.0
    %2307 = vmatpush1.msra.mxu0 0.0
    %2308 = vmatprep.subr.mxu0 0.0
    %2309 = vmatpush1.msra.mxu0 0.0
    %2310 = vmatprep.subr.mxu0 0.0
    %2311 = vmatpush1.msra.mxu0 0.0
    %2312 = vmatprep.subr.mxu0 0.0
    %2313 = vmatpush1.msra.mxu0 0.0
    %2314 = vmatprep.subr.mxu0 0.0
    %2315 = vmatpush1.msra.mxu0 0.0
    %2316 = vmatprep.subr.mxu0 0.0
    %2317 = vmatpush1.msra.mxu0 0.0
    %2318 = vmatprep.mubr.f32.mxu0 0.0
    %2319 = vmatmul.mubr.f32.gmra.mrb[0].mxu0 %v2249
    %v2320 = vpop.f32.mrb[0].mxu0
    %v2321 = vadd.f32 %v2246, %v2320
    %v2322 = vpop.f32.mrb[0].mxu0
    %2323 = vmatprep.mubr.f32.mxu0 0.0
    %2324 = vmatmul.mubr.f32.gmra.mrb[0].mxu0 %v2252
    %v2325 = vpop.f32.mrb[0].mxu0
    %v2326 = vadd.f32 %v2246, %v2325
    %v2327 = vpop.f32.mrb[0].mxu0
    %2328 = vdwg.mxu0
    %2330 = vrot.lane.b32.xlu0 %v2321, 96
    %v2331 = vpop.permute.xlu0 %2330
    %v2332 = vsel %vm493, %v2321, 0
    %v2334 = vsel %vm493, %v2331, 0
    %2336 = vmatprep.subr.mxu0 0.0
    %2337 = vmatpush1.xpose.msra.mxu0 %v2334
    %2338 = vmatprep.subr.mxu0 0.0
    %2339 = vmatpush1.xpose.msra.mxu0 0.0
    %2340 = vmatprep.subr.mxu0 0.0
    %2341 = vmatpush1.xpose.msra.mxu0 0.0
    %2342 = vmatprep.subr.mxu0 0.0
    %2343 = vmatpush1.xpose.msra.mxu0 0.0
    %2344 = vmatprep.subr.mxu0 0.0
    %2345 = vmatpush1.xpose.msra.mxu0 0.0
    %2346 = vmatprep.subr.mxu0 0.0
    %2347 = vmatpush1.xpose.msra.mxu0 0.0
    %2348 = vmatprep.subr.mxu0 0.0
    %2349 = vmatpush1.xpose.msra.mxu0 0.0
    %2350 = vmatprep.subr.mxu0 0.0
    %2351 = vmatpush1.xpose.msra.mxu0 0.0
    %2352 = vmatprep.subr.mxu0 0.0
    %2353 = vmatpush1.xpose.msra.mxu0 0.0
    %2354 = vmatprep.subr.mxu0 0.0
    %2355 = vmatpush1.xpose.msra.mxu0 0.0
    %2356 = vmatprep.subr.mxu0 0.0
    %2357 = vmatpush1.xpose.msra.mxu0 0.0
    %2358 = vmatprep.subr.mxu0 0.0
    %2359 = vmatpush1.xpose.msra.mxu0 0.0
    %2360 = vmatprep.subr.mxu0 0.0
    %2361 = vmatpush1.xpose.msra.mxu0 0.0
    %2362 = vmatprep.subr.mxu0 0.0
    %2363 = vmatpush1.xpose.msra.mxu0 0.0
    %2364 = vmatprep.subr.mxu0 0.0
    %2365 = vmatpush1.xpose.msra.mxu0 0.0
    %2366 = vmatprep.subr.mxu0 0.0
    %2367 = vmatpush1.xpose.msra.mxu0 0.0
    %2368 = vmatprep.subr.mxu0 0.0
    %2369 = vmatpush1.xpose.msra.mxu0 0.0
    %2370 = vmatprep.subr.mxu0 0.0
    %2371 = vmatpush1.xpose.msra.mxu0 0.0
    %2372 = vmatprep.subr.mxu0 0.0
    %2373 = vmatpush1.xpose.msra.mxu0 0.0
    %2374 = vmatprep.subr.mxu0 0.0
    %2375 = vmatpush1.xpose.msra.mxu0 0.0
    %2376 = vmatprep.subr.mxu0 0.0
    %2377 = vmatpush1.xpose.msra.mxu0 0.0
    %2378 = vmatprep.subr.mxu0 0.0
    %2379 = vmatpush1.xpose.msra.mxu0 0.0
    %2380 = vmatprep.subr.mxu0 0.0
    %2381 = vmatpush1.xpose.msra.mxu0 0.0
    %2382 = vmatprep.subr.mxu0 0.0
    %2383 = vmatpush1.xpose.msra.mxu0 0.0
    %2384 = vmatprep.subr.mxu0 0.0
    %2385 = vmatpush1.xpose.msra.mxu0 0.0
    %2386 = vmatprep.subr.mxu0 0.0
    %2387 = vmatpush1.xpose.msra.mxu0 0.0
    %2388 = vmatprep.subr.mxu0 0.0
    %2389 = vmatpush1.xpose.msra.mxu0 0.0
    %2390 = vmatprep.subr.mxu0 0.0
    %2391 = vmatpush1.xpose.msra.mxu0 0.0
    %2392 = vmatprep.subr.mxu0 0.0
    %2393 = vmatpush1.xpose.msra.mxu0 0.0
    %2394 = vmatprep.subr.mxu0 0.0
    %2395 = vmatpush1.xpose.msra.mxu0 0.0
    %2396 = vmatprep.subr.mxu0 0.0
    %2397 = vmatpush1.xpose.msra.mxu0 0.0
    %2398 = vmatprep.subr.mxu0 0.0
    %2399 = vmatpush1.xpose.msra.mxu0 0.0
    %2400 = vmatprep.mubr.f32.mxu0 0.0
    %2401 = vmatmul.mubr.f32.gmra.mrb[0].mxu0 %v2332
    %v2402 = vpop.f32.mrb[0].mxu0
    %v2403 = vadd.f32 0.0, %v2402
    %v2404 = vpop.f32.mrb[0].mxu0
    %2405 = vdwg.mxu0
    %2407 = vrot.lane.b32.xlu0 %v2326, 96
    %v2408 = vpop.permute.xlu0 %2407
    %v2409 = vsel %vm493, %v2326, 0
    %v2411 = vsel %vm493, %v2408, 0
    %2413 = vmatprep.subr.mxu0 0.0
    %2414 = vmatpush1.xpose.msra.mxu0 %v2411
    %2415 = vmatprep.subr.mxu0 0.0
    %2416 = vmatpush1.xpose.msra.mxu0 0.0
    %2417 = vmatprep.subr.mxu0 0.0
    %2418 = vmatpush1.xpose.msra.mxu0 0.0
    %2419 = vmatprep.subr.mxu0 0.0
    %2420 = vmatpush1.xpose.msra.mxu0 0.0
    %2421 = vmatprep.subr.mxu0 0.0
    %2422 = vmatpush1.xpose.msra.mxu0 0.0
    %2423 = vmatprep.subr.mxu0 0.0
    %2424 = vmatpush1.xpose.msra.mxu0 0.0
    %2425 = vmatprep.subr.mxu0 0.0
    %2426 = vmatpush1.xpose.msra.mxu0 0.0
    %2427 = vmatprep.subr.mxu0 0.0
    %2428 = vmatpush1.xpose.msra.mxu0 0.0
    %2429 = vmatprep.subr.mxu0 0.0
    %2430 = vmatpush1.xpose.msra.mxu0 0.0
    %2431 = vmatprep.subr.mxu0 0.0
    %2432 = vmatpush1.xpose.msra.mxu0 0.0
    %2433 = vmatprep.subr.mxu0 0.0
    %2434 = vmatpush1.xpose.msra.mxu0 0.0
    %2435 = vmatprep.subr.mxu0 0.0
    %2436 = vmatpush1.xpose.msra.mxu0 0.0
    %2437 = vmatprep.subr.mxu0 0.0
    %2438 = vmatpush1.xpose.msra.mxu0 0.0
    %2439 = vmatprep.subr.mxu0 0.0
    %2440 = vmatpush1.xpose.msra.mxu0 0.0
    %2441 = vmatprep.subr.mxu0 0.0
    %2442 = vmatpush1.xpose.msra.mxu0 0.0
    %2443 = vmatprep.subr.mxu0 0.0
    %2444 = vmatpush1.xpose.msra.mxu0 0.0
    %2445 = vmatprep.subr.mxu0 0.0
    %2446 = vmatpush1.xpose.msra.mxu0 0.0
    %2447 = vmatprep.subr.mxu0 0.0
    %2448 = vmatpush1.xpose.msra.mxu0 0.0
    %2449 = vmatprep.subr.mxu0 0.0
    %2450 = vmatpush1.xpose.msra.mxu0 0.0
    %2451 = vmatprep.subr.mxu0 0.0
    %2452 = vmatpush1.xpose.msra.mxu0 0.0
    %2453 = vmatprep.subr.mxu0 0.0
    %2454 = vmatpush1.xpose.msra.mxu0 0.0
    %2455 = vmatprep.subr.mxu0 0.0
    %2456 = vmatpush1.xpose.msra.mxu0 0.0
    %2457 = vmatprep.subr.mxu0 0.0
    %2458 = vmatpush1.xpose.msra.mxu0 0.0
    %2459 = vmatprep.subr.mxu0 0.0
    %2460 = vmatpush1.xpose.msra.mxu0 0.0
    %2461 = vmatprep.subr.mxu0 0.0
    %2462 = vmatpush1.xpose.msra.mxu0 0.0
    %2463 = vmatprep.subr.mxu0 0.0
    %2464 = vmatpush1.xpose.msra.mxu0 0.0
    %2465 = vmatprep.subr.mxu0 0.0
    %2466 = vmatpush1.xpose.msra.mxu0 0.0
    %2467 = vmatprep.subr.mxu0 0.0
    %2468 = vmatpush1.xpose.msra.mxu0 0.0
    %2469 = vmatprep.subr.mxu0 0.0
    %2470 = vmatpush1.xpose.msra.mxu0 0.0
    %2471 = vmatprep.subr.mxu0 0.0
    %2472 = vmatpush1.xpose.msra.mxu0 0.0
    %2473 = vmatprep.subr.mxu0 0.0
    %2474 = vmatpush1.xpose.msra.mxu0 0.0
    %2475 = vmatprep.subr.mxu0 0.0
    %2476 = vmatpush1.xpose.msra.mxu0 0.0
    %2477 = vmatprep.mubr.f32.mxu0 0.0
    %2478 = vmatmul.mubr.f32.gmra.mrb[0].mxu0 %v2409
    %v2479 = vpop.f32.mrb[0].mxu0
    %v2480 = vadd.f32 0.0, %v2479
    %v2481 = vpop.f32.mrb[0].mxu0
    %2482 = vdwg.mxu0
    %2483 = vrot.lane.b32.xlu0 %v2321, 120
    %v2484 = vpop.permute.xlu0 %2483
    %2485 = vrot.lane.b32.xlu0 %v2321, 88
    %v2486 = vpop.permute.xlu0 %2485
    %v2487 = vsel %vm493, %v2484, 0
    %v2489 = vsel %vm493, %v2486, 0
    %2491 = vmatprep.subr.mxu0 0.0
    %2492 = vmatpush1.xpose.msra.mxu0 %v2489
    %2493 = vmatprep.subr.mxu0 0.0
    %2494 = vmatpush1.xpose.msra.mxu0 0.0
    %2495 = vmatprep.subr.mxu0 0.0
    %2496 = vmatpush1.xpose.msra.mxu0 0.0
    %2497 = vmatprep.subr.mxu0 0.0
    %2498 = vmatpush1.xpose.msra.mxu0 0.0
    %2499 = vmatprep.subr.mxu0 0.0
    %2500 = vmatpush1.xpose.msra.mxu0 0.0
    %2501 = vmatprep.subr.mxu0 0.0
    %2502 = vmatpush1.xpose.msra.mxu0 0.0
    %2503 = vmatprep.subr.mxu0 0.0
    %2504 = vmatpush1.xpose.msra.mxu0 0.0
    %2505 = vmatprep.subr.mxu0 0.0
    %2506 = vmatpush1.xpose.msra.mxu0 0.0
    %2507 = vmatprep.subr.mxu0 0.0
    %2508 = vmatpush1.xpose.msra.mxu0 0.0
    %2509 = vmatprep.subr.mxu0 0.0
    %2510 = vmatpush1.xpose.msra.mxu0 0.0
    %2511 = vmatprep.subr.mxu0 0.0
    %2512 = vmatpush1.xpose.msra.mxu0 0.0
    %2513 = vmatprep.subr.mxu0 0.0
    %2514 = vmatpush1.xpose.msra.mxu0 0.0
    %2515 = vmatprep.subr.mxu0 0.0
    %2516 = vmatpush1.xpose.msra.mxu0 0.0
    %2517 = vmatprep.subr.mxu0 0.0
    %2518 = vmatpush1.xpose.msra.mxu0 0.0
    %2519 = vmatprep.subr.mxu0 0.0
    %2520 = vmatpush1.xpose.msra.mxu0 0.0
    %2521 = vmatprep.subr.mxu0 0.0
    %2522 = vmatpush1.xpose.msra.mxu0 0.0
    %2523 = vmatprep.subr.mxu0 0.0
    %2524 = vmatpush1.xpose.msra.mxu0 0.0
    %2525 = vmatprep.subr.mxu0 0.0
    %2526 = vmatpush1.xpose.msra.mxu0 0.0
    %2527 = vmatprep.subr.mxu0 0.0
    %2528 = vmatpush1.xpose.msra.mxu0 0.0
    %2529 = vmatprep.subr.mxu0 0.0
    %2530 = vmatpush1.xpose.msra.mxu0 0.0
    %2531 = vmatprep.subr.mxu0 0.0
    %2532 = vmatpush1.xpose.msra.mxu0 0.0
    %2533 = vmatprep.subr.mxu0 0.0
    %2534 = vmatpush1.xpose.msra.mxu0 0.0
    %2535 = vmatprep.subr.mxu0 0.0
    %2536 = vmatpush1.xpose.msra.mxu0 0.0
    %2537 = vmatprep.subr.mxu0 0.0
    %2538 = vmatpush1.xpose.msra.mxu0 0.0
    %2539 = vmatprep.subr.mxu0 0.0
    %2540 = vmatpush1.xpose.msra.mxu0 0.0
    %2541 = vmatprep.subr.mxu0 0.0
    %2542 = vmatpush1.xpose.msra.mxu0 0.0
    %2543 = vmatprep.subr.mxu0 0.0
    %2544 = vmatpush1.xpose.msra.mxu0 0.0
    %2545 = vmatprep.subr.mxu0 0.0
    %2546 = vmatpush1.xpose.msra.mxu0 0.0
    %2547 = vmatprep.subr.mxu0 0.0
    %2548 = vmatpush1.xpose.msra.mxu0 0.0
    %2549 = vmatprep.subr.mxu0 0.0
    %2550 = vmatpush1.xpose.msra.mxu0 0.0
    %2551 = vmatprep.subr.mxu0 0.0
    %2552 = vmatpush1.xpose.msra.mxu0 0.0
    %2553 = vmatprep.subr.mxu0 0.0
    %2554 = vmatpush1.xpose.msra.mxu0 0.0
    %2555 = vmatprep.mubr.f32.mxu0 0.0
    %2556 = vmatmul.mubr.f32.gmra.mrb[0].mxu0 %v2487
    %v2557 = vpop.f32.mrb[0].mxu0
    %v2558 = vadd.f32 0.0, %v2557
    %v2559 = vpop.f32.mrb[0].mxu0
    %2560 = vdwg.mxu0
    %2561 = vrot.lane.b32.xlu0 %v2326, 120
    %v2562 = vpop.permute.xlu0 %2561
    %2563 = vrot.lane.b32.xlu0 %v2326, 88
    %v2564 = vpop.permute.xlu0 %2563
    %v2565 = vsel %vm493, %v2562, 0
    %v2567 = vsel %vm493, %v2564, 0
    %2569 = vmatprep.subr.mxu0 0.0
    %2570 = vmatpush1.xpose.msra.mxu0 %v2567
    %2571 = vmatprep.subr.mxu0 0.0
    %2572 = vmatpush1.xpose.msra.mxu0 0.0
    %2573 = vmatprep.subr.mxu0 0.0
    %2574 = vmatpush1.xpose.msra.mxu0 0.0
    %2575 = vmatprep.subr.mxu0 0.0
    %2576 = vmatpush1.xpose.msra.mxu0 0.0
    %2577 = vmatprep.subr.mxu0 0.0
    %2578 = vmatpush1.xpose.msra.mxu0 0.0
    %2579 = vmatprep.subr.mxu0 0.0
    %2580 = vmatpush1.xpose.msra.mxu0 0.0
    %2581 = vmatprep.subr.mxu0 0.0
    %2582 = vmatpush1.xpose.msra.mxu0 0.0
    %2583 = vmatprep.subr.mxu0 0.0
    %2584 = vmatpush1.xpose.msra.mxu0 0.0
    %2585 = vmatprep.subr.mxu0 0.0
    %2586 = vmatpush1.xpose.msra.mxu0 0.0
    %2587 = vmatprep.subr.mxu0 0.0
    %2588 = vmatpush1.xpose.msra.mxu0 0.0
    %2589 = vmatprep.subr.mxu0 0.0
    %2590 = vmatpush1.xpose.msra.mxu0 0.0
    %2591 = vmatprep.subr.mxu0 0.0
    %2592 = vmatpush1.xpose.msra.mxu0 0.0
    %2593 = vmatprep.subr.mxu0 0.0
    %2594 = vmatpush1.xpose.msra.mxu0 0.0
    %2595 = vmatprep.subr.mxu0 0.0
    %2596 = vmatpush1.xpose.msra.mxu0 0.0
    %2597 = vmatprep.subr.mxu0 0.0
    %2598 = vmatpush1.xpose.msra.mxu0 0.0
    %2599 = vmatprep.subr.mxu0 0.0
    %2600 = vmatpush1.xpose.msra.mxu0 0.0
    %2601 = vmatprep.subr.mxu0 0.0
    %2602 = vmatpush1.xpose.msra.mxu0 0.0
    %2603 = vmatprep.subr.mxu0 0.0
    %2604 = vmatpush1.xpose.msra.mxu0 0.0
    %2605 = vmatprep.subr.mxu0 0.0
    %2606 = vmatpush1.xpose.msra.mxu0 0.0
    %2607 = vmatprep.subr.mxu0 0.0
    %2608 = vmatpush1.xpose.msra.mxu0 0.0
    %2609 = vmatprep.subr.mxu0 0.0
    %2610 = vmatpush1.xpose.msra.mxu0 0.0
    %2611 = vmatprep.subr.mxu0 0.0
    %2612 = vmatpush1.xpose.msra.mxu0 0.0
    %2613 = vmatprep.subr.mxu0 0.0
    %2614 = vmatpush1.xpose.msra.mxu0 0.0
    %2615 = vmatprep.subr.mxu0 0.0
    %2616 = vmatpush1.xpose.msra.mxu0 0.0
    %2617 = vmatprep.subr.mxu0 0.0
    %2618 = vmatpush1.xpose.msra.mxu0 0.0
    %2619 = vmatprep.subr.mxu0 0.0
    %2620 = vmatpush1.xpose.msra.mxu0 0.0
    %2621 = vmatprep.subr.mxu0 0.0
    %2622 = vmatpush1.xpose.msra.mxu0 0.0
    %2623 = vmatprep.subr.mxu0 0.0
    %2624 = vmatpush1.xpose.msra.mxu0 0.0
    %2625 = vmatprep.subr.mxu0 0.0
    %2626 = vmatpush1.xpose.msra.mxu0 0.0
    %2627 = vmatprep.subr.mxu0 0.0
    %2628 = vmatpush1.xpose.msra.mxu0 0.0
    %2629 = vmatprep.subr.mxu0 0.0
    %2630 = vmatpush1.xpose.msra.mxu0 0.0
    %2631 = vmatprep.subr.mxu0 0.0
    %2632 = vmatpush1.xpose.msra.mxu0 0.0
    %2633 = vmatprep.mubr.f32.mxu0 0.0
    %2634 = vmatmul.mubr.f32.gmra.mrb[0].mxu0 %v2565
    %v2635 = vpop.f32.mrb[0].mxu0
    %v2636 = vadd.f32 0.0, %v2635
    %v2637 = vpop.f32.mrb[0].mxu0
    %2638 = vdwg.mxu0
    %2639 = vrot.lane.b32.xlu0 %v2321, 112
    %v2640 = vpop.permute.xlu0 %2639
    %2641 = vrot.lane.b32.xlu0 %v2321, 80
    %v2642 = vpop.permute.xlu0 %2641
    %v2643 = vsel %vm493, %v2640, 0
    %v2645 = vsel %vm493, %v2642, 0
    %2647 = vmatprep.subr.mxu0 0.0
    %2648 = vmatpush1.xpose.msra.mxu0 %v2645
    %2649 = vmatprep.subr.mxu0 0.0
    %2650 = vmatpush1.xpose.msra.mxu0 0.0
    %2651 = vmatprep.subr.mxu0 0.0
    %2652 = vmatpush1.xpose.msra.mxu0 0.0
    %2653 = vmatprep.subr.mxu0 0.0
    %2654 = vmatpush1.xpose.msra.mxu0 0.0
    %2655 = vmatprep.subr.mxu0 0.0
    %2656 = vmatpush1.xpose.msra.mxu0 0.0
    %2657 = vmatprep.subr.mxu0 0.0
    %2658 = vmatpush1.xpose.msra.mxu0 0.0
    %2659 = vmatprep.subr.mxu0 0.0
    %2660 = vmatpush1.xpose.msra.mxu0 0.0
    %2661 = vmatprep.subr.mxu0 0.0
    %2662 = vmatpush1.xpose.msra.mxu0 0.0
    %2663 = vmatprep.subr.mxu0 0.0
    %2664 = vmatpush1.xpose.msra.mxu0 0.0
    %2665 = vmatprep.subr.mxu0 0.0
    %2666 = vmatpush1.xpose.msra.mxu0 0.0
    %2667 = vmatprep.subr.mxu0 0.0
    %2668 = vmatpush1.xpose.msra.mxu0 0.0
    %2669 = vmatprep.subr.mxu0 0.0
    %2670 = vmatpush1.xpose.msra.mxu0 0.0
    %2671 = vmatprep.subr.mxu0 0.0
    %2672 = vmatpush1.xpose.msra.mxu0 0.0
    %2673 = vmatprep.subr.mxu0 0.0
    %2674 = vmatpush1.xpose.msra.mxu0 0.0
    %2675 = vmatprep.subr.mxu0 0.0
    %2676 = vmatpush1.xpose.msra.mxu0 0.0
    %2677 = vmatprep.subr.mxu0 0.0
    %2678 = vmatpush1.xpose.msra.mxu0 0.0
    %2679 = vmatprep.subr.mxu0 0.0
    %2680 = vmatpush1.xpose.msra.mxu0 0.0
    %2681 = vmatprep.subr.mxu0 0.0
    %2682 = vmatpush1.xpose.msra.mxu0 0.0
    %2683 = vmatprep.subr.mxu0 0.0
    %2684 = vmatpush1.xpose.msra.mxu0 0.0
    %2685 = vmatprep.subr.mxu0 0.0
    %2686 = vmatpush1.xpose.msra.mxu0 0.0
    %2687 = vmatprep.subr.mxu0 0.0
    %2688 = vmatpush1.xpose.msra.mxu0 0.0
    %2689 = vmatprep.subr.mxu0 0.0
    %2690 = vmatpush1.xpose.msra.mxu0 0.0
    %2691 = vmatprep.subr.mxu0 0.0
    %2692 = vmatpush1.xpose.msra.mxu0 0.0
    %2693 = vmatprep.subr.mxu0 0.0
    %2694 = vmatpush1.xpose.msra.mxu0 0.0
    %2695 = vmatprep.subr.mxu0 0.0
    %2696 = vmatpush1.xpose.msra.mxu0 0.0
    %2697 = vmatprep.subr.mxu0 0.0
    %2698 = vmatpush1.xpose.msra.mxu0 0.0
    %2699 = vmatprep.subr.mxu0 0.0
    %2700 = vmatpush1.xpose.msra.mxu0 0.0
    %2701 = vmatprep.subr.mxu0 0.0
    %2702 = vmatpush1.xpose.msra.mxu0 0.0
    %2703 = vmatprep.subr.mxu0 0.0
    %2704 = vmatpush1.xpose.msra.mxu0 0.0
    %2705 = vmatprep.subr.mxu0 0.0
    %2706 = vmatpush1.xpose.msra.mxu0 0.0
    %2707 = vmatprep.subr.mxu0 0.0
    %2708 = vmatpush1.xpose.msra.mxu0 0.0
    %2709 = vmatprep.subr.mxu0 0.0
    %2710 = vmatpush1.xpose.msra.mxu0 0.0
    %2711 = vmatprep.mubr.f32.mxu0 0.0
    %2712 = vmatmul.mubr.f32.gmra.mrb[0].mxu0 %v2643
    %v2713 = vpop.f32.mrb[0].mxu0
    %v2714 = vadd.f32 0.0, %v2713
    %v2715 = vpop.f32.mrb[0].mxu0
    %2716 = vdwg.mxu0
    %2717 = vrot.lane.b32.xlu0 %v2326, 112
    %v2718 = vpop.permute.xlu0 %2717
    %2719 = vrot.lane.b32.xlu0 %v2326, 80
    %v2720 = vpop.permute.xlu0 %2719
    %v2721 = vsel %vm493, %v2718, 0
    %v2723 = vsel %vm493, %v2720, 0
    %2725 = vmatprep.subr.mxu0 0.0
    %2726 = vmatpush1.xpose.msra.mxu0 %v2723
    %2727 = vmatprep.subr.mxu0 0.0
    %2728 = vmatpush1.xpose.msra.mxu0 0.0
    %2729 = vmatprep.subr.mxu0 0.0
    %2730 = vmatpush1.xpose.msra.mxu0 0.0
    %2731 = vmatprep.subr.mxu0 0.0
    %2732 = vmatpush1.xpose.msra.mxu0 0.0
    %2733 = vmatprep.subr.mxu0 0.0
    %2734 = vmatpush1.xpose.msra.mxu0 0.0
    %2735 = vmatprep.subr.mxu0 0.0
    %2736 = vmatpush1.xpose.msra.mxu0 0.0
    %2737 = vmatprep.subr.mxu0 0.0
    %2738 = vmatpush1.xpose.msra.mxu0 0.0
    %2739 = vmatprep.subr.mxu0 0.0
    %2740 = vmatpush1.xpose.msra.mxu0 0.0
    %2741 = vmatprep.subr.mxu0 0.0
    %2742 = vmatpush1.xpose.msra.mxu0 0.0
    %2743 = vmatprep.subr.mxu0 0.0
    %2744 = vmatpush1.xpose.msra.mxu0 0.0
    %2745 = vmatprep.subr.mxu0 0.0
    %2746 = vmatpush1.xpose.msra.mxu0 0.0
    %2747 = vmatprep.subr.mxu0 0.0
    %2748 = vmatpush1.xpose.msra.mxu0 0.0
    %2749 = vmatprep.subr.mxu0 0.0
    %2750 = vmatpush1.xpose.msra.mxu0 0.0
    %2751 = vmatprep.subr.mxu0 0.0
    %2752 = vmatpush1.xpose.msra.mxu0 0.0
    %2753 = vmatprep.subr.mxu0 0.0
    %2754 = vmatpush1.xpose.msra.mxu0 0.0
    %2755 = vmatprep.subr.mxu0 0.0
    %2756 = vmatpush1.xpose.msra.mxu0 0.0
    %2757 = vmatprep.subr.mxu0 0.0
    %2758 = vmatpush1.xpose.msra.mxu0 0.0
    %2759 = vmatprep.subr.mxu0 0.0
    %2760 = vmatpush1.xpose.msra.mxu0 0.0
    %2761 = vmatprep.subr.mxu0 0.0
    %2762 = vmatpush1.xpose.msra.mxu0 0.0
    %2763 = vmatprep.subr.mxu0 0.0
    %2764 = vmatpush1.xpose.msra.mxu0 0.0
    %2765 = vmatprep.subr.mxu0 0.0
    %2766 = vmatpush1.xpose.msra.mxu0 0.0
    %2767 = vmatprep.subr.mxu0 0.0
    %2768 = vmatpush1.xpose.msra.mxu0 0.0
    %2769 = vmatprep.subr.mxu0 0.0
    %2770 = vmatpush1.xpose.msra.mxu0 0.0
    %2771 = vmatprep.subr.mxu0 0.0
    %2772 = vmatpush1.xpose.msra.mxu0 0.0
    %2773 = vmatprep.subr.mxu0 0.0
    %2774 = vmatpush1.xpose.msra.mxu0 0.0
    %2775 = vmatprep.subr.mxu0 0.0
    %2776 = vmatpush1.xpose.msra.mxu0 0.0
    %2777 = vmatprep.subr.mxu0 0.0
    %2778 = vmatpush1.xpose.msra.mxu0 0.0
    %2779 = vmatprep.subr.mxu0 0.0
    %2780 = vmatpush1.xpose.msra.mxu0 0.0
    %2781 = vmatprep.subr.mxu0 0.0
    %2782 = vmatpush1.xpose.msra.mxu0 0.0
    %2783 = vmatprep.subr.mxu0 0.0
    %2784 = vmatpush1.xpose.msra.mxu0 0.0
    %2785 = vmatprep.subr.mxu0 0.0
    %2786 = vmatpush1.xpose.msra.mxu0 0.0
    %2787 = vmatprep.subr.mxu0 0.0
    %2788 = vmatpush1.xpose.msra.mxu0 0.0
    %2789 = vmatprep.mubr.f32.mxu0 0.0
    %2790 = vmatmul.mubr.f32.gmra.mrb[0].mxu0 %v2721
    %v2791 = vpop.f32.mrb[0].mxu0
    %v2792 = vadd.f32 0.0, %v2791
    %v2793 = vpop.f32.mrb[0].mxu0
    %2794 = vdwg.mxu0
    %2795 = vrot.lane.b32.xlu0 %v2321, 104
    %v2796 = vpop.permute.xlu0 %2795
    %2797 = vrot.lane.b32.xlu0 %v2321, 72
    %v2798 = vpop.permute.xlu0 %2797
    %v2799 = vsel %vm493, %v2796, 0
    %v2801 = vsel %vm493, %v2798, 0
    %2803 = vmatprep.subr.mxu0 0.0
    %2804 = vmatpush1.xpose.msra.mxu0 %v2801
    %2805 = vmatprep.subr.mxu0 0.0
    %2806 = vmatpush1.xpose.msra.mxu0 0.0
    %2807 = vmatprep.subr.mxu0 0.0
    %2808 = vmatpush1.xpose.msra.mxu0 0.0
    %2809 = vmatprep.subr.mxu0 0.0
    %2810 = vmatpush1.xpose.msra.mxu0 0.0
    %2811 = vmatprep.subr.mxu0 0.0
    %2812 = vmatpush1.xpose.msra.mxu0 0.0
    %2813 = vmatprep.subr.mxu0 0.0
    %2814 = vmatpush1.xpose.msra.mxu0 0.0
    %2815 = vmatprep.subr.mxu0 0.0
    %2816 = vmatpush1.xpose.msra.mxu0 0.0
    %2817 = vmatprep.subr.mxu0 0.0
    %2818 = vmatpush1.xpose.msra.mxu0 0.0
    %2819 = vmatprep.subr.mxu0 0.0
    %2820 = vmatpush1.xpose.msra.mxu0 0.0
    %2821 = vmatprep.subr.mxu0 0.0
    %2822 = vmatpush1.xpose.msra.mxu0 0.0
    %2823 = vmatprep.subr.mxu0 0.0
    %2824 = vmatpush1.xpose.msra.mxu0 0.0
    %2825 = vmatprep.subr.mxu0 0.0
    %2826 = vmatpush1.xpose.msra.mxu0 0.0
    %2827 = vmatprep.subr.mxu0 0.0
    %2828 = vmatpush1.xpose.msra.mxu0 0.0
    %2829 = vmatprep.subr.mxu0 0.0
    %2830 = vmatpush1.xpose.msra.mxu0 0.0
    %2831 = vmatprep.subr.mxu0 0.0
    %2832 = vmatpush1.xpose.msra.mxu0 0.0
    %2833 = vmatprep.subr.mxu0 0.0
    %2834 = vmatpush1.xpose.msra.mxu0 0.0
    %2835 = vmatprep.subr.mxu0 0.0
    %2836 = vmatpush1.xpose.msra.mxu0 0.0
    %2837 = vmatprep.subr.mxu0 0.0
    %2838 = vmatpush1.xpose.msra.mxu0 0.0
    %2839 = vmatprep.subr.mxu0 0.0
    %2840 = vmatpush1.xpose.msra.mxu0 0.0
    %2841 = vmatprep.subr.mxu0 0.0
    %2842 = vmatpush1.xpose.msra.mxu0 0.0
    %2843 = vmatprep.subr.mxu0 0.0
    %2844 = vmatpush1.xpose.msra.mxu0 0.0
    %2845 = vmatprep.subr.mxu0 0.0
    %2846 = vmatpush1.xpose.msra.mxu0 0.0
    %2847 = vmatprep.subr.mxu0 0.0
    %2848 = vmatpush1.xpose.msra.mxu0 0.0
    %2849 = vmatprep.subr.mxu0 0.0
    %2850 = vmatpush1.xpose.msra.mxu0 0.0
    %2851 = vmatprep.subr.mxu0 0.0
    %2852 = vmatpush1.xpose.msra.mxu0 0.0
    %2853 = vmatprep.subr.mxu0 0.0
    %2854 = vmatpush1.xpose.msra.mxu0 0.0
    %2855 = vmatprep.subr.mxu0 0.0
    %2856 = vmatpush1.xpose.msra.mxu0 0.0
    %2857 = vmatprep.subr.mxu0 0.0
    %2858 = vmatpush1.xpose.msra.mxu0 0.0
    %2859 = vmatprep.subr.mxu0 0.0
    %2860 = vmatpush1.xpose.msra.mxu0 0.0
    %2861 = vmatprep.subr.mxu0 0.0
    %2862 = vmatpush1.xpose.msra.mxu0 0.0
    %2863 = vmatprep.subr.mxu0 0.0
    %2864 = vmatpush1.xpose.msra.mxu0 0.0
    %2865 = vmatprep.subr.mxu0 0.0
    %2866 = vmatpush1.xpose.msra.mxu0 0.0
    %2867 = vmatprep.mubr.f32.mxu0 0.0
    %2868 = vmatmul.mubr.f32.gmra.mrb[0].mxu0 %v2799
    %v2869 = vpop.f32.mrb[0].mxu0
    %v2870 = vadd.f32 0.0, %v2869
    %v2871 = vpop.f32.mrb[0].mxu0
    %2872 = vdwg.mxu0
    %2873 = vrot.lane.b32.xlu0 %v2326, 104
    %v2874 = vpop.permute.xlu0 %2873
    %2875 = vrot.lane.b32.xlu0 %v2326, 72
    %v2876 = vpop.permute.xlu0 %2875
    %v2877 = vsel %vm493, %v2874, 0
    %v2879 = vsel %vm493, %v2876, 0
    %2881 = vmatprep.subr.mxu0 0.0
    %2882 = vmatpush1.xpose.msra.mxu0 %v2879
    %2883 = vmatprep.subr.mxu0 0.0
    %2884 = vmatpush1.xpose.msra.mxu0 0.0
    %2885 = vmatprep.subr.mxu0 0.0
    %2886 = vmatpush1.xpose.msra.mxu0 0.0
    %2887 = vmatprep.subr.mxu0 0.0
    %2888 = vmatpush1.xpose.msra.mxu0 0.0
    %2889 = vmatprep.subr.mxu0 0.0
    %2890 = vmatpush1.xpose.msra.mxu0 0.0
    %2891 = vmatprep.subr.mxu0 0.0
    %2892 = vmatpush1.xpose.msra.mxu0 0.0
    %2893 = vmatprep.subr.mxu0 0.0
    %2894 = vmatpush1.xpose.msra.mxu0 0.0
    %2895 = vmatprep.subr.mxu0 0.0
    %2896 = vmatpush1.xpose.msra.mxu0 0.0
    %2897 = vmatprep.subr.mxu0 0.0
    %2898 = vmatpush1.xpose.msra.mxu0 0.0
    %2899 = vmatprep.subr.mxu0 0.0
    %2900 = vmatpush1.xpose.msra.mxu0 0.0
    %2901 = vmatprep.subr.mxu0 0.0
    %2902 = vmatpush1.xpose.msra.mxu0 0.0
    %2903 = vmatprep.subr.mxu0 0.0
    %2904 = vmatpush1.xpose.msra.mxu0 0.0
    %2905 = vmatprep.subr.mxu0 0.0
    %2906 = vmatpush1.xpose.msra.mxu0 0.0
    %2907 = vmatprep.subr.mxu0 0.0
    %2908 = vmatpush1.xpose.msra.mxu0 0.0
    %2909 = vmatprep.subr.mxu0 0.0
    %2910 = vmatpush1.xpose.msra.mxu0 0.0
    %2911 = vmatprep.subr.mxu0 0.0
    %2912 = vmatpush1.xpose.msra.mxu0 0.0
    %2913 = vmatprep.subr.mxu0 0.0
    %2914 = vmatpush1.xpose.msra.mxu0 0.0
    %2915 = vmatprep.subr.mxu0 0.0
    %2916 = vmatpush1.xpose.msra.mxu0 0.0
    %2917 = vmatprep.subr.mxu0 0.0
    %2918 = vmatpush1.xpose.msra.mxu0 0.0
    %2919 = vmatprep.subr.mxu0 0.0
    %2920 = vmatpush1.xpose.msra.mxu0 0.0
    %2921 = vmatprep.subr.mxu0 0.0
    %2922 = vmatpush1.xpose.msra.mxu0 0.0
    %2923 = vmatprep.subr.mxu0 0.0
    %2924 = vmatpush1.xpose.msra.mxu0 0.0
    %2925 = vmatprep.subr.mxu0 0.0
    %2926 = vmatpush1.xpose.msra.mxu0 0.0
    %2927 = vmatprep.subr.mxu0 0.0
    %2928 = vmatpush1.xpose.msra.mxu0 0.0
    %2929 = vmatprep.subr.mxu0 0.0
    %2930 = vmatpush1.xpose.msra.mxu0 0.0
    %2931 = vmatprep.subr.mxu0 0.0
    %2932 = vmatpush1.xpose.msra.mxu0 0.0
    %2933 = vmatprep.subr.mxu0 0.0
    %2934 = vmatpush1.xpose.msra.mxu0 0.0
    %2935 = vmatprep.subr.mxu0 0.0
    %2936 = vmatpush1.xpose.msra.mxu0 0.0
    %2937 = vmatprep.subr.mxu0 0.0
    %2938 = vmatpush1.xpose.msra.mxu0 0.0
    %2939 = vmatprep.subr.mxu0 0.0
    %2940 = vmatpush1.xpose.msra.mxu0 0.0
    %2941 = vmatprep.subr.mxu0 0.0
    %2942 = vmatpush1.xpose.msra.mxu0 0.0
    %2943 = vmatprep.subr.mxu0 0.0
    %2944 = vmatpush1.xpose.msra.mxu0 0.0
    %2945 = vmatprep.mubr.f32.mxu0 0.0
    %2946 = vmatmul.mubr.f32.gmra.mrb[0].mxu0 %v2877
    %v2947 = vpop.f32.mrb[0].mxu0
    %v2948 = vadd.f32 0.0, %v2947
    %v2949 = vpop.f32.mrb[0].mxu0
    %2950 = vdwg.mxu0
    %v2951 = vadd.f32 %v2403, %v1116
    %v2952 = vadd.f32 %v2480, %v1120
    %v2953 = vadd.f32 %v2558, %v1116
    %v2954 = vadd.f32 %v2636, %v1120
    %v2955 = vadd.f32 %v2714, %v1116
    %v2956 = vadd.f32 %v2792, %v1120
    %v2957 = vadd.f32 %v2870, %v1116
    %v2958 = vadd.f32 %v2948, %v1120
    %v2959 = vsel %vm493, %v2951, -inf
    %2960 = vmax.xlane.f32.xlu0 %v2959
    %v2961 = vpop.xlane.xlu0 %2960
    %v2962 = vsel %vm493, %v2952, -inf
    %2963 = vmax.xlane.f32.xlu0 %v2962
    %v2964 = vpop.xlane.xlu0 %2963
    %v2965 = vsel %vm493, %v2953, -inf
    %2966 = vmax.xlane.f32.xlu0 %v2965
    %v2967 = vpop.xlane.xlu0 %2966
    %v2968 = vsel %vm493, %v2954, -inf
    %2969 = vmax.xlane.f32.xlu0 %v2968
    %v2970 = vpop.xlane.xlu0 %2969
    %v2971 = vsel %vm493, %v2955, -inf
    %2972 = vmax.xlane.f32.xlu0 %v2971
    %v2973 = vpop.xlane.xlu0 %2972
    %v2974 = vsel %vm493, %v2956, -inf
    %2975 = vmax.xlane.f32.xlu0 %v2974
    %v2976 = vpop.xlane.xlu0 %2975
    %v2977 = vsel %vm493, %v2957, -inf
    %2978 = vmax.xlane.f32.xlu0 %v2977
    %v2979 = vpop.xlane.xlu0 %2978
    %v2980 = vsel %vm493, %v2958, -inf
    %2981 = vmax.xlane.f32.xlu0 %v2980
    %v2982 = vpop.xlane.xlu0 %2981
    %v2983 = vsub.f32 %v2951, %v2961
    %v2984 = vsub.f32 %v2952, %v2964
    %v2985 = vsub.f32 %v2953, %v2967
    %v2986 = vsub.f32 %v2954, %v2970
    %v2987 = vsub.f32 %v2955, %v2973
    %v2988 = vsub.f32 %v2956, %v2976
    %v2989 = vsub.f32 %v2957, %v2979
    %v2990 = vsub.f32 %v2958, %v2982
    %v2991 = vmul.f32 %v2983, 1.442695
    %v2992 = vpow.pop %v2991
    %v2993 = vmul.f32 %v2984, 1.442695
    %v2994 = vpow.pop %v2993
    %v2995 = vmul.f32 %v2985, 1.442695
    %v2996 = vpow.pop %v2995
    %v2997 = vmul.f32 %v2986, 1.442695
    %v2998 = vpow.pop %v2997
    %v2999 = vmul.f32 %v2987, 1.442695
    %v3000 = vpow.pop %v2999
    %v3001 = vmul.f32 %v2988, 1.442695
    %v3002 = vpow.pop %v3001
    %v3003 = vmul.f32 %v2989, 1.442695
    %v3004 = vpow.pop %v3003
    %v3005 = vmul.f32 %v2990, 1.442695
    %v3006 = vpow.pop %v3005
    %v3007 = vsel %vm493, %v2992, 0.0
    %3008 = vadd.xlane.f32.xlu0 %v3007
    %v3009 = vpop.xlane.xlu0 %3008
    %v3010 = vsel %vm493, %v2994, 0.0
    %3011 = vadd.xlane.f32.xlu0 %v3010
    %v3012 = vpop.xlane.xlu0 %3011
    %v3013 = vsel %vm493, %v2996, 0.0
    %3014 = vadd.xlane.f32.xlu0 %v3013
    %v3015 = vpop.xlane.xlu0 %3014
    %v3016 = vsel %vm493, %v2998, 0.0
    %3017 = vadd.xlane.f32.xlu0 %v3016
    %v3018 = vpop.xlane.xlu0 %3017
    %v3019 = vsel %vm493, %v3000, 0.0
    %3020 = vadd.xlane.f32.xlu0 %v3019
    %v3021 = vpop.xlane.xlu0 %3020
    %v3022 = vsel %vm493, %v3002, 0.0
    %3023 = vadd.xlane.f32.xlu0 %v3022
    %v3024 = vpop.xlane.xlu0 %3023
    %v3025 = vsel %vm493, %v3004, 0.0
    %3026 = vadd.xlane.f32.xlu0 %v3025
    %v3027 = vpop.xlane.xlu0 %3026
    %v3028 = vsel %vm493, %v3006, 0.0
    %3029 = vadd.xlane.f32.xlu0 %v3028
    %v3030 = vpop.xlane.xlu0 %3029
    %v3031 = vrcp.pop %v3009
    %v3032 = vrcp.pop %v3012
    %v3033 = vrcp.pop %v3015
    %v3034 = vrcp.pop %v3018
    %v3035 = vrcp.pop %v3021
    %v3036 = vrcp.pop %v3024
    %v3037 = vrcp.pop %v3027
    %v3038 = vrcp.pop %v3030
    %v3039 = vmul.f32 %v2992, %v3031
    %v3040 = vmul.f32 %v2994, %v3032
    %v3041 = vmul.f32 %v2996, %v3033
    %v3042 = vmul.f32 %v2998, %v3034
    %v3043 = vmul.f32 %v3000, %v3035
    %v3044 = vmul.f32 %v3002, %v3036
    %v3045 = vmul.f32 %v3004, %v3037
    %v3046 = vmul.f32 %v3006, %v3038
    %3047 = vrot.lane.b32.xlu0 %v2321, 64
    %v3048 = vpop.permute.xlu0 %3047
    %v3051 = vsel %vm493, %v3039, 0
    %3053 = vmatprep.subr.mxu0 0.0
    %3054 = vmatpush1.msra.mxu0 %v3048
    %3055 = vmatprep.subr.mxu0 0.0
    %3056 = vmatpush1.msra.mxu0 0.0
    %3057 = vmatprep.subr.mxu0 0.0
    %3058 = vmatpush1.msra.mxu0 0.0
    %3059 = vmatprep.subr.mxu0 0.0
    %3060 = vmatpush1.msra.mxu0 0.0
    %3061 = vmatprep.subr.mxu0 0.0
    %3062 = vmatpush1.msra.mxu0 0.0
    %3063 = vmatprep.subr.mxu0 0.0
    %3064 = vmatpush1.msra.mxu0 0.0
    %3065 = vmatprep.subr.mxu0 0.0
    %3066 = vmatpush1.msra.mxu0 0.0
    %3067 = vmatprep.subr.mxu0 0.0
    %3068 = vmatpush1.msra.mxu0 0.0
    %3069 = vmatprep.subr.mxu0 0.0
    %3070 = vmatpush1.msra.mxu0 0.0
    %3071 = vmatprep.subr.mxu0 0.0
    %3072 = vmatpush1.msra.mxu0 0.0
    %3073 = vmatprep.subr.mxu0 0.0
    %3074 = vmatpush1.msra.mxu0 0.0
    %3075 = vmatprep.subr.mxu0 0.0
    %3076 = vmatpush1.msra.mxu0 0.0
    %3077 = vmatprep.subr.mxu0 0.0
    %3078 = vmatpush1.msra.mxu0 0.0
    %3079 = vmatprep.subr.mxu0 0.0
    %3080 = vmatpush1.msra.mxu0 0.0
    %3081 = vmatprep.subr.mxu0 0.0
    %3082 = vmatpush1.msra.mxu0 0.0
    %3083 = vmatprep.subr.mxu0 0.0
    %3084 = vmatpush1.msra.mxu0 0.0
    %3085 = vmatprep.subr.mxu0 0.0
    %3086 = vmatpush1.msra.mxu0 0.0
    %3087 = vmatprep.subr.mxu0 0.0
    %3088 = vmatpush1.msra.mxu0 0.0
    %3089 = vmatprep.subr.mxu0 0.0
    %3090 = vmatpush1.msra.mxu0 0.0
    %3091 = vmatprep.subr.mxu0 0.0
    %3092 = vmatpush1.msra.mxu0 0.0
    %3093 = vmatprep.subr.mxu0 0.0
    %3094 = vmatpush1.msra.mxu0 0.0
    %3095 = vmatprep.subr.mxu0 0.0
    %3096 = vmatpush1.msra.mxu0 0.0
    %3097 = vmatprep.subr.mxu0 0.0
    %3098 = vmatpush1.msra.mxu0 0.0
    %3099 = vmatprep.subr.mxu0 0.0
    %3100 = vmatpush1.msra.mxu0 0.0
    %3101 = vmatprep.subr.mxu0 0.0
    %3102 = vmatpush1.msra.mxu0 0.0
    %3103 = vmatprep.subr.mxu0 0.0
    %3104 = vmatpush1.msra.mxu0 0.0
    %3105 = vmatprep.subr.mxu0 0.0
    %3106 = vmatpush1.msra.mxu0 0.0
    %3107 = vmatprep.subr.mxu0 0.0
    %3108 = vmatpush1.msra.mxu0 0.0
    %3109 = vmatprep.subr.mxu0 0.0
    %3110 = vmatpush1.msra.mxu0 0.0
    %3111 = vmatprep.subr.mxu0 0.0
    %3112 = vmatpush1.msra.mxu0 0.0
    %3113 = vmatprep.subr.mxu0 0.0
    %3114 = vmatpush1.msra.mxu0 0.0
    %3115 = vmatprep.subr.mxu0 0.0
    %3116 = vmatpush1.msra.mxu0 0.0
    %3117 = vmatprep.mubr.f32.mxu0 0.0
    %3118 = vmatmul.mubr.f32.gmra.mrb[0].mxu0 %v3051
    %v3119 = vpop.f32.mrb[0].mxu0
    %v3120 = vadd.f32 0.0, %v3119
    %v3121 = vpop.f32.mrb[0].mxu0
    %3122 = vdwg.mxu0
    %3123 = vrot.lane.b32.xlu0 %v2326, 64
    %v3124 = vpop.permute.xlu0 %3123
    %v3127 = vsel %vm493, %v3040, 0
    %3129 = vmatprep.subr.mxu0 0.0
    %3130 = vmatpush1.msra.mxu0 %v3124
    %3131 = vmatprep.subr.mxu0 0.0
    %3132 = vmatpush1.msra.mxu0 0.0
    %3133 = vmatprep.subr.mxu0 0.0
    %3134 = vmatpush1.msra.mxu0 0.0
    %3135 = vmatprep.subr.mxu0 0.0
    %3136 = vmatpush1.msra.mxu0 0.0
    %3137 = vmatprep.subr.mxu0 0.0
    %3138 = vmatpush1.msra.mxu0 0.0
    %3139 = vmatprep.subr.mxu0 0.0
    %3140 = vmatpush1.msra.mxu0 0.0
    %3141 = vmatprep.subr.mxu0 0.0
    %3142 = vmatpush1.msra.mxu0 0.0
    %3143 = vmatprep.subr.mxu0 0.0
    %3144 = vmatpush1.msra.mxu0 0.0
    %3145 = vmatprep.subr.mxu0 0.0
    %3146 = vmatpush1.msra.mxu0 0.0
    %3147 = vmatprep.subr.mxu0 0.0
    %3148 = vmatpush1.msra.mxu0 0.0
    %3149 = vmatprep.subr.mxu0 0.0
    %3150 = vmatpush1.msra.mxu0 0.0
    %3151 = vmatprep.subr.mxu0 0.0
    %3152 = vmatpush1.msra.mxu0 0.0
    %3153 = vmatprep.subr.mxu0 0.0
    %3154 = vmatpush1.msra.mxu0 0.0
    %3155 = vmatprep.subr.mxu0 0.0
    %3156 = vmatpush1.msra.mxu0 0.0
    %3157 = vmatprep.subr.mxu0 0.0
    %3158 = vmatpush1.msra.mxu0 0.0
    %3159 = vmatprep.subr.mxu0 0.0
    %3160 = vmatpush1.msra.mxu0 0.0
    %3161 = vmatprep.subr.mxu0 0.0
    %3162 = vmatpush1.msra.mxu0 0.0
    %3163 = vmatprep.subr.mxu0 0.0
    %3164 = vmatpush1.msra.mxu0 0.0
    %3165 = vmatprep.subr.mxu0 0.0
    %3166 = vmatpush1.msra.mxu0 0.0
    %3167 = vmatprep.subr.mxu0 0.0
    %3168 = vmatpush1.msra.mxu0 0.0
    %3169 = vmatprep.subr.mxu0 0.0
    %3170 = vmatpush1.msra.mxu0 0.0
    %3171 = vmatprep.subr.mxu0 0.0
    %3172 = vmatpush1.msra.mxu0 0.0
    %3173 = vmatprep.subr.mxu0 0.0
    %3174 = vmatpush1.msra.mxu0 0.0
    %3175 = vmatprep.subr.mxu0 0.0
    %3176 = vmatpush1.msra.mxu0 0.0
    %3177 = vmatprep.subr.mxu0 0.0
    %3178 = vmatpush1.msra.mxu0 0.0
    %3179 = vmatprep.subr.mxu0 0.0
    %3180 = vmatpush1.msra.mxu0 0.0
    %3181 = vmatprep.subr.mxu0 0.0
    %3182 = vmatpush1.msra.mxu0 0.0
    %3183 = vmatprep.subr.mxu0 0.0
    %3184 = vmatpush1.msra.mxu0 0.0
    %3185 = vmatprep.subr.mxu0 0.0
    %3186 = vmatpush1.msra.mxu0 0.0
    %3187 = vmatprep.subr.mxu0 0.0
    %3188 = vmatpush1.msra.mxu0 0.0
    %3189 = vmatprep.subr.mxu0 0.0
    %3190 = vmatpush1.msra.mxu0 0.0
    %3191 = vmatprep.subr.mxu0 0.0
    %3192 = vmatpush1.msra.mxu0 0.0
    %3193 = vmatprep.mubr.f32.mxu0 0.0
    %3194 = vmatmul.mubr.f32.gmra.mrb[0].mxu0 %v3127
    %v3195 = vpop.f32.mrb[0].mxu0
    %v3196 = vadd.f32 0.0, %v3195
    %v3197 = vpop.f32.mrb[0].mxu0
    %3198 = vdwg.mxu0
    %3199 = vrot.lane.b32.xlu0 %v2321, 56
    %v3200 = vpop.permute.xlu0 %3199
    %v3203 = vsel %vm493, %v3041, 0
    %3205 = vmatprep.subr.mxu0 0.0
    %3206 = vmatpush1.msra.mxu0 %v3200
    %3207 = vmatprep.subr.mxu0 0.0
    %3208 = vmatpush1.msra.mxu0 0.0
    %3209 = vmatprep.subr.mxu0 0.0
    %3210 = vmatpush1.msra.mxu0 0.0
    %3211 = vmatprep.subr.mxu0 0.0
    %3212 = vmatpush1.msra.mxu0 0.0
    %3213 = vmatprep.subr.mxu0 0.0
    %3214 = vmatpush1.msra.mxu0 0.0
    %3215 = vmatprep.subr.mxu0 0.0
    %3216 = vmatpush1.msra.mxu0 0.0
    %3217 = vmatprep.subr.mxu0 0.0
    %3218 = vmatpush1.msra.mxu0 0.0
    %3219 = vmatprep.subr.mxu0 0.0
    %3220 = vmatpush1.msra.mxu0 0.0
    %3221 = vmatprep.subr.mxu0 0.0
    %3222 = vmatpush1.msra.mxu0 0.0
    %3223 = vmatprep.subr.mxu0 0.0
    %3224 = vmatpush1.msra.mxu0 0.0
    %3225 = vmatprep.subr.mxu0 0.0
    %3226 = vmatpush1.msra.mxu0 0.0
    %3227 = vmatprep.subr.mxu0 0.0
    %3228 = vmatpush1.msra.mxu0 0.0
    %3229 = vmatprep.subr.mxu0 0.0
    %3230 = vmatpush1.msra.mxu0 0.0
    %3231 = vmatprep.subr.mxu0 0.0
    %3232 = vmatpush1.msra.mxu0 0.0
    %3233 = vmatprep.subr.mxu0 0.0
    %3234 = vmatpush1.msra.mxu0 0.0
    %3235 = vmatprep.subr.mxu0 0.0
    %3236 = vmatpush1.msra.mxu0 0.0
    %3237 = vmatprep.subr.mxu0 0.0
    %3238 = vmatpush1.msra.mxu0 0.0
    %3239 = vmatprep.subr.mxu0 0.0
    %3240 = vmatpush1.msra.mxu0 0.0
    %3241 = vmatprep.subr.mxu0 0.0
    %3242 = vmatpush1.msra.mxu0 0.0
    %3243 = vmatprep.subr.mxu0 0.0
    %3244 = vmatpush1.msra.mxu0 0.0
    %3245 = vmatprep.subr.mxu0 0.0
    %3246 = vmatpush1.msra.mxu0 0.0
    %3247 = vmatprep.subr.mxu0 0.0
    %3248 = vmatpush1.msra.mxu0 0.0
    %3249 = vmatprep.subr.mxu0 0.0
    %3250 = vmatpush1.msra.mxu0 0.0
    %3251 = vmatprep.subr.mxu0 0.0
    %3252 = vmatpush1.msra.mxu0 0.0
    %3253 = vmatprep.subr.mxu0 0.0
    %3254 = vmatpush1.msra.mxu0 0.0
    %3255 = vmatprep.subr.mxu0 0.0
    %3256 = vmatpush1.msra.mxu0 0.0
    %3257 = vmatprep.subr.mxu0 0.0
    %3258 = vmatpush1.msra.mxu0 0.0
    %3259 = vmatprep.subr.mxu0 0.0
    %3260 = vmatpush1.msra.mxu0 0.0
    %3261 = vmatprep.subr.mxu0 0.0
    %3262 = vmatpush1.msra.mxu0 0.0
    %3263 = vmatprep.subr.mxu0 0.0
    %3264 = vmatpush1.msra.mxu0 0.0
    %3265 = vmatprep.subr.mxu0 0.0
    %3266 = vmatpush1.msra.mxu0 0.0
    %3267 = vmatprep.subr.mxu0 0.0
    %3268 = vmatpush1.msra.mxu0 0.0
    %3269 = vmatprep.mubr.f32.mxu0 0.0
    %3270 = vmatmul.mubr.f32.gmra.mrb[0].mxu0 %v3203
    %v3271 = vpop.f32.mrb[0].mxu0
    %v3272 = vadd.f32 0.0, %v3271
    %v3273 = vpop.f32.mrb[0].mxu0
    %3274 = vdwg.mxu0
    %3275 = vrot.lane.b32.xlu0 %v2326, 56
    %v3276 = vpop.permute.xlu0 %3275
    %v3279 = vsel %vm493, %v3042, 0
    %3281 = vmatprep.subr.mxu0 0.0
    %3282 = vmatpush1.msra.mxu0 %v3276
    %3283 = vmatprep.subr.mxu0 0.0
    %3284 = vmatpush1.msra.mxu0 0.0
    %3285 = vmatprep.subr.mxu0 0.0
    %3286 = vmatpush1.msra.mxu0 0.0
    %3287 = vmatprep.subr.mxu0 0.0
    %3288 = vmatpush1.msra.mxu0 0.0
    %3289 = vmatprep.subr.mxu0 0.0
    %3290 = vmatpush1.msra.mxu0 0.0
    %3291 = vmatprep.subr.mxu0 0.0
    %3292 = vmatpush1.msra.mxu0 0.0
    %3293 = vmatprep.subr.mxu0 0.0
    %3294 = vmatpush1.msra.mxu0 0.0
    %3295 = vmatprep.subr.mxu0 0.0
    %3296 = vmatpush1.msra.mxu0 0.0
    %3297 = vmatprep.subr.mxu0 0.0
    %3298 = vmatpush1.msra.mxu0 0.0
    %3299 = vmatprep.subr.mxu0 0.0
    %3300 = vmatpush1.msra.mxu0 0.0
    %3301 = vmatprep.subr.mxu0 0.0
    %3302 = vmatpush1.msra.mxu0 0.0
    %3303 = vmatprep.subr.mxu0 0.0
    %3304 = vmatpush1.msra.mxu0 0.0
    %3305 = vmatprep.subr.mxu0 0.0
    %3306 = vmatpush1.msra.mxu0 0.0
    %3307 = vmatprep.subr.mxu0 0.0
    %3308 = vmatpush1.msra.mxu0 0.0
    %3309 = vmatprep.subr.mxu0 0.0
    %3310 = vmatpush1.msra.mxu0 0.0
    %3311 = vmatprep.subr.mxu0 0.0
    %3312 = vmatpush1.msra.mxu0 0.0
    %3313 = vmatprep.subr.mxu0 0.0
    %3314 = vmatpush1.msra.mxu0 0.0
    %3315 = vmatprep.subr.mxu0 0.0
    %3316 = vmatpush1.msra.mxu0 0.0
    %3317 = vmatprep.subr.mxu0 0.0
    %3318 = vmatpush1.msra.mxu0 0.0
    %3319 = vmatprep.subr.mxu0 0.0
    %3320 = vmatpush1.msra.mxu0 0.0
    %3321 = vmatprep.subr.mxu0 0.0
    %3322 = vmatpush1.msra.mxu0 0.0
    %3323 = vmatprep.subr.mxu0 0.0
    %3324 = vmatpush1.msra.mxu0 0.0
    %3325 = vmatprep.subr.mxu0 0.0
    %3326 = vmatpush1.msra.mxu0 0.0
    %3327 = vmatprep.subr.mxu0 0.0
    %3328 = vmatpush1.msra.mxu0 0.0
    %3329 = vmatprep.subr.mxu0 0.0
    %3330 = vmatpush1.msra.mxu0 0.0
    %3331 = vmatprep.subr.mxu0 0.0
    %3332 = vmatpush1.msra.mxu0 0.0
    %3333 = vmatprep.subr.mxu0 0.0
    %3334 = vmatpush1.msra.mxu0 0.0
    %3335 = vmatprep.subr.mxu0 0.0
    %3336 = vmatpush1.msra.mxu0 0.0
    %3337 = vmatprep.subr.mxu0 0.0
    %3338 = vmatpush1.msra.mxu0 0.0
    %3339 = vmatprep.subr.mxu0 0.0
    %3340 = vmatpush1.msra.mxu0 0.0
    %3341 = vmatprep.subr.mxu0 0.0
    %3342 = vmatpush1.msra.mxu0 0.0
    %3343 = vmatprep.subr.mxu0 0.0
    %3344 = vmatpush1.msra.mxu0 0.0
    %3345 = vmatprep.mubr.f32.mxu0 0.0
    %3346 = vmatmul.mubr.f32.gmra.mrb[0].mxu0 %v3279
    %v3347 = vpop.f32.mrb[0].mxu0
    %v3348 = vadd.f32 0.0, %v3347
    %v3349 = vpop.f32.mrb[0].mxu0
    %3350 = vdwg.mxu0
    %3351 = vrot.lane.b32.xlu0 %v2321, 48
    %v3352 = vpop.permute.xlu0 %3351
    %v3355 = vsel %vm493, %v3043, 0
    %3357 = vmatprep.subr.mxu0 0.0
    %3358 = vmatpush1.msra.mxu0 %v3352
    %3359 = vmatprep.subr.mxu0 0.0
    %3360 = vmatpush1.msra.mxu0 0.0
    %3361 = vmatprep.subr.mxu0 0.0
    %3362 = vmatpush1.msra.mxu0 0.0
    %3363 = vmatprep.subr.mxu0 0.0
    %3364 = vmatpush1.msra.mxu0 0.0
    %3365 = vmatprep.subr.mxu0 0.0
    %3366 = vmatpush1.msra.mxu0 0.0
    %3367 = vmatprep.subr.mxu0 0.0
    %3368 = vmatpush1.msra.mxu0 0.0
    %3369 = vmatprep.subr.mxu0 0.0
    %3370 = vmatpush1.msra.mxu0 0.0
    %3371 = vmatprep.subr.mxu0 0.0
    %3372 = vmatpush1.msra.mxu0 0.0
    %3373 = vmatprep.subr.mxu0 0.0
    %3374 = vmatpush1.msra.mxu0 0.0
    %3375 = vmatprep.subr.mxu0 0.0
    %3376 = vmatpush1.msra.mxu0 0.0
    %3377 = vmatprep.subr.mxu0 0.0
    %3378 = vmatpush1.msra.mxu0 0.0
    %3379 = vmatprep.subr.mxu0 0.0
    %3380 = vmatpush1.msra.mxu0 0.0
    %3381 = vmatprep.subr.mxu0 0.0
    %3382 = vmatpush1.msra.mxu0 0.0
    %3383 = vmatprep.subr.mxu0 0.0
    %3384 = vmatpush1.msra.mxu0 0.0
    %3385 = vmatprep.subr.mxu0 0.0
    %3386 = vmatpush1.msra.mxu0 0.0
    %3387 = vmatprep.subr.mxu0 0.0
    %3388 = vmatpush1.msra.mxu0 0.0
    %3389 = vmatprep.subr.mxu0 0.0
    %3390 = vmatpush1.msra.mxu0 0.0
    %3391 = vmatprep.subr.mxu0 0.0
    %3392 = vmatpush1.msra.mxu0 0.0
    %3393 = vmatprep.subr.mxu0 0.0
    %3394 = vmatpush1.msra.mxu0 0.0
    %3395 = vmatprep.subr.mxu0 0.0
    %3396 = vmatpush1.msra.mxu0 0.0
    %3397 = vmatprep.subr.mxu0 0.0
    %3398 = vmatpush1.msra.mxu0 0.0
    %3399 = vmatprep.subr.mxu0 0.0
    %3400 = vmatpush1.msra.mxu0 0.0
    %3401 = vmatprep.subr.mxu0 0.0
    %3402 = vmatpush1.msra.mxu0 0.0
    %3403 = vmatprep.subr.mxu0 0.0
    %3404 = vmatpush1.msra.mxu0 0.0
    %3405 = vmatprep.subr.mxu0 0.0
    %3406 = vmatpush1.msra.mxu0 0.0
    %3407 = vmatprep.subr.mxu0 0.0
    %3408 = vmatpush1.msra.mxu0 0.0
    %3409 = vmatprep.subr.mxu0 0.0
    %3410 = vmatpush1.msra.mxu0 0.0
    %3411 = vmatprep.subr.mxu0 0.0
    %3412 = vmatpush1.msra.mxu0 0.0
    %3413 = vmatprep.subr.mxu0 0.0
    %3414 = vmatpush1.msra.mxu0 0.0
    %3415 = vmatprep.subr.mxu0 0.0
    %3416 = vmatpush1.msra.mxu0 0.0
    %3417 = vmatprep.subr.mxu0 0.0
    %3418 = vmatpush1.msra.mxu0 0.0
    %3419 = vmatprep.subr.mxu0 0.0
    %3420 = vmatpush1.msra.mxu0 0.0
    %3421 = vmatprep.mubr.f32.mxu0 0.0
    %3422 = vmatmul.mubr.f32.gmra.mrb[0].mxu0 %v3355
    %v3423 = vpop.f32.mrb[0].mxu0
    %v3424 = vadd.f32 0.0, %v3423
    %v3425 = vpop.f32.mrb[0].mxu0
    %3426 = vdwg.mxu0
    %3427 = vrot.lane.b32.xlu0 %v2326, 48
    %v3428 = vpop.permute.xlu0 %3427
    %v3431 = vsel %vm493, %v3044, 0
    %3433 = vmatprep.subr.mxu0 0.0
    %3434 = vmatpush1.msra.mxu0 %v3428
    %3435 = vmatprep.subr.mxu0 0.0
    %3436 = vmatpush1.msra.mxu0 0.0
    %3437 = vmatprep.subr.mxu0 0.0
    %3438 = vmatpush1.msra.mxu0 0.0
    %3439 = vmatprep.subr.mxu0 0.0
    %3440 = vmatpush1.msra.mxu0 0.0
    %3441 = vmatprep.subr.mxu0 0.0
    %3442 = vmatpush1.msra.mxu0 0.0
    %3443 = vmatprep.subr.mxu0 0.0
    %3444 = vmatpush1.msra.mxu0 0.0
    %3445 = vmatprep.subr.mxu0 0.0
    %3446 = vmatpush1.msra.mxu0 0.0
    %3447 = vmatprep.subr.mxu0 0.0
    %3448 = vmatpush1.msra.mxu0 0.0
    %3449 = vmatprep.subr.mxu0 0.0
    %3450 = vmatpush1.msra.mxu0 0.0
    %3451 = vmatprep.subr.mxu0 0.0
    %3452 = vmatpush1.msra.mxu0 0.0
    %3453 = vmatprep.subr.mxu0 0.0
    %3454 = vmatpush1.msra.mxu0 0.0
    %3455 = vmatprep.subr.mxu0 0.0
    %3456 = vmatpush1.msra.mxu0 0.0
    %3457 = vmatprep.subr.mxu0 0.0
    %3458 = vmatpush1.msra.mxu0 0.0
    %3459 = vmatprep.subr.mxu0 0.0
    %3460 = vmatpush1.msra.mxu0 0.0
    %3461 = vmatprep.subr.mxu0 0.0
    %3462 = vmatpush1.msra.mxu0 0.0
    %3463 = vmatprep.subr.mxu0 0.0
    %3464 = vmatpush1.msra.mxu0 0.0
    %3465 = vmatprep.subr.mxu0 0.0
    %3466 = vmatpush1.msra.mxu0 0.0
    %3467 = vmatprep.subr.mxu0 0.0
    %3468 = vmatpush1.msra.mxu0 0.0
    %3469 = vmatprep.subr.mxu0 0.0
    %3470 = vmatpush1.msra.mxu0 0.0
    %3471 = vmatprep.subr.mxu0 0.0
    %3472 = vmatpush1.msra.mxu0 0.0
    %3473 = vmatprep.subr.mxu0 0.0
    %3474 = vmatpush1.msra.mxu0 0.0
    %3475 = vmatprep.subr.mxu0 0.0
    %3476 = vmatpush1.msra.mxu0 0.0
    %3477 = vmatprep.subr.mxu0 0.0
    %3478 = vmatpush1.msra.mxu0 0.0
    %3479 = vmatprep.subr.mxu0 0.0
    %3480 = vmatpush1.msra.mxu0 0.0
    %3481 = vmatprep.subr.mxu0 0.0
    %3482 = vmatpush1.msra.mxu0 0.0
    %3483 = vmatprep.subr.mxu0 0.0
    %3484 = vmatpush1.msra.mxu0 0.0
    %3485 = vmatprep.subr.mxu0 0.0
    %3486 = vmatpush1.msra.mxu0 0.0
    %3487 = vmatprep.subr.mxu0 0.0
    %3488 = vmatpush1.msra.mxu0 0.0
    %3489 = vmatprep.subr.mxu0 0.0
    %3490 = vmatpush1.msra.mxu0 0.0
    %3491 = vmatprep.subr.mxu0 0.0
    %3492 = vmatpush1.msra.mxu0 0.0
    %3493 = vmatprep.subr.mxu0 0.0
    %3494 = vmatpush1.msra.mxu0 0.0
    %3495 = vmatprep.subr.mxu0 0.0
    %3496 = vmatpush1.msra.mxu0 0.0
    %3497 = vmatprep.mubr.f32.mxu0 0.0
    %3498 = vmatmul.mubr.f32.gmra.mrb[0].mxu0 %v3431
    %v3499 = vpop.f32.mrb[0].mxu0
    %v3500 = vadd.f32 0.0, %v3499
    %v3501 = vpop.f32.mrb[0].mxu0
    %3502 = vdwg.mxu0
    %3503 = vrot.lane.b32.xlu0 %v2321, 40
    %v3504 = vpop.permute.xlu0 %3503
    %v3507 = vsel %vm493, %v3045, 0
    %3509 = vmatprep.subr.mxu0 0.0
    %3510 = vmatpush1.msra.mxu0 %v3504
    %3511 = vmatprep.subr.mxu0 0.0
    %3512 = vmatpush1.msra.mxu0 0.0
    %3513 = vmatprep.subr.mxu0 0.0
    %3514 = vmatpush1.msra.mxu0 0.0
    %3515 = vmatprep.subr.mxu0 0.0
    %3516 = vmatpush1.msra.mxu0 0.0
    %3517 = vmatprep.subr.mxu0 0.0
    %3518 = vmatpush1.msra.mxu0 0.0
    %3519 = vmatprep.subr.mxu0 0.0
    %3520 = vmatpush1.msra.mxu0 0.0
    %3521 = vmatprep.subr.mxu0 0.0
    %3522 = vmatpush1.msra.mxu0 0.0
    %3523 = vmatprep.subr.mxu0 0.0
    %3524 = vmatpush1.msra.mxu0 0.0
    %3525 = vmatprep.subr.mxu0 0.0
    %3526 = vmatpush1.msra.mxu0 0.0
    %3527 = vmatprep.subr.mxu0 0.0
    %3528 = vmatpush1.msra.mxu0 0.0
    %3529 = vmatprep.subr.mxu0 0.0
    %3530 = vmatpush1.msra.mxu0 0.0
    %3531 = vmatprep.subr.mxu0 0.0
    %3532 = vmatpush1.msra.mxu0 0.0
    %3533 = vmatprep.subr.mxu0 0.0
    %3534 = vmatpush1.msra.mxu0 0.0
    %3535 = vmatprep.subr.mxu0 0.0
    %3536 = vmatpush1.msra.mxu0 0.0
    %3537 = vmatprep.subr.mxu0 0.0
    %3538 = vmatpush1.msra.mxu0 0.0
    %3539 = vmatprep.subr.mxu0 0.0
    %3540 = vmatpush1.msra.mxu0 0.0
    %3541 = vmatprep.subr.mxu0 0.0
    %3542 = vmatpush1.msra.mxu0 0.0
    %3543 = vmatprep.subr.mxu0 0.0
    %3544 = vmatpush1.msra.mxu0 0.0
    %3545 = vmatprep.subr.mxu0 0.0
    %3546 = vmatpush1.msra.mxu0 0.0
    %3547 = vmatprep.subr.mxu0 0.0
    %3548 = vmatpush1.msra.mxu0 0.0
    %3549 = vmatprep.subr.mxu0 0.0
    %3550 = vmatpush1.msra.mxu0 0.0
    %3551 = vmatprep.subr.mxu0 0.0
    %3552 = vmatpush1.msra.mxu0 0.0
    %3553 = vmatprep.subr.mxu0 0.0
    %3554 = vmatpush1.msra.mxu0 0.0
    %3555 = vmatprep.subr.mxu0 0.0
    %3556 = vmatpush1.msra.mxu0 0.0
    %3557 = vmatprep.subr.mxu0 0.0
    %3558 = vmatpush1.msra.mxu0 0.0
    %3559 = vmatprep.subr.mxu0 0.0
    %3560 = vmatpush1.msra.mxu0 0.0
    %3561 = vmatprep.subr.mxu0 0.0
    %3562 = vmatpush1.msra.mxu0 0.0
    %3563 = vmatprep.subr.mxu0 0.0
    %3564 = vmatpush1.msra.mxu0 0.0
    %3565 = vmatprep.subr.mxu0 0.0
    %3566 = vmatpush1.msra.mxu0 0.0
    %3567 = vmatprep.subr.mxu0 0.0
    %3568 = vmatpush1.msra.mxu0 0.0
    %3569 = vmatprep.subr.mxu0 0.0
    %3570 = vmatpush1.msra.mxu0 0.0
    %3571 = vmatprep.subr.mxu0 0.0
    %3572 = vmatpush1.msra.mxu0 0.0
    %3573 = vmatprep.mubr.f32.mxu0 0.0
    %3574 = vmatmul.mubr.f32.gmra.mrb[0].mxu0 %v3507
    %v3575 = vpop.f32.mrb[0].mxu0
    %v3576 = vadd.f32 0.0, %v3575
    %v3577 = vpop.f32.mrb[0].mxu0
    %3578 = vdwg.mxu0
    %3579 = vrot.lane.b32.xlu0 %v2326, 40
    %v3580 = vpop.permute.xlu0 %3579
    %v3583 = vsel %vm493, %v3046, 0
    %3585 = vmatprep.subr.mxu0 0.0
    %3586 = vmatpush1.msra.mxu0 %v3580
    %3587 = vmatprep.subr.mxu0 0.0
    %3588 = vmatpush1.msra.mxu0 0.0
    %3589 = vmatprep.subr.mxu0 0.0
    %3590 = vmatpush1.msra.mxu0 0.0
    %3591 = vmatprep.subr.mxu0 0.0
    %3592 = vmatpush1.msra.mxu0 0.0
    %3593 = vmatprep.subr.mxu0 0.0
    %3594 = vmatpush1.msra.mxu0 0.0
    %3595 = vmatprep.subr.mxu0 0.0
    %3596 = vmatpush1.msra.mxu0 0.0
    %3597 = vmatprep.subr.mxu0 0.0
    %3598 = vmatpush1.msra.mxu0 0.0
    %3599 = vmatprep.subr.mxu0 0.0
    %3600 = vmatpush1.msra.mxu0 0.0
    %3601 = vmatprep.subr.mxu0 0.0
    %3602 = vmatpush1.msra.mxu0 0.0
    %3603 = vmatprep.subr.mxu0 0.0
    %3604 = vmatpush1.msra.mxu0 0.0
    %3605 = vmatprep.subr.mxu0 0.0
    %3606 = vmatpush1.msra.mxu0 0.0
    %3607 = vmatprep.subr.mxu0 0.0
    %3608 = vmatpush1.msra.mxu0 0.0
    %3609 = vmatprep.subr.mxu0 0.0
    %3610 = vmatpush1.msra.mxu0 0.0
    %3611 = vmatprep.subr.mxu0 0.0
    %3612 = vmatpush1.msra.mxu0 0.0
    %3613 = vmatprep.subr.mxu0 0.0
    %3614 = vmatpush1.msra.mxu0 0.0
    %3615 = vmatprep.subr.mxu0 0.0
    %3616 = vmatpush1.msra.mxu0 0.0
    %3617 = vmatprep.subr.mxu0 0.0
    %3618 = vmatpush1.msra.mxu0 0.0
    %3619 = vmatprep.subr.mxu0 0.0
    %3620 = vmatpush1.msra.mxu0 0.0
    %3621 = vmatprep.subr.mxu0 0.0
    %3622 = vmatpush1.msra.mxu0 0.0
    %3623 = vmatprep.subr.mxu0 0.0
    %3624 = vmatpush1.msra.mxu0 0.0
    %3625 = vmatprep.subr.mxu0 0.0
    %3626 = vmatpush1.msra.mxu0 0.0
    %3627 = vmatprep.subr.mxu0 0.0
    %3628 = vmatpush1.msra.mxu0 0.0
    %3629 = vmatprep.subr.mxu0 0.0
    %3630 = vmatpush1.msra.mxu0 0.0
    %3631 = vmatprep.subr.mxu0 0.0
    %3632 = vmatpush1.msra.mxu0 0.0
    %3633 = vmatprep.subr.mxu0 0.0
    %3634 = vmatpush1.msra.mxu0 0.0
    %3635 = vmatprep.subr.mxu0 0.0
    %3636 = vmatpush1.msra.mxu0 0.0
    %3637 = vmatprep.subr.mxu0 0.0
    %3638 = vmatpush1.msra.mxu0 0.0
    %3639 = vmatprep.subr.mxu0 0.0
    %3640 = vmatpush1.msra.mxu0 0.0
    %3641 = vmatprep.subr.mxu0 0.0
    %3642 = vmatpush1.msra.mxu0 0.0
    %3643 = vmatprep.subr.mxu0 0.0
    %3644 = vmatpush1.msra.mxu0 0.0
    %3645 = vmatprep.subr.mxu0 0.0
    %3646 = vmatpush1.msra.mxu0 0.0
    %3647 = vmatprep.subr.mxu0 0.0
    %3648 = vmatpush1.msra.mxu0 0.0
    %3649 = vmatprep.mubr.f32.mxu0 0.0
    %3650 = vmatmul.mubr.f32.gmra.mrb[0].mxu0 %v3583
    %v3651 = vpop.f32.mrb[0].mxu0
    %v3652 = vadd.f32 0.0, %v3651
    %v3653 = vpop.f32.mrb[0].mxu0
    %3654 = vdwg.mxu0
    %3657 = vrot.lane.b32.xlu0 %v3272, 8
    %v3658 = vpop.permute.xlu0 %3657
    %3659 = vrot.lane.b32.xlu0 %v3348, 8
    %v3660 = vpop.permute.xlu0 %3659
    %3665 = vrot.lane.b32.xlu0 %v3424, 16
    %v3666 = vpop.permute.xlu0 %3665
    %3667 = vrot.lane.b32.xlu0 %v3500, 16
    %v3668 = vpop.permute.xlu0 %3667
    %3673 = vrot.lane.b32.xlu0 %v3576, 24
    %v3674 = vpop.permute.xlu0 %3673
    %3675 = vrot.lane.b32.xlu0 %v3652, 24
    %v3676 = vpop.permute.xlu0 %3675
    %v3679 = vsel %vm493, %v3120, %v3658
    %v3680 = vsel %vm493, %v3196, %v3660
    %v3681 = vsel %vm1853, %v3679, %v3666
    %v3682 = vsel %vm1853, %v3680, %v3668
    %v3683 = vsel %vm1856, %v3681, %v3674
    %v3684 = vsel %vm1856, %v3682, %v3676
    %s3685 = scalar_lea.vmem %s13, 32
    %v3686 = vld [vmem:[%s3685] sm:$0xff]
    %v3687 = vld [vmem:[%s3685 + $0x8] sm:$0xff]
    %v3688 = vld [vmem:[%s3685 + $0x10] sm:$0xff]
    %v3689 = vld [vmem:[%s3685 + $0x18] sm:$0xff]
    %s3690 = scalar_lea.vmem [#allocation11], 1
    %v3691 = vld [vmem:[%s3690] sm:$0x1]
    %v3693 = vlaneseq
    %v3694 = vshrl.u32 %v3693, 7
    %v3695 = vsub.s32 0, %v3694
    %v3696 = vrot.slane %v3691, %v3695
    %v3699 = vsel %vm359, %v3683, 0
    %v3702 = vsel %vm359, %v3684, 0
    %3704 = vmatprep.subr.mxu0 0.0
    %3705 = vmatpush1.msra.mxu0 %v3686
    %3706 = vmatprep.subr.mxu0 0.0
    %3707 = vmatpush1.msra.mxu0 %v3687
    %3708 = vmatprep.subr.mxu0 0.0
    %3709 = vmatpush1.msra.mxu0 %v3688
    %3710 = vmatprep.subr.mxu0 0.0
    %3711 = vmatpush1.msra.mxu0 %v3689
    %3712 = vmatprep.subr.mxu0 0.0
    %3713 = vmatpush1.msra.mxu0 0.0
    %3714 = vmatprep.subr.mxu0 0.0
    %3715 = vmatpush1.msra.mxu0 0.0
    %3716 = vmatprep.subr.mxu0 0.0
    %3717 = vmatpush1.msra.mxu0 0.0
    %3718 = vmatprep.subr.mxu0 0.0
    %3719 = vmatpush1.msra.mxu0 0.0
    %3720 = vmatprep.subr.mxu0 0.0
    %3721 = vmatpush1.msra.mxu0 0.0
    %3722 = vmatprep.subr.mxu0 0.0
    %3723 = vmatpush1.msra.mxu0 0.0
    %3724 = vmatprep.subr.mxu0 0.0
    %3725 = vmatpush1.msra.mxu0 0.0
    %3726 = vmatprep.subr.mxu0 0.0
    %3727 = vmatpush1.msra.mxu0 0.0
    %3728 = vmatprep.subr.mxu0 0.0
    %3729 = vmatpush1.msra.mxu0 0.0
    %3730 = vmatprep.subr.mxu0 0.0
    %3731 = vmatpush1.msra.mxu0 0.0
    %3732 = vmatprep.subr.mxu0 0.0
    %3733 = vmatpush1.msra.mxu0 0.0
    %3734 = vmatprep.subr.mxu0 0.0
    %3735 = vmatpush1.msra.mxu0 0.0
    %3736 = vmatprep.subr.mxu0 0.0
    %3737 = vmatpush1.msra.mxu0 0.0
    %3738 = vmatprep.subr.mxu0 0.0
    %3739 = vmatpush1.msra.mxu0 0.0
    %3740 = vmatprep.subr.mxu0 0.0
    %3741 = vmatpush1.msra.mxu0 0.0
    %3742 = vmatprep.subr.mxu0 0.0
    %3743 = vmatpush1.msra.mxu0 0.0
    %3744 = vmatprep.subr.mxu0 0.0
    %3745 = vmatpush1.msra.mxu0 0.0
    %3746 = vmatprep.subr.mxu0 0.0
    %3747 = vmatpush1.msra.mxu0 0.0
    %3748 = vmatprep.subr.mxu0 0.0
    %3749 = vmatpush1.msra.mxu0 0.0
    %3750 = vmatprep.subr.mxu0 0.0
    %3751 = vmatpush1.msra.mxu0 0.0
    %3752 = vmatprep.subr.mxu0 0.0
    %3753 = vmatpush1.msra.mxu0 0.0
    %3754 = vmatprep.subr.mxu0 0.0
    %3755 = vmatpush1.msra.mxu0 0.0
    %3756 = vmatprep.subr.mxu0 0.0
    %3757 = vmatpush1.msra.mxu0 0.0
    %3758 = vmatprep.subr.mxu0 0.0
    %3759 = vmatpush1.msra.mxu0 0.0
    %3760 = vmatprep.subr.mxu0 0.0
    %3761 = vmatpush1.msra.mxu0 0.0
    %3762 = vmatprep.subr.mxu0 0.0
    %3763 = vmatpush1.msra.mxu0 0.0
    %3764 = vmatprep.subr.mxu0 0.0
    %3765 = vmatpush1.msra.mxu0 0.0
    %3766 = vmatprep.subr.mxu0 0.0
    %3767 = vmatpush1.msra.mxu0 0.0
    %3768 = vmatprep.mubr.f32.mxu0 0.0
    %3769 = vmatmul.mubr.f32.gmra.mrb[0].mxu0 %v3699
    %v3770 = vpop.f32.mrb[0].mxu0
    %v3771 = vadd.f32 %v3696, %v3770
    %v3772 = vpop.f32.mrb[0].mxu0
    %3773 = vmatprep.mubr.f32.mxu0 0.0
    %3774 = vmatmul.mubr.f32.gmra.mrb[0].mxu0 %v3702
    %v3775 = vpop.f32.mrb[0].mxu0
    %v3776 = vadd.f32 %v3696, %v3775
    %v3777 = vpop.f32.mrb[0].mxu0
    %3778 = vdwg.mxu0
    %v3779 = vadd.f32 %v2233, %v3771
    %v3780 = vadd.f32 %v2234, %v3776
    %s3781 = scalar_lea.vmem [#allocation16], 1
    %v3782 = vld [vmem:[%s3781] sm:$0x1]
    %s3783 = scalar_lea.vmem [#allocation17], 1
    %v3784 = vld [vmem:[%s3783] sm:$0x1]
    %v3785 = vsel %vm359, %v3779, 0.0
    %3786 = vadd.xlane.f32.xlu0 %v3785
    %v3787 = vpop.xlane.xlu0 %3786
    %v3788 = vsel %vm359, %v3780, 0.0
    %3789 = vadd.xlane.f32.xlu0 %v3788
    %v3790 = vpop.xlane.xlu0 %3789
    %v3791 = vmul.f32 %v3787, %v1961
    %v3792 = vmul.f32 %v3790, %v1961
    %v3793 = vsub.f32 %v3779, %v3791
    %v3794 = vsub.f32 %v3780, %v3792
    %v3795 = vmul.f32 %v3793, %v3793
    %v3796 = vmul.f32 %v3794, %v3794
    %v3797 = vsel %vm359, %v3795, 0.0
    %3798 = vadd.xlane.f32.xlu0 %v3797
    %v3799 = vpop.xlane.xlu0 %3798
    %v3800 = vsel %vm359, %v3796, 0.0
    %3801 = vadd.xlane.f32.xlu0 %v3800
    %v3802 = vpop.xlane.xlu0 %3801
    %v3803 = vmul.f32 %v3799, %v1961
    %v3804 = vmul.f32 %v3802, %v1961
    %v3805 = vadd.f32 %v3803, 1e-05
    %v3806 = vadd.f32 %v3804, 1e-05
    %v3807 = vrsqrt.pop %v3805
    %v3808 = vrsqrt.pop %v3806
    %v3809 = vmul.f32 %v3793, %v3807
    %v3810 = vmul.f32 %v3794, %v3808
    %v3812 = vlaneseq
    %v3813 = vshrl.u32 %v3812, 7
    %v3814 = vsub.s32 0, %v3813
    %v3815 = vrot.slane %v3782, %v3814
    %v3817 = vmul.f32 %v3809, %v3815
    %v3818 = vmul.f32 %v3810, %v3815
    %v3820 = vlaneseq
    %v3821 = vshrl.u32 %v3820, 7
    %v3822 = vsub.s32 0, %v3821
    %v3823 = vrot.slane %v3784, %v3822
    %v3825 = vadd.f32 %v3817, %v3823
    %v3826 = vadd.f32 %v3818, %v3823
    %s3827 = scalar_lea.vmem %s17, 32
    %v3828 = vld [vmem:[%s3827] sm:$0xff]
    %v3829 = vld [vmem:[%s3827 + $0x8] sm:$0xff]
    %v3830 = vld [vmem:[%s3827 + $0x10] sm:$0xff]
    %v3831 = vld [vmem:[%s3827 + $0x18] sm:$0xff]
    %s3832 = scalar_lea.vmem [#allocation13], 1
    %v3833 = vld [vmem:[%s3832] sm:$0x1]
    %v3835 = vlaneseq
    %v3836 = vshrl.u32 %v3835, 7
    %v3837 = vsub.s32 0, %v3836
    %v3838 = vrot.slane %v3833, %v3837
    %v3841 = vsel %vm359, %v3825, 0
    %v3844 = vsel %vm359, %v3826, 0
    %3846 = vmatprep.subr.mxu0 0.0
    %3847 = vmatpush1.msra.mxu0 %v3828
    %3848 = vmatprep.subr.mxu0 0.0
    %3849 = vmatpush1.msra.mxu0 %v3829
    %3850 = vmatprep.subr.mxu0 0.0
    %3851 = vmatpush1.msra.mxu0 %v3830
    %3852 = vmatprep.subr.mxu0 0.0
    %3853 = vmatpush1.msra.mxu0 %v3831
    %3854 = vmatprep.subr.mxu0 0.0
    %3855 = vmatpush1.msra.mxu0 0.0
    %3856 = vmatprep.subr.mxu0 0.0
    %3857 = vmatpush1.msra.mxu0 0.0
    %3858 = vmatprep.subr.mxu0 0.0
    %3859 = vmatpush1.msra.mxu0 0.0
    %3860 = vmatprep.subr.mxu0 0.0
    %3861 = vmatpush1.msra.mxu0 0.0
    %3862 = vmatprep.subr.mxu0 0.0
    %3863 = vmatpush1.msra.mxu0 0.0
    %3864 = vmatprep.subr.mxu0 0.0
    %3865 = vmatpush1.msra.mxu0 0.0
    %3866 = vmatprep.subr.mxu0 0.0
    %3867 = vmatpush1.msra.mxu0 0.0
    %3868 = vmatprep.subr.mxu0 0.0
    %3869 = vmatpush1.msra.mxu0 0.0
    %3870 = vmatprep.subr.mxu0 0.0
    %3871 = vmatpush1.msra.mxu0 0.0
    %3872 = vmatprep.subr.mxu0 0.0
    %3873 = vmatpush1.msra.mxu0 0.0
    %3874 = vmatprep.subr.mxu0 0.0
    %3875 = vmatpush1.msra.mxu0 0.0
    %3876 = vmatprep.subr.mxu0 0.0
    %3877 = vmatpush1.msra.mxu0 0.0
    %3878 = vmatprep.subr.mxu0 0.0
    %3879 = vmatpush1.msra.mxu0 0.0
    %3880 = vmatprep.subr.mxu0 0.0
    %3881 = vmatpush1.msra.mxu0 0.0
    %3882 = vmatprep.subr.mxu0 0.0
    %3883 = vmatpush1.msra.mxu0 0.0
    %3884 = vmatprep.subr.mxu0 0.0
    %3885 = vmatpush1.msra.mxu0 0.0
    %3886 = vmatprep.subr.mxu0 0.0
    %3887 = vmatpush1.msra.mxu0 0.0
    %3888 = vmatprep.subr.mxu0 0.0
    %3889 = vmatpush1.msra.mxu0 0.0
    %3890 = vmatprep.subr.mxu0 0.0
    %3891 = vmatpush1.msra.mxu0 0.0
    %3892 = vmatprep.subr.mxu0 0.0
    %3893 = vmatpush1.msra.mxu0 0.0
    %3894 = vmatprep.subr.mxu0 0.0
    %3895 = vmatpush1.msra.mxu0 0.0
    %3896 = vmatprep.subr.mxu0 0.0
    %3897 = vmatpush1.msra.mxu0 0.0
    %3898 = vmatprep.subr.mxu0 0.0
    %3899 = vmatpush1.msra.mxu0 0.0
    %3900 = vmatprep.subr.mxu0 0.0
    %3901 = vmatpush1.msra.mxu0 0.0
    %3902 = vmatprep.subr.mxu0 0.0
    %3903 = vmatpush1.msra.mxu0 0.0
    %3904 = vmatprep.subr.mxu0 0.0
    %3905 = vmatpush1.msra.mxu0 0.0
    %3906 = vmatprep.subr.mxu0 0.0
    %3907 = vmatpush1.msra.mxu0 0.0
    %3908 = vmatprep.subr.mxu0 0.0
    %3909 = vmatpush1.msra.mxu0 0.0
    %3910 = vmatprep.mubr.f32.mxu0 0.0
    %3911 = vmatmul.mubr.f32.gmra.mrb[0].mxu0 %v3841
    %v3912 = vpop.f32.mrb[0].mxu0
    %v3913 = vadd.f32 %v3838, %v3912
    %v3914 = vpop.f32.mrb[0].mxu0
    %3915 = vmatprep.mubr.f32.mxu0 0.0
    %3916 = vmatmul.mubr.f32.gmra.mrb[0].mxu0 %v3844
    %v3917 = vpop.f32.mrb[0].mxu0
    %v3918 = vadd.f32 %v3838, %v3917
    %v3919 = vpop.f32.mrb[0].mxu0
    %3920 = vdwg.mxu0
    %v3921 = vmax.f32 %v3913, 0.0
    %v3922 = vmax.f32 %v3918, 0.0
    %s3923 = scalar_lea.vmem %s21, 64
    %v3924 = vld [vmem:[%s3923] sm:$0xff]
    %v3925 = vld [vmem:[%s3923 + $0x8] sm:$0xff]
    %v3926 = vld [vmem:[%s3923 + $0x10] sm:$0xff]
    %v3927 = vld [vmem:[%s3923 + $0x18] sm:$0xff]
    %v3928 = vld [vmem:[%s3923 + $0x20] sm:$0xff]
    %v3929 = vld [vmem:[%s3923 + $0x28] sm:$0xff]
    %v3930 = vld [vmem:[%s3923 + $0x30] sm:$0xff]
    %v3931 = vld [vmem:[%s3923 + $0x38] sm:$0xff]
    %s3932 = scalar_lea.vmem [#allocation14], 1
    %v3933 = vld [vmem:[%s3932] sm:$0x1]
    %v3935 = vlaneseq
    %v3936 = vshrl.u32 %v3935, 7
    %v3937 = vsub.s32 0, %v3936
    %v3938 = vrot.slane %v3933, %v3937
    %v3941 = vsel %vm2107, %v3921, 0
    %v3944 = vsel %vm2107, %v3922, 0
    %3946 = vmatprep.subr.mxu0 0.0
    %3947 = vmatpush1.msra.mxu0 %v3924
    %3948 = vmatprep.subr.mxu0 0.0
    %3949 = vmatpush1.msra.mxu0 %v3925
    %3950 = vmatprep.subr.mxu0 0.0
    %3951 = vmatpush1.msra.mxu0 %v3926
    %3952 = vmatprep.subr.mxu0 0.0
    %3953 = vmatpush1.msra.mxu0 %v3927
    %3954 = vmatprep.subr.mxu0 0.0
    %3955 = vmatpush1.msra.mxu0 %v3928
    %3956 = vmatprep.subr.mxu0 0.0
    %3957 = vmatpush1.msra.mxu0 %v3929
    %3958 = vmatprep.subr.mxu0 0.0
    %3959 = vmatpush1.msra.mxu0 %v3930
    %3960 = vmatprep.subr.mxu0 0.0
    %3961 = vmatpush1.msra.mxu0 %v3931
    %3962 = vmatprep.subr.mxu0 0.0
    %3963 = vmatpush1.msra.mxu0 0.0
    %3964 = vmatprep.subr.mxu0 0.0
    %3965 = vmatpush1.msra.mxu0 0.0
    %3966 = vmatprep.subr.mxu0 0.0
    %3967 = vmatpush1.msra.mxu0 0.0
    %3968 = vmatprep.subr.mxu0 0.0
    %3969 = vmatpush1.msra.mxu0 0.0
    %3970 = vmatprep.subr.mxu0 0.0
    %3971 = vmatpush1.msra.mxu0 0.0
    %3972 = vmatprep.subr.mxu0 0.0
    %3973 = vmatpush1.msra.mxu0 0.0
    %3974 = vmatprep.subr.mxu0 0.0
    %3975 = vmatpush1.msra.mxu0 0.0
    %3976 = vmatprep.subr.mxu0 0.0
    %3977 = vmatpush1.msra.mxu0 0.0
    %3978 = vmatprep.subr.mxu0 0.0
    %3979 = vmatpush1.msra.mxu0 0.0
    %3980 = vmatprep.subr.mxu0 0.0
    %3981 = vmatpush1.msra.mxu0 0.0
    %3982 = vmatprep.subr.mxu0 0.0
    %3983 = vmatpush1.msra.mxu0 0.0
    %3984 = vmatprep.subr.mxu0 0.0
    %3985 = vmatpush1.msra.mxu0 0.0
    %3986 = vmatprep.subr.mxu0 0.0
    %3987 = vmatpush1.msra.mxu0 0.0
    %3988 = vmatprep.subr.mxu0 0.0
    %3989 = vmatpush1.msra.mxu0 0.0
    %3990 = vmatprep.subr.mxu0 0.0
    %3991 = vmatpush1.msra.mxu0 0.0
    %3992 = vmatprep.subr.mxu0 0.0
    %3993 = vmatpush1.msra.mxu0 0.0
    %3994 = vmatprep.subr.mxu0 0.0
    %3995 = vmatpush1.msra.mxu0 0.0
    %3996 = vmatprep.subr.mxu0 0.0
    %3997 = vmatpush1.msra.mxu0 0.0
    %3998 = vmatprep.subr.mxu0 0.0
    %3999 = vmatpush1.msra.mxu0 0.0
    %4000 = vmatprep.subr.mxu0 0.0
    %4001 = vmatpush1.msra.mxu0 0.0
    %4002 = vmatprep.subr.mxu0 0.0
    %4003 = vmatpush1.msra.mxu0 0.0
    %4004 = vmatprep.subr.mxu0 0.0
    %4005 = vmatpush1.msra.mxu0 0.0
    %4006 = vmatprep.subr.mxu0 0.0
    %4007 = vmatpush1.msra.mxu0 0.0
    %4008 = vmatprep.subr.mxu0 0.0
    %4009 = vmatpush1.msra.mxu0 0.0
    %4010 = vmatprep.mubr.f32.mxu0 0.0
    %4011 = vmatmul.mubr.f32.gmra.mrb[0].mxu0 %v3941
    %v4012 = vpop.f32.mrb[0].mxu0
    %v4013 = vadd.f32 %v3938, %v4012
    %v4014 = vpop.f32.mrb[0].mxu0
    %4015 = vmatprep.mubr.f32.mxu0 0.0
    %4016 = vmatmul.mubr.f32.gmra.mrb[0].mxu0 %v3944
    %v4017 = vpop.f32.mrb[0].mxu0
    %v4018 = vadd.f32 %v3938, %v4017
    %v4019 = vpop.f32.mrb[0].mxu0
    %4020 = vdwg.mxu0
    %v4021 = vadd.f32 %v3825, %v4013
    %v4022 = vadd.f32 %v3826, %v4018
    %s4023 = scalar_lea.vmem [#allocation19], 1
    %v4024 = vld [vmem:[%s4023] sm:$0x1]
    %s4025 = scalar_lea.vmem [#allocation20], 1
    %v4026 = vld [vmem:[%s4025] sm:$0x1]
    %v4027 = vsel %vm359, %v4021, 0.0
    %4028 = vadd.xlane.f32.xlu0 %v4027
    %v4029 = vpop.xlane.xlu0 %4028
    %v4030 = vsel %vm359, %v4022, 0.0
    %4031 = vadd.xlane.f32.xlu0 %v4030
    %v4032 = vpop.xlane.xlu0 %4031
    %v4033 = vmul.f32 %v4029, %v1961
    %v4034 = vmul.f32 %v4032, %v1961
    %v4035 = vsub.f32 %v4021, %v4033
    %v4036 = vsub.f32 %v4022, %v4034
    %v4037 = vmul.f32 %v4035, %v4035
    %v4038 = vmul.f32 %v4036, %v4036
    %v4039 = vsel %vm359, %v4037, 0.0
    %4040 = vadd.xlane.f32.xlu0 %v4039
    %v4041 = vpop.xlane.xlu0 %4040
    %v4042 = vsel %vm359, %v4038, 0.0
    %4043 = vadd.xlane.f32.xlu0 %v4042
    %v4044 = vpop.xlane.xlu0 %4043
    %v4045 = vmul.f32 %v4041, %v1961
    %v4046 = vmul.f32 %v4044, %v1961
    %v4047 = vadd.f32 %v4045, 1e-05
    %v4048 = vadd.f32 %v4046, 1e-05
    %v4049 = vrsqrt.pop %v4047
    %v4050 = vrsqrt.pop %v4048
    %v4051 = vmul.f32 %v4035, %v4049
    %v4052 = vmul.f32 %v4036, %v4050
    %v4054 = vlaneseq
    %v4055 = vshrl.u32 %v4054, 7
    %v4056 = vsub.s32 0, %v4055
    %v4057 = vrot.slane %v4024, %v4056
    %v4059 = vmul.f32 %v4051, %v4057
    %v4060 = vmul.f32 %v4052, %v4057
    %v4062 = vlaneseq
    %v4063 = vshrl.u32 %v4062, 7
    %v4064 = vsub.s32 0, %v4063
    %v4065 = vrot.slane %v4026, %v4064
    %v4067 = vadd.f32 %v4059, %v4065
    %v4068 = vadd.f32 %v4060, %v4065
    %s4069 = scalar_lea.vmem %s9, 64
    %v4070 = vld [vmem:[%s4069] sm:$0xff]
    %v4071 = vld [vmem:[%s4069 + $0x8] sm:$0xff]
    %v4072 = vld [vmem:[%s4069 + $0x10] sm:$0xff]
    %v4073 = vld [vmem:[%s4069 + $0x18] sm:$0xff]
    %s4074 = scalar_lea.vmem [#allocation10], 2
    %v4075 = vld [vmem:[%s4074] sm:$0x1]
    %v4077 = vlaneseq
    %v4078 = vshrl.u32 %v4077, 7
    %v4079 = vsub.s32 0, %v4078
    %v4080 = vrot.slane %v4075, %v4079
    %v4083 = vsel %vm359, %v4067, 0
    %v4086 = vsel %vm359, %v4068, 0
    %4088 = vmatprep.subr.mxu0 0.0
    %4089 = vmatpush1.msra.mxu0 %v4070
    %4090 = vmatprep.subr.mxu0 0.0
    %4091 = vmatpush1.msra.mxu0 %v4071
    %4092 = vmatprep.subr.mxu0 0.0
    %4093 = vmatpush1.msra.mxu0 %v4072
    %4094 = vmatprep.subr.mxu0 0.0
    %4095 = vmatpush1.msra.mxu0 %v4073
    %4096 = vmatprep.subr.mxu0 0.0
    %4097 = vmatpush1.msra.mxu0 0.0
    %4098 = vmatprep.subr.mxu0 0.0
    %4099 = vmatpush1.msra.mxu0 0.0
    %4100 = vmatprep.subr.mxu0 0.0
    %4101 = vmatpush1.msra.mxu0 0.0
    %4102 = vmatprep.subr.mxu0 0.0
    %4103 = vmatpush1.msra.mxu0 0.0
    %4104 = vmatprep.subr.mxu0 0.0
    %4105 = vmatpush1.msra.mxu0 0.0
    %4106 = vmatprep.subr.mxu0 0.0
    %4107 = vmatpush1.msra.mxu0 0.0
    %4108 = vmatprep.subr.mxu0 0.0
    %4109 = vmatpush1.msra.mxu0 0.0
    %4110 = vmatprep.subr.mxu0 0.0
    %4111 = vmatpush1.msra.mxu0 0.0
    %4112 = vmatprep.subr.mxu0 0.0
    %4113 = vmatpush1.msra.mxu0 0.0
    %4114 = vmatprep.subr.mxu0 0.0
    %4115 = vmatpush1.msra.mxu0 0.0
    %4116 = vmatprep.subr.mxu0 0.0
    %4117 = vmatpush1.msra.mxu0 0.0
    %4118 = vmatprep.subr.mxu0 0.0
    %4119 = vmatpush1.msra.mxu0 0.0
    %4120 = vmatprep.subr.mxu0 0.0
    %4121 = vmatpush1.msra.mxu0 0.0
    %4122 = vmatprep.subr.mxu0 0.0
    %4123 = vmatpush1.msra.mxu0 0.0
    %4124 = vmatprep.subr.mxu0 0.0
    %4125 = vmatpush1.msra.mxu0 0.0
    %4126 = vmatprep.subr.mxu0 0.0
    %4127 = vmatpush1.msra.mxu0 0.0
    %4128 = vmatprep.subr.mxu0 0.0
    %4129 = vmatpush1.msra.mxu0 0.0
    %4130 = vmatprep.subr.mxu0 0.0
    %4131 = vmatpush1.msra.mxu0 0.0
    %4132 = vmatprep.subr.mxu0 0.0
    %4133 = vmatpush1.msra.mxu0 0.0
    %4134 = vmatprep.subr.mxu0 0.0
    %4135 = vmatpush1.msra.mxu0 0.0
    %4136 = vmatprep.subr.mxu0 0.0
    %4137 = vmatpush1.msra.mxu0 0.0
    %4138 = vmatprep.subr.mxu0 0.0
    %4139 = vmatpush1.msra.mxu0 0.0
    %4140 = vmatprep.subr.mxu0 0.0
    %4141 = vmatpush1.msra.mxu0 0.0
    %4142 = vmatprep.subr.mxu0 0.0
    %4143 = vmatpush1.msra.mxu0 0.0
    %4144 = vmatprep.subr.mxu0 0.0
    %4145 = vmatpush1.msra.mxu0 0.0
    %4146 = vmatprep.subr.mxu0 0.0
    %4147 = vmatpush1.msra.mxu0 0.0
    %4148 = vmatprep.subr.mxu0 0.0
    %4149 = vmatpush1.msra.mxu0 0.0
    %4150 = vmatprep.subr.mxu0 0.0
    %4151 = vmatpush1.msra.mxu0 0.0
    %4152 = vmatprep.mubr.f32.mxu0 0.0
    %4153 = vmatmul.mubr.f32.gmra.mrb[0].mxu0 %v4083
    %v4154 = vpop.f32.mrb[0].mxu0
    %v4155 = vadd.f32 %v4080, %v4154
    %v4156 = vpop.f32.mrb[0].mxu0
    %4157 = vmatprep.mubr.f32.mxu0 0.0
    %4158 = vmatmul.mubr.f32.gmra.mrb[0].mxu0 %v4086
    %v4159 = vpop.f32.mrb[0].mxu0
    %v4160 = vadd.f32 %v4080, %v4159
    %v4161 = vpop.f32.mrb[0].mxu0
    %4162 = vdwg.mxu0
    %4164 = vrot.lane.b32.xlu0 %v4155, 96
    %v4165 = vpop.permute.xlu0 %4164
    %v4166 = vsel %vm493, %v4155, 0
    %v4168 = vsel %vm493, %v4165, 0
    %4170 = vmatprep.subr.mxu0 0.0
    %4171 = vmatpush1.xpose.msra.mxu0 %v4168
    %4172 = vmatprep.subr.mxu0 0.0
    %4173 = vmatpush1.xpose.msra.mxu0 0.0
    %4174 = vmatprep.subr.mxu0 0.0
    %4175 = vmatpush1.xpose.msra.mxu0 0.0
    %4176 = vmatprep.subr.mxu0 0.0
    %4177 = vmatpush1.xpose.msra.mxu0 0.0
    %4178 = vmatprep.subr.mxu0 0.0
    %4179 = vmatpush1.xpose.msra.mxu0 0.0
    %4180 = vmatprep.subr.mxu0 0.0
    %4181 = vmatpush1.xpose.msra.mxu0 0.0
    %4182 = vmatprep.subr.mxu0 0.0
    %4183 = vmatpush1.xpose.msra.mxu0 0.0
    %4184 = vmatprep.subr.mxu0 0.0
    %4185 = vmatpush1.xpose.msra.mxu0 0.0
    %4186 = vmatprep.subr.mxu0 0.0
    %4187 = vmatpush1.xpose.msra.mxu0 0.0
    %4188 = vmatprep.subr.mxu0 0.0
    %4189 = vmatpush1.xpose.msra.mxu0 0.0
    %4190 = vmatprep.subr.mxu0 0.0
    %4191 = vmatpush1.xpose.msra.mxu0 0.0
    %4192 = vmatprep.subr.mxu0 0.0
    %4193 = vmatpush1.xpose.msra.mxu0 0.0
    %4194 = vmatprep.subr.mxu0 0.0
    %4195 = vmatpush1.xpose.msra.mxu0 0.0
    %4196 = vmatprep.subr.mxu0 0.0
    %4197 = vmatpush1.xpose.msra.mxu0 0.0
    %4198 = vmatprep.subr.mxu0 0.0
    %4199 = vmatpush1.xpose.msra.mxu0 0.0
    %4200 = vmatprep.subr.mxu0 0.0
    %4201 = vmatpush1.xpose.msra.mxu0 0.0
    %4202 = vmatprep.subr.mxu0 0.0
    %4203 = vmatpush1.xpose.msra.mxu0 0.0
    %4204 = vmatprep.subr.mxu0 0.0
    %4205 = vmatpush1.xpose.msra.mxu0 0.0
    %4206 = vmatprep.subr.mxu0 0.0
    %4207 = vmatpush1.xpose.msra.mxu0 0.0
    %4208 = vmatprep.subr.mxu0 0.0
    %4209 = vmatpush1.xpose.msra.mxu0 0.0
    %4210 = vmatprep.subr.mxu0 0.0
    %4211 = vmatpush1.xpose.msra.mxu0 0.0
    %4212 = vmatprep.subr.mxu0 0.0
    %4213 = vmatpush1.xpose.msra.mxu0 0.0
    %4214 = vmatprep.subr.mxu0 0.0
    %4215 = vmatpush1.xpose.msra.mxu0 0.0
    %4216 = vmatprep.subr.mxu0 0.0
    %4217 = vmatpush1.xpose.msra.mxu0 0.0
    %4218 = vmatprep.subr.mxu0 0.0
    %4219 = vmatpush1.xpose.msra.mxu0 0.0
    %4220 = vmatprep.subr.mxu0 0.0
    %4221 = vmatpush1.xpose.msra.mxu0 0.0
    %4222 = vmatprep.subr.mxu0 0.0
    %4223 = vmatpush1.xpose.msra.mxu0 0.0
    %4224 = vmatprep.subr.mxu0 0.0
    %4225 = vmatpush1.xpose.msra.mxu0 0.0
    %4226 = vmatprep.subr.mxu0 0.0
    %4227 = vmatpush1.xpose.msra.mxu0 0.0
    %4228 = vmatprep.subr.mxu0 0.0
    %4229 = vmatpush1.xpose.msra.mxu0 0.0
    %4230 = vmatprep.subr.mxu0 0.0
    %4231 = vmatpush1.xpose.msra.mxu0 0.0
    %4232 = vmatprep.subr.mxu0 0.0
    %4233 = vmatpush1.xpose.msra.mxu0 0.0
    %4234 = vmatprep.mubr.f32.mxu0 0.0
    %4235 = vmatmul.mubr.f32.gmra.mrb[0].mxu0 %v4166
    %v4236 = vpop.f32.mrb[0].mxu0
    %v4237 = vadd.f32 0.0, %v4236
    %v4238 = vpop.f32.mrb[0].mxu0
    %4239 = vdwg.mxu0
    %4241 = vrot.lane.b32.xlu0 %v4160, 96
    %v4242 = vpop.permute.xlu0 %4241
    %v4243 = vsel %vm493, %v4160, 0
    %v4245 = vsel %vm493, %v4242, 0
    %4247 = vmatprep.subr.mxu0 0.0
    %4248 = vmatpush1.xpose.msra.mxu0 %v4245
    %4249 = vmatprep.subr.mxu0 0.0
    %4250 = vmatpush1.xpose.msra.mxu0 0.0
    %4251 = vmatprep.subr.mxu0 0.0
    %4252 = vmatpush1.xpose.msra.mxu0 0.0
    %4253 = vmatprep.subr.mxu0 0.0
    %4254 = vmatpush1.xpose.msra.mxu0 0.0
    %4255 = vmatprep.subr.mxu0 0.0
    %4256 = vmatpush1.xpose.msra.mxu0 0.0
    %4257 = vmatprep.subr.mxu0 0.0
    %4258 = vmatpush1.xpose.msra.mxu0 0.0
    %4259 = vmatprep.subr.mxu0 0.0
    %4260 = vmatpush1.xpose.msra.mxu0 0.0
    %4261 = vmatprep.subr.mxu0 0.0
    %4262 = vmatpush1.xpose.msra.mxu0 0.0
    %4263 = vmatprep.subr.mxu0 0.0
    %4264 = vmatpush1.xpose.msra.mxu0 0.0
    %4265 = vmatprep.subr.mxu0 0.0
    %4266 = vmatpush1.xpose.msra.mxu0 0.0
    %4267 = vmatprep.subr.mxu0 0.0
    %4268 = vmatpush1.xpose.msra.mxu0 0.0
    %4269 = vmatprep.subr.mxu0 0.0
    %4270 = vmatpush1.xpose.msra.mxu0 0.0
    %4271 = vmatprep.subr.mxu0 0.0
    %4272 = vmatpush1.xpose.msra.mxu0 0.0
    %4273 = vmatprep.subr.mxu0 0.0
    %4274 = vmatpush1.xpose.msra.mxu0 0.0
    %4275 = vmatprep.subr.mxu0 0.0
    %4276 = vmatpush1.xpose.msra.mxu0 0.0
    %4277 = vmatprep.subr.mxu0 0.0
    %4278 = vmatpush1.xpose.msra.mxu0 0.0
    %4279 = vmatprep.subr.mxu0 0.0
    %4280 = vmatpush1.xpose.msra.mxu0 0.0
    %4281 = vmatprep.subr.mxu0 0.0
    %4282 = vmatpush1.xpose.msra.mxu0 0.0
    %4283 = vmatprep.subr.mxu0 0.0
    %4284 = vmatpush1.xpose.msra.mxu0 0.0
    %4285 = vmatprep.subr.mxu0 0.0
    %4286 = vmatpush1.xpose.msra.mxu0 0.0
    %4287 = vmatprep.subr.mxu0 0.0
    %4288 = vmatpush1.xpose.msra.mxu0 0.0
    %4289 = vmatprep.subr.mxu0 0.0
    %4290 = vmatpush1.xpose.msra.mxu0 0.0
    %4291 = vmatprep.subr.mxu0 0.0
    %4292 = vmatpush1.xpose.msra.mxu0 0.0
    %4293 = vmatprep.subr.mxu0 0.0
    %4294 = vmatpush1.xpose.msra.mxu0 0.0
    %4295 = vmatprep.subr.mxu0 0.0
    %4296 = vmatpush1.xpose.msra.mxu0 0.0
    %4297 = vmatprep.subr.mxu0 0.0
    %4298 = vmatpush1.xpose.msra.mxu0 0.0
    %4299 = vmatprep.subr.mxu0 0.0
    %4300 = vmatpush1.xpose.msra.mxu0 0.0
    %4301 = vmatprep.subr.mxu0 0.0
    %4302 = vmatpush1.xpose.msra.mxu0 0.0
    %4303 = vmatprep.subr.mxu0 0.0
    %4304 = vmatpush1.xpose.msra.mxu0 0.0
    %4305 = vmatprep.subr.mxu0 0.0
    %4306 = vmatpush1.xpose.msra.mxu0 0.0
    %4307 = vmatprep.subr.mxu0 0.0
    %4308 = vmatpush1.xpose.msra.mxu0 0.0
    %4309 = vmatprep.subr.mxu0 0.0
    %4310 = vmatpush1.xpose.msra.mxu0 0.0
    %4311 = vmatprep.mubr.f32.mxu0 0.0
    %4312 = vmatmul.mubr.f32.gmra.mrb[0].mxu0 %v4243
    %v4313 = vpop.f32.mrb[0].mxu0
    %v4314 = vadd.f32 0.0, %v4313
    %v4315 = vpop.f32.mrb[0].mxu0
    %4316 = vdwg.mxu0
    %4317 = vrot.lane.b32.xlu0 %v4155, 120
    %v4318 = vpop.permute.xlu0 %4317
    %4319 = vrot.lane.b32.xlu0 %v4155, 88
    %v4320 = vpop.permute.xlu0 %4319
    %v4321 = vsel %vm493, %v4318, 0
    %v4323 = vsel %vm493, %v4320, 0
    %4325 = vmatprep.subr.mxu0 0.0
    %4326 = vmatpush1.xpose.msra.mxu0 %v4323
    %4327 = vmatprep.subr.mxu0 0.0
    %4328 = vmatpush1.xpose.msra.mxu0 0.0
    %4329 = vmatprep.subr.mxu0 0.0
    %4330 = vmatpush1.xpose.msra.mxu0 0.0
    %4331 = vmatprep.subr.mxu0 0.0
    %4332 = vmatpush1.xpose.msra.mxu0 0.0
    %4333 = vmatprep.subr.mxu0 0.0
    %4334 = vmatpush1.xpose.msra.mxu0 0.0
    %4335 = vmatprep.subr.mxu0 0.0
    %4336 = vmatpush1.xpose.msra.mxu0 0.0
    %4337 = vmatprep.subr.mxu0 0.0
    %4338 = vmatpush1.xpose.msra.mxu0 0.0
    %4339 = vmatprep.subr.mxu0 0.0
    %4340 = vmatpush1.xpose.msra.mxu0 0.0
    %4341 = vmatprep.subr.mxu0 0.0
    %4342 = vmatpush1.xpose.msra.mxu0 0.0
    %4343 = vmatprep.subr.mxu0 0.0
    %4344 = vmatpush1.xpose.msra.mxu0 0.0
    %4345 = vmatprep.subr.mxu0 0.0
    %4346 = vmatpush1.xpose.msra.mxu0 0.0
    %4347 = vmatprep.subr.mxu0 0.0
    %4348 = vmatpush1.xpose.msra.mxu0 0.0
    %4349 = vmatprep.subr.mxu0 0.0
    %4350 = vmatpush1.xpose.msra.mxu0 0.0
    %4351 = vmatprep.subr.mxu0 0.0
    %4352 = vmatpush1.xpose.msra.mxu0 0.0
    %4353 = vmatprep.subr.mxu0 0.0
    %4354 = vmatpush1.xpose.msra.mxu0 0.0
    %4355 = vmatprep.subr.mxu0 0.0
    %4356 = vmatpush1.xpose.msra.mxu0 0.0
    %4357 = vmatprep.subr.mxu0 0.0
    %4358 = vmatpush1.xpose.msra.mxu0 0.0
    %4359 = vmatprep.subr.mxu0 0.0
    %4360 = vmatpush1.xpose.msra.mxu0 0.0
    %4361 = vmatprep.subr.mxu0 0.0
    %4362 = vmatpush1.xpose.msra.mxu0 0.0
    %4363 = vmatprep.subr.mxu0 0.0
    %4364 = vmatpush1.xpose.msra.mxu0 0.0
    %4365 = vmatprep.subr.mxu0 0.0
    %4366 = vmatpush1.xpose.msra.mxu0 0.0
    %4367 = vmatprep.subr.mxu0 0.0
    %4368 = vmatpush1.xpose.msra.mxu0 0.0
    %4369 = vmatprep.subr.mxu0 0.0
    %4370 = vmatpush1.xpose.msra.mxu0 0.0
    %4371 = vmatprep.subr.mxu0 0.0
    %4372 = vmatpush1.xpose.msra.mxu0 0.0
    %4373 = vmatprep.subr.mxu0 0.0
    %4374 = vmatpush1.xpose.msra.mxu0 0.0
    %4375 = vmatprep.subr.mxu0 0.0
    %4376 = vmatpush1.xpose.msra.mxu0 0.0
    %4377 = vmatprep.subr.mxu0 0.0
    %4378 = vmatpush1.xpose.msra.mxu0 0.0
    %4379 = vmatprep.subr.mxu0 0.0
    %4380 = vmatpush1.xpose.msra.mxu0 0.0
    %4381 = vmatprep.subr.mxu0 0.0
    %4382 = vmatpush1.xpose.msra.mxu0 0.0
    %4383 = vmatprep.subr.mxu0 0.0
    %4384 = vmatpush1.xpose.msra.mxu0 0.0
    %4385 = vmatprep.subr.mxu0 0.0
    %4386 = vmatpush1.xpose.msra.mxu0 0.0
    %4387 = vmatprep.subr.mxu0 0.0
    %4388 = vmatpush1.xpose.msra.mxu0 0.0
    %4389 = vmatprep.mubr.f32.mxu0 0.0
    %4390 = vmatmul.mubr.f32.gmra.mrb[0].mxu0 %v4321
    %v4391 = vpop.f32.mrb[0].mxu0
    %v4392 = vadd.f32 0.0, %v4391
    %v4393 = vpop.f32.mrb[0].mxu0
    %4394 = vdwg.mxu0
    %4395 = vrot.lane.b32.xlu0 %v4160, 120
    %v4396 = vpop.permute.xlu0 %4395
    %4397 = vrot.lane.b32.xlu0 %v4160, 88
    %v4398 = vpop.permute.xlu0 %4397
    %v4399 = vsel %vm493, %v4396, 0
    %v4401 = vsel %vm493, %v4398, 0
    %4403 = vmatprep.subr.mxu0 0.0
    %4404 = vmatpush1.xpose.msra.mxu0 %v4401
    %4405 = vmatprep.subr.mxu0 0.0
    %4406 = vmatpush1.xpose.msra.mxu0 0.0
    %4407 = vmatprep.subr.mxu0 0.0
    %4408 = vmatpush1.xpose.msra.mxu0 0.0
    %4409 = vmatprep.subr.mxu0 0.0
    %4410 = vmatpush1.xpose.msra.mxu0 0.0
    %4411 = vmatprep.subr.mxu0 0.0
    %4412 = vmatpush1.xpose.msra.mxu0 0.0
    %4413 = vmatprep.subr.mxu0 0.0
    %4414 = vmatpush1.xpose.msra.mxu0 0.0
    %4415 = vmatprep.subr.mxu0 0.0
    %4416 = vmatpush1.xpose.msra.mxu0 0.0
    %4417 = vmatprep.subr.mxu0 0.0
    %4418 = vmatpush1.xpose.msra.mxu0 0.0
    %4419 = vmatprep.subr.mxu0 0.0
    %4420 = vmatpush1.xpose.msra.mxu0 0.0
    %4421 = vmatprep.subr.mxu0 0.0
    %4422 = vmatpush1.xpose.msra.mxu0 0.0
    %4423 = vmatprep.subr.mxu0 0.0
    %4424 = vmatpush1.xpose.msra.mxu0 0.0
    %4425 = vmatprep.subr.mxu0 0.0
    %4426 = vmatpush1.xpose.msra.mxu0 0.0
    %4427 = vmatprep.subr.mxu0 0.0
    %4428 = vmatpush1.xpose.msra.mxu0 0.0
    %4429 = vmatprep.subr.mxu0 0.0
    %4430 = vmatpush1.xpose.msra.mxu0 0.0
    %4431 = vmatprep.subr.mxu0 0.0
    %4432 = vmatpush1.xpose.msra.mxu0 0.0
    %4433 = vmatprep.subr.mxu0 0.0
    %4434 = vmatpush1.xpose.msra.mxu0 0.0
    %4435 = vmatprep.subr.mxu0 0.0
    %4436 = vmatpush1.xpose.msra.mxu0 0.0
    %4437 = vmatprep.subr.mxu0 0.0
    %4438 = vmatpush1.xpose.msra.mxu0 0.0
    %4439 = vmatprep.subr.mxu0 0.0
    %4440 = vmatpush1.xpose.msra.mxu0 0.0
    %4441 = vmatprep.subr.mxu0 0.0
    %4442 = vmatpush1.xpose.msra.mxu0 0.0
    %4443 = vmatprep.subr.mxu0 0.0
    %4444 = vmatpush1.xpose.msra.mxu0 0.0
    %4445 = vmatprep.subr.mxu0 0.0
    %4446 = vmatpush1.xpose.msra.mxu0 0.0
    %4447 = vmatprep.subr.mxu0 0.0
    %4448 = vmatpush1.xpose.msra.mxu0 0.0
    %4449 = vmatprep.subr.mxu0 0.0
    %4450 = vmatpush1.xpose.msra.mxu0 0.0
    %4451 = vmatprep.subr.mxu0 0.0
    %4452 = vmatpush1.xpose.msra.mxu0 0.0
    %4453 = vmatprep.subr.mxu0 0.0
    %4454 = vmatpush1.xpose.msra.mxu0 0.0
    %4455 = vmatprep.subr.mxu0 0.0
    %4456 = vmatpush1.xpose.msra.mxu0 0.0
    %4457 = vmatprep.subr.mxu0 0.0
    %4458 = vmatpush1.xpose.msra.mxu0 0.0
    %4459 = vmatprep.subr.mxu0 0.0
    %4460 = vmatpush1.xpose.msra.mxu0 0.0
    %4461 = vmatprep.subr.mxu0 0.0
    %4462 = vmatpush1.xpose.msra.mxu0 0.0
    %4463 = vmatprep.subr.mxu0 0.0
    %4464 = vmatpush1.xpose.msra.mxu0 0.0
    %4465 = vmatprep.subr.mxu0 0.0
    %4466 = vmatpush1.xpose.msra.mxu0 0.0
    %4467 = vmatprep.mubr.f32.mxu0 0.0
    %4468 = vmatmul.mubr.f32.gmra.mrb[0].mxu0 %v4399
    %v4469 = vpop.f32.mrb[0].mxu0
    %v4470 = vadd.f32 0.0, %v4469
    %v4471 = vpop.f32.mrb[0].mxu0
    %4472 = vdwg.mxu0
    %4473 = vrot.lane.b32.xlu0 %v4155, 112
    %v4474 = vpop.permute.xlu0 %4473
    %4475 = vrot.lane.b32.xlu0 %v4155, 80
    %v4476 = vpop.permute.xlu0 %4475
    %v4477 = vsel %vm493, %v4474, 0
    %v4479 = vsel %vm493, %v4476, 0
    %4481 = vmatprep.subr.mxu0 0.0
    %4482 = vmatpush1.xpose.msra.mxu0 %v4479
    %4483 = vmatprep.subr.mxu0 0.0
    %4484 = vmatpush1.xpose.msra.mxu0 0.0
    %4485 = vmatprep.subr.mxu0 0.0
    %4486 = vmatpush1.xpose.msra.mxu0 0.0
    %4487 = vmatprep.subr.mxu0 0.0
    %4488 = vmatpush1.xpose.msra.mxu0 0.0
    %4489 = vmatprep.subr.mxu0 0.0
    %4490 = vmatpush1.xpose.msra.mxu0 0.0
    %4491 = vmatprep.subr.mxu0 0.0
    %4492 = vmatpush1.xpose.msra.mxu0 0.0
    %4493 = vmatprep.subr.mxu0 0.0
    %4494 = vmatpush1.xpose.msra.mxu0 0.0
    %4495 = vmatprep.subr.mxu0 0.0
    %4496 = vmatpush1.xpose.msra.mxu0 0.0
    %4497 = vmatprep.subr.mxu0 0.0
    %4498 = vmatpush1.xpose.msra.mxu0 0.0
    %4499 = vmatprep.subr.mxu0 0.0
    %4500 = vmatpush1.xpose.msra.mxu0 0.0
    %4501 = vmatprep.subr.mxu0 0.0
    %4502 = vmatpush1.xpose.msra.mxu0 0.0
    %4503 = vmatprep.subr.mxu0 0.0
    %4504 = vmatpush1.xpose.msra.mxu0 0.0
    %4505 = vmatprep.subr.mxu0 0.0
    %4506 = vmatpush1.xpose.msra.mxu0 0.0
    %4507 = vmatprep.subr.mxu0 0.0
    %4508 = vmatpush1.xpose.msra.mxu0 0.0
    %4509 = vmatprep.subr.mxu0 0.0
    %4510 = vmatpush1.xpose.msra.mxu0 0.0
    %4511 = vmatprep.subr.mxu0 0.0
    %4512 = vmatpush1.xpose.msra.mxu0 0.0
    %4513 = vmatprep.subr.mxu0 0.0
    %4514 = vmatpush1.xpose.msra.mxu0 0.0
    %4515 = vmatprep.subr.mxu0 0.0
    %4516 = vmatpush1.xpose.msra.mxu0 0.0
    %4517 = vmatprep.subr.mxu0 0.0
    %4518 = vmatpush1.xpose.msra.mxu0 0.0
    %4519 = vmatprep.subr.mxu0 0.0
    %4520 = vmatpush1.xpose.msra.mxu0 0.0
    %4521 = vmatprep.subr.mxu0 0.0
    %4522 = vmatpush1.xpose.msra.mxu0 0.0
    %4523 = vmatprep.subr.mxu0 0.0
    %4524 = vmatpush1.xpose.msra.mxu0 0.0
    %4525 = vmatprep.subr.mxu0 0.0
    %4526 = vmatpush1.xpose.msra.mxu0 0.0
    %4527 = vmatprep.subr.mxu0 0.0
    %4528 = vmatpush1.xpose.msra.mxu0 0.0
    %4529 = vmatprep.subr.mxu0 0.0
    %4530 = vmatpush1.xpose.msra.mxu0 0.0
    %4531 = vmatprep.subr.mxu0 0.0
    %4532 = vmatpush1.xpose.msra.mxu0 0.0
    %4533 = vmatprep.subr.mxu0 0.0
    %4534 = vmatpush1.xpose.msra.mxu0 0.0
    %4535 = vmatprep.subr.mxu0 0.0
    %4536 = vmatpush1.xpose.msra.mxu0 0.0
    %4537 = vmatprep.subr.mxu0 0.0
    %4538 = vmatpush1.xpose.msra.mxu0 0.0
    %4539 = vmatprep.subr.mxu0 0.0
    %4540 = vmatpush1.xpose.msra.mxu0 0.0
    %4541 = vmatprep.subr.mxu0 0.0
    %4542 = vmatpush1.xpose.msra.mxu0 0.0
    %4543 = vmatprep.subr.mxu0 0.0
    %4544 = vmatpush1.xpose.msra.mxu0 0.0
    %4545 = vmatprep.mubr.f32.mxu0 0.0
    %4546 = vmatmul.mubr.f32.gmra.mrb[0].mxu0 %v4477
    %v4547 = vpop.f32.mrb[0].mxu0
    %v4548 = vadd.f32 0.0, %v4547
    %v4549 = vpop.f32.mrb[0].mxu0
    %4550 = vdwg.mxu0
    %4551 = vrot.lane.b32.xlu0 %v4160, 112
    %v4552 = vpop.permute.xlu0 %4551
    %4553 = vrot.lane.b32.xlu0 %v4160, 80
    %v4554 = vpop.permute.xlu0 %4553
    %v4555 = vsel %vm493, %v4552, 0
    %v4557 = vsel %vm493, %v4554, 0
    %4559 = vmatprep.subr.mxu0 0.0
    %4560 = vmatpush1.xpose.msra.mxu0 %v4557
    %4561 = vmatprep.subr.mxu0 0.0
    %4562 = vmatpush1.xpose.msra.mxu0 0.0
    %4563 = vmatprep.subr.mxu0 0.0
    %4564 = vmatpush1.xpose.msra.mxu0 0.0
    %4565 = vmatprep.subr.mxu0 0.0
    %4566 = vmatpush1.xpose.msra.mxu0 0.0
    %4567 = vmatprep.subr.mxu0 0.0
    %4568 = vmatpush1.xpose.msra.mxu0 0.0
    %4569 = vmatprep.subr.mxu0 0.0
    %4570 = vmatpush1.xpose.msra.mxu0 0.0
    %4571 = vmatprep.subr.mxu0 0.0
    %4572 = vmatpush1.xpose.msra.mxu0 0.0
    %4573 = vmatprep.subr.mxu0 0.0
    %4574 = vmatpush1.xpose.msra.mxu0 0.0
    %4575 = vmatprep.subr.mxu0 0.0
    %4576 = vmatpush1.xpose.msra.mxu0 0.0
    %4577 = vmatprep.subr.mxu0 0.0
    %4578 = vmatpush1.xpose.msra.mxu0 0.0
    %4579 = vmatprep.subr.mxu0 0.0
    %4580 = vmatpush1.xpose.msra.mxu0 0.0
    %4581 = vmatprep.subr.mxu0 0.0
    %4582 = vmatpush1.xpose.msra.mxu0 0.0
    %4583 = vmatprep.subr.mxu0 0.0
    %4584 = vmatpush1.xpose.msra.mxu0 0.0
    %4585 = vmatprep.subr.mxu0 0.0
    %4586 = vmatpush1.xpose.msra.mxu0 0.0
    %4587 = vmatprep.subr.mxu0 0.0
    %4588 = vmatpush1.xpose.msra.mxu0 0.0
    %4589 = vmatprep.subr.mxu0 0.0
    %4590 = vmatpush1.xpose.msra.mxu0 0.0
    %4591 = vmatprep.subr.mxu0 0.0
    %4592 = vmatpush1.xpose.msra.mxu0 0.0
    %4593 = vmatprep.subr.mxu0 0.0
    %4594 = vmatpush1.xpose.msra.mxu0 0.0
    %4595 = vmatprep.subr.mxu0 0.0
    %4596 = vmatpush1.xpose.msra.mxu0 0.0
    %4597 = vmatprep.subr.mxu0 0.0
    %4598 = vmatpush1.xpose.msra.mxu0 0.0
    %4599 = vmatprep.subr.mxu0 0.0
    %4600 = vmatpush1.xpose.msra.mxu0 0.0
    %4601 = vmatprep.subr.mxu0 0.0
    %4602 = vmatpush1.xpose.msra.mxu0 0.0
    %4603 = vmatprep.subr.mxu0 0.0
    %4604 = vmatpush1.xpose.msra.mxu0 0.0
    %4605 = vmatprep.subr.mxu0 0.0
    %4606 = vmatpush1.xpose.msra.mxu0 0.0
    %4607 = vmatprep.subr.mxu0 0.0
    %4608 = vmatpush1.xpose.msra.mxu0 0.0
    %4609 = vmatprep.subr.mxu0 0.0
    %4610 = vmatpush1.xpose.msra.mxu0 0.0
    %4611 = vmatprep.subr.mxu0 0.0
    %4612 = vmatpush1.xpose.msra.mxu0 0.0
    %4613 = vmatprep.subr.mxu0 0.0
    %4614 = vmatpush1.xpose.msra.mxu0 0.0
    %4615 = vmatprep.subr.mxu0 0.0
    %4616 = vmatpush1.xpose.msra.mxu0 0.0
    %4617 = vmatprep.subr.mxu0 0.0
    %4618 = vmatpush1.xpose.msra.mxu0 0.0
    %4619 = vmatprep.subr.mxu0 0.0
    %4620 = vmatpush1.xpose.msra.mxu0 0.0
    %4621 = vmatprep.subr.mxu0 0.0
    %4622 = vmatpush1.xpose.msra.mxu0 0.0
    %4623 = vmatprep.mubr.f32.mxu0 0.0
    %4624 = vmatmul.mubr.f32.gmra.mrb[0].mxu0 %v4555
    %v4625 = vpop.f32.mrb[0].mxu0
    %v4626 = vadd.f32 0.0, %v4625
    %v4627 = vpop.f32.mrb[0].mxu0
    %4628 = vdwg.mxu0
    %4629 = vrot.lane.b32.xlu0 %v4155, 104
    %v4630 = vpop.permute.xlu0 %4629
    %4631 = vrot.lane.b32.xlu0 %v4155, 72
    %v4632 = vpop.permute.xlu0 %4631
    %v4633 = vsel %vm493, %v4630, 0
    %v4635 = vsel %vm493, %v4632, 0
    %4637 = vmatprep.subr.mxu0 0.0
    %4638 = vmatpush1.xpose.msra.mxu0 %v4635
    %4639 = vmatprep.subr.mxu0 0.0
    %4640 = vmatpush1.xpose.msra.mxu0 0.0
    %4641 = vmatprep.subr.mxu0 0.0
    %4642 = vmatpush1.xpose.msra.mxu0 0.0
    %4643 = vmatprep.subr.mxu0 0.0
    %4644 = vmatpush1.xpose.msra.mxu0 0.0
    %4645 = vmatprep.subr.mxu0 0.0
    %4646 = vmatpush1.xpose.msra.mxu0 0.0
    %4647 = vmatprep.subr.mxu0 0.0
    %4648 = vmatpush1.xpose.msra.mxu0 0.0
    %4649 = vmatprep.subr.mxu0 0.0
    %4650 = vmatpush1.xpose.msra.mxu0 0.0
    %4651 = vmatprep.subr.mxu0 0.0
    %4652 = vmatpush1.xpose.msra.mxu0 0.0
    %4653 = vmatprep.subr.mxu0 0.0
    %4654 = vmatpush1.xpose.msra.mxu0 0.0
    %4655 = vmatprep.subr.mxu0 0.0
    %4656 = vmatpush1.xpose.msra.mxu0 0.0
    %4657 = vmatprep.subr.mxu0 0.0
    %4658 = vmatpush1.xpose.msra.mxu0 0.0
    %4659 = vmatprep.subr.mxu0 0.0
    %4660 = vmatpush1.xpose.msra.mxu0 0.0
    %4661 = vmatprep.subr.mxu0 0.0
    %4662 = vmatpush1.xpose.msra.mxu0 0.0
    %4663 = vmatprep.subr.mxu0 0.0
    %4664 = vmatpush1.xpose.msra.mxu0 0.0
    %4665 = vmatprep.subr.mxu0 0.0
    %4666 = vmatpush1.xpose.msra.mxu0 0.0
    %4667 = vmatprep.subr.mxu0 0.0
    %4668 = vmatpush1.xpose.msra.mxu0 0.0
    %4669 = vmatprep.subr.mxu0 0.0
    %4670 = vmatpush1.xpose.msra.mxu0 0.0
    %4671 = vmatprep.subr.mxu0 0.0
    %4672 = vmatpush1.xpose.msra.mxu0 0.0
    %4673 = vmatprep.subr.mxu0 0.0
    %4674 = vmatpush1.xpose.msra.mxu0 0.0
    %4675 = vmatprep.subr.mxu0 0.0
    %4676 = vmatpush1.xpose.msra.mxu0 0.0
    %4677 = vmatprep.subr.mxu0 0.0
    %4678 = vmatpush1.xpose.msra.mxu0 0.0
    %4679 = vmatprep.subr.mxu0 0.0
    %4680 = vmatpush1.xpose.msra.mxu0 0.0
    %4681 = vmatprep.subr.mxu0 0.0
    %4682 = vmatpush1.xpose.msra.mxu0 0.0
    %4683 = vmatprep.subr.mxu0 0.0
    %4684 = vmatpush1.xpose.msra.mxu0 0.0
    %4685 = vmatprep.subr.mxu0 0.0
    %4686 = vmatpush1.xpose.msra.mxu0 0.0
    %4687 = vmatprep.subr.mxu0 0.0
    %4688 = vmatpush1.xpose.msra.mxu0 0.0
    %4689 = vmatprep.subr.mxu0 0.0
    %4690 = vmatpush1.xpose.msra.mxu0 0.0
    %4691 = vmatprep.subr.mxu0 0.0
    %4692 = vmatpush1.xpose.msra.mxu0 0.0
    %4693 = vmatprep.subr.mxu0 0.0
    %4694 = vmatpush1.xpose.msra.mxu0 0.0
    %4695 = vmatprep.subr.mxu0 0.0
    %4696 = vmatpush1.xpose.msra.mxu0 0.0
    %4697 = vmatprep.subr.mxu0 0.0
    %4698 = vmatpush1.xpose.msra.mxu0 0.0
    %4699 = vmatprep.subr.mxu0 0.0
    %4700 = vmatpush1.xpose.msra.mxu0 0.0
    %4701 = vmatprep.mubr.f32.mxu0 0.0
    %4702 = vmatmul.mubr.f32.gmra.mrb[0].mxu0 %v4633
    %v4703 = vpop.f32.mrb[0].mxu0
    %v4704 = vadd.f32 0.0, %v4703
    %v4705 = vpop.f32.mrb[0].mxu0
    %4706 = vdwg.mxu0
    %4707 = vrot.lane.b32.xlu0 %v4160, 104
    %v4708 = vpop.permute.xlu0 %4707
    %4709 = vrot.lane.b32.xlu0 %v4160, 72
    %v4710 = vpop.permute.xlu0 %4709
    %v4711 = vsel %vm493, %v4708, 0
    %v4713 = vsel %vm493, %v4710, 0
    %4715 = vmatprep.subr.mxu0 0.0
    %4716 = vmatpush1.xpose.msra.mxu0 %v4713
    %4717 = vmatprep.subr.mxu0 0.0
    %4718 = vmatpush1.xpose.msra.mxu0 0.0
    %4719 = vmatprep.subr.mxu0 0.0
    %4720 = vmatpush1.xpose.msra.mxu0 0.0
    %4721 = vmatprep.subr.mxu0 0.0
    %4722 = vmatpush1.xpose.msra.mxu0 0.0
    %4723 = vmatprep.subr.mxu0 0.0
    %4724 = vmatpush1.xpose.msra.mxu0 0.0
    %4725 = vmatprep.subr.mxu0 0.0
    %4726 = vmatpush1.xpose.msra.mxu0 0.0
    %4727 = vmatprep.subr.mxu0 0.0
    %4728 = vmatpush1.xpose.msra.mxu0 0.0
    %4729 = vmatprep.subr.mxu0 0.0
    %4730 = vmatpush1.xpose.msra.mxu0 0.0
    %4731 = vmatprep.subr.mxu0 0.0
    %4732 = vmatpush1.xpose.msra.mxu0 0.0
    %4733 = vmatprep.subr.mxu0 0.0
    %4734 = vmatpush1.xpose.msra.mxu0 0.0
    %4735 = vmatprep.subr.mxu0 0.0
    %4736 = vmatpush1.xpose.msra.mxu0 0.0
    %4737 = vmatprep.subr.mxu0 0.0
    %4738 = vmatpush1.xpose.msra.mxu0 0.0
    %4739 = vmatprep.subr.mxu0 0.0
    %4740 = vmatpush1.xpose.msra.mxu0 0.0
    %4741 = vmatprep.subr.mxu0 0.0
    %4742 = vmatpush1.xpose.msra.mxu0 0.0
    %4743 = vmatprep.subr.mxu0 0.0
    %4744 = vmatpush1.xpose.msra.mxu0 0.0
    %4745 = vmatprep.subr.mxu0 0.0
    %4746 = vmatpush1.xpose.msra.mxu0 0.0
    %4747 = vmatprep.subr.mxu0 0.0
    %4748 = vmatpush1.xpose.msra.mxu0 0.0
    %4749 = vmatprep.subr.mxu0 0.0
    %4750 = vmatpush1.xpose.msra.mxu0 0.0
    %4751 = vmatprep.subr.mxu0 0.0
    %4752 = vmatpush1.xpose.msra.mxu0 0.0
    %4753 = vmatprep.subr.mxu0 0.0
    %4754 = vmatpush1.xpose.msra.mxu0 0.0
    %4755 = vmatprep.subr.mxu0 0.0
    %4756 = vmatpush1.xpose.msra.mxu0 0.0
    %4757 = vmatprep.subr.mxu0 0.0
    %4758 = vmatpush1.xpose.msra.mxu0 0.0
    %4759 = vmatprep.subr.mxu0 0.0
    %4760 = vmatpush1.xpose.msra.mxu0 0.0
    %4761 = vmatprep.subr.mxu0 0.0
    %4762 = vmatpush1.xpose.msra.mxu0 0.0
    %4763 = vmatprep.subr.mxu0 0.0
    %4764 = vmatpush1.xpose.msra.mxu0 0.0
    %4765 = vmatprep.subr.mxu0 0.0
    %4766 = vmatpush1.xpose.msra.mxu0 0.0
    %4767 = vmatprep.subr.mxu0 0.0
    %4768 = vmatpush1.xpose.msra.mxu0 0.0
    %4769 = vmatprep.subr.mxu0 0.0
    %4770 = vmatpush1.xpose.msra.mxu0 0.0
    %4771 = vmatprep.subr.mxu0 0.0
    %4772 = vmatpush1.xpose.msra.mxu0 0.0
    %4773 = vmatprep.subr.mxu0 0.0
    %4774 = vmatpush1.xpose.msra.mxu0 0.0
    %4775 = vmatprep.subr.mxu0 0.0
    %4776 = vmatpush1.xpose.msra.mxu0 0.0
    %4777 = vmatprep.subr.mxu0 0.0
    %4778 = vmatpush1.xpose.msra.mxu0 0.0
    %4779 = vmatprep.mubr.f32.mxu0 0.0
    %4780 = vmatmul.mubr.f32.gmra.mrb[0].mxu0 %v4711
    %v4781 = vpop.f32.mrb[0].mxu0
    %v4782 = vadd.f32 0.0, %v4781
    %v4783 = vpop.f32.mrb[0].mxu0
    %4784 = vdwg.mxu0
    %v4785 = vadd.f32 %v4237, %v1116
    %v4786 = vadd.f32 %v4314, %v1120
    %v4787 = vadd.f32 %v4392, %v1116
    %v4788 = vadd.f32 %v4470, %v1120
    %v4789 = vadd.f32 %v4548, %v1116
    %v4790 = vadd.f32 %v4626, %v1120
    %v4791 = vadd.f32 %v4704, %v1116
    %v4792 = vadd.f32 %v4782, %v1120
    %v4793 = vsel %vm493, %v4785, -inf
    %4794 = vmax.xlane.f32.xlu0 %v4793
    %v4795 = vpop.xlane.xlu0 %4794
    %v4796 = vsel %vm493, %v4786, -inf
    %4797 = vmax.xlane.f32.xlu0 %v4796
    %v4798 = vpop.xlane.xlu0 %4797
    %v4799 = vsel %vm493, %v4787, -inf
    %4800 = vmax.xlane.f32.xlu0 %v4799
    %v4801 = vpop.xlane.xlu0 %4800
    %v4802 = vsel %vm493, %v4788, -inf
    %4803 = vmax.xlane.f32.xlu0 %v4802
    %v4804 = vpop.xlane.xlu0 %4803
    %v4805 = vsel %vm493, %v4789, -inf
    %4806 = vmax.xlane.f32.xlu0 %v4805
    %v4807 = vpop.xlane.xlu0 %4806
    %v4808 = vsel %vm493, %v4790, -inf
    %4809 = vmax.xlane.f32.xlu0 %v4808
    %v4810 = vpop.xlane.xlu0 %4809
    %v4811 = vsel %vm493, %v4791, -inf
    %4812 = vmax.xlane.f32.xlu0 %v4811
    %v4813 = vpop.xlane.xlu0 %4812
    %v4814 = vsel %vm493, %v4792, -inf
    %4815 = vmax.xlane.f32.xlu0 %v4814
    %v4816 = vpop.xlane.xlu0 %4815
    %v4817 = vsub.f32 %v4785, %v4795
    %v4818 = vsub.f32 %v4786, %v4798
    %v4819 = vsub.f32 %v4787, %v4801
    %v4820 = vsub.f32 %v4788, %v4804
    %v4821 = vsub.f32 %v4789, %v4807
    %v4822 = vsub.f32 %v4790, %v4810
    %v4823 = vsub.f32 %v4791, %v4813
    %v4824 = vsub.f32 %v4792, %v4816
    %v4825 = vmul.f32 %v4817, 1.442695
    %v4826 = vpow.pop %v4825
    %v4827 = vmul.f32 %v4818, 1.442695
    %v4828 = vpow.pop %v4827
    %v4829 = vmul.f32 %v4819, 1.442695
    %v4830 = vpow.pop %v4829
    %v4831 = vmul.f32 %v4820, 1.442695
    %v4832 = vpow.pop %v4831
    %v4833 = vmul.f32 %v4821, 1.442695
    %v4834 = vpow.pop %v4833
    %v4835 = vmul.f32 %v4822, 1.442695
    %v4836 = vpow.pop %v4835
    %v4837 = vmul.f32 %v4823, 1.442695
    %v4838 = vpow.pop %v4837
    %v4839 = vmul.f32 %v4824, 1.442695
    %v4840 = vpow.pop %v4839
    %v4841 = vsel %vm493, %v4826, 0.0
    %4842 = vadd.xlane.f32.xlu0 %v4841
    %v4843 = vpop.xlane.xlu0 %4842
    %v4844 = vsel %vm493, %v4828, 0.0
    %4845 = vadd.xlane.f32.xlu0 %v4844
    %v4846 = vpop.xlane.xlu0 %4845
    %v4847 = vsel %vm493, %v4830, 0.0
    %4848 = vadd.xlane.f32.xlu0 %v4847
    %v4849 = vpop.xlane.xlu0 %4848
    %v4850 = vsel %vm493, %v4832, 0.0
    %4851 = vadd.xlane.f32.xlu0 %v4850
    %v4852 = vpop.xlane.xlu0 %4851
    %v4853 = vsel %vm493, %v4834, 0.0
    %4854 = vadd.xlane.f32.xlu0 %v4853
    %v4855 = vpop.xlane.xlu0 %4854
    %v4856 = vsel %vm493, %v4836, 0.0
    %4857 = vadd.xlane.f32.xlu0 %v4856
    %v4858 = vpop.xlane.xlu0 %4857
    %v4859 = vsel %vm493, %v4838, 0.0
    %4860 = vadd.xlane.f32.xlu0 %v4859
    %v4861 = vpop.xlane.xlu0 %4860
    %v4862 = vsel %vm493, %v4840, 0.0
    %4863 = vadd.xlane.f32.xlu0 %v4862
    %v4864 = vpop.xlane.xlu0 %4863
    %v4865 = vrcp.pop %v4843
    %v4866 = vrcp.pop %v4846
    %v4867 = vrcp.pop %v4849
    %v4868 = vrcp.pop %v4852
    %v4869 = vrcp.pop %v4855
    %v4870 = vrcp.pop %v4858
    %v4871 = vrcp.pop %v4861
    %v4872 = vrcp.pop %v4864
    %v4873 = vmul.f32 %v4826, %v4865
    %v4874 = vmul.f32 %v4828, %v4866
    %v4875 = vmul.f32 %v4830, %v4867
    %v4876 = vmul.f32 %v4832, %v4868
    %v4877 = vmul.f32 %v4834, %v4869
    %v4878 = vmul.f32 %v4836, %v4870
    %v4879 = vmul.f32 %v4838, %v4871
    %v4880 = vmul.f32 %v4840, %v4872
    %4881 = vrot.lane.b32.xlu0 %v4155, 64
    %v4882 = vpop.permute.xlu0 %4881
    %v4885 = vsel %vm493, %v4873, 0
    %4887 = vmatprep.subr.mxu0 0.0
    %4888 = vmatpush1.msra.mxu0 %v4882
    %4889 = vmatprep.subr.mxu0 0.0
    %4890 = vmatpush1.msra.mxu0 0.0
    %4891 = vmatprep.subr.mxu0 0.0
    %4892 = vmatpush1.msra.mxu0 0.0
    %4893 = vmatprep.subr.mxu0 0.0
    %4894 = vmatpush1.msra.mxu0 0.0
    %4895 = vmatprep.subr.mxu0 0.0
    %4896 = vmatpush1.msra.mxu0 0.0
    %4897 = vmatprep.subr.mxu0 0.0
    %4898 = vmatpush1.msra.mxu0 0.0
    %4899 = vmatprep.subr.mxu0 0.0
    %4900 = vmatpush1.msra.mxu0 0.0
    %4901 = vmatprep.subr.mxu0 0.0
    %4902 = vmatpush1.msra.mxu0 0.0
    %4903 = vmatprep.subr.mxu0 0.0
    %4904 = vmatpush1.msra.mxu0 0.0
    %4905 = vmatprep.subr.mxu0 0.0
    %4906 = vmatpush1.msra.mxu0 0.0
    %4907 = vmatprep.subr.mxu0 0.0
    %4908 = vmatpush1.msra.mxu0 0.0
    %4909 = vmatprep.subr.mxu0 0.0
    %4910 = vmatpush1.msra.mxu0 0.0
    %4911 = vmatprep.subr.mxu0 0.0
    %4912 = vmatpush1.msra.mxu0 0.0
    %4913 = vmatprep.subr.mxu0 0.0
    %4914 = vmatpush1.msra.mxu0 0.0
    %4915 = vmatprep.subr.mxu0 0.0
    %4916 = vmatpush1.msra.mxu0 0.0
    %4917 = vmatprep.subr.mxu0 0.0
    %4918 = vmatpush1.msra.mxu0 0.0
    %4919 = vmatprep.subr.mxu0 0.0
    %4920 = vmatpush1.msra.mxu0 0.0
    %4921 = vmatprep.subr.mxu0 0.0
    %4922 = vmatpush1.msra.mxu0 0.0
    %4923 = vmatprep.subr.mxu0 0.0
    %4924 = vmatpush1.msra.mxu0 0.0
    %4925 = vmatprep.subr.mxu0 0.0
    %4926 = vmatpush1.msra.mxu0 0.0
    %4927 = vmatprep.subr.mxu0 0.0
    %4928 = vmatpush1.msra.mxu0 0.0
    %4929 = vmatprep.subr.mxu0 0.0
    %4930 = vmatpush1.msra.mxu0 0.0
    %4931 = vmatprep.subr.mxu0 0.0
    %4932 = vmatpush1.msra.mxu0 0.0
    %4933 = vmatprep.subr.mxu0 0.0
    %4934 = vmatpush1.msra.mxu0 0.0
    %4935 = vmatprep.subr.mxu0 0.0
    %4936 = vmatpush1.msra.mxu0 0.0
    %4937 = vmatprep.subr.mxu0 0.0
    %4938 = vmatpush1.msra.mxu0 0.0
    %4939 = vmatprep.subr.mxu0 0.0
    %4940 = vmatpush1.msra.mxu0 0.0
    %4941 = vmatprep.subr.mxu0 0.0
    %4942 = vmatpush1.msra.mxu0 0.0
    %4943 = vmatprep.subr.mxu0 0.0
    %4944 = vmatpush1.msra.mxu0 0.0
    %4945 = vmatprep.subr.mxu0 0.0
    %4946 = vmatpush1.msra.mxu0 0.0
    %4947 = vmatprep.subr.mxu0 0.0
    %4948 = vmatpush1.msra.mxu0 0.0
    %4949 = vmatprep.subr.mxu0 0.0
    %4950 = vmatpush1.msra.mxu0 0.0
    %4951 = vmatprep.mubr.f32.mxu0 0.0
    %4952 = vmatmul.mubr.f32.gmra.mrb[0].mxu0 %v4885
    %v4953 = vpop.f32.mrb[0].mxu0
    %v4954 = vadd.f32 0.0, %v4953
    %v4955 = vpop.f32.mrb[0].mxu0
    %4956 = vdwg.mxu0
    %4957 = vrot.lane.b32.xlu0 %v4160, 64
    %v4958 = vpop.permute.xlu0 %4957
    %v4961 = vsel %vm493, %v4874, 0
    %4963 = vmatprep.subr.mxu0 0.0
    %4964 = vmatpush1.msra.mxu0 %v4958
    %4965 = vmatprep.subr.mxu0 0.0
    %4966 = vmatpush1.msra.mxu0 0.0
    %4967 = vmatprep.subr.mxu0 0.0
    %4968 = vmatpush1.msra.mxu0 0.0
    %4969 = vmatprep.subr.mxu0 0.0
    %4970 = vmatpush1.msra.mxu0 0.0
    %4971 = vmatprep.subr.mxu0 0.0
    %4972 = vmatpush1.msra.mxu0 0.0
    %4973 = vmatprep.subr.mxu0 0.0
    %4974 = vmatpush1.msra.mxu0 0.0
    %4975 = vmatprep.subr.mxu0 0.0
    %4976 = vmatpush1.msra.mxu0 0.0
    %4977 = vmatprep.subr.mxu0 0.0
    %4978 = vmatpush1.msra.mxu0 0.0
    %4979 = vmatprep.subr.mxu0 0.0
    %4980 = vmatpush1.msra.mxu0 0.0
    %4981 = vmatprep.subr.mxu0 0.0
    %4982 = vmatpush1.msra.mxu0 0.0
    %4983 = vmatprep.subr.mxu0 0.0
    %4984 = vmatpush1.msra.mxu0 0.0
    %4985 = vmatprep.subr.mxu0 0.0
    %4986 = vmatpush1.msra.mxu0 0.0
    %4987 = vmatprep.subr.mxu0 0.0
    %4988 = vmatpush1.msra.mxu0 0.0
    %4989 = vmatprep.subr.mxu0 0.0
    %4990 = vmatpush1.msra.mxu0 0.0
    %4991 = vmatprep.subr.mxu0 0.0
    %4992 = vmatpush1.msra.mxu0 0.0
    %4993 = vmatprep.subr.mxu0 0.0
    %4994 = vmatpush1.msra.mxu0 0.0
    %4995 = vmatprep.subr.mxu0 0.0
    %4996 = vmatpush1.msra.mxu0 0.0
    %4997 = vmatprep.subr.mxu0 0.0
    %4998 = vmatpush1.msra.mxu0 0.0
    %4999 = vmatprep.subr.mxu0 0.0
    %5000 = vmatpush1.msra.mxu0 0.0
    %5001 = vmatprep.subr.mxu0 0.0
    %5002 = vmatpush1.msra.mxu0 0.0
    %5003 = vmatprep.subr.mxu0 0.0
    %5004 = vmatpush1.msra.mxu0 0.0
    %5005 = vmatprep.subr.mxu0 0.0
    %5006 = vmatpush1.msra.mxu0 0.0
    %5007 = vmatprep.subr.mxu0 0.0
    %5008 = vmatpush1.msra.mxu0 0.0
    %5009 = vmatprep.subr.mxu0 0.0
    %5010 = vmatpush1.msra.mxu0 0.0
    %5011 = vmatprep.subr.mxu0 0.0
    %5012 = vmatpush1.msra.mxu0 0.0
    %5013 = vmatprep.subr.mxu0 0.0
    %5014 = vmatpush1.msra.mxu0 0.0
    %5015 = vmatprep.subr.mxu0 0.0
    %5016 = vmatpush1.msra.mxu0 0.0
    %5017 = vmatprep.subr.mxu0 0.0
    %5018 = vmatpush1.msra.mxu0 0.0
    %5019 = vmatprep.subr.mxu0 0.0
    %5020 = vmatpush1.msra.mxu0 0.0
    %5021 = vmatprep.subr.mxu0 0.0
    %5022 = vmatpush1.msra.mxu0 0.0
    %5023 = vmatprep.subr.mxu0 0.0
    %5024 = vmatpush1.msra.mxu0 0.0
    %5025 = vmatprep.subr.mxu0 0.0
    %5026 = vmatpush1.msra.mxu0 0.0
    %5027 = vmatprep.mubr.f32.mxu0 0.0
    %5028 = vmatmul.mubr.f32.gmra.mrb[0].mxu0 %v4961
    %v5029 = vpop.f32.mrb[0].mxu0
    %v5030 = vadd.f32 0.0, %v5029
    %v5031 = vpop.f32.mrb[0].mxu0
    %5032 = vdwg.mxu0
    %5033 = vrot.lane.b32.xlu0 %v4155, 56
    %v5034 = vpop.permute.xlu0 %5033
    %v5037 = vsel %vm493, %v4875, 0
    %5039 = vmatprep.subr.mxu0 0.0
    %5040 = vmatpush1.msra.mxu0 %v5034
    %5041 = vmatprep.subr.mxu0 0.0
    %5042 = vmatpush1.msra.mxu0 0.0
    %5043 = vmatprep.subr.mxu0 0.0
    %5044 = vmatpush1.msra.mxu0 0.0
    %5045 = vmatprep.subr.mxu0 0.0
    %5046 = vmatpush1.msra.mxu0 0.0
    %5047 = vmatprep.subr.mxu0 0.0
    %5048 = vmatpush1.msra.mxu0 0.0
    %5049 = vmatprep.subr.mxu0 0.0
    %5050 = vmatpush1.msra.mxu0 0.0
    %5051 = vmatprep.subr.mxu0 0.0
    %5052 = vmatpush1.msra.mxu0 0.0
    %5053 = vmatprep.subr.mxu0 0.0
    %5054 = vmatpush1.msra.mxu0 0.0
    %5055 = vmatprep.subr.mxu0 0.0
    %5056 = vmatpush1.msra.mxu0 0.0
    %5057 = vmatprep.subr.mxu0 0.0
    %5058 = vmatpush1.msra.mxu0 0.0
    %5059 = vmatprep.subr.mxu0 0.0
    %5060 = vmatpush1.msra.mxu0 0.0
    %5061 = vmatprep.subr.mxu0 0.0
    %5062 = vmatpush1.msra.mxu0 0.0
    %5063 = vmatprep.subr.mxu0 0.0
    %5064 = vmatpush1.msra.mxu0 0.0
    %5065 = vmatprep.subr.mxu0 0.0
    %5066 = vmatpush1.msra.mxu0 0.0
    %5067 = vmatprep.subr.mxu0 0.0
    %5068 = vmatpush1.msra.mxu0 0.0
    %5069 = vmatprep.subr.mxu0 0.0
    %5070 = vmatpush1.msra.mxu0 0.0
    %5071 = vmatprep.subr.mxu0 0.0
    %5072 = vmatpush1.msra.mxu0 0.0
    %5073 = vmatprep.subr.mxu0 0.0
    %5074 = vmatpush1.msra.mxu0 0.0
    %5075 = vmatprep.subr.mxu0 0.0
    %5076 = vmatpush1.msra.mxu0 0.0
    %5077 = vmatprep.subr.mxu0 0.0
    %5078 = vmatpush1.msra.mxu0 0.0
    %5079 = vmatprep.subr.mxu0 0.0
    %5080 = vmatpush1.msra.mxu0 0.0
    %5081 = vmatprep.subr.mxu0 0.0
    %5082 = vmatpush1.msra.mxu0 0.0
    %5083 = vmatprep.subr.mxu0 0.0
    %5084 = vmatpush1.msra.mxu0 0.0
    %5085 = vmatprep.subr.mxu0 0.0
    %5086 = vmatpush1.msra.mxu0 0.0
    %5087 = vmatprep.subr.mxu0 0.0
    %5088 = vmatpush1.msra.mxu0 0.0
    %5089 = vmatprep.subr.mxu0 0.0
    %5090 = vmatpush1.msra.mxu0 0.0
    %5091 = vmatprep.subr.mxu0 0.0
    %5092 = vmatpush1.msra.mxu0 0.0
    %5093 = vmatprep.subr.mxu0 0.0
    %5094 = vmatpush1.msra.mxu0 0.0
    %5095 = vmatprep.subr.mxu0 0.0
    %5096 = vmatpush1.msra.mxu0 0.0
    %5097 = vmatprep.subr.mxu0 0.0
    %5098 = vmatpush1.msra.mxu0 0.0
    %5099 = vmatprep.subr.mxu0 0.0
    %5100 = vmatpush1.msra.mxu0 0.0
    %5101 = vmatprep.subr.mxu0 0.0
    %5102 = vmatpush1.msra.mxu0 0.0
    %5103 = vmatprep.mubr.f32.mxu0 0.0
    %5104 = vmatmul.mubr.f32.gmra.mrb[0].mxu0 %v5037
    %v5105 = vpop.f32.mrb[0].mxu0
    %v5106 = vadd.f32 0.0, %v5105
    %v5107 = vpop.f32.mrb[0].mxu0
    %5108 = vdwg.mxu0
    %5109 = vrot.lane.b32.xlu0 %v4160, 56
    %v5110 = vpop.permute.xlu0 %5109
    %v5113 = vsel %vm493, %v4876, 0
    %5115 = vmatprep.subr.mxu0 0.0
    %5116 = vmatpush1.msra.mxu0 %v5110
    %5117 = vmatprep.subr.mxu0 0.0
    %5118 = vmatpush1.msra.mxu0 0.0
    %5119 = vmatprep.subr.mxu0 0.0
    %5120 = vmatpush1.msra.mxu0 0.0
    %5121 = vmatprep.subr.mxu0 0.0
    %5122 = vmatpush1.msra.mxu0 0.0
    %5123 = vmatprep.subr.mxu0 0.0
    %5124 = vmatpush1.msra.mxu0 0.0
    %5125 = vmatprep.subr.mxu0 0.0
    %5126 = vmatpush1.msra.mxu0 0.0
    %5127 = vmatprep.subr.mxu0 0.0
    %5128 = vmatpush1.msra.mxu0 0.0
    %5129 = vmatprep.subr.mxu0 0.0
    %5130 = vmatpush1.msra.mxu0 0.0
    %5131 = vmatprep.subr.mxu0 0.0
    %5132 = vmatpush1.msra.mxu0 0.0
    %5133 = vmatprep.subr.mxu0 0.0
    %5134 = vmatpush1.msra.mxu0 0.0
    %5135 = vmatprep.subr.mxu0 0.0
    %5136 = vmatpush1.msra.mxu0 0.0
    %5137 = vmatprep.subr.mxu0 0.0
    %5138 = vmatpush1.msra.mxu0 0.0
    %5139 = vmatprep.subr.mxu0 0.0
    %5140 = vmatpush1.msra.mxu0 0.0
    %5141 = vmatprep.subr.mxu0 0.0
    %5142 = vmatpush1.msra.mxu0 0.0
    %5143 = vmatprep.subr.mxu0 0.0
    %5144 = vmatpush1.msra.mxu0 0.0
    %5145 = vmatprep.subr.mxu0 0.0
    %5146 = vmatpush1.msra.mxu0 0.0
    %5147 = vmatprep.subr.mxu0 0.0
    %5148 = vmatpush1.msra.mxu0 0.0
    %5149 = vmatprep.subr.mxu0 0.0
    %5150 = vmatpush1.msra.mxu0 0.0
    %5151 = vmatprep.subr.mxu0 0.0
    %5152 = vmatpush1.msra.mxu0 0.0
    %5153 = vmatprep.subr.mxu0 0.0
    %5154 = vmatpush1.msra.mxu0 0.0
    %5155 = vmatprep.subr.mxu0 0.0
    %5156 = vmatpush1.msra.mxu0 0.0
    %5157 = vmatprep.subr.mxu0 0.0
    %5158 = vmatpush1.msra.mxu0 0.0
    %5159 = vmatprep.subr.mxu0 0.0
    %5160 = vmatpush1.msra.mxu0 0.0
    %5161 = vmatprep.subr.mxu0 0.0
    %5162 = vmatpush1.msra.mxu0 0.0
    %5163 = vmatprep.subr.mxu0 0.0
    %5164 = vmatpush1.msra.mxu0 0.0
    %5165 = vmatprep.subr.mxu0 0.0
    %5166 = vmatpush1.msra.mxu0 0.0
    %5167 = vmatprep.subr.mxu0 0.0
    %5168 = vmatpush1.msra.mxu0 0.0
    %5169 = vmatprep.subr.mxu0 0.0
    %5170 = vmatpush1.msra.mxu0 0.0
    %5171 = vmatprep.subr.mxu0 0.0
    %5172 = vmatpush1.msra.mxu0 0.0
    %5173 = vmatprep.subr.mxu0 0.0
    %5174 = vmatpush1.msra.mxu0 0.0
    %5175 = vmatprep.subr.mxu0 0.0
    %5176 = vmatpush1.msra.mxu0 0.0
    %5177 = vmatprep.subr.mxu0 0.0
    %5178 = vmatpush1.msra.mxu0 0.0
    %5179 = vmatprep.mubr.f32.mxu0 0.0
    %5180 = vmatmul.mubr.f32.gmra.mrb[0].mxu0 %v5113
    %v5181 = vpop.f32.mrb[0].mxu0
    %v5182 = vadd.f32 0.0, %v5181
    %v5183 = vpop.f32.mrb[0].mxu0
    %5184 = vdwg.mxu0
    %5185 = vrot.lane.b32.xlu0 %v4155, 48
    %v5186 = vpop.permute.xlu0 %5185
    %v5189 = vsel %vm493, %v4877, 0
    %5191 = vmatprep.subr.mxu0 0.0
    %5192 = vmatpush1.msra.mxu0 %v5186
    %5193 = vmatprep.subr.mxu0 0.0
    %5194 = vmatpush1.msra.mxu0 0.0
    %5195 = vmatprep.subr.mxu0 0.0
    %5196 = vmatpush1.msra.mxu0 0.0
    %5197 = vmatprep.subr.mxu0 0.0
    %5198 = vmatpush1.msra.mxu0 0.0
    %5199 = vmatprep.subr.mxu0 0.0
    %5200 = vmatpush1.msra.mxu0 0.0
    %5201 = vmatprep.subr.mxu0 0.0
    %5202 = vmatpush1.msra.mxu0 0.0
    %5203 = vmatprep.subr.mxu0 0.0
    %5204 = vmatpush1.msra.mxu0 0.0
    %5205 = vmatprep.subr.mxu0 0.0
    %5206 = vmatpush1.msra.mxu0 0.0
    %5207 = vmatprep.subr.mxu0 0.0
    %5208 = vmatpush1.msra.mxu0 0.0
    %5209 = vmatprep.subr.mxu0 0.0
    %5210 = vmatpush1.msra.mxu0 0.0
    %5211 = vmatprep.subr.mxu0 0.0
    %5212 = vmatpush1.msra.mxu0 0.0
    %5213 = vmatprep.subr.mxu0 0.0
    %5214 = vmatpush1.msra.mxu0 0.0
    %5215 = vmatprep.subr.mxu0 0.0
    %5216 = vmatpush1.msra.mxu0 0.0
    %5217 = vmatprep.subr.mxu0 0.0
    %5218 = vmatpush1.msra.mxu0 0.0
    %5219 = vmatprep.subr.mxu0 0.0
    %5220 = vmatpush1.msra.mxu0 0.0
    %5221 = vmatprep.subr.mxu0 0.0
    %5222 = vmatpush1.msra.mxu0 0.0
    %5223 = vmatprep.subr.mxu0 0.0
    %5224 = vmatpush1.msra.mxu0 0.0
    %5225 = vmatprep.subr.mxu0 0.0
    %5226 = vmatpush1.msra.mxu0 0.0
    %5227 = vmatprep.subr.mxu0 0.0
    %5228 = vmatpush1.msra.mxu0 0.0
    %5229 = vmatprep.subr.mxu0 0.0
    %5230 = vmatpush1.msra.mxu0 0.0
    %5231 = vmatprep.subr.mxu0 0.0
    %5232 = vmatpush1.msra.mxu0 0.0
    %5233 = vmatprep.subr.mxu0 0.0
    %5234 = vmatpush1.msra.mxu0 0.0
    %5235 = vmatprep.subr.mxu0 0.0
    %5236 = vmatpush1.msra.mxu0 0.0
    %5237 = vmatprep.subr.mxu0 0.0
    %5238 = vmatpush1.msra.mxu0 0.0
    %5239 = vmatprep.subr.mxu0 0.0
    %5240 = vmatpush1.msra.mxu0 0.0
    %5241 = vmatprep.subr.mxu0 0.0
    %5242 = vmatpush1.msra.mxu0 0.0
    %5243 = vmatprep.subr.mxu0 0.0
    %5244 = vmatpush1.msra.mxu0 0.0
    %5245 = vmatprep.subr.mxu0 0.0
    %5246 = vmatpush1.msra.mxu0 0.0
    %5247 = vmatprep.subr.mxu0 0.0
    %5248 = vmatpush1.msra.mxu0 0.0
    %5249 = vmatprep.subr.mxu0 0.0
    %5250 = vmatpush1.msra.mxu0 0.0
    %5251 = vmatprep.subr.mxu0 0.0
    %5252 = vmatpush1.msra.mxu0 0.0
    %5253 = vmatprep.subr.mxu0 0.0
    %5254 = vmatpush1.msra.mxu0 0.0
    %5255 = vmatprep.mubr.f32.mxu0 0.0
    %5256 = vmatmul.mubr.f32.gmra.mrb[0].mxu0 %v5189
    %v5257 = vpop.f32.mrb[0].mxu0
    %v5258 = vadd.f32 0.0, %v5257
    %v5259 = vpop.f32.mrb[0].mxu0
    %5260 = vdwg.mxu0
    %5261 = vrot.lane.b32.xlu0 %v4160, 48
    %v5262 = vpop.permute.xlu0 %5261
    %v5265 = vsel %vm493, %v4878, 0
    %5267 = vmatprep.subr.mxu0 0.0
    %5268 = vmatpush1.msra.mxu0 %v5262
    %5269 = vmatprep.subr.mxu0 0.0
    %5270 = vmatpush1.msra.mxu0 0.0
    %5271 = vmatprep.subr.mxu0 0.0
    %5272 = vmatpush1.msra.mxu0 0.0
    %5273 = vmatprep.subr.mxu0 0.0
    %5274 = vmatpush1.msra.mxu0 0.0
    %5275 = vmatprep.subr.mxu0 0.0
    %5276 = vmatpush1.msra.mxu0 0.0
    %5277 = vmatprep.subr.mxu0 0.0
    %5278 = vmatpush1.msra.mxu0 0.0
    %5279 = vmatprep.subr.mxu0 0.0
    %5280 = vmatpush1.msra.mxu0 0.0
    %5281 = vmatprep.subr.mxu0 0.0
    %5282 = vmatpush1.msra.mxu0 0.0
    %5283 = vmatprep.subr.mxu0 0.0
    %5284 = vmatpush1.msra.mxu0 0.0
    %5285 = vmatprep.subr.mxu0 0.0
    %5286 = vmatpush1.msra.mxu0 0.0
    %5287 = vmatprep.subr.mxu0 0.0
    %5288 = vmatpush1.msra.mxu0 0.0
    %5289 = vmatprep.subr.mxu0 0.0
    %5290 = vmatpush1.msra.mxu0 0.0
    %5291 = vmatprep.subr.mxu0 0.0
    %5292 = vmatpush1.msra.mxu0 0.0
    %5293 = vmatprep.subr.mxu0 0.0
    %5294 = vmatpush1.msra.mxu0 0.0
    %5295 = vmatprep.subr.mxu0 0.0
    %5296 = vmatpush1.msra.mxu0 0.0
    %5297 = vmatprep.subr.mxu0 0.0
    %5298 = vmatpush1.msra.mxu0 0.0
    %5299 = vmatprep.subr.mxu0 0.0
    %5300 = vmatpush1.msra.mxu0 0.0
    %5301 = vmatprep.subr.mxu0 0.0
    %5302 = vmatpush1.msra.mxu0 0.0
    %5303 = vmatprep.subr.mxu0 0.0
    %5304 = vmatpush1.msra.mxu0 0.0
    %5305 = vmatprep.subr.mxu0 0.0
    %5306 = vmatpush1.msra.mxu0 0.0
    %5307 = vmatprep.subr.mxu0 0.0
    %5308 = vmatpush1.msra.mxu0 0.0
    %5309 = vmatprep.subr.mxu0 0.0
    %5310 = vmatpush1.msra.mxu0 0.0
    %5311 = vmatprep.subr.mxu0 0.0
    %5312 = vmatpush1.msra.mxu0 0.0
    %5313 = vmatprep.subr.mxu0 0.0
    %5314 = vmatpush1.msra.mxu0 0.0
    %5315 = vmatprep.subr.mxu0 0.0
    %5316 = vmatpush1.msra.mxu0 0.0
    %5317 = vmatprep.subr.mxu0 0.0
    %5318 = vmatpush1.msra.mxu0 0.0
    %5319 = vmatprep.subr.mxu0 0.0
    %5320 = vmatpush1.msra.mxu0 0.0
    %5321 = vmatprep.subr.mxu0 0.0
    %5322 = vmatpush1.msra.mxu0 0.0
    %5323 = vmatprep.subr.mxu0 0.0
    %5324 = vmatpush1.msra.mxu0 0.0
    %5325 = vmatprep.subr.mxu0 0.0
    %5326 = vmatpush1.msra.mxu0 0.0
    %5327 = vmatprep.subr.mxu0 0.0
    %5328 = vmatpush1.msra.mxu0 0.0
    %5329 = vmatprep.subr.mxu0 0.0
    %5330 = vmatpush1.msra.mxu0 0.0
    %5331 = vmatprep.mubr.f32.mxu0 0.0
    %5332 = vmatmul.mubr.f32.gmra.mrb[0].mxu0 %v5265
    %v5333 = vpop.f32.mrb[0].mxu0
    %v5334 = vadd.f32 0.0, %v5333
    %v5335 = vpop.f32.mrb[0].mxu0
    %5336 = vdwg.mxu0
    %5337 = vrot.lane.b32.xlu0 %v4155, 40
    %v5338 = vpop.permute.xlu0 %5337
    %v5341 = vsel %vm493, %v4879, 0
    %5343 = vmatprep.subr.mxu0 0.0
    %5344 = vmatpush1.msra.mxu0 %v5338
    %5345 = vmatprep.subr.mxu0 0.0
    %5346 = vmatpush1.msra.mxu0 0.0
    %5347 = vmatprep.subr.mxu0 0.0
    %5348 = vmatpush1.msra.mxu0 0.0
    %5349 = vmatprep.subr.mxu0 0.0
    %5350 = vmatpush1.msra.mxu0 0.0
    %5351 = vmatprep.subr.mxu0 0.0
    %5352 = vmatpush1.msra.mxu0 0.0
    %5353 = vmatprep.subr.mxu0 0.0
    %5354 = vmatpush1.msra.mxu0 0.0
    %5355 = vmatprep.subr.mxu0 0.0
    %5356 = vmatpush1.msra.mxu0 0.0
    %5357 = vmatprep.subr.mxu0 0.0
    %5358 = vmatpush1.msra.mxu0 0.0
    %5359 = vmatprep.subr.mxu0 0.0
    %5360 = vmatpush1.msra.mxu0 0.0
    %5361 = vmatprep.subr.mxu0 0.0
    %5362 = vmatpush1.msra.mxu0 0.0
    %5363 = vmatprep.subr.mxu0 0.0
    %5364 = vmatpush1.msra.mxu0 0.0
    %5365 = vmatprep.subr.mxu0 0.0
    %5366 = vmatpush1.msra.mxu0 0.0
    %5367 = vmatprep.subr.mxu0 0.0
    %5368 = vmatpush1.msra.mxu0 0.0
    %5369 = vmatprep.subr.mxu0 0.0
    %5370 = vmatpush1.msra.mxu0 0.0
    %5371 = vmatprep.subr.mxu0 0.0
    %5372 = vmatpush1.msra.mxu0 0.0
    %5373 = vmatprep.subr.mxu0 0.0
    %5374 = vmatpush1.msra.mxu0 0.0
    %5375 = vmatprep.subr.mxu0 0.0
    %5376 = vmatpush1.msra.mxu0 0.0
    %5377 = vmatprep.subr.mxu0 0.0
    %5378 = vmatpush1.msra.mxu0 0.0
    %5379 = vmatprep.subr.mxu0 0.0
    %5380 = vmatpush1.msra.mxu0 0.0
    %5381 = vmatprep.subr.mxu0 0.0
    %5382 = vmatpush1.msra.mxu0 0.0
    %5383 = vmatprep.subr.mxu0 0.0
    %5384 = vmatpush1.msra.mxu0 0.0
    %5385 = vmatprep.subr.mxu0 0.0
    %5386 = vmatpush1.msra.mxu0 0.0
    %5387 = vmatprep.subr.mxu0 0.0
    %5388 = vmatpush1.msra.mxu0 0.0
    %5389 = vmatprep.subr.mxu0 0.0
    %5390 = vmatpush1.msra.mxu0 0.0
    %5391 = vmatprep.subr.mxu0 0.0
    %5392 = vmatpush1.msra.mxu0 0.0
    %5393 = vmatprep.subr.mxu0 0.0
    %5394 = vmatpush1.msra.mxu0 0.0
    %5395 = vmatprep.subr.mxu0 0.0
    %5396 = vmatpush1.msra.mxu0 0.0
    %5397 = vmatprep.subr.mxu0 0.0
    %5398 = vmatpush1.msra.mxu0 0.0
    %5399 = vmatprep.subr.mxu0 0.0
    %5400 = vmatpush1.msra.mxu0 0.0
    %5401 = vmatprep.subr.mxu0 0.0
    %5402 = vmatpush1.msra.mxu0 0.0
    %5403 = vmatprep.subr.mxu0 0.0
    %5404 = vmatpush1.msra.mxu0 0.0
    %5405 = vmatprep.subr.mxu0 0.0
    %5406 = vmatpush1.msra.mxu0 0.0
    %5407 = vmatprep.mubr.f32.mxu0 0.0
    %5408 = vmatmul.mubr.f32.gmra.mrb[0].mxu0 %v5341
    %v5409 = vpop.f32.mrb[0].mxu0
    %v5410 = vadd.f32 0.0, %v5409
    %v5411 = vpop.f32.mrb[0].mxu0
    %5412 = vdwg.mxu0
    %5413 = vrot.lane.b32.xlu0 %v4160, 40
    %v5414 = vpop.permute.xlu0 %5413
    %v5417 = vsel %vm493, %v4880, 0
    %5419 = vmatprep.subr.mxu0 0.0
    %5420 = vmatpush1.msra.mxu0 %v5414
    %5421 = vmatprep.subr.mxu0 0.0
    %5422 = vmatpush1.msra.mxu0 0.0
    %5423 = vmatprep.subr.mxu0 0.0
    %5424 = vmatpush1.msra.mxu0 0.0
    %5425 = vmatprep.subr.mxu0 0.0
    %5426 = vmatpush1.msra.mxu0 0.0
    %5427 = vmatprep.subr.mxu0 0.0
    %5428 = vmatpush1.msra.mxu0 0.0
    %5429 = vmatprep.subr.mxu0 0.0
    %5430 = vmatpush1.msra.mxu0 0.0
    %5431 = vmatprep.subr.mxu0 0.0
    %5432 = vmatpush1.msra.mxu0 0.0
    %5433 = vmatprep.subr.mxu0 0.0
    %5434 = vmatpush1.msra.mxu0 0.0
    %5435 = vmatprep.subr.mxu0 0.0
    %5436 = vmatpush1.msra.mxu0 0.0
    %5437 = vmatprep.subr.mxu0 0.0
    %5438 = vmatpush1.msra.mxu0 0.0
    %5439 = vmatprep.subr.mxu0 0.0
    %5440 = vmatpush1.msra.mxu0 0.0
    %5441 = vmatprep.subr.mxu0 0.0
    %5442 = vmatpush1.msra.mxu0 0.0
    %5443 = vmatprep.subr.mxu0 0.0
    %5444 = vmatpush1.msra.mxu0 0.0
    %5445 = vmatprep.subr.mxu0 0.0
    %5446 = vmatpush1.msra.mxu0 0.0
    %5447 = vmatprep.subr.mxu0 0.0
    %5448 = vmatpush1.msra.mxu0 0.0
    %5449 = vmatprep.subr.mxu0 0.0
    %5450 = vmatpush1.msra.mxu0 0.0
    %5451 = vmatprep.subr.mxu0 0.0
    %5452 = vmatpush1.msra.mxu0 0.0
    %5453 = vmatprep.subr.mxu0 0.0
    %5454 = vmatpush1.msra.mxu0 0.0
    %5455 = vmatprep.subr.mxu0 0.0
    %5456 = vmatpush1.msra.mxu0 0.0
    %5457 = vmatprep.subr.mxu0 0.0
    %5458 = vmatpush1.msra.mxu0 0.0
    %5459 = vmatprep.subr.mxu0 0.0
    %5460 = vmatpush1.msra.mxu0 0.0
    %5461 = vmatprep.subr.mxu0 0.0
    %5462 = vmatpush1.msra.mxu0 0.0
    %5463 = vmatprep.subr.mxu0 0.0
    %5464 = vmatpush1.msra.mxu0 0.0
    %5465 = vmatprep.subr.mxu0 0.0
    %5466 = vmatpush1.msra.mxu0 0.0
    %5467 = vmatprep.subr.mxu0 0.0
    %5468 = vmatpush1.msra.mxu0 0.0
    %5469 = vmatprep.subr.mxu0 0.0
    %5470 = vmatpush1.msra.mxu0 0.0
    %5471 = vmatprep.subr.mxu0 0.0
    %5472 = vmatpush1.msra.mxu0 0.0
    %5473 = vmatprep.subr.mxu0 0.0
    %5474 = vmatpush1.msra.mxu0 0.0
    %5475 = vmatprep.subr.mxu0 0.0
    %5476 = vmatpush1.msra.mxu0 0.0
    %5477 = vmatprep.subr.mxu0 0.0
    %5478 = vmatpush1.msra.mxu0 0.0
    %5479 = vmatprep.subr.mxu0 0.0
    %5480 = vmatpush1.msra.mxu0 0.0
    %5481 = vmatprep.subr.mxu0 0.0
    %5482 = vmatpush1.msra.mxu0 0.0
    %5483 = vmatprep.mubr.f32.mxu0 0.0
    %5484 = vmatmul.mubr.f32.gmra.mrb[0].mxu0 %v5417
    %v5485 = vpop.f32.mrb[0].mxu0
    %v5486 = vadd.f32 0.0, %v5485
    %v5487 = vpop.f32.mrb[0].mxu0
    %5488 = vdwg.mxu0
    %5491 = vrot.lane.b32.xlu0 %v5106, 8
    %v5492 = vpop.permute.xlu0 %5491
    %5493 = vrot.lane.b32.xlu0 %v5182, 8
    %v5494 = vpop.permute.xlu0 %5493
    %5499 = vrot.lane.b32.xlu0 %v5258, 16
    %v5500 = vpop.permute.xlu0 %5499
    %5501 = vrot.lane.b32.xlu0 %v5334, 16
    %v5502 = vpop.permute.xlu0 %5501
    %5507 = vrot.lane.b32.xlu0 %v5410, 24
    %v5508 = vpop.permute.xlu0 %5507
    %5509 = vrot.lane.b32.xlu0 %v5486, 24
    %v5510 = vpop.permute.xlu0 %5509
    %v5513 = vsel %vm493, %v4954, %v5492
    %v5514 = vsel %vm493, %v5030, %v5494
    %v5515 = vsel %vm1853, %v5513, %v5500
    %v5516 = vsel %vm1853, %v5514, %v5502
    %v5517 = vsel %vm1856, %v5515, %v5508
    %v5518 = vsel %vm1856, %v5516, %v5510
    %s5519 = scalar_lea.vmem %s13, 64
    %v5520 = vld [vmem:[%s5519] sm:$0xff]
    %v5521 = vld [vmem:[%s5519 + $0x8] sm:$0xff]
    %v5522 = vld [vmem:[%s5519 + $0x10] sm:$0xff]
    %v5523 = vld [vmem:[%s5519 + $0x18] sm:$0xff]
    %s5524 = scalar_lea.vmem [#allocation11], 2
    %v5525 = vld [vmem:[%s5524] sm:$0x1]
    %v5527 = vlaneseq
    %v5528 = vshrl.u32 %v5527, 7
    %v5529 = vsub.s32 0, %v5528
    %v5530 = vrot.slane %v5525, %v5529
    %v5533 = vsel %vm359, %v5517, 0
    %v5536 = vsel %vm359, %v5518, 0
    %5538 = vmatprep.subr.mxu0 0.0
    %5539 = vmatpush1.msra.mxu0 %v5520
    %5540 = vmatprep.subr.mxu0 0.0
    %5541 = vmatpush1.msra.mxu0 %v5521
    %5542 = vmatprep.subr.mxu0 0.0
    %5543 = vmatpush1.msra.mxu0 %v5522
    %5544 = vmatprep.subr.mxu0 0.0
    %5545 = vmatpush1.msra.mxu0 %v5523
    %5546 = vmatprep.subr.mxu0 0.0
    %5547 = vmatpush1.msra.mxu0 0.0
    %5548 = vmatprep.subr.mxu0 0.0
    %5549 = vmatpush1.msra.mxu0 0.0
    %5550 = vmatprep.subr.mxu0 0.0
    %5551 = vmatpush1.msra.mxu0 0.0
    %5552 = vmatprep.subr.mxu0 0.0
    %5553 = vmatpush1.msra.mxu0 0.0
    %5554 = vmatprep.subr.mxu0 0.0
    %5555 = vmatpush1.msra.mxu0 0.0
    %5556 = vmatprep.subr.mxu0 0.0
    %5557 = vmatpush1.msra.mxu0 0.0
    %5558 = vmatprep.subr.mxu0 0.0
    %5559 = vmatpush1.msra.mxu0 0.0
    %5560 = vmatprep.subr.mxu0 0.0
    %5561 = vmatpush1.msra.mxu0 0.0
    %5562 = vmatprep.subr.mxu0 0.0
    %5563 = vmatpush1.msra.mxu0 0.0
    %5564 = vmatprep.subr.mxu0 0.0
    %5565 = vmatpush1.msra.mxu0 0.0
    %5566 = vmatprep.subr.mxu0 0.0
    %5567 = vmatpush1.msra.mxu0 0.0
    %5568 = vmatprep.subr.mxu0 0.0
    %5569 = vmatpush1.msra.mxu0 0.0
    %5570 = vmatprep.subr.mxu0 0.0
    %5571 = vmatpush1.msra.mxu0 0.0
    %5572 = vmatprep.subr.mxu0 0.0
    %5573 = vmatpush1.msra.mxu0 0.0
    %5574 = vmatprep.subr.mxu0 0.0
    %5575 = vmatpush1.msra.mxu0 0.0
    %5576 = vmatprep.subr.mxu0 0.0
    %5577 = vmatpush1.msra.mxu0 0.0
    %5578 = vmatprep.subr.mxu0 0.0
    %5579 = vmatpush1.msra.mxu0 0.0
    %5580 = vmatprep.subr.mxu0 0.0
    %5581 = vmatpush1.msra.mxu0 0.0
    %5582 = vmatprep.subr.mxu0 0.0
    %5583 = vmatpush1.msra.mxu0 0.0
    %5584 = vmatprep.subr.mxu0 0.0
    %5585 = vmatpush1.msra.mxu0 0.0
    %5586 = vmatprep.subr.mxu0 0.0
    %5587 = vmatpush1.msra.mxu0 0.0
    %5588 = vmatprep.subr.mxu0 0.0
    %5589 = vmatpush1.msra.mxu0 0.0
    %5590 = vmatprep.subr.mxu0 0.0
    %5591 = vmatpush1.msra.mxu0 0.0
    %5592 = vmatprep.subr.mxu0 0.0
    %5593 = vmatpush1.msra.mxu0 0.0
    %5594 = vmatprep.subr.mxu0 0.0
    %5595 = vmatpush1.msra.mxu0 0.0
    %5596 = vmatprep.subr.mxu0 0.0
    %5597 = vmatpush1.msra.mxu0 0.0
    %5598 = vmatprep.subr.mxu0 0.0
    %5599 = vmatpush1.msra.mxu0 0.0
    %5600 = vmatprep.subr.mxu0 0.0
    %5601 = vmatpush1.msra.mxu0 0.0
    %5602 = vmatprep.mubr.f32.mxu0 0.0
    %5603 = vmatmul.mubr.f32.gmra.mrb[0].mxu0 %v5533
    %v5604 = vpop.f32.mrb[0].mxu0
    %v5605 = vadd.f32 %v5530, %v5604
    %v5606 = vpop.f32.mrb[0].mxu0
    %5607 = vmatprep.mubr.f32.mxu0 0.0
    %5608 = vmatmul.mubr.f32.gmra.mrb[0].mxu0 %v5536
    %v5609 = vpop.f32.mrb[0].mxu0
    %v5610 = vadd.f32 %v5530, %v5609
    %v5611 = vpop.f32.mrb[0].mxu0
    %5612 = vdwg.mxu0
    %v5613 = vadd.f32 %v4067, %v5605
    %v5614 = vadd.f32 %v4068, %v5610
    %s5615 = scalar_lea.vmem [#allocation16], 2
    %v5616 = vld [vmem:[%s5615] sm:$0x1]
    %s5617 = scalar_lea.vmem [#allocation17], 2
    %v5618 = vld [vmem:[%s5617] sm:$0x1]
    %v5619 = vsel %vm359, %v5613, 0.0
    %5620 = vadd.xlane.f32.xlu0 %v5619
    %v5621 = vpop.xlane.xlu0 %5620
    %v5622 = vsel %vm359, %v5614, 0.0
    %5623 = vadd.xlane.f32.xlu0 %v5622
    %v5624 = vpop.xlane.xlu0 %5623
    %v5625 = vmul.f32 %v5621, %v1961
    %v5626 = vmul.f32 %v5624, %v1961
    %v5627 = vsub.f32 %v5613, %v5625
    %v5628 = vsub.f32 %v5614, %v5626
    %v5629 = vmul.f32 %v5627, %v5627
    %v5630 = vmul.f32 %v5628, %v5628
    %v5631 = vsel %vm359, %v5629, 0.0
    %5632 = vadd.xlane.f32.xlu0 %v5631
    %v5633 = vpop.xlane.xlu0 %5632
    %v5634 = vsel %vm359, %v5630, 0.0
    %5635 = vadd.xlane.f32.xlu0 %v5634
    %v5636 = vpop.xlane.xlu0 %5635
    %v5637 = vmul.f32 %v5633, %v1961
    %v5638 = vmul.f32 %v5636, %v1961
    %v5639 = vadd.f32 %v5637, 1e-05
    %v5640 = vadd.f32 %v5638, 1e-05
    %v5641 = vrsqrt.pop %v5639
    %v5642 = vrsqrt.pop %v5640
    %v5643 = vmul.f32 %v5627, %v5641
    %v5644 = vmul.f32 %v5628, %v5642
    %v5646 = vlaneseq
    %v5647 = vshrl.u32 %v5646, 7
    %v5648 = vsub.s32 0, %v5647
    %v5649 = vrot.slane %v5616, %v5648
    %v5651 = vmul.f32 %v5643, %v5649
    %v5652 = vmul.f32 %v5644, %v5649
    %v5654 = vlaneseq
    %v5655 = vshrl.u32 %v5654, 7
    %v5656 = vsub.s32 0, %v5655
    %v5657 = vrot.slane %v5618, %v5656
    %v5659 = vadd.f32 %v5651, %v5657
    %v5660 = vadd.f32 %v5652, %v5657
    %s5661 = scalar_lea.vmem %s17, 64
    %v5662 = vld [vmem:[%s5661] sm:$0xff]
    %v5663 = vld [vmem:[%s5661 + $0x8] sm:$0xff]
    %v5664 = vld [vmem:[%s5661 + $0x10] sm:$0xff]
    %v5665 = vld [vmem:[%s5661 + $0x18] sm:$0xff]
    %s5666 = scalar_lea.vmem [#allocation13], 2
    %v5667 = vld [vmem:[%s5666] sm:$0x1]
    %v5669 = vlaneseq
    %v5670 = vshrl.u32 %v5669, 7
    %v5671 = vsub.s32 0, %v5670
    %v5672 = vrot.slane %v5667, %v5671
    %v5675 = vsel %vm359, %v5659, 0
    %v5678 = vsel %vm359, %v5660, 0
    %5680 = vmatprep.subr.mxu0 0.0
    %5681 = vmatpush1.msra.mxu0 %v5662
    %5682 = vmatprep.subr.mxu0 0.0
    %5683 = vmatpush1.msra.mxu0 %v5663
    %5684 = vmatprep.subr.mxu0 0.0
    %5685 = vmatpush1.msra.mxu0 %v5664
    %5686 = vmatprep.subr.mxu0 0.0
    %5687 = vmatpush1.msra.mxu0 %v5665
    %5688 = vmatprep.subr.mxu0 0.0
    %5689 = vmatpush1.msra.mxu0 0.0
    %5690 = vmatprep.subr.mxu0 0.0
    %5691 = vmatpush1.msra.mxu0 0.0
    %5692 = vmatprep.subr.mxu0 0.0
    %5693 = vmatpush1.msra.mxu0 0.0
    %5694 = vmatprep.subr.mxu0 0.0
    %5695 = vmatpush1.msra.mxu0 0.0
    %5696 = vmatprep.subr.mxu0 0.0
    %5697 = vmatpush1.msra.mxu0 0.0
    %5698 = vmatprep.subr.mxu0 0.0
    %5699 = vmatpush1.msra.mxu0 0.0
    %5700 = vmatprep.subr.mxu0 0.0
    %5701 = vmatpush1.msra.mxu0 0.0
    %5702 = vmatprep.subr.mxu0 0.0
    %5703 = vmatpush1.msra.mxu0 0.0
    %5704 = vmatprep.subr.mxu0 0.0
    %5705 = vmatpush1.msra.mxu0 0.0
    %5706 = vmatprep.subr.mxu0 0.0
    %5707 = vmatpush1.msra.mxu0 0.0
    %5708 = vmatprep.subr.mxu0 0.0
    %5709 = vmatpush1.msra.mxu0 0.0
    %5710 = vmatprep.subr.mxu0 0.0
    %5711 = vmatpush1.msra.mxu0 0.0
    %5712 = vmatprep.subr.mxu0 0.0
    %5713 = vmatpush1.msra.mxu0 0.0
    %5714 = vmatprep.subr.mxu0 0.0
    %5715 = vmatpush1.msra.mxu0 0.0
    %5716 = vmatprep.subr.mxu0 0.0
    %5717 = vmatpush1.msra.mxu0 0.0
    %5718 = vmatprep.subr.mxu0 0.0
    %5719 = vmatpush1.msra.mxu0 0.0
    %5720 = vmatprep.subr.mxu0 0.0
    %5721 = vmatpush1.msra.mxu0 0.0
    %5722 = vmatprep.subr.mxu0 0.0
    %5723 = vmatpush1.msra.mxu0 0.0
    %5724 = vmatprep.subr.mxu0 0.0
    %5725 = vmatpush1.msra.mxu0 0.0
    %5726 = vmatprep.subr.mxu0 0.0
    %5727 = vmatpush1.msra.mxu0 0.0
    %5728 = vmatprep.subr.mxu0 0.0
    %5729 = vmatpush1.msra.mxu0 0.0
    %5730 = vmatprep.subr.mxu0 0.0
    %5731 = vmatpush1.msra.mxu0 0.0
    %5732 = vmatprep.subr.mxu0 0.0
    %5733 = vmatpush1.msra.mxu0 0.0
    %5734 = vmatprep.subr.mxu0 0.0
    %5735 = vmatpush1.msra.mxu0 0.0
    %5736 = vmatprep.subr.mxu0 0.0
    %5737 = vmatpush1.msra.mxu0 0.0
    %5738 = vmatprep.subr.mxu0 0.0
    %5739 = vmatpush1.msra.mxu0 0.0
    %5740 = vmatprep.subr.mxu0 0.0
    %5741 = vmatpush1.msra.mxu0 0.0
    %5742 = vmatprep.subr.mxu0 0.0
    %5743 = vmatpush1.msra.mxu0 0.0
    %5744 = vmatprep.mubr.f32.mxu0 0.0
    %5745 = vmatmul.mubr.f32.gmra.mrb[0].mxu0 %v5675
    %v5746 = vpop.f32.mrb[0].mxu0
    %v5747 = vadd.f32 %v5672, %v5746
    %v5748 = vpop.f32.mrb[0].mxu0
    %5749 = vmatprep.mubr.f32.mxu0 0.0
    %5750 = vmatmul.mubr.f32.gmra.mrb[0].mxu0 %v5678
    %v5751 = vpop.f32.mrb[0].mxu0
    %v5752 = vadd.f32 %v5672, %v5751
    %v5753 = vpop.f32.mrb[0].mxu0
    %5754 = vdwg.mxu0
    %v5755 = vmax.f32 %v5747, 0.0
    %v5756 = vmax.f32 %v5752, 0.0
    %s5757 = scalar_lea.vmem %s21, 128
    %v5758 = vld [vmem:[%s5757] sm:$0xff]
    %v5759 = vld [vmem:[%s5757 + $0x8] sm:$0xff]
    %v5760 = vld [vmem:[%s5757 + $0x10] sm:$0xff]
    %v5761 = vld [vmem:[%s5757 + $0x18] sm:$0xff]
    %v5762 = vld [vmem:[%s5757 + $0x20] sm:$0xff]
    %v5763 = vld [vmem:[%s5757 + $0x28] sm:$0xff]
    %v5764 = vld [vmem:[%s5757 + $0x30] sm:$0xff]
    %v5765 = vld [vmem:[%s5757 + $0x38] sm:$0xff]
    %s5766 = scalar_lea.vmem [#allocation14], 2
    %v5767 = vld [vmem:[%s5766] sm:$0x1]
    %v5769 = vlaneseq
    %v5770 = vshrl.u32 %v5769, 7
    %v5771 = vsub.s32 0, %v5770
    %v5772 = vrot.slane %v5767, %v5771
    %v5775 = vsel %vm2107, %v5755, 0
    %v5778 = vsel %vm2107, %v5756, 0
    %5780 = vmatprep.subr.mxu0 0.0
    %5781 = vmatpush1.msra.mxu0 %v5758
    %5782 = vmatprep.subr.mxu0 0.0
    %5783 = vmatpush1.msra.mxu0 %v5759
    %5784 = vmatprep.subr.mxu0 0.0
    %5785 = vmatpush1.msra.mxu0 %v5760
    %5786 = vmatprep.subr.mxu0 0.0
    %5787 = vmatpush1.msra.mxu0 %v5761
    %5788 = vmatprep.subr.mxu0 0.0
    %5789 = vmatpush1.msra.mxu0 %v5762
    %5790 = vmatprep.subr.mxu0 0.0
    %5791 = vmatpush1.msra.mxu0 %v5763
    %5792 = vmatprep.subr.mxu0 0.0
    %5793 = vmatpush1.msra.mxu0 %v5764
    %5794 = vmatprep.subr.mxu0 0.0
    %5795 = vmatpush1.msra.mxu0 %v5765
    %5796 = vmatprep.subr.mxu0 0.0
    %5797 = vmatpush1.msra.mxu0 0.0
    %5798 = vmatprep.subr.mxu0 0.0
    %5799 = vmatpush1.msra.mxu0 0.0
    %5800 = vmatprep.subr.mxu0 0.0
    %5801 = vmatpush1.msra.mxu0 0.0
    %5802 = vmatprep.subr.mxu0 0.0
    %5803 = vmatpush1.msra.mxu0 0.0
    %5804 = vmatprep.subr.mxu0 0.0
    %5805 = vmatpush1.msra.mxu0 0.0
    %5806 = vmatprep.subr.mxu0 0.0
    %5807 = vmatpush1.msra.mxu0 0.0
    %5808 = vmatprep.subr.mxu0 0.0
    %5809 = vmatpush1.msra.mxu0 0.0
    %5810 = vmatprep.subr.mxu0 0.0
    %5811 = vmatpush1.msra.mxu0 0.0
    %5812 = vmatprep.subr.mxu0 0.0
    %5813 = vmatpush1.msra.mxu0 0.0
    %5814 = vmatprep.subr.mxu0 0.0
    %5815 = vmatpush1.msra.mxu0 0.0
    %5816 = vmatprep.subr.mxu0 0.0
    %5817 = vmatpush1.msra.mxu0 0.0
    %5818 = vmatprep.subr.mxu0 0.0
    %5819 = vmatpush1.msra.mxu0 0.0
    %5820 = vmatprep.subr.mxu0 0.0
    %5821 = vmatpush1.msra.mxu0 0.0
    %5822 = vmatprep.subr.mxu0 0.0
    %5823 = vmatpush1.msra.mxu0 0.0
    %5824 = vmatprep.subr.mxu0 0.0
    %5825 = vmatpush1.msra.mxu0 0.0
    %5826 = vmatprep.subr.mxu0 0.0
    %5827 = vmatpush1.msra.mxu0 0.0
    %5828 = vmatprep.subr.mxu0 0.0
    %5829 = vmatpush1.msra.mxu0 0.0
    %5830 = vmatprep.subr.mxu0 0.0
    %5831 = vmatpush1.msra.mxu0 0.0
    %5832 = vmatprep.subr.mxu0 0.0
    %5833 = vmatpush1.msra.mxu0 0.0
    %5834 = vmatprep.subr.mxu0 0.0
    %5835 = vmatpush1.msra.mxu0 0.0
    %5836 = vmatprep.subr.mxu0 0.0
    %5837 = vmatpush1.msra.mxu0 0.0
    %5838 = vmatprep.subr.mxu0 0.0
    %5839 = vmatpush1.msra.mxu0 0.0
    %5840 = vmatprep.subr.mxu0 0.0
    %5841 = vmatpush1.msra.mxu0 0.0
    %5842 = vmatprep.subr.mxu0 0.0
    %5843 = vmatpush1.msra.mxu0 0.0
    %5844 = vmatprep.mubr.f32.mxu0 0.0
    %5845 = vmatmul.mubr.f32.gmra.mrb[0].mxu0 %v5775
    %v5846 = vpop.f32.mrb[0].mxu0
    %v5847 = vadd.f32 %v5772, %v5846
    %v5848 = vpop.f32.mrb[0].mxu0
    %5849 = vmatprep.mubr.f32.mxu0 0.0
    %5850 = vmatmul.mubr.f32.gmra.mrb[0].mxu0 %v5778
    %v5851 = vpop.f32.mrb[0].mxu0
    %v5852 = vadd.f32 %v5772, %v5851
    %v5853 = vpop.f32.mrb[0].mxu0
    %5854 = vdwg.mxu0
    %v5855 = vadd.f32 %v5659, %v5847
    %v5856 = vadd.f32 %v5660, %v5852
    %s5857 = scalar_lea.vmem [#allocation19], 2
    %v5858 = vld [vmem:[%s5857] sm:$0x1]
    %s5859 = scalar_lea.vmem [#allocation20], 2
    %v5860 = vld [vmem:[%s5859] sm:$0x1]
    %v5861 = vsel %vm359, %v5855, 0.0
    %5862 = vadd.xlane.f32.xlu0 %v5861
    %v5863 = vpop.xlane.xlu0 %5862
    %v5864 = vsel %vm359, %v5856, 0.0
    %5865 = vadd.xlane.f32.xlu0 %v5864
    %v5866 = vpop.xlane.xlu0 %5865
    %v5867 = vmul.f32 %v5863, %v1961
    %v5868 = vmul.f32 %v5866, %v1961
    %v5869 = vsub.f32 %v5855, %v5867
    %v5870 = vsub.f32 %v5856, %v5868
    %v5871 = vmul.f32 %v5869, %v5869
    %v5872 = vmul.f32 %v5870, %v5870
    %v5873 = vsel %vm359, %v5871, 0.0
    %5874 = vadd.xlane.f32.xlu0 %v5873
    %v5875 = vpop.xlane.xlu0 %5874
    %v5876 = vsel %vm359, %v5872, 0.0
    %5877 = vadd.xlane.f32.xlu0 %v5876
    %v5878 = vpop.xlane.xlu0 %5877
    %v5879 = vmul.f32 %v5875, %v1961
    %v5880 = vmul.f32 %v5878, %v1961
    %v5881 = vadd.f32 %v5879, 1e-05
    %v5882 = vadd.f32 %v5880, 1e-05
    %v5883 = vrsqrt.pop %v5881
    %v5884 = vrsqrt.pop %v5882
    %v5885 = vmul.f32 %v5869, %v5883
    %v5886 = vmul.f32 %v5870, %v5884
    %v5888 = vlaneseq
    %v5889 = vshrl.u32 %v5888, 7
    %v5890 = vsub.s32 0, %v5889
    %v5891 = vrot.slane %v5858, %v5890
    %v5893 = vmul.f32 %v5885, %v5891
    %v5894 = vmul.f32 %v5886, %v5891
    %v5896 = vlaneseq
    %v5897 = vshrl.u32 %v5896, 7
    %v5898 = vsub.s32 0, %v5897
    %v5899 = vrot.slane %v5860, %v5898
    %v5901 = vadd.f32 %v5893, %v5899
    %v5902 = vadd.f32 %v5894, %v5899
    %s5903 = scalar_lea.vmem %s9, 96
    %v5904 = vld [vmem:[%s5903] sm:$0xff]
    %v5905 = vld [vmem:[%s5903 + $0x8] sm:$0xff]
    %v5906 = vld [vmem:[%s5903 + $0x10] sm:$0xff]
    %v5907 = vld [vmem:[%s5903 + $0x18] sm:$0xff]
    %s5908 = scalar_lea.vmem [#allocation10], 3
    %v5909 = vld [vmem:[%s5908] sm:$0x1]
    %v5911 = vlaneseq
    %v5912 = vshrl.u32 %v5911, 7
    %v5913 = vsub.s32 0, %v5912
    %v5914 = vrot.slane %v5909, %v5913
    %v5917 = vsel %vm359, %v5901, 0
    %v5920 = vsel %vm359, %v5902, 0
    %5922 = vmatprep.subr.mxu0 0.0
    %5923 = vmatpush1.msra.mxu0 %v5904
    %5924 = vmatprep.subr.mxu0 0.0
    %5925 = vmatpush1.msra.mxu0 %v5905
    %5926 = vmatprep.subr.mxu0 0.0
    %5927 = vmatpush1.msra.mxu0 %v5906
    %5928 = vmatprep.subr.mxu0 0.0
    %5929 = vmatpush1.msra.mxu0 %v5907
    %5930 = vmatprep.subr.mxu0 0.0
    %5931 = vmatpush1.msra.mxu0 0.0
    %5932 = vmatprep.subr.mxu0 0.0
    %5933 = vmatpush1.msra.mxu0 0.0
    %5934 = vmatprep.subr.mxu0 0.0
    %5935 = vmatpush1.msra.mxu0 0.0
    %5936 = vmatprep.subr.mxu0 0.0
    %5937 = vmatpush1.msra.mxu0 0.0
    %5938 = vmatprep.subr.mxu0 0.0
    %5939 = vmatpush1.msra.mxu0 0.0
    %5940 = vmatprep.subr.mxu0 0.0
    %5941 = vmatpush1.msra.mxu0 0.0
    %5942 = vmatprep.subr.mxu0 0.0
    %5943 = vmatpush1.msra.mxu0 0.0
    %5944 = vmatprep.subr.mxu0 0.0
    %5945 = vmatpush1.msra.mxu0 0.0
    %5946 = vmatprep.subr.mxu0 0.0
    %5947 = vmatpush1.msra.mxu0 0.0
    %5948 = vmatprep.subr.mxu0 0.0
    %5949 = vmatpush1.msra.mxu0 0.0
    %5950 = vmatprep.subr.mxu0 0.0
    %5951 = vmatpush1.msra.mxu0 0.0
    %5952 = vmatprep.subr.mxu0 0.0
    %5953 = vmatpush1.msra.mxu0 0.0
    %5954 = vmatprep.subr.mxu0 0.0
    %5955 = vmatpush1.msra.mxu0 0.0
    %5956 = vmatprep.subr.mxu0 0.0
    %5957 = vmatpush1.msra.mxu0 0.0
    %5958 = vmatprep.subr.mxu0 0.0
    %5959 = vmatpush1.msra.mxu0 0.0
    %5960 = vmatprep.subr.mxu0 0.0
    %5961 = vmatpush1.msra.mxu0 0.0
    %5962 = vmatprep.subr.mxu0 0.0
    %5963 = vmatpush1.msra.mxu0 0.0
    %5964 = vmatprep.subr.mxu0 0.0
    %5965 = vmatpush1.msra.mxu0 0.0
    %5966 = vmatprep.subr.mxu0 0.0
    %5967 = vmatpush1.msra.mxu0 0.0
    %5968 = vmatprep.subr.mxu0 0.0
    %5969 = vmatpush1.msra.mxu0 0.0
    %5970 = vmatprep.subr.mxu0 0.0
    %5971 = vmatpush1.msra.mxu0 0.0
    %5972 = vmatprep.subr.mxu0 0.0
    %5973 = vmatpush1.msra.mxu0 0.0
    %5974 = vmatprep.subr.mxu0 0.0
    %5975 = vmatpush1.msra.mxu0 0.0
    %5976 = vmatprep.subr.mxu0 0.0
    %5977 = vmatpush1.msra.mxu0 0.0
    %5978 = vmatprep.subr.mxu0 0.0
    %5979 = vmatpush1.msra.mxu0 0.0
    %5980 = vmatprep.subr.mxu0 0.0
    %5981 = vmatpush1.msra.mxu0 0.0
    %5982 = vmatprep.subr.mxu0 0.0
    %5983 = vmatpush1.msra.mxu0 0.0
    %5984 = vmatprep.subr.mxu0 0.0
    %5985 = vmatpush1.msra.mxu0 0.0
    %5986 = vmatprep.mubr.f32.mxu0 0.0
    %5987 = vmatmul.mubr.f32.gmra.mrb[0].mxu0 %v5917
    %v5988 = vpop.f32.mrb[0].mxu0
    %v5989 = vadd.f32 %v5914, %v5988
    %v5990 = vpop.f32.mrb[0].mxu0
    %5991 = vmatprep.mubr.f32.mxu0 0.0
    %5992 = vmatmul.mubr.f32.gmra.mrb[0].mxu0 %v5920
    %v5993 = vpop.f32.mrb[0].mxu0
    %v5994 = vadd.f32 %v5914, %v5993
    %v5995 = vpop.f32.mrb[0].mxu0
    %5996 = vdwg.mxu0
    %5998 = vrot.lane.b32.xlu0 %v5989, 96
    %v5999 = vpop.permute.xlu0 %5998
    %v6000 = vsel %vm493, %v5989, 0
    %v6002 = vsel %vm493, %v5999, 0
    %6004 = vmatprep.subr.mxu0 0.0
    %6005 = vmatpush1.xpose.msra.mxu0 %v6002
    %6006 = vmatprep.subr.mxu0 0.0
    %6007 = vmatpush1.xpose.msra.mxu0 0.0
    %6008 = vmatprep.subr.mxu0 0.0
    %6009 = vmatpush1.xpose.msra.mxu0 0.0
    %6010 = vmatprep.subr.mxu0 0.0
    %6011 = vmatpush1.xpose.msra.mxu0 0.0
    %6012 = vmatprep.subr.mxu0 0.0
    %6013 = vmatpush1.xpose.msra.mxu0 0.0
    %6014 = vmatprep.subr.mxu0 0.0
    %6015 = vmatpush1.xpose.msra.mxu0 0.0
    %6016 = vmatprep.subr.mxu0 0.0
    %6017 = vmatpush1.xpose.msra.mxu0 0.0
    %6018 = vmatprep.subr.mxu0 0.0
    %6019 = vmatpush1.xpose.msra.mxu0 0.0
    %6020 = vmatprep.subr.mxu0 0.0
    %6021 = vmatpush1.xpose.msra.mxu0 0.0
    %6022 = vmatprep.subr.mxu0 0.0
    %6023 = vmatpush1.xpose.msra.mxu0 0.0
    %6024 = vmatprep.subr.mxu0 0.0
    %6025 = vmatpush1.xpose.msra.mxu0 0.0
    %6026 = vmatprep.subr.mxu0 0.0
    %6027 = vmatpush1.xpose.msra.mxu0 0.0
    %6028 = vmatprep.subr.mxu0 0.0
    %6029 = vmatpush1.xpose.msra.mxu0 0.0
    %6030 = vmatprep.subr.mxu0 0.0
    %6031 = vmatpush1.xpose.msra.mxu0 0.0
    %6032 = vmatprep.subr.mxu0 0.0
    %6033 = vmatpush1.xpose.msra.mxu0 0.0
    %6034 = vmatprep.subr.mxu0 0.0
    %6035 = vmatpush1.xpose.msra.mxu0 0.0
    %6036 = vmatprep.subr.mxu0 0.0
    %6037 = vmatpush1.xpose.msra.mxu0 0.0
    %6038 = vmatprep.subr.mxu0 0.0
    %6039 = vmatpush1.xpose.msra.mxu0 0.0
    %6040 = vmatprep.subr.mxu0 0.0
    %6041 = vmatpush1.xpose.msra.mxu0 0.0
    %6042 = vmatprep.subr.mxu0 0.0
    %6043 = vmatpush1.xpose.msra.mxu0 0.0
    %6044 = vmatprep.subr.mxu0 0.0
    %6045 = vmatpush1.xpose.msra.mxu0 0.0
    %6046 = vmatprep.subr.mxu0 0.0
    %6047 = vmatpush1.xpose.msra.mxu0 0.0
    %6048 = vmatprep.subr.mxu0 0.0
    %6049 = vmatpush1.xpose.msra.mxu0 0.0
    %6050 = vmatprep.subr.mxu0 0.0
    %6051 = vmatpush1.xpose.msra.mxu0 0.0
    %6052 = vmatprep.subr.mxu0 0.0
    %6053 = vmatpush1.xpose.msra.mxu0 0.0
    %6054 = vmatprep.subr.mxu0 0.0
    %6055 = vmatpush1.xpose.msra.mxu0 0.0
    %6056 = vmatprep.subr.mxu0 0.0
    %6057 = vmatpush1.xpose.msra.mxu0 0.0
    %6058 = vmatprep.subr.mxu0 0.0
    %6059 = vmatpush1.xpose.msra.mxu0 0.0
    %6060 = vmatprep.subr.mxu0 0.0
    %6061 = vmatpush1.xpose.msra.mxu0 0.0
    %6062 = vmatprep.subr.mxu0 0.0
    %6063 = vmatpush1.xpose.msra.mxu0 0.0
    %6064 = vmatprep.subr.mxu0 0.0
    %6065 = vmatpush1.xpose.msra.mxu0 0.0
    %6066 = vmatprep.subr.mxu0 0.0
    %6067 = vmatpush1.xpose.msra.mxu0 0.0
    %6068 = vmatprep.mubr.f32.mxu0 0.0
    %6069 = vmatmul.mubr.f32.gmra.mrb[0].mxu0 %v6000
    %v6070 = vpop.f32.mrb[0].mxu0
    %v6071 = vadd.f32 0.0, %v6070
    %v6072 = vpop.f32.mrb[0].mxu0
    %6073 = vdwg.mxu0
    %6075 = vrot.lane.b32.xlu0 %v5994, 96
    %v6076 = vpop.permute.xlu0 %6075
    %v6077 = vsel %vm493, %v5994, 0
    %v6079 = vsel %vm493, %v6076, 0
    %6081 = vmatprep.subr.mxu0 0.0
    %6082 = vmatpush1.xpose.msra.mxu0 %v6079
    %6083 = vmatprep.subr.mxu0 0.0
    %6084 = vmatpush1.xpose.msra.mxu0 0.0
    %6085 = vmatprep.subr.mxu0 0.0
    %6086 = vmatpush1.xpose.msra.mxu0 0.0
    %6087 = vmatprep.subr.mxu0 0.0
    %6088 = vmatpush1.xpose.msra.mxu0 0.0
    %6089 = vmatprep.subr.mxu0 0.0
    %6090 = vmatpush1.xpose.msra.mxu0 0.0
    %6091 = vmatprep.subr.mxu0 0.0
    %6092 = vmatpush1.xpose.msra.mxu0 0.0
    %6093 = vmatprep.subr.mxu0 0.0
    %6094 = vmatpush1.xpose.msra.mxu0 0.0
    %6095 = vmatprep.subr.mxu0 0.0
    %6096 = vmatpush1.xpose.msra.mxu0 0.0
    %6097 = vmatprep.subr.mxu0 0.0
    %6098 = vmatpush1.xpose.msra.mxu0 0.0
    %6099 = vmatprep.subr.mxu0 0.0
    %6100 = vmatpush1.xpose.msra.mxu0 0.0
    %6101 = vmatprep.subr.mxu0 0.0
    %6102 = vmatpush1.xpose.msra.mxu0 0.0
    %6103 = vmatprep.subr.mxu0 0.0
    %6104 = vmatpush1.xpose.msra.mxu0 0.0
    %6105 = vmatprep.subr.mxu0 0.0
    %6106 = vmatpush1.xpose.msra.mxu0 0.0
    %6107 = vmatprep.subr.mxu0 0.0
    %6108 = vmatpush1.xpose.msra.mxu0 0.0
    %6109 = vmatprep.subr.mxu0 0.0
    %6110 = vmatpush1.xpose.msra.mxu0 0.0
    %6111 = vmatprep.subr.mxu0 0.0
    %6112 = vmatpush1.xpose.msra.mxu0 0.0
    %6113 = vmatprep.subr.mxu0 0.0
    %6114 = vmatpush1.xpose.msra.mxu0 0.0
    %6115 = vmatprep.subr.mxu0 0.0
    %6116 = vmatpush1.xpose.msra.mxu0 0.0
    %6117 = vmatprep.subr.mxu0 0.0
    %6118 = vmatpush1.xpose.msra.mxu0 0.0
    %6119 = vmatprep.subr.mxu0 0.0
    %6120 = vmatpush1.xpose.msra.mxu0 0.0
    %6121 = vmatprep.subr.mxu0 0.0
    %6122 = vmatpush1.xpose.msra.mxu0 0.0
    %6123 = vmatprep.subr.mxu0 0.0
    %6124 = vmatpush1.xpose.msra.mxu0 0.0
    %6125 = vmatprep.subr.mxu0 0.0
    %6126 = vmatpush1.xpose.msra.mxu0 0.0
    %6127 = vmatprep.subr.mxu0 0.0
    %6128 = vmatpush1.xpose.msra.mxu0 0.0
    %6129 = vmatprep.subr.mxu0 0.0
    %6130 = vmatpush1.xpose.msra.mxu0 0.0
    %6131 = vmatprep.subr.mxu0 0.0
    %6132 = vmatpush1.xpose.msra.mxu0 0.0
    %6133 = vmatprep.subr.mxu0 0.0
    %6134 = vmatpush1.xpose.msra.mxu0 0.0
    %6135 = vmatprep.subr.mxu0 0.0
    %6136 = vmatpush1.xpose.msra.mxu0 0.0
    %6137 = vmatprep.subr.mxu0 0.0
    %6138 = vmatpush1.xpose.msra.mxu0 0.0
    %6139 = vmatprep.subr.mxu0 0.0
    %6140 = vmatpush1.xpose.msra.mxu0 0.0
    %6141 = vmatprep.subr.mxu0 0.0
    %6142 = vmatpush1.xpose.msra.mxu0 0.0
    %6143 = vmatprep.subr.mxu0 0.0
    %6144 = vmatpush1.xpose.msra.mxu0 0.0
    %6145 = vmatprep.mubr.f32.mxu0 0.0
    %6146 = vmatmul.mubr.f32.gmra.mrb[0].mxu0 %v6077
    %v6147 = vpop.f32.mrb[0].mxu0
    %v6148 = vadd.f32 0.0, %v6147
    %v6149 = vpop.f32.mrb[0].mxu0
    %6150 = vdwg.mxu0
    %6151 = vrot.lane.b32.xlu0 %v5989, 120
    %v6152 = vpop.permute.xlu0 %6151
    %6153 = vrot.lane.b32.xlu0 %v5989, 88
    %v6154 = vpop.permute.xlu0 %6153
    %v6155 = vsel %vm493, %v6152, 0
    %v6157 = vsel %vm493, %v6154, 0
    %6159 = vmatprep.subr.mxu0 0.0
    %6160 = vmatpush1.xpose.msra.mxu0 %v6157
    %6161 = vmatprep.subr.mxu0 0.0
    %6162 = vmatpush1.xpose.msra.mxu0 0.0
    %6163 = vmatprep.subr.mxu0 0.0
    %6164 = vmatpush1.xpose.msra.mxu0 0.0
    %6165 = vmatprep.subr.mxu0 0.0
    %6166 = vmatpush1.xpose.msra.mxu0 0.0
    %6167 = vmatprep.subr.mxu0 0.0
    %6168 = vmatpush1.xpose.msra.mxu0 0.0
    %6169 = vmatprep.subr.mxu0 0.0
    %6170 = vmatpush1.xpose.msra.mxu0 0.0
    %6171 = vmatprep.subr.mxu0 0.0
    %6172 = vmatpush1.xpose.msra.mxu0 0.0
    %6173 = vmatprep.subr.mxu0 0.0
    %6174 = vmatpush1.xpose.msra.mxu0 0.0
    %6175 = vmatprep.subr.mxu0 0.0
    %6176 = vmatpush1.xpose.msra.mxu0 0.0
    %6177 = vmatprep.subr.mxu0 0.0
    %6178 = vmatpush1.xpose.msra.mxu0 0.0
    %6179 = vmatprep.subr.mxu0 0.0
    %6180 = vmatpush1.xpose.msra.mxu0 0.0
    %6181 = vmatprep.subr.mxu0 0.0
    %6182 = vmatpush1.xpose.msra.mxu0 0.0
    %6183 = vmatprep.subr.mxu0 0.0
    %6184 = vmatpush1.xpose.msra.mxu0 0.0
    %6185 = vmatprep.subr.mxu0 0.0
    %6186 = vmatpush1.xpose.msra.mxu0 0.0
    %6187 = vmatprep.subr.mxu0 0.0
    %6188 = vmatpush1.xpose.msra.mxu0 0.0
    %6189 = vmatprep.subr.mxu0 0.0
    %6190 = vmatpush1.xpose.msra.mxu0 0.0
    %6191 = vmatprep.subr.mxu0 0.0
    %6192 = vmatpush1.xpose.msra.mxu0 0.0
    %6193 = vmatprep.subr.mxu0 0.0
    %6194 = vmatpush1.xpose.msra.mxu0 0.0
    %6195 = vmatprep.subr.mxu0 0.0
    %6196 = vmatpush1.xpose.msra.mxu0 0.0
    %6197 = vmatprep.subr.mxu0 0.0
    %6198 = vmatpush1.xpose.msra.mxu0 0.0
    %6199 = vmatprep.subr.mxu0 0.0
    %6200 = vmatpush1.xpose.msra.mxu0 0.0
    %6201 = vmatprep.subr.mxu0 0.0
    %6202 = vmatpush1.xpose.msra.mxu0 0.0
    %6203 = vmatprep.subr.mxu0 0.0
    %6204 = vmatpush1.xpose.msra.mxu0 0.0
    %6205 = vmatprep.subr.mxu0 0.0
    %6206 = vmatpush1.xpose.msra.mxu0 0.0
    %6207 = vmatprep.subr.mxu0 0.0
    %6208 = vmatpush1.xpose.msra.mxu0 0.0
    %6209 = vmatprep.subr.mxu0 0.0
    %6210 = vmatpush1.xpose.msra.mxu0 0.0
    %6211 = vmatprep.subr.mxu0 0.0
    %6212 = vmatpush1.xpose.msra.mxu0 0.0
    %6213 = vmatprep.subr.mxu0 0.0
    %6214 = vmatpush1.xpose.msra.mxu0 0.0
    %6215 = vmatprep.subr.mxu0 0.0
    %6216 = vmatpush1.xpose.msra.mxu0 0.0
    %6217 = vmatprep.subr.mxu0 0.0
    %6218 = vmatpush1.xpose.msra.mxu0 0.0
    %6219 = vmatprep.subr.mxu0 0.0
    %6220 = vmatpush1.xpose.msra.mxu0 0.0
    %6221 = vmatprep.subr.mxu0 0.0
    %6222 = vmatpush1.xpose.msra.mxu0 0.0
    %6223 = vmatprep.mubr.f32.mxu0 0.0
    %6224 = vmatmul.mubr.f32.gmra.mrb[0].mxu0 %v6155
    %v6225 = vpop.f32.mrb[0].mxu0
    %v6226 = vadd.f32 0.0, %v6225
    %v6227 = vpop.f32.mrb[0].mxu0
    %6228 = vdwg.mxu0
    %6229 = vrot.lane.b32.xlu0 %v5994, 120
    %v6230 = vpop.permute.xlu0 %6229
    %6231 = vrot.lane.b32.xlu0 %v5994, 88
    %v6232 = vpop.permute.xlu0 %6231
    %v6233 = vsel %vm493, %v6230, 0
    %v6235 = vsel %vm493, %v6232, 0
    %6237 = vmatprep.subr.mxu0 0.0
    %6238 = vmatpush1.xpose.msra.mxu0 %v6235
    %6239 = vmatprep.subr.mxu0 0.0
    %6240 = vmatpush1.xpose.msra.mxu0 0.0
    %6241 = vmatprep.subr.mxu0 0.0
    %6242 = vmatpush1.xpose.msra.mxu0 0.0
    %6243 = vmatprep.subr.mxu0 0.0
    %6244 = vmatpush1.xpose.msra.mxu0 0.0
    %6245 = vmatprep.subr.mxu0 0.0
    %6246 = vmatpush1.xpose.msra.mxu0 0.0
    %6247 = vmatprep.subr.mxu0 0.0
    %6248 = vmatpush1.xpose.msra.mxu0 0.0
    %6249 = vmatprep.subr.mxu0 0.0
    %6250 = vmatpush1.xpose.msra.mxu0 0.0
    %6251 = vmatprep.subr.mxu0 0.0
    %6252 = vmatpush1.xpose.msra.mxu0 0.0
    %6253 = vmatprep.subr.mxu0 0.0
    %6254 = vmatpush1.xpose.msra.mxu0 0.0
    %6255 = vmatprep.subr.mxu0 0.0
    %6256 = vmatpush1.xpose.msra.mxu0 0.0
    %6257 = vmatprep.subr.mxu0 0.0
    %6258 = vmatpush1.xpose.msra.mxu0 0.0
    %6259 = vmatprep.subr.mxu0 0.0
    %6260 = vmatpush1.xpose.msra.mxu0 0.0
    %6261 = vmatprep.subr.mxu0 0.0
    %6262 = vmatpush1.xpose.msra.mxu0 0.0
    %6263 = vmatprep.subr.mxu0 0.0
    %6264 = vmatpush1.xpose.msra.mxu0 0.0
    %6265 = vmatprep.subr.mxu0 0.0
    %6266 = vmatpush1.xpose.msra.mxu0 0.0
    %6267 = vmatprep.subr.mxu0 0.0
    %6268 = vmatpush1.xpose.msra.mxu0 0.0
    %6269 = vmatprep.subr.mxu0 0.0
    %6270 = vmatpush1.xpose.msra.mxu0 0.0
    %6271 = vmatprep.subr.mxu0 0.0
    %6272 = vmatpush1.xpose.msra.mxu0 0.0
    %6273 = vmatprep.subr.mxu0 0.0
    %6274 = vmatpush1.xpose.msra.mxu0 0.0
    %6275 = vmatprep.subr.mxu0 0.0
    %6276 = vmatpush1.xpose.msra.mxu0 0.0
    %6277 = vmatprep.subr.mxu0 0.0
    %6278 = vmatpush1.xpose.msra.mxu0 0.0
    %6279 = vmatprep.subr.mxu0 0.0
    %6280 = vmatpush1.xpose.msra.mxu0 0.0
    %6281 = vmatprep.subr.mxu0 0.0
    %6282 = vmatpush1.xpose.msra.mxu0 0.0
    %6283 = vmatprep.subr.mxu0 0.0
    %6284 = vmatpush1.xpose.msra.mxu0 0.0
    %6285 = vmatprep.subr.mxu0 0.0
    %6286 = vmatpush1.xpose.msra.mxu0 0.0
    %6287 = vmatprep.subr.mxu0 0.0
    %6288 = vmatpush1.xpose.msra.mxu0 0.0
    %6289 = vmatprep.subr.mxu0 0.0
    %6290 = vmatpush1.xpose.msra.mxu0 0.0
    %6291 = vmatprep.subr.mxu0 0.0
    %6292 = vmatpush1.xpose.msra.mxu0 0.0
    %6293 = vmatprep.subr.mxu0 0.0
    %6294 = vmatpush1.xpose.msra.mxu0 0.0
    %6295 = vmatprep.subr.mxu0 0.0
    %6296 = vmatpush1.xpose.msra.mxu0 0.0
    %6297 = vmatprep.subr.mxu0 0.0
    %6298 = vmatpush1.xpose.msra.mxu0 0.0
    %6299 = vmatprep.subr.mxu0 0.0
    %6300 = vmatpush1.xpose.msra.mxu0 0.0
    %6301 = vmatprep.mubr.f32.mxu0 0.0
    %6302 = vmatmul.mubr.f32.gmra.mrb[0].mxu0 %v6233
    %v6303 = vpop.f32.mrb[0].mxu0
    %v6304 = vadd.f32 0.0, %v6303
    %v6305 = vpop.f32.mrb[0].mxu0
    %6306 = vdwg.mxu0
    %6307 = vrot.lane.b32.xlu0 %v5989, 112
    %v6308 = vpop.permute.xlu0 %6307
    %6309 = vrot.lane.b32.xlu0 %v5989, 80
    %v6310 = vpop.permute.xlu0 %6309
    %v6311 = vsel %vm493, %v6308, 0
    %v6313 = vsel %vm493, %v6310, 0
    %6315 = vmatprep.subr.mxu0 0.0
    %6316 = vmatpush1.xpose.msra.mxu0 %v6313
    %6317 = vmatprep.subr.mxu0 0.0
    %6318 = vmatpush1.xpose.msra.mxu0 0.0
    %6319 = vmatprep.subr.mxu0 0.0
    %6320 = vmatpush1.xpose.msra.mxu0 0.0
    %6321 = vmatprep.subr.mxu0 0.0
    %6322 = vmatpush1.xpose.msra.mxu0 0.0
    %6323 = vmatprep.subr.mxu0 0.0
    %6324 = vmatpush1.xpose.msra.mxu0 0.0
    %6325 = vmatprep.subr.mxu0 0.0
    %6326 = vmatpush1.xpose.msra.mxu0 0.0
    %6327 = vmatprep.subr.mxu0 0.0
    %6328 = vmatpush1.xpose.msra.mxu0 0.0
    %6329 = vmatprep.subr.mxu0 0.0
    %6330 = vmatpush1.xpose.msra.mxu0 0.0
    %6331 = vmatprep.subr.mxu0 0.0
    %6332 = vmatpush1.xpose.msra.mxu0 0.0
    %6333 = vmatprep.subr.mxu0 0.0
    %6334 = vmatpush1.xpose.msra.mxu0 0.0
    %6335 = vmatprep.subr.mxu0 0.0
    %6336 = vmatpush1.xpose.msra.mxu0 0.0
    %6337 = vmatprep.subr.mxu0 0.0
    %6338 = vmatpush1.xpose.msra.mxu0 0.0
    %6339 = vmatprep.subr.mxu0 0.0
    %6340 = vmatpush1.xpose.msra.mxu0 0.0
    %6341 = vmatprep.subr.mxu0 0.0
    %6342 = vmatpush1.xpose.msra.mxu0 0.0
    %6343 = vmatprep.subr.mxu0 0.0
    %6344 = vmatpush1.xpose.msra.mxu0 0.0
    %6345 = vmatprep.subr.mxu0 0.0
    %6346 = vmatpush1.xpose.msra.mxu0 0.0
    %6347 = vmatprep.subr.mxu0 0.0
    %6348 = vmatpush1.xpose.msra.mxu0 0.0
    %6349 = vmatprep.subr.mxu0 0.0
    %6350 = vmatpush1.xpose.msra.mxu0 0.0
    %6351 = vmatprep.subr.mxu0 0.0
    %6352 = vmatpush1.xpose.msra.mxu0 0.0
    %6353 = vmatprep.subr.mxu0 0.0
    %6354 = vmatpush1.xpose.msra.mxu0 0.0
    %6355 = vmatprep.subr.mxu0 0.0
    %6356 = vmatpush1.xpose.msra.mxu0 0.0
    %6357 = vmatprep.subr.mxu0 0.0
    %6358 = vmatpush1.xpose.msra.mxu0 0.0
    %6359 = vmatprep.subr.mxu0 0.0
    %6360 = vmatpush1.xpose.msra.mxu0 0.0
    %6361 = vmatprep.subr.mxu0 0.0
    %6362 = vmatpush1.xpose.msra.mxu0 0.0
    %6363 = vmatprep.subr.mxu0 0.0
    %6364 = vmatpush1.xpose.msra.mxu0 0.0
    %6365 = vmatprep.subr.mxu0 0.0
    %6366 = vmatpush1.xpose.msra.mxu0 0.0
    %6367 = vmatprep.subr.mxu0 0.0
    %6368 = vmatpush1.xpose.msra.mxu0 0.0
    %6369 = vmatprep.subr.mxu0 0.0
    %6370 = vmatpush1.xpose.msra.mxu0 0.0
    %6371 = vmatprep.subr.mxu0 0.0
    %6372 = vmatpush1.xpose.msra.mxu0 0.0
    %6373 = vmatprep.subr.mxu0 0.0
    %6374 = vmatpush1.xpose.msra.mxu0 0.0
    %6375 = vmatprep.subr.mxu0 0.0
    %6376 = vmatpush1.xpose.msra.mxu0 0.0
    %6377 = vmatprep.subr.mxu0 0.0
    %6378 = vmatpush1.xpose.msra.mxu0 0.0
    %6379 = vmatprep.mubr.f32.mxu0 0.0
    %6380 = vmatmul.mubr.f32.gmra.mrb[0].mxu0 %v6311
    %v6381 = vpop.f32.mrb[0].mxu0
    %v6382 = vadd.f32 0.0, %v6381
    %v6383 = vpop.f32.mrb[0].mxu0
    %6384 = vdwg.mxu0
    %6385 = vrot.lane.b32.xlu0 %v5994, 112
    %v6386 = vpop.permute.xlu0 %6385
    %6387 = vrot.lane.b32.xlu0 %v5994, 80
    %v6388 = vpop.permute.xlu0 %6387
    %v6389 = vsel %vm493, %v6386, 0
    %v6391 = vsel %vm493, %v6388, 0
    %6393 = vmatprep.subr.mxu0 0.0
    %6394 = vmatpush1.xpose.msra.mxu0 %v6391
    %6395 = vmatprep.subr.mxu0 0.0
    %6396 = vmatpush1.xpose.msra.mxu0 0.0
    %6397 = vmatprep.subr.mxu0 0.0
    %6398 = vmatpush1.xpose.msra.mxu0 0.0
    %6399 = vmatprep.subr.mxu0 0.0
    %6400 = vmatpush1.xpose.msra.mxu0 0.0
    %6401 = vmatprep.subr.mxu0 0.0
    %6402 = vmatpush1.xpose.msra.mxu0 0.0
    %6403 = vmatprep.subr.mxu0 0.0
    %6404 = vmatpush1.xpose.msra.mxu0 0.0
    %6405 = vmatprep.subr.mxu0 0.0
    %6406 = vmatpush1.xpose.msra.mxu0 0.0
    %6407 = vmatprep.subr.mxu0 0.0
    %6408 = vmatpush1.xpose.msra.mxu0 0.0
    %6409 = vmatprep.subr.mxu0 0.0
    %6410 = vmatpush1.xpose.msra.mxu0 0.0
    %6411 = vmatprep.subr.mxu0 0.0
    %6412 = vmatpush1.xpose.msra.mxu0 0.0
    %6413 = vmatprep.subr.mxu0 0.0
    %6414 = vmatpush1.xpose.msra.mxu0 0.0
    %6415 = vmatprep.subr.mxu0 0.0
    %6416 = vmatpush1.xpose.msra.mxu0 0.0
    %6417 = vmatprep.subr.mxu0 0.0
    %6418 = vmatpush1.xpose.msra.mxu0 0.0
    %6419 = vmatprep.subr.mxu0 0.0
    %6420 = vmatpush1.xpose.msra.mxu0 0.0
    %6421 = vmatprep.subr.mxu0 0.0
    %6422 = vmatpush1.xpose.msra.mxu0 0.0
    %6423 = vmatprep.subr.mxu0 0.0
    %6424 = vmatpush1.xpose.msra.mxu0 0.0
    %6425 = vmatprep.subr.mxu0 0.0
    %6426 = vmatpush1.xpose.msra.mxu0 0.0
    %6427 = vmatprep.subr.mxu0 0.0
    %6428 = vmatpush1.xpose.msra.mxu0 0.0
    %6429 = vmatprep.subr.mxu0 0.0
    %6430 = vmatpush1.xpose.msra.mxu0 0.0
    %6431 = vmatprep.subr.mxu0 0.0
    %6432 = vmatpush1.xpose.msra.mxu0 0.0
    %6433 = vmatprep.subr.mxu0 0.0
    %6434 = vmatpush1.xpose.msra.mxu0 0.0
    %6435 = vmatprep.subr.mxu0 0.0
    %6436 = vmatpush1.xpose.msra.mxu0 0.0
    %6437 = vmatprep.subr.mxu0 0.0
    %6438 = vmatpush1.xpose.msra.mxu0 0.0
    %6439 = vmatprep.subr.mxu0 0.0
    %6440 = vmatpush1.xpose.msra.mxu0 0.0
    %6441 = vmatprep.subr.mxu0 0.0
    %6442 = vmatpush1.xpose.msra.mxu0 0.0
    %6443 = vmatprep.subr.mxu0 0.0
    %6444 = vmatpush1.xpose.msra.mxu0 0.0
    %6445 = vmatprep.subr.mxu0 0.0
    %6446 = vmatpush1.xpose.msra.mxu0 0.0
    %6447 = vmatprep.subr.mxu0 0.0
    %6448 = vmatpush1.xpose.msra.mxu0 0.0
    %6449 = vmatprep.subr.mxu0 0.0
    %6450 = vmatpush1.xpose.msra.mxu0 0.0
    %6451 = vmatprep.subr.mxu0 0.0
    %6452 = vmatpush1.xpose.msra.mxu0 0.0
    %6453 = vmatprep.subr.mxu0 0.0
    %6454 = vmatpush1.xpose.msra.mxu0 0.0
    %6455 = vmatprep.subr.mxu0 0.0
    %6456 = vmatpush1.xpose.msra.mxu0 0.0
    %6457 = vmatprep.mubr.f32.mxu0 0.0
    %6458 = vmatmul.mubr.f32.gmra.mrb[0].mxu0 %v6389
    %v6459 = vpop.f32.mrb[0].mxu0
    %v6460 = vadd.f32 0.0, %v6459
    %v6461 = vpop.f32.mrb[0].mxu0
    %6462 = vdwg.mxu0
    %6463 = vrot.lane.b32.xlu0 %v5989, 104
    %v6464 = vpop.permute.xlu0 %6463
    %6465 = vrot.lane.b32.xlu0 %v5989, 72
    %v6466 = vpop.permute.xlu0 %6465
    %v6467 = vsel %vm493, %v6464, 0
    %v6469 = vsel %vm493, %v6466, 0
    %6471 = vmatprep.subr.mxu0 0.0
    %6472 = vmatpush1.xpose.msra.mxu0 %v6469
    %6473 = vmatprep.subr.mxu0 0.0
    %6474 = vmatpush1.xpose.msra.mxu0 0.0
    %6475 = vmatprep.subr.mxu0 0.0
    %6476 = vmatpush1.xpose.msra.mxu0 0.0
    %6477 = vmatprep.subr.mxu0 0.0
    %6478 = vmatpush1.xpose.msra.mxu0 0.0
    %6479 = vmatprep.subr.mxu0 0.0
    %6480 = vmatpush1.xpose.msra.mxu0 0.0
    %6481 = vmatprep.subr.mxu0 0.0
    %6482 = vmatpush1.xpose.msra.mxu0 0.0
    %6483 = vmatprep.subr.mxu0 0.0
    %6484 = vmatpush1.xpose.msra.mxu0 0.0
    %6485 = vmatprep.subr.mxu0 0.0
    %6486 = vmatpush1.xpose.msra.mxu0 0.0
    %6487 = vmatprep.subr.mxu0 0.0
    %6488 = vmatpush1.xpose.msra.mxu0 0.0
    %6489 = vmatprep.subr.mxu0 0.0
    %6490 = vmatpush1.xpose.msra.mxu0 0.0
    %6491 = vmatprep.subr.mxu0 0.0
    %6492 = vmatpush1.xpose.msra.mxu0 0.0
    %6493 = vmatprep.subr.mxu0 0.0
    %6494 = vmatpush1.xpose.msra.mxu0 0.0
    %6495 = vmatprep.subr.mxu0 0.0
    %6496 = vmatpush1.xpose.msra.mxu0 0.0
    %6497 = vmatprep.subr.mxu0 0.0
    %6498 = vmatpush1.xpose.msra.mxu0 0.0
    %6499 = vmatprep.subr.mxu0 0.0
    %6500 = vmatpush1.xpose.msra.mxu0 0.0
    %6501 = vmatprep.subr.mxu0 0.0
    %6502 = vmatpush1.xpose.msra.mxu0 0.0
    %6503 = vmatprep.subr.mxu0 0.0
    %6504 = vmatpush1.xpose.msra.mxu0 0.0
    %6505 = vmatprep.subr.mxu0 0.0
    %6506 = vmatpush1.xpose.msra.mxu0 0.0
    %6507 = vmatprep.subr.mxu0 0.0
    %6508 = vmatpush1.xpose.msra.mxu0 0.0
    %6509 = vmatprep.subr.mxu0 0.0
    %6510 = vmatpush1.xpose.msra.mxu0 0.0
    %6511 = vmatprep.subr.mxu0 0.0
    %6512 = vmatpush1.xpose.msra.mxu0 0.0
    %6513 = vmatprep.subr.mxu0 0.0
    %6514 = vmatpush1.xpose.msra.mxu0 0.0
    %6515 = vmatprep.subr.mxu0 0.0
    %6516 = vmatpush1.xpose.msra.mxu0 0.0
    %6517 = vmatprep.subr.mxu0 0.0
    %6518 = vmatpush1.xpose.msra.mxu0 0.0
    %6519 = vmatprep.subr.mxu0 0.0
    %6520 = vmatpush1.xpose.msra.mxu0 0.0
    %6521 = vmatprep.subr.mxu0 0.0
    %6522 = vmatpush1.xpose.msra.mxu0 0.0
    %6523 = vmatprep.subr.mxu0 0.0
    %6524 = vmatpush1.xpose.msra.mxu0 0.0
    %6525 = vmatprep.subr.mxu0 0.0
    %6526 = vmatpush1.xpose.msra.mxu0 0.0
    %6527 = vmatprep.subr.mxu0 0.0
    %6528 = vmatpush1.xpose.msra.mxu0 0.0
    %6529 = vmatprep.subr.mxu0 0.0
    %6530 = vmatpush1.xpose.msra.mxu0 0.0
    %6531 = vmatprep.subr.mxu0 0.0
    %6532 = vmatpush1.xpose.msra.mxu0 0.0
    %6533 = vmatprep.subr.mxu0 0.0
    %6534 = vmatpush1.xpose.msra.mxu0 0.0
    %6535 = vmatprep.mubr.f32.mxu0 0.0
    %6536 = vmatmul.mubr.f32.gmra.mrb[0].mxu0 %v6467
    %v6537 = vpop.f32.mrb[0].mxu0
    %v6538 = vadd.f32 0.0, %v6537
    %v6539 = vpop.f32.mrb[0].mxu0
    %6540 = vdwg.mxu0
    %6541 = vrot.lane.b32.xlu0 %v5994, 104
    %v6542 = vpop.permute.xlu0 %6541
    %6543 = vrot.lane.b32.xlu0 %v5994, 72
    %v6544 = vpop.permute.xlu0 %6543
    %v6545 = vsel %vm493, %v6542, 0
    %v6547 = vsel %vm493, %v6544, 0
    %6549 = vmatprep.subr.mxu0 0.0
    %6550 = vmatpush1.xpose.msra.mxu0 %v6547
    %6551 = vmatprep.subr.mxu0 0.0
    %6552 = vmatpush1.xpose.msra.mxu0 0.0
    %6553 = vmatprep.subr.mxu0 0.0
    %6554 = vmatpush1.xpose.msra.mxu0 0.0
    %6555 = vmatprep.subr.mxu0 0.0
    %6556 = vmatpush1.xpose.msra.mxu0 0.0
    %6557 = vmatprep.subr.mxu0 0.0
    %6558 = vmatpush1.xpose.msra.mxu0 0.0
    %6559 = vmatprep.subr.mxu0 0.0
    %6560 = vmatpush1.xpose.msra.mxu0 0.0
    %6561 = vmatprep.subr.mxu0 0.0
    %6562 = vmatpush1.xpose.msra.mxu0 0.0
    %6563 = vmatprep.subr.mxu0 0.0
    %6564 = vmatpush1.xpose.msra.mxu0 0.0
    %6565 = vmatprep.subr.mxu0 0.0
    %6566 = vmatpush1.xpose.msra.mxu0 0.0
    %6567 = vmatprep.subr.mxu0 0.0
    %6568 = vmatpush1.xpose.msra.mxu0 0.0
    %6569 = vmatprep.subr.mxu0 0.0
    %6570 = vmatpush1.xpose.msra.mxu0 0.0
    %6571 = vmatprep.subr.mxu0 0.0
    %6572 = vmatpush1.xpose.msra.mxu0 0.0
    %6573 = vmatprep.subr.mxu0 0.0
    %6574 = vmatpush1.xpose.msra.mxu0 0.0
    %6575 = vmatprep.subr.mxu0 0.0
    %6576 = vmatpush1.xpose.msra.mxu0 0.0
    %6577 = vmatprep.subr.mxu0 0.0
    %6578 = vmatpush1.xpose.msra.mxu0 0.0
    %6579 = vmatprep.subr.mxu0 0.0
    %6580 = vmatpush1.xpose.msra.mxu0 0.0
    %6581 = vmatprep.subr.mxu0 0.0
    %6582 = vmatpush1.xpose.msra.mxu0 0.0
    %6583 = vmatprep.subr.mxu0 0.0
    %6584 = vmatpush1.xpose.msra.mxu0 0.0
    %6585 = vmatprep.subr.mxu0 0.0
    %6586 = vmatpush1.xpose.msra.mxu0 0.0
    %6587 = vmatprep.subr.mxu0 0.0
    %6588 = vmatpush1.xpose.msra.mxu0 0.0
    %6589 = vmatprep.subr.mxu0 0.0
    %6590 = vmatpush1.xpose.msra.mxu0 0.0
    %6591 = vmatprep.subr.mxu0 0.0
    %6592 = vmatpush1.xpose.msra.mxu0 0.0
    %6593 = vmatprep.subr.mxu0 0.0
    %6594 = vmatpush1.xpose.msra.mxu0 0.0
    %6595 = vmatprep.subr.mxu0 0.0
    %6596 = vmatpush1.xpose.msra.mxu0 0.0
    %6597 = vmatprep.subr.mxu0 0.0
    %6598 = vmatpush1.xpose.msra.mxu0 0.0
    %6599 = vmatprep.subr.mxu0 0.0
    %6600 = vmatpush1.xpose.msra.mxu0 0.0
    %6601 = vmatprep.subr.mxu0 0.0
    %6602 = vmatpush1.xpose.msra.mxu0 0.0
    %6603 = vmatprep.subr.mxu0 0.0
    %6604 = vmatpush1.xpose.msra.mxu0 0.0
    %6605 = vmatprep.subr.mxu0 0.0
    %6606 = vmatpush1.xpose.msra.mxu0 0.0
    %6607 = vmatprep.subr.mxu0 0.0
    %6608 = vmatpush1.xpose.msra.mxu0 0.0
    %6609 = vmatprep.subr.mxu0 0.0
    %6610 = vmatpush1.xpose.msra.mxu0 0.0
    %6611 = vmatprep.subr.mxu0 0.0
    %6612 = vmatpush1.xpose.msra.mxu0 0.0
    %6613 = vmatprep.mubr.f32.mxu0 0.0
    %6614 = vmatmul.mubr.f32.gmra.mrb[0].mxu0 %v6545
    %v6615 = vpop.f32.mrb[0].mxu0
    %v6616 = vadd.f32 0.0, %v6615
    %v6617 = vpop.f32.mrb[0].mxu0
    %6618 = vdwg.mxu0
    %v6619 = vadd.f32 %v6071, %v1116
    %v6620 = vadd.f32 %v6148, %v1120
    %v6621 = vadd.f32 %v6226, %v1116
    %v6622 = vadd.f32 %v6304, %v1120
    %v6623 = vadd.f32 %v6382, %v1116
    %v6624 = vadd.f32 %v6460, %v1120
    %v6625 = vadd.f32 %v6538, %v1116
    %v6626 = vadd.f32 %v6616, %v1120
    %v6627 = vsel %vm493, %v6619, -inf
    %6628 = vmax.xlane.f32.xlu0 %v6627
    %v6629 = vpop.xlane.xlu0 %6628
    %v6630 = vsel %vm493, %v6620, -inf
    %6631 = vmax.xlane.f32.xlu0 %v6630
    %v6632 = vpop.xlane.xlu0 %6631
    %v6633 = vsel %vm493, %v6621, -inf
    %6634 = vmax.xlane.f32.xlu0 %v6633
    %v6635 = vpop.xlane.xlu0 %6634
    %v6636 = vsel %vm493, %v6622, -inf
    %6637 = vmax.xlane.f32.xlu0 %v6636
    %v6638 = vpop.xlane.xlu0 %6637
    %v6639 = vsel %vm493, %v6623, -inf
    %6640 = vmax.xlane.f32.xlu0 %v6639
    %v6641 = vpop.xlane.xlu0 %6640
    %v6642 = vsel %vm493, %v6624, -inf
    %6643 = vmax.xlane.f32.xlu0 %v6642
    %v6644 = vpop.xlane.xlu0 %6643
    %v6645 = vsel %vm493, %v6625, -inf
    %6646 = vmax.xlane.f32.xlu0 %v6645
    %v6647 = vpop.xlane.xlu0 %6646
    %v6648 = vsel %vm493, %v6626, -inf
    %6649 = vmax.xlane.f32.xlu0 %v6648
    %v6650 = vpop.xlane.xlu0 %6649
    %v6651 = vsub.f32 %v6619, %v6629
    %v6652 = vsub.f32 %v6620, %v6632
    %v6653 = vsub.f32 %v6621, %v6635
    %v6654 = vsub.f32 %v6622, %v6638
    %v6655 = vsub.f32 %v6623, %v6641
    %v6656 = vsub.f32 %v6624, %v6644
    %v6657 = vsub.f32 %v6625, %v6647
    %v6658 = vsub.f32 %v6626, %v6650
    %v6659 = vmul.f32 %v6651, 1.442695
    %v6660 = vpow.pop %v6659
    %v6661 = vmul.f32 %v6652, 1.442695
    %v6662 = vpow.pop %v6661
    %v6663 = vmul.f32 %v6653, 1.442695
    %v6664 = vpow.pop %v6663
    %v6665 = vmul.f32 %v6654, 1.442695
    %v6666 = vpow.pop %v6665
    %v6667 = vmul.f32 %v6655, 1.442695
    %v6668 = vpow.pop %v6667
    %v6669 = vmul.f32 %v6656, 1.442695
    %v6670 = vpow.pop %v6669
    %v6671 = vmul.f32 %v6657, 1.442695
    %v6672 = vpow.pop %v6671
    %v6673 = vmul.f32 %v6658, 1.442695
    %v6674 = vpow.pop %v6673
    %v6675 = vsel %vm493, %v6660, 0.0
    %6676 = vadd.xlane.f32.xlu0 %v6675
    %v6677 = vpop.xlane.xlu0 %6676
    %v6678 = vsel %vm493, %v6662, 0.0
    %6679 = vadd.xlane.f32.xlu0 %v6678
    %v6680 = vpop.xlane.xlu0 %6679
    %v6681 = vsel %vm493, %v6664, 0.0
    %6682 = vadd.xlane.f32.xlu0 %v6681
    %v6683 = vpop.xlane.xlu0 %6682
    %v6684 = vsel %vm493, %v6666, 0.0
    %6685 = vadd.xlane.f32.xlu0 %v6684
    %v6686 = vpop.xlane.xlu0 %6685
    %v6687 = vsel %vm493, %v6668, 0.0
    %6688 = vadd.xlane.f32.xlu0 %v6687
    %v6689 = vpop.xlane.xlu0 %6688
    %v6690 = vsel %vm493, %v6670, 0.0
    %6691 = vadd.xlane.f32.xlu0 %v6690
    %v6692 = vpop.xlane.xlu0 %6691
    %v6693 = vsel %vm493, %v6672, 0.0
    %6694 = vadd.xlane.f32.xlu0 %v6693
    %v6695 = vpop.xlane.xlu0 %6694
    %v6696 = vsel %vm493, %v6674, 0.0
    %6697 = vadd.xlane.f32.xlu0 %v6696
    %v6698 = vpop.xlane.xlu0 %6697
    %v6699 = vrcp.pop %v6677
    %v6700 = vrcp.pop %v6680
    %v6701 = vrcp.pop %v6683
    %v6702 = vrcp.pop %v6686
    %v6703 = vrcp.pop %v6689
    %v6704 = vrcp.pop %v6692
    %v6705 = vrcp.pop %v6695
    %v6706 = vrcp.pop %v6698
    %v6707 = vmul.f32 %v6660, %v6699
    %v6708 = vmul.f32 %v6662, %v6700
    %v6709 = vmul.f32 %v6664, %v6701
    %v6710 = vmul.f32 %v6666, %v6702
    %v6711 = vmul.f32 %v6668, %v6703
    %v6712 = vmul.f32 %v6670, %v6704
    %v6713 = vmul.f32 %v6672, %v6705
    %v6714 = vmul.f32 %v6674, %v6706
    %6715 = vrot.lane.b32.xlu0 %v5989, 64
    %v6716 = vpop.permute.xlu0 %6715
    %v6719 = vsel %vm493, %v6707, 0
    %6721 = vmatprep.subr.mxu0 0.0
    %6722 = vmatpush1.msra.mxu0 %v6716
    %6723 = vmatprep.subr.mxu0 0.0
    %6724 = vmatpush1.msra.mxu0 0.0
    %6725 = vmatprep.subr.mxu0 0.0
    %6726 = vmatpush1.msra.mxu0 0.0
    %6727 = vmatprep.subr.mxu0 0.0
    %6728 = vmatpush1.msra.mxu0 0.0
    %6729 = vmatprep.subr.mxu0 0.0
    %6730 = vmatpush1.msra.mxu0 0.0
    %6731 = vmatprep.subr.mxu0 0.0
    %6732 = vmatpush1.msra.mxu0 0.0
    %6733 = vmatprep.subr.mxu0 0.0
    %6734 = vmatpush1.msra.mxu0 0.0
    %6735 = vmatprep.subr.mxu0 0.0
    %6736 = vmatpush1.msra.mxu0 0.0
    %6737 = vmatprep.subr.mxu0 0.0
    %6738 = vmatpush1.msra.mxu0 0.0
    %6739 = vmatprep.subr.mxu0 0.0
    %6740 = vmatpush1.msra.mxu0 0.0
    %6741 = vmatprep.subr.mxu0 0.0
    %6742 = vmatpush1.msra.mxu0 0.0
    %6743 = vmatprep.subr.mxu0 0.0
    %6744 = vmatpush1.msra.mxu0 0.0
    %6745 = vmatprep.subr.mxu0 0.0
    %6746 = vmatpush1.msra.mxu0 0.0
    %6747 = vmatprep.subr.mxu0 0.0
    %6748 = vmatpush1.msra.mxu0 0.0
    %6749 = vmatprep.subr.mxu0 0.0
    %6750 = vmatpush1.msra.mxu0 0.0
    %6751 = vmatprep.subr.mxu0 0.0
    %6752 = vmatpush1.msra.mxu0 0.0
    %6753 = vmatprep.subr.mxu0 0.0
    %6754 = vmatpush1.msra.mxu0 0.0
    %6755 = vmatprep.subr.mxu0 0.0
    %6756 = vmatpush1.msra.mxu0 0.0
    %6757 = vmatprep.subr.mxu0 0.0
    %6758 = vmatpush1.msra.mxu0 0.0
    %6759 = vmatprep.subr.mxu0 0.0
    %6760 = vmatpush1.msra.mxu0 0.0
    %6761 = vmatprep.subr.mxu0 0.0
    %6762 = vmatpush1.msra.mxu0 0.0
    %6763 = vmatprep.subr.mxu0 0.0
    %6764 = vmatpush1.msra.mxu0 0.0
    %6765 = vmatprep.subr.mxu0 0.0
    %6766 = vmatpush1.msra.mxu0 0.0
    %6767 = vmatprep.subr.mxu0 0.0
    %6768 = vmatpush1.msra.mxu0 0.0
    %6769 = vmatprep.subr.mxu0 0.0
    %6770 = vmatpush1.msra.mxu0 0.0
    %6771 = vmatprep.subr.mxu0 0.0
    %6772 = vmatpush1.msra.mxu0 0.0
    %6773 = vmatprep.subr.mxu0 0.0
    %6774 = vmatpush1.msra.mxu0 0.0
    %6775 = vmatprep.subr.mxu0 0.0
    %6776 = vmatpush1.msra.mxu0 0.0
    %6777 = vmatprep.subr.mxu0 0.0
    %6778 = vmatpush1.msra.mxu0 0.0
    %6779 = vmatprep.subr.mxu0 0.0
    %6780 = vmatpush1.msra.mxu0 0.0
    %6781 = vmatprep.subr.mxu0 0.0
    %6782 = vmatpush1.msra.mxu0 0.0
    %6783 = vmatprep.subr.mxu0 0.0
    %6784 = vmatpush1.msra.mxu0 0.0
    %6785 = vmatprep.mubr.f32.mxu0 0.0
    %6786 = vmatmul.mubr.f32.gmra.mrb[0].mxu0 %v6719
    %v6787 = vpop.f32.mrb[0].mxu0
    %v6788 = vadd.f32 0.0, %v6787
    %v6789 = vpop.f32.mrb[0].mxu0
    %6790 = vdwg.mxu0
    %6791 = vrot.lane.b32.xlu0 %v5994, 64
    %v6792 = vpop.permute.xlu0 %6791
    %v6795 = vsel %vm493, %v6708, 0
    %6797 = vmatprep.subr.mxu0 0.0
    %6798 = vmatpush1.msra.mxu0 %v6792
    %6799 = vmatprep.subr.mxu0 0.0
    %6800 = vmatpush1.msra.mxu0 0.0
    %6801 = vmatprep.subr.mxu0 0.0
    %6802 = vmatpush1.msra.mxu0 0.0
    %6803 = vmatprep.subr.mxu0 0.0
    %6804 = vmatpush1.msra.mxu0 0.0
    %6805 = vmatprep.subr.mxu0 0.0
    %6806 = vmatpush1.msra.mxu0 0.0
    %6807 = vmatprep.subr.mxu0 0.0
    %6808 = vmatpush1.msra.mxu0 0.0
    %6809 = vmatprep.subr.mxu0 0.0
    %6810 = vmatpush1.msra.mxu0 0.0
    %6811 = vmatprep.subr.mxu0 0.0
    %6812 = vmatpush1.msra.mxu0 0.0
    %6813 = vmatprep.subr.mxu0 0.0
    %6814 = vmatpush1.msra.mxu0 0.0
    %6815 = vmatprep.subr.mxu0 0.0
    %6816 = vmatpush1.msra.mxu0 0.0
    %6817 = vmatprep.subr.mxu0 0.0
    %6818 = vmatpush1.msra.mxu0 0.0
    %6819 = vmatprep.subr.mxu0 0.0
    %6820 = vmatpush1.msra.mxu0 0.0
    %6821 = vmatprep.subr.mxu0 0.0
    %6822 = vmatpush1.msra.mxu0 0.0
    %6823 = vmatprep.subr.mxu0 0.0
    %6824 = vmatpush1.msra.mxu0 0.0
    %6825 = vmatprep.subr.mxu0 0.0
    %6826 = vmatpush1.msra.mxu0 0.0
    %6827 = vmatprep.subr.mxu0 0.0
    %6828 = vmatpush1.msra.mxu0 0.0
    %6829 = vmatprep.subr.mxu0 0.0
    %6830 = vmatpush1.msra.mxu0 0.0
    %6831 = vmatprep.subr.mxu0 0.0
    %6832 = vmatpush1.msra.mxu0 0.0
    %6833 = vmatprep.subr.mxu0 0.0
    %6834 = vmatpush1.msra.mxu0 0.0
    %6835 = vmatprep.subr.mxu0 0.0
    %6836 = vmatpush1.msra.mxu0 0.0
    %6837 = vmatprep.subr.mxu0 0.0
    %6838 = vmatpush1.msra.mxu0 0.0
    %6839 = vmatprep.subr.mxu0 0.0
    %6840 = vmatpush1.msra.mxu0 0.0
    %6841 = vmatprep.subr.mxu0 0.0
    %6842 = vmatpush1.msra.mxu0 0.0
    %6843 = vmatprep.subr.mxu0 0.0
    %6844 = vmatpush1.msra.mxu0 0.0
    %6845 = vmatprep.subr.mxu0 0.0
    %6846 = vmatpush1.msra.mxu0 0.0
    %6847 = vmatprep.subr.mxu0 0.0
    %6848 = vmatpush1.msra.mxu0 0.0
    %6849 = vmatprep.subr.mxu0 0.0
    %6850 = vmatpush1.msra.mxu0 0.0
    %6851 = vmatprep.subr.mxu0 0.0
    %6852 = vmatpush1.msra.mxu0 0.0
    %6853 = vmatprep.subr.mxu0 0.0
    %6854 = vmatpush1.msra.mxu0 0.0
    %6855 = vmatprep.subr.mxu0 0.0
    %6856 = vmatpush1.msra.mxu0 0.0
    %6857 = vmatprep.subr.mxu0 0.0
    %6858 = vmatpush1.msra.mxu0 0.0
    %6859 = vmatprep.subr.mxu0 0.0
    %6860 = vmatpush1.msra.mxu0 0.0
    %6861 = vmatprep.mubr.f32.mxu0 0.0
    %6862 = vmatmul.mubr.f32.gmra.mrb[0].mxu0 %v6795
    %v6863 = vpop.f32.mrb[0].mxu0
    %v6864 = vadd.f32 0.0, %v6863
    %v6865 = vpop.f32.mrb[0].mxu0
    %6866 = vdwg.mxu0
    %6867 = vrot.lane.b32.xlu0 %v5989, 56
    %v6868 = vpop.permute.xlu0 %6867
    %v6871 = vsel %vm493, %v6709, 0
    %6873 = vmatprep.subr.mxu0 0.0
    %6874 = vmatpush1.msra.mxu0 %v6868
    %6875 = vmatprep.subr.mxu0 0.0
    %6876 = vmatpush1.msra.mxu0 0.0
    %6877 = vmatprep.subr.mxu0 0.0
    %6878 = vmatpush1.msra.mxu0 0.0
    %6879 = vmatprep.subr.mxu0 0.0
    %6880 = vmatpush1.msra.mxu0 0.0
    %6881 = vmatprep.subr.mxu0 0.0
    %6882 = vmatpush1.msra.mxu0 0.0
    %6883 = vmatprep.subr.mxu0 0.0
    %6884 = vmatpush1.msra.mxu0 0.0
    %6885 = vmatprep.subr.mxu0 0.0
    %6886 = vmatpush1.msra.mxu0 0.0
    %6887 = vmatprep.subr.mxu0 0.0
    %6888 = vmatpush1.msra.mxu0 0.0
    %6889 = vmatprep.subr.mxu0 0.0
    %6890 = vmatpush1.msra.mxu0 0.0
    %6891 = vmatprep.subr.mxu0 0.0
    %6892 = vmatpush1.msra.mxu0 0.0
    %6893 = vmatprep.subr.mxu0 0.0
    %6894 = vmatpush1.msra.mxu0 0.0
    %6895 = vmatprep.subr.mxu0 0.0
    %6896 = vmatpush1.msra.mxu0 0.0
    %6897 = vmatprep.subr.mxu0 0.0
    %6898 = vmatpush1.msra.mxu0 0.0
    %6899 = vmatprep.subr.mxu0 0.0
    %6900 = vmatpush1.msra.mxu0 0.0
    %6901 = vmatprep.subr.mxu0 0.0
    %6902 = vmatpush1.msra.mxu0 0.0
    %6903 = vmatprep.subr.mxu0 0.0
    %6904 = vmatpush1.msra.mxu0 0.0
    %6905 = vmatprep.subr.mxu0 0.0
    %6906 = vmatpush1.msra.mxu0 0.0
    %6907 = vmatprep.subr.mxu0 0.0
    %6908 = vmatpush1.msra.mxu0 0.0
    %6909 = vmatprep.subr.mxu0 0.0
    %6910 = vmatpush1.msra.mxu0 0.0
    %6911 = vmatprep.subr.mxu0 0.0
    %6912 = vmatpush1.msra.mxu0 0.0
    %6913 = vmatprep.subr.mxu0 0.0
    %6914 = vmatpush1.msra.mxu0 0.0
    %6915 = vmatprep.subr.mxu0 0.0
    %6916 = vmatpush1.msra.mxu0 0.0
    %6917 = vmatprep.subr.mxu0 0.0
    %6918 = vmatpush1.msra.mxu0 0.0
    %6919 = vmatprep.subr.mxu0 0.0
    %6920 = vmatpush1.msra.mxu0 0.0
    %6921 = vmatprep.subr.mxu0 0.0
    %6922 = vmatpush1.msra.mxu0 0.0
    %6923 = vmatprep.subr.mxu0 0.0
    %6924 = vmatpush1.msra.mxu0 0.0
    %6925 = vmatprep.subr.mxu0 0.0
    %6926 = vmatpush1.msra.mxu0 0.0
    %6927 = vmatprep.subr.mxu0 0.0
    %6928 = vmatpush1.msra.mxu0 0.0
    %6929 = vmatprep.subr.mxu0 0.0
    %6930 = vmatpush1.msra.mxu0 0.0
    %6931 = vmatprep.subr.mxu0 0.0
    %6932 = vmatpush1.msra.mxu0 0.0
    %6933 = vmatprep.subr.mxu0 0.0
    %6934 = vmatpush1.msra.mxu0 0.0
    %6935 = vmatprep.subr.mxu0 0.0
    %6936 = vmatpush1.msra.mxu0 0.0
    %6937 = vmatprep.mubr.f32.mxu0 0.0
    %6938 = vmatmul.mubr.f32.gmra.mrb[0].mxu0 %v6871
    %v6939 = vpop.f32.mrb[0].mxu0
    %v6940 = vadd.f32 0.0, %v6939
    %v6941 = vpop.f32.mrb[0].mxu0
    %6942 = vdwg.mxu0
    %6943 = vrot.lane.b32.xlu0 %v5994, 56
    %v6944 = vpop.permute.xlu0 %6943
    %v6947 = vsel %vm493, %v6710, 0
    %6949 = vmatprep.subr.mxu0 0.0
    %6950 = vmatpush1.msra.mxu0 %v6944
    %6951 = vmatprep.subr.mxu0 0.0
    %6952 = vmatpush1.msra.mxu0 0.0
    %6953 = vmatprep.subr.mxu0 0.0
    %6954 = vmatpush1.msra.mxu0 0.0
    %6955 = vmatprep.subr.mxu0 0.0
    %6956 = vmatpush1.msra.mxu0 0.0
    %6957 = vmatprep.subr.mxu0 0.0
    %6958 = vmatpush1.msra.mxu0 0.0
    %6959 = vmatprep.subr.mxu0 0.0
    %6960 = vmatpush1.msra.mxu0 0.0
    %6961 = vmatprep.subr.mxu0 0.0
    %6962 = vmatpush1.msra.mxu0 0.0
    %6963 = vmatprep.subr.mxu0 0.0
    %6964 = vmatpush1.msra.mxu0 0.0
    %6965 = vmatprep.subr.mxu0 0.0
    %6966 = vmatpush1.msra.mxu0 0.0
    %6967 = vmatprep.subr.mxu0 0.0
    %6968 = vmatpush1.msra.mxu0 0.0
    %6969 = vmatprep.subr.mxu0 0.0
    %6970 = vmatpush1.msra.mxu0 0.0
    %6971 = vmatprep.subr.mxu0 0.0
    %6972 = vmatpush1.msra.mxu0 0.0
    %6973 = vmatprep.subr.mxu0 0.0
    %6974 = vmatpush1.msra.mxu0 0.0
    %6975 = vmatprep.subr.mxu0 0.0
    %6976 = vmatpush1.msra.mxu0 0.0
    %6977 = vmatprep.subr.mxu0 0.0
    %6978 = vmatpush1.msra.mxu0 0.0
    %6979 = vmatprep.subr.mxu0 0.0
    %6980 = vmatpush1.msra.mxu0 0.0
    %6981 = vmatprep.subr.mxu0 0.0
    %6982 = vmatpush1.msra.mxu0 0.0
    %6983 = vmatprep.subr.mxu0 0.0
    %6984 = vmatpush1.msra.mxu0 0.0
    %6985 = vmatprep.subr.mxu0 0.0
    %6986 = vmatpush1.msra.mxu0 0.0
    %6987 = vmatprep.subr.mxu0 0.0
    %6988 = vmatpush1.msra.mxu0 0.0
    %6989 = vmatprep.subr.mxu0 0.0
    %6990 = vmatpush1.msra.mxu0 0.0
    %6991 = vmatprep.subr.mxu0 0.0
    %6992 = vmatpush1.msra.mxu0 0.0
    %6993 = vmatprep.subr.mxu0 0.0
    %6994 = vmatpush1.msra.mxu0 0.0
    %6995 = vmatprep.subr.mxu0 0.0
    %6996 = vmatpush1.msra.mxu0 0.0
    %6997 = vmatprep.subr.mxu0 0.0
    %6998 = vmatpush1.msra.mxu0 0.0
    %6999 = vmatprep.subr.mxu0 0.0
    %7000 = vmatpush1.msra.mxu0 0.0
    %7001 = vmatprep.subr.mxu0 0.0
    %7002 = vmatpush1.msra.mxu0 0.0
    %7003 = vmatprep.subr.mxu0 0.0
    %7004 = vmatpush1.msra.mxu0 0.0
    %7005 = vmatprep.subr.mxu0 0.0
    %7006 = vmatpush1.msra.mxu0 0.0
    %7007 = vmatprep.subr.mxu0 0.0
    %7008 = vmatpush1.msra.mxu0 0.0
    %7009 = vmatprep.subr.mxu0 0.0
    %7010 = vmatpush1.msra.mxu0 0.0
    %7011 = vmatprep.subr.mxu0 0.0
    %7012 = vmatpush1.msra.mxu0 0.0
    %7013 = vmatprep.mubr.f32.mxu0 0.0
    %7014 = vmatmul.mubr.f32.gmra.mrb[0].mxu0 %v6947
    %v7015 = vpop.f32.mrb[0].mxu0
    %v7016 = vadd.f32 0.0, %v7015
    %v7017 = vpop.f32.mrb[0].mxu0
    %7018 = vdwg.mxu0
    %7019 = vrot.lane.b32.xlu0 %v5989, 48
    %v7020 = vpop.permute.xlu0 %7019
    %v7023 = vsel %vm493, %v6711, 0
    %7025 = vmatprep.subr.mxu0 0.0
    %7026 = vmatpush1.msra.mxu0 %v7020
    %7027 = vmatprep.subr.mxu0 0.0
    %7028 = vmatpush1.msra.mxu0 0.0
    %7029 = vmatprep.subr.mxu0 0.0
    %7030 = vmatpush1.msra.mxu0 0.0
    %7031 = vmatprep.subr.mxu0 0.0
    %7032 = vmatpush1.msra.mxu0 0.0
    %7033 = vmatprep.subr.mxu0 0.0
    %7034 = vmatpush1.msra.mxu0 0.0
    %7035 = vmatprep.subr.mxu0 0.0
    %7036 = vmatpush1.msra.mxu0 0.0
    %7037 = vmatprep.subr.mxu0 0.0
    %7038 = vmatpush1.msra.mxu0 0.0
    %7039 = vmatprep.subr.mxu0 0.0
    %7040 = vmatpush1.msra.mxu0 0.0
    %7041 = vmatprep.subr.mxu0 0.0
    %7042 = vmatpush1.msra.mxu0 0.0
    %7043 = vmatprep.subr.mxu0 0.0
    %7044 = vmatpush1.msra.mxu0 0.0
    %7045 = vmatprep.subr.mxu0 0.0
    %7046 = vmatpush1.msra.mxu0 0.0
    %7047 = vmatprep.subr.mxu0 0.0
    %7048 = vmatpush1.msra.mxu0 0.0
    %7049 = vmatprep.subr.mxu0 0.0
    %7050 = vmatpush1.msra.mxu0 0.0
    %7051 = vmatprep.subr.mxu0 0.0
    %7052 = vmatpush1.msra.mxu0 0.0
    %7053 = vmatprep.subr.mxu0 0.0
    %7054 = vmatpush1.msra.mxu0 0.0
    %7055 = vmatprep.subr.mxu0 0.0
    %7056 = vmatpush1.msra.mxu0 0.0
    %7057 = vmatprep.subr.mxu0 0.0
    %7058 = vmatpush1.msra.mxu0 0.0
    %7059 = vmatprep.subr.mxu0 0.0
    %7060 = vmatpush1.msra.mxu0 0.0
    %7061 = vmatprep.subr.mxu0 0.0
    %7062 = vmatpush1.msra.mxu0 0.0
    %7063 = vmatprep.subr.mxu0 0.0
    %7064 = vmatpush1.msra.mxu0 0.0
    %7065 = vmatprep.subr.mxu0 0.0
    %7066 = vmatpush1.msra.mxu0 0.0
    %7067 = vmatprep.subr.mxu0 0.0
    %7068 = vmatpush1.msra.mxu0 0.0
    %7069 = vmatprep.subr.mxu0 0.0
    %7070 = vmatpush1.msra.mxu0 0.0
    %7071 = vmatprep.subr.mxu0 0.0
    %7072 = vmatpush1.msra.mxu0 0.0
    %7073 = vmatprep.subr.mxu0 0.0
    %7074 = vmatpush1.msra.mxu0 0.0
    %7075 = vmatprep.subr.mxu0 0.0
    %7076 = vmatpush1.msra.mxu0 0.0
    %7077 = vmatprep.subr.mxu0 0.0
    %7078 = vmatpush1.msra.mxu0 0.0
    %7079 = vmatprep.subr.mxu0 0.0
    %7080 = vmatpush1.msra.mxu0 0.0
    %7081 = vmatprep.subr.mxu0 0.0
    %7082 = vmatpush1.msra.mxu0 0.0
    %7083 = vmatprep.subr.mxu0 0.0
    %7084 = vmatpush1.msra.mxu0 0.0
    %7085 = vmatprep.subr.mxu0 0.0
    %7086 = vmatpush1.msra.mxu0 0.0
    %7087 = vmatprep.subr.mxu0 0.0
    %7088 = vmatpush1.msra.mxu0 0.0
    %7089 = vmatprep.mubr.f32.mxu0 0.0
    %7090 = vmatmul.mubr.f32.gmra.mrb[0].mxu0 %v7023
    %v7091 = vpop.f32.mrb[0].mxu0
    %v7092 = vadd.f32 0.0, %v7091
    %v7093 = vpop.f32.mrb[0].mxu0
    %7094 = vdwg.mxu0
    %7095 = vrot.lane.b32.xlu0 %v5994, 48
    %v7096 = vpop.permute.xlu0 %7095
    %v7099 = vsel %vm493, %v6712, 0
    %7101 = vmatprep.subr.mxu0 0.0
    %7102 = vmatpush1.msra.mxu0 %v7096
    %7103 = vmatprep.subr.mxu0 0.0
    %7104 = vmatpush1.msra.mxu0 0.0
    %7105 = vmatprep.subr.mxu0 0.0
    %7106 = vmatpush1.msra.mxu0 0.0
    %7107 = vmatprep.subr.mxu0 0.0
    %7108 = vmatpush1.msra.mxu0 0.0
    %7109 = vmatprep.subr.mxu0 0.0
    %7110 = vmatpush1.msra.mxu0 0.0
    %7111 = vmatprep.subr.mxu0 0.0
    %7112 = vmatpush1.msra.mxu0 0.0
    %7113 = vmatprep.subr.mxu0 0.0
    %7114 = vmatpush1.msra.mxu0 0.0
    %7115 = vmatprep.subr.mxu0 0.0
    %7116 = vmatpush1.msra.mxu0 0.0
    %7117 = vmatprep.subr.mxu0 0.0
    %7118 = vmatpush1.msra.mxu0 0.0
    %7119 = vmatprep.subr.mxu0 0.0
    %7120 = vmatpush1.msra.mxu0 0.0
    %7121 = vmatprep.subr.mxu0 0.0
    %7122 = vmatpush1.msra.mxu0 0.0
    %7123 = vmatprep.subr.mxu0 0.0
    %7124 = vmatpush1.msra.mxu0 0.0
    %7125 = vmatprep.subr.mxu0 0.0
    %7126 = vmatpush1.msra.mxu0 0.0
    %7127 = vmatprep.subr.mxu0 0.0
    %7128 = vmatpush1.msra.mxu0 0.0
    %7129 = vmatprep.subr.mxu0 0.0
    %7130 = vmatpush1.msra.mxu0 0.0
    %7131 = vmatprep.subr.mxu0 0.0
    %7132 = vmatpush1.msra.mxu0 0.0
    %7133 = vmatprep.subr.mxu0 0.0
    %7134 = vmatpush1.msra.mxu0 0.0
    %7135 = vmatprep.subr.mxu0 0.0
    %7136 = vmatpush1.msra.mxu0 0.0
    %7137 = vmatprep.subr.mxu0 0.0
    %7138 = vmatpush1.msra.mxu0 0.0
    %7139 = vmatprep.subr.mxu0 0.0
    %7140 = vmatpush1.msra.mxu0 0.0
    %7141 = vmatprep.subr.mxu0 0.0
    %7142 = vmatpush1.msra.mxu0 0.0
    %7143 = vmatprep.subr.mxu0 0.0
    %7144 = vmatpush1.msra.mxu0 0.0
    %7145 = vmatprep.subr.mxu0 0.0
    %7146 = vmatpush1.msra.mxu0 0.0
    %7147 = vmatprep.subr.mxu0 0.0
    %7148 = vmatpush1.msra.mxu0 0.0
    %7149 = vmatprep.subr.mxu0 0.0
    %7150 = vmatpush1.msra.mxu0 0.0
    %7151 = vmatprep.subr.mxu0 0.0
    %7152 = vmatpush1.msra.mxu0 0.0
    %7153 = vmatprep.subr.mxu0 0.0
    %7154 = vmatpush1.msra.mxu0 0.0
    %7155 = vmatprep.subr.mxu0 0.0
    %7156 = vmatpush1.msra.mxu0 0.0
    %7157 = vmatprep.subr.mxu0 0.0
    %7158 = vmatpush1.msra.mxu0 0.0
    %7159 = vmatprep.subr.mxu0 0.0
    %7160 = vmatpush1.msra.mxu0 0.0
    %7161 = vmatprep.subr.mxu0 0.0
    %7162 = vmatpush1.msra.mxu0 0.0
    %7163 = vmatprep.subr.mxu0 0.0
    %7164 = vmatpush1.msra.mxu0 0.0
    %7165 = vmatprep.mubr.f32.mxu0 0.0
    %7166 = vmatmul.mubr.f32.gmra.mrb[0].mxu0 %v7099
    %v7167 = vpop.f32.mrb[0].mxu0
    %v7168 = vadd.f32 0.0, %v7167
    %v7169 = vpop.f32.mrb[0].mxu0
    %7170 = vdwg.mxu0
    %7171 = vrot.lane.b32.xlu0 %v5989, 40
    %v7172 = vpop.permute.xlu0 %7171
    %v7175 = vsel %vm493, %v6713, 0
    %7177 = vmatprep.subr.mxu0 0.0
    %7178 = vmatpush1.msra.mxu0 %v7172
    %7179 = vmatprep.subr.mxu0 0.0
    %7180 = vmatpush1.msra.mxu0 0.0
    %7181 = vmatprep.subr.mxu0 0.0
    %7182 = vmatpush1.msra.mxu0 0.0
    %7183 = vmatprep.subr.mxu0 0.0
    %7184 = vmatpush1.msra.mxu0 0.0
    %7185 = vmatprep.subr.mxu0 0.0
    %7186 = vmatpush1.msra.mxu0 0.0
    %7187 = vmatprep.subr.mxu0 0.0
    %7188 = vmatpush1.msra.mxu0 0.0
    %7189 = vmatprep.subr.mxu0 0.0
    %7190 = vmatpush1.msra.mxu0 0.0
    %7191 = vmatprep.subr.mxu0 0.0
    %7192 = vmatpush1.msra.mxu0 0.0
    %7193 = vmatprep.subr.mxu0 0.0
    %7194 = vmatpush1.msra.mxu0 0.0
    %7195 = vmatprep.subr.mxu0 0.0
    %7196 = vmatpush1.msra.mxu0 0.0
    %7197 = vmatprep.subr.mxu0 0.0
    %7198 = vmatpush1.msra.mxu0 0.0
    %7199 = vmatprep.subr.mxu0 0.0
    %7200 = vmatpush1.msra.mxu0 0.0
    %7201 = vmatprep.subr.mxu0 0.0
    %7202 = vmatpush1.msra.mxu0 0.0
    %7203 = vmatprep.subr.mxu0 0.0
    %7204 = vmatpush1.msra.mxu0 0.0
    %7205 = vmatprep.subr.mxu0 0.0
    %7206 = vmatpush1.msra.mxu0 0.0
    %7207 = vmatprep.subr.mxu0 0.0
    %7208 = vmatpush1.msra.mxu0 0.0
    %7209 = vmatprep.subr.mxu0 0.0
    %7210 = vmatpush1.msra.mxu0 0.0
    %7211 = vmatprep.subr.mxu0 0.0
    %7212 = vmatpush1.msra.mxu0 0.0
    %7213 = vmatprep.subr.mxu0 0.0
    %7214 = vmatpush1.msra.mxu0 0.0
    %7215 = vmatprep.subr.mxu0 0.0
    %7216 = vmatpush1.msra.mxu0 0.0
    %7217 = vmatprep.subr.mxu0 0.0
    %7218 = vmatpush1.msra.mxu0 0.0
    %7219 = vmatprep.subr.mxu0 0.0
    %7220 = vmatpush1.msra.mxu0 0.0
    %7221 = vmatprep.subr.mxu0 0.0
    %7222 = vmatpush1.msra.mxu0 0.0
    %7223 = vmatprep.subr.mxu0 0.0
    %7224 = vmatpush1.msra.mxu0 0.0
    %7225 = vmatprep.subr.mxu0 0.0
    %7226 = vmatpush1.msra.mxu0 0.0
    %7227 = vmatprep.subr.mxu0 0.0
    %7228 = vmatpush1.msra.mxu0 0.0
    %7229 = vmatprep.subr.mxu0 0.0
    %7230 = vmatpush1.msra.mxu0 0.0
    %7231 = vmatprep.subr.mxu0 0.0
    %7232 = vmatpush1.msra.mxu0 0.0
    %7233 = vmatprep.subr.mxu0 0.0
    %7234 = vmatpush1.msra.mxu0 0.0
    %7235 = vmatprep.subr.mxu0 0.0
    %7236 = vmatpush1.msra.mxu0 0.0
    %7237 = vmatprep.subr.mxu0 0.0
    %7238 = vmatpush1.msra.mxu0 0.0
    %7239 = vmatprep.subr.mxu0 0.0
    %7240 = vmatpush1.msra.mxu0 0.0
    %7241 = vmatprep.mubr.f32.mxu0 0.0
    %7242 = vmatmul.mubr.f32.gmra.mrb[0].mxu0 %v7175
    %v7243 = vpop.f32.mrb[0].mxu0
    %v7244 = vadd.f32 0.0, %v7243
    %v7245 = vpop.f32.mrb[0].mxu0
    %7246 = vdwg.mxu0
    %7247 = vrot.lane.b32.xlu0 %v5994, 40
    %v7248 = vpop.permute.xlu0 %7247
    %v7251 = vsel %vm493, %v6714, 0
    %7253 = vmatprep.subr.mxu0 0.0
    %7254 = vmatpush1.msra.mxu0 %v7248
    %7255 = vmatprep.subr.mxu0 0.0
    %7256 = vmatpush1.msra.mxu0 0.0
    %7257 = vmatprep.subr.mxu0 0.0
    %7258 = vmatpush1.msra.mxu0 0.0
    %7259 = vmatprep.subr.mxu0 0.0
    %7260 = vmatpush1.msra.mxu0 0.0
    %7261 = vmatprep.subr.mxu0 0.0
    %7262 = vmatpush1.msra.mxu0 0.0
    %7263 = vmatprep.subr.mxu0 0.0
    %7264 = vmatpush1.msra.mxu0 0.0
    %7265 = vmatprep.subr.mxu0 0.0
    %7266 = vmatpush1.msra.mxu0 0.0
    %7267 = vmatprep.subr.mxu0 0.0
    %7268 = vmatpush1.msra.mxu0 0.0
    %7269 = vmatprep.subr.mxu0 0.0
    %7270 = vmatpush1.msra.mxu0 0.0
    %7271 = vmatprep.subr.mxu0 0.0
    %7272 = vmatpush1.msra.mxu0 0.0
    %7273 = vmatprep.subr.mxu0 0.0
    %7274 = vmatpush1.msra.mxu0 0.0
    %7275 = vmatprep.subr.mxu0 0.0
    %7276 = vmatpush1.msra.mxu0 0.0
    %7277 = vmatprep.subr.mxu0 0.0
    %7278 = vmatpush1.msra.mxu0 0.0
    %7279 = vmatprep.subr.mxu0 0.0
    %7280 = vmatpush1.msra.mxu0 0.0
    %7281 = vmatprep.subr.mxu0 0.0
    %7282 = vmatpush1.msra.mxu0 0.0
    %7283 = vmatprep.subr.mxu0 0.0
    %7284 = vmatpush1.msra.mxu0 0.0
    %7285 = vmatprep.subr.mxu0 0.0
    %7286 = vmatpush1.msra.mxu0 0.0
    %7287 = vmatprep.subr.mxu0 0.0
    %7288 = vmatpush1.msra.mxu0 0.0
    %7289 = vmatprep.subr.mxu0 0.0
    %7290 = vmatpush1.msra.mxu0 0.0
    %7291 = vmatprep.subr.mxu0 0.0
    %7292 = vmatpush1.msra.mxu0 0.0
    %7293 = vmatprep.subr.mxu0 0.0
    %7294 = vmatpush1.msra.mxu0 0.0
    %7295 = vmatprep.subr.mxu0 0.0
    %7296 = vmatpush1.msra.mxu0 0.0
    %7297 = vmatprep.subr.mxu0 0.0
    %7298 = vmatpush1.msra.mxu0 0.0
    %7299 = vmatprep.subr.mxu0 0.0
    %7300 = vmatpush1.msra.mxu0 0.0
    %7301 = vmatprep.subr.mxu0 0.0
    %7302 = vmatpush1.msra.mxu0 0.0
    %7303 = vmatprep.subr.mxu0 0.0
    %7304 = vmatpush1.msra.mxu0 0.0
    %7305 = vmatprep.subr.mxu0 0.0
    %7306 = vmatpush1.msra.mxu0 0.0
    %7307 = vmatprep.subr.mxu0 0.0
    %7308 = vmatpush1.msra.mxu0 0.0
    %7309 = vmatprep.subr.mxu0 0.0
    %7310 = vmatpush1.msra.mxu0 0.0
    %7311 = vmatprep.subr.mxu0 0.0
    %7312 = vmatpush1.msra.mxu0 0.0
    %7313 = vmatprep.subr.mxu0 0.0
    %7314 = vmatpush1.msra.mxu0 0.0
    %7315 = vmatprep.subr.mxu0 0.0
    %7316 = vmatpush1.msra.mxu0 0.0
    %7317 = vmatprep.mubr.f32.mxu0 0.0
    %7318 = vmatmul.mubr.f32.gmra.mrb[0].mxu0 %v7251
    %v7319 = vpop.f32.mrb[0].mxu0
    %v7320 = vadd.f32 0.0, %v7319
    %v7321 = vpop.f32.mrb[0].mxu0
    %7322 = vdwg.mxu0
    %7325 = vrot.lane.b32.xlu0 %v6940, 8
    %v7326 = vpop.permute.xlu0 %7325
    %7327 = vrot.lane.b32.xlu0 %v7016, 8
    %v7328 = vpop.permute.xlu0 %7327
    %7333 = vrot.lane.b32.xlu0 %v7092, 16
    %v7334 = vpop.permute.xlu0 %7333
    %7335 = vrot.lane.b32.xlu0 %v7168, 16
    %v7336 = vpop.permute.xlu0 %7335
    %7341 = vrot.lane.b32.xlu0 %v7244, 24
    %v7342 = vpop.permute.xlu0 %7341
    %7343 = vrot.lane.b32.xlu0 %v7320, 24
    %v7344 = vpop.permute.xlu0 %7343
    %v7347 = vsel %vm493, %v6788, %v7326
    %v7348 = vsel %vm493, %v6864, %v7328
    %v7349 = vsel %vm1853, %v7347, %v7334
    %v7350 = vsel %vm1853, %v7348, %v7336
    %v7351 = vsel %vm1856, %v7349, %v7342
    %v7352 = vsel %vm1856, %v7350, %v7344
    %s7353 = scalar_lea.vmem %s13, 96
    %v7354 = vld [vmem:[%s7353] sm:$0xff]
    %v7355 = vld [vmem:[%s7353 + $0x8] sm:$0xff]
    %v7356 = vld [vmem:[%s7353 + $0x10] sm:$0xff]
    %v7357 = vld [vmem:[%s7353 + $0x18] sm:$0xff]
    %s7358 = scalar_lea.vmem [#allocation11], 3
    %v7359 = vld [vmem:[%s7358] sm:$0x1]
    %v7361 = vlaneseq
    %v7362 = vshrl.u32 %v7361, 7
    %v7363 = vsub.s32 0, %v7362
    %v7364 = vrot.slane %v7359, %v7363
    %v7367 = vsel %vm359, %v7351, 0
    %v7370 = vsel %vm359, %v7352, 0
    %7372 = vmatprep.subr.mxu0 0.0
    %7373 = vmatpush1.msra.mxu0 %v7354
    %7374 = vmatprep.subr.mxu0 0.0
    %7375 = vmatpush1.msra.mxu0 %v7355
    %7376 = vmatprep.subr.mxu0 0.0
    %7377 = vmatpush1.msra.mxu0 %v7356
    %7378 = vmatprep.subr.mxu0 0.0
    %7379 = vmatpush1.msra.mxu0 %v7357
    %7380 = vmatprep.subr.mxu0 0.0
    %7381 = vmatpush1.msra.mxu0 0.0
    %7382 = vmatprep.subr.mxu0 0.0
    %7383 = vmatpush1.msra.mxu0 0.0
    %7384 = vmatprep.subr.mxu0 0.0
    %7385 = vmatpush1.msra.mxu0 0.0
    %7386 = vmatprep.subr.mxu0 0.0
    %7387 = vmatpush1.msra.mxu0 0.0
    %7388 = vmatprep.subr.mxu0 0.0
    %7389 = vmatpush1.msra.mxu0 0.0
    %7390 = vmatprep.subr.mxu0 0.0
    %7391 = vmatpush1.msra.mxu0 0.0
    %7392 = vmatprep.subr.mxu0 0.0
    %7393 = vmatpush1.msra.mxu0 0.0
    %7394 = vmatprep.subr.mxu0 0.0
    %7395 = vmatpush1.msra.mxu0 0.0
    %7396 = vmatprep.subr.mxu0 0.0
    %7397 = vmatpush1.msra.mxu0 0.0
    %7398 = vmatprep.subr.mxu0 0.0
    %7399 = vmatpush1.msra.mxu0 0.0
    %7400 = vmatprep.subr.mxu0 0.0
    %7401 = vmatpush1.msra.mxu0 0.0
    %7402 = vmatprep.subr.mxu0 0.0
    %7403 = vmatpush1.msra.mxu0 0.0
    %7404 = vmatprep.subr.mxu0 0.0
    %7405 = vmatpush1.msra.mxu0 0.0
    %7406 = vmatprep.subr.mxu0 0.0
    %7407 = vmatpush1.msra.mxu0 0.0
    %7408 = vmatprep.subr.mxu0 0.0
    %7409 = vmatpush1.msra.mxu0 0.0
    %7410 = vmatprep.subr.mxu0 0.0
    %7411 = vmatpush1.msra.mxu0 0.0
    %7412 = vmatprep.subr.mxu0 0.0
    %7413 = vmatpush1.msra.mxu0 0.0
    %7414 = vmatprep.subr.mxu0 0.0
    %7415 = vmatpush1.msra.mxu0 0.0
    %7416 = vmatprep.subr.mxu0 0.0
    %7417 = vmatpush1.msra.mxu0 0.0
    %7418 = vmatprep.subr.mxu0 0.0
    %7419 = vmatpush1.msra.mxu0 0.0
    %7420 = vmatprep.subr.mxu0 0.0
    %7421 = vmatpush1.msra.mxu0 0.0
    %7422 = vmatprep.subr.mxu0 0.0
    %7423 = vmatpush1.msra.mxu0 0.0
    %7424 = vmatprep.subr.mxu0 0.0
    %7425 = vmatpush1.msra.mxu0 0.0
    %7426 = vmatprep.subr.mxu0 0.0
    %7427 = vmatpush1.msra.mxu0 0.0
    %7428 = vmatprep.subr.mxu0 0.0
    %7429 = vmatpush1.msra.mxu0 0.0
    %7430 = vmatprep.subr.mxu0 0.0
    %7431 = vmatpush1.msra.mxu0 0.0
    %7432 = vmatprep.subr.mxu0 0.0
    %7433 = vmatpush1.msra.mxu0 0.0
    %7434 = vmatprep.subr.mxu0 0.0
    %7435 = vmatpush1.msra.mxu0 0.0
    %7436 = vmatprep.mubr.f32.mxu0 0.0
    %7437 = vmatmul.mubr.f32.gmra.mrb[0].mxu0 %v7367
    %v7438 = vpop.f32.mrb[0].mxu0
    %v7439 = vadd.f32 %v7364, %v7438
    %v7440 = vpop.f32.mrb[0].mxu0
    %7441 = vmatprep.mubr.f32.mxu0 0.0
    %7442 = vmatmul.mubr.f32.gmra.mrb[0].mxu0 %v7370
    %v7443 = vpop.f32.mrb[0].mxu0
    %v7444 = vadd.f32 %v7364, %v7443
    %v7445 = vpop.f32.mrb[0].mxu0
    %7446 = vdwg.mxu0
    %v7447 = vadd.f32 %v5901, %v7439
    %v7448 = vadd.f32 %v5902, %v7444
    %s7449 = scalar_lea.vmem [#allocation16], 3
    %v7450 = vld [vmem:[%s7449] sm:$0x1]
    %s7451 = scalar_lea.vmem [#allocation17], 3
    %v7452 = vld [vmem:[%s7451] sm:$0x1]
    %v7453 = vsel %vm359, %v7447, 0.0
    %7454 = vadd.xlane.f32.xlu0 %v7453
    %v7455 = vpop.xlane.xlu0 %7454
    %v7456 = vsel %vm359, %v7448, 0.0
    %7457 = vadd.xlane.f32.xlu0 %v7456
    %v7458 = vpop.xlane.xlu0 %7457
    %v7459 = vmul.f32 %v7455, %v1961
    %v7460 = vmul.f32 %v7458, %v1961
    %v7461 = vsub.f32 %v7447, %v7459
    %v7462 = vsub.f32 %v7448, %v7460
    %v7463 = vmul.f32 %v7461, %v7461
    %v7464 = vmul.f32 %v7462, %v7462
    %v7465 = vsel %vm359, %v7463, 0.0
    %7466 = vadd.xlane.f32.xlu0 %v7465
    %v7467 = vpop.xlane.xlu0 %7466
    %v7468 = vsel %vm359, %v7464, 0.0
    %7469 = vadd.xlane.f32.xlu0 %v7468
    %v7470 = vpop.xlane.xlu0 %7469
    %v7471 = vmul.f32 %v7467, %v1961
    %v7472 = vmul.f32 %v7470, %v1961
    %v7473 = vadd.f32 %v7471, 1e-05
    %v7474 = vadd.f32 %v7472, 1e-05
    %v7475 = vrsqrt.pop %v7473
    %v7476 = vrsqrt.pop %v7474
    %v7477 = vmul.f32 %v7461, %v7475
    %v7478 = vmul.f32 %v7462, %v7476
    %v7480 = vlaneseq
    %v7481 = vshrl.u32 %v7480, 7
    %v7482 = vsub.s32 0, %v7481
    %v7483 = vrot.slane %v7450, %v7482
    %v7485 = vmul.f32 %v7477, %v7483
    %v7486 = vmul.f32 %v7478, %v7483
    %v7488 = vlaneseq
    %v7489 = vshrl.u32 %v7488, 7
    %v7490 = vsub.s32 0, %v7489
    %v7491 = vrot.slane %v7452, %v7490
    %v7493 = vadd.f32 %v7485, %v7491
    %v7494 = vadd.f32 %v7486, %v7491
    %s7495 = scalar_lea.vmem %s17, 96
    %v7496 = vld [vmem:[%s7495] sm:$0xff]
    %v7497 = vld [vmem:[%s7495 + $0x8] sm:$0xff]
    %v7498 = vld [vmem:[%s7495 + $0x10] sm:$0xff]
    %v7499 = vld [vmem:[%s7495 + $0x18] sm:$0xff]
    %s7500 = scalar_lea.vmem [#allocation13], 3
    %v7501 = vld [vmem:[%s7500] sm:$0x1]
    %v7503 = vlaneseq
    %v7504 = vshrl.u32 %v7503, 7
    %v7505 = vsub.s32 0, %v7504
    %v7506 = vrot.slane %v7501, %v7505
    %v7509 = vsel %vm359, %v7493, 0
    %v7512 = vsel %vm359, %v7494, 0
    %7514 = vmatprep.subr.mxu0 0.0
    %7515 = vmatpush1.msra.mxu0 %v7496
    %7516 = vmatprep.subr.mxu0 0.0
    %7517 = vmatpush1.msra.mxu0 %v7497
    %7518 = vmatprep.subr.mxu0 0.0
    %7519 = vmatpush1.msra.mxu0 %v7498
    %7520 = vmatprep.subr.mxu0 0.0
    %7521 = vmatpush1.msra.mxu0 %v7499
    %7522 = vmatprep.subr.mxu0 0.0
    %7523 = vmatpush1.msra.mxu0 0.0
    %7524 = vmatprep.subr.mxu0 0.0
    %7525 = vmatpush1.msra.mxu0 0.0
    %7526 = vmatprep.subr.mxu0 0.0
    %7527 = vmatpush1.msra.mxu0 0.0
    %7528 = vmatprep.subr.mxu0 0.0
    %7529 = vmatpush1.msra.mxu0 0.0
    %7530 = vmatprep.subr.mxu0 0.0
    %7531 = vmatpush1.msra.mxu0 0.0
    %7532 = vmatprep.subr.mxu0 0.0
    %7533 = vmatpush1.msra.mxu0 0.0
    %7534 = vmatprep.subr.mxu0 0.0
    %7535 = vmatpush1.msra.mxu0 0.0
    %7536 = vmatprep.subr.mxu0 0.0
    %7537 = vmatpush1.msra.mxu0 0.0
    %7538 = vmatprep.subr.mxu0 0.0
    %7539 = vmatpush1.msra.mxu0 0.0
    %7540 = vmatprep.subr.mxu0 0.0
    %7541 = vmatpush1.msra.mxu0 0.0
    %7542 = vmatprep.subr.mxu0 0.0
    %7543 = vmatpush1.msra.mxu0 0.0
    %7544 = vmatprep.subr.mxu0 0.0
    %7545 = vmatpush1.msra.mxu0 0.0
    %7546 = vmatprep.subr.mxu0 0.0
    %7547 = vmatpush1.msra.mxu0 0.0
    %7548 = vmatprep.subr.mxu0 0.0
    %7549 = vmatpush1.msra.mxu0 0.0
    %7550 = vmatprep.subr.mxu0 0.0
    %7551 = vmatpush1.msra.mxu0 0.0
    %7552 = vmatprep.subr.mxu0 0.0
    %7553 = vmatpush1.msra.mxu0 0.0
    %7554 = vmatprep.subr.mxu0 0.0
    %7555 = vmatpush1.msra.mxu0 0.0
    %7556 = vmatprep.subr.mxu0 0.0
    %7557 = vmatpush1.msra.mxu0 0.0
    %7558 = vmatprep.subr.mxu0 0.0
    %7559 = vmatpush1.msra.mxu0 0.0
    %7560 = vmatprep.subr.mxu0 0.0
    %7561 = vmatpush1.msra.mxu0 0.0
    %7562 = vmatprep.subr.mxu0 0.0
    %7563 = vmatpush1.msra.mxu0 0.0
    %7564 = vmatprep.subr.mxu0 0.0
    %7565 = vmatpush1.msra.mxu0 0.0
    %7566 = vmatprep.subr.mxu0 0.0
    %7567 = vmatpush1.msra.mxu0 0.0
    %7568 = vmatprep.subr.mxu0 0.0
    %7569 = vmatpush1.msra.mxu0 0.0
    %7570 = vmatprep.subr.mxu0 0.0
    %7571 = vmatpush1.msra.mxu0 0.0
    %7572 = vmatprep.subr.mxu0 0.0
    %7573 = vmatpush1.msra.mxu0 0.0
    %7574 = vmatprep.subr.mxu0 0.0
    %7575 = vmatpush1.msra.mxu0 0.0
    %7576 = vmatprep.subr.mxu0 0.0
    %7577 = vmatpush1.msra.mxu0 0.0
    %7578 = vmatprep.mubr.f32.mxu0 0.0
    %7579 = vmatmul.mubr.f32.gmra.mrb[0].mxu0 %v7509
    %v7580 = vpop.f32.mrb[0].mxu0
    %v7581 = vadd.f32 %v7506, %v7580
    %v7582 = vpop.f32.mrb[0].mxu0
    %7583 = vmatprep.mubr.f32.mxu0 0.0
    %7584 = vmatmul.mubr.f32.gmra.mrb[0].mxu0 %v7512
    %v7585 = vpop.f32.mrb[0].mxu0
    %v7586 = vadd.f32 %v7506, %v7585
    %v7587 = vpop.f32.mrb[0].mxu0
    %7588 = vdwg.mxu0
    %v7589 = vmax.f32 %v7581, 0.0
    %v7590 = vmax.f32 %v7586, 0.0
    %s7591 = scalar_lea.vmem %s21, 192
    %v7592 = vld [vmem:[%s7591] sm:$0xff]
    %v7593 = vld [vmem:[%s7591 + $0x8] sm:$0xff]
    %v7594 = vld [vmem:[%s7591 + $0x10] sm:$0xff]
    %v7595 = vld [vmem:[%s7591 + $0x18] sm:$0xff]
    %v7596 = vld [vmem:[%s7591 + $0x20] sm:$0xff]
    %v7597 = vld [vmem:[%s7591 + $0x28] sm:$0xff]
    %v7598 = vld [vmem:[%s7591 + $0x30] sm:$0xff]
    %v7599 = vld [vmem:[%s7591 + $0x38] sm:$0xff]
    %s7600 = scalar_lea.vmem [#allocation14], 3
    %v7601 = vld [vmem:[%s7600] sm:$0x1]
    %v7603 = vlaneseq
    %v7604 = vshrl.u32 %v7603, 7
    %v7605 = vsub.s32 0, %v7604
    %v7606 = vrot.slane %v7601, %v7605
    %v7609 = vsel %vm2107, %v7589, 0
    %v7612 = vsel %vm2107, %v7590, 0
    %7614 = vmatprep.subr.mxu0 0.0
    %7615 = vmatpush1.msra.mxu0 %v7592
    %7616 = vmatprep.subr.mxu0 0.0
    %7617 = vmatpush1.msra.mxu0 %v7593
    %7618 = vmatprep.subr.mxu0 0.0
    %7619 = vmatpush1.msra.mxu0 %v7594
    %7620 = vmatprep.subr.mxu0 0.0
    %7621 = vmatpush1.msra.mxu0 %v7595
    %7622 = vmatprep.subr.mxu0 0.0
    %7623 = vmatpush1.msra.mxu0 %v7596
    %7624 = vmatprep.subr.mxu0 0.0
    %7625 = vmatpush1.msra.mxu0 %v7597
    %7626 = vmatprep.subr.mxu0 0.0
    %7627 = vmatpush1.msra.mxu0 %v7598
    %7628 = vmatprep.subr.mxu0 0.0
    %7629 = vmatpush1.msra.mxu0 %v7599
    %7630 = vmatprep.subr.mxu0 0.0
    %7631 = vmatpush1.msra.mxu0 0.0
    %7632 = vmatprep.subr.mxu0 0.0
    %7633 = vmatpush1.msra.mxu0 0.0
    %7634 = vmatprep.subr.mxu0 0.0
    %7635 = vmatpush1.msra.mxu0 0.0
    %7636 = vmatprep.subr.mxu0 0.0
    %7637 = vmatpush1.msra.mxu0 0.0
    %7638 = vmatprep.subr.mxu0 0.0
    %7639 = vmatpush1.msra.mxu0 0.0
    %7640 = vmatprep.subr.mxu0 0.0
    %7641 = vmatpush1.msra.mxu0 0.0
    %7642 = vmatprep.subr.mxu0 0.0
    %7643 = vmatpush1.msra.mxu0 0.0
    %7644 = vmatprep.subr.mxu0 0.0
    %7645 = vmatpush1.msra.mxu0 0.0
    %7646 = vmatprep.subr.mxu0 0.0
    %7647 = vmatpush1.msra.mxu0 0.0
    %7648 = vmatprep.subr.mxu0 0.0
    %7649 = vmatpush1.msra.mxu0 0.0
    %7650 = vmatprep.subr.mxu0 0.0
    %7651 = vmatpush1.msra.mxu0 0.0
    %7652 = vmatprep.subr.mxu0 0.0
    %7653 = vmatpush1.msra.mxu0 0.0
    %7654 = vmatprep.subr.mxu0 0.0
    %7655 = vmatpush1.msra.mxu0 0.0
    %7656 = vmatprep.subr.mxu0 0.0
    %7657 = vmatpush1.msra.mxu0 0.0
    %7658 = vmatprep.subr.mxu0 0.0
    %7659 = vmatpush1.msra.mxu0 0.0
    %7660 = vmatprep.subr.mxu0 0.0
    %7661 = vmatpush1.msra.mxu0 0.0
    %7662 = vmatprep.subr.mxu0 0.0
    %7663 = vmatpush1.msra.mxu0 0.0
    %7664 = vmatprep.subr.mxu0 0.0
    %7665 = vmatpush1.msra.mxu0 0.0
    %7666 = vmatprep.subr.mxu0 0.0
    %7667 = vmatpush1.msra.mxu0 0.0
    %7668 = vmatprep.subr.mxu0 0.0
    %7669 = vmatpush1.msra.mxu0 0.0
    %7670 = vmatprep.subr.mxu0 0.0
    %7671 = vmatpush1.msra.mxu0 0.0
    %7672 = vmatprep.subr.mxu0 0.0
    %7673 = vmatpush1.msra.mxu0 0.0
    %7674 = vmatprep.subr.mxu0 0.0
    %7675 = vmatpush1.msra.mxu0 0.0
    %7676 = vmatprep.subr.mxu0 0.0
    %7677 = vmatpush1.msra.mxu0 0.0
    %7678 = vmatprep.mubr.f32.mxu0 0.0
    %7679 = vmatmul.mubr.f32.gmra.mrb[0].mxu0 %v7609
    %v7680 = vpop.f32.mrb[0].mxu0
    %v7681 = vadd.f32 %v7606, %v7680
    %v7682 = vpop.f32.mrb[0].mxu0
    %7683 = vmatprep.mubr.f32.mxu0 0.0
    %7684 = vmatmul.mubr.f32.gmra.mrb[0].mxu0 %v7612
    %v7685 = vpop.f32.mrb[0].mxu0
    %v7686 = vadd.f32 %v7606, %v7685
    %v7687 = vpop.f32.mrb[0].mxu0
    %7688 = vdwg.mxu0
    %v7689 = vadd.f32 %v7493, %v7681
    %v7690 = vadd.f32 %v7494, %v7686
    %s7691 = scalar_lea.vmem [#allocation19], 3
    %v7692 = vld [vmem:[%s7691] sm:$0x1]
    %s7693 = scalar_lea.vmem [#allocation20], 3
    %v7694 = vld [vmem:[%s7693] sm:$0x1]
    %v7695 = vsel %vm359, %v7689, 0.0
    %7696 = vadd.xlane.f32.xlu0 %v7695
    %v7697 = vpop.xlane.xlu0 %7696
    %v7698 = vsel %vm359, %v7690, 0.0
    %7699 = vadd.xlane.f32.xlu0 %v7698
    %v7700 = vpop.xlane.xlu0 %7699
    %v7701 = vmul.f32 %v7697, %v1961
    %v7702 = vmul.f32 %v7700, %v1961
    %v7703 = vsub.f32 %v7689, %v7701
    %v7704 = vsub.f32 %v7690, %v7702
    %v7705 = vmul.f32 %v7703, %v7703
    %v7706 = vmul.f32 %v7704, %v7704
    %v7707 = vsel %vm359, %v7705, 0.0
    %7708 = vadd.xlane.f32.xlu0 %v7707
    %v7709 = vpop.xlane.xlu0 %7708
    %v7710 = vsel %vm359, %v7706, 0.0
    %7711 = vadd.xlane.f32.xlu0 %v7710
    %v7712 = vpop.xlane.xlu0 %7711
    %v7713 = vmul.f32 %v7709, %v1961
    %v7714 = vmul.f32 %v7712, %v1961
    %v7715 = vadd.f32 %v7713, 1e-05
    %v7716 = vadd.f32 %v7714, 1e-05
    %v7717 = vrsqrt.pop %v7715
    %v7718 = vrsqrt.pop %v7716
    %v7719 = vmul.f32 %v7703, %v7717
    %v7720 = vmul.f32 %v7704, %v7718
    %v7722 = vlaneseq
    %v7723 = vshrl.u32 %v7722, 7
    %v7724 = vsub.s32 0, %v7723
    %v7725 = vrot.slane %v7692, %v7724
    %v7727 = vmul.f32 %v7719, %v7725
    %v7728 = vmul.f32 %v7720, %v7725
    %v7730 = vlaneseq
    %v7731 = vshrl.u32 %v7730, 7
    %v7732 = vsub.s32 0, %v7731
    %v7733 = vrot.slane %v7694, %v7732
    %v7735 = vadd.f32 %v7727, %v7733
    %v7736 = vadd.f32 %v7728, %v7733
    %v7737 = vld [vmem:[#allocation8] sm:$0xff]
    %v7738 = vld [vmem:[#allocation8 + $0x8] sm:$0xff]
    %v7739 = vld [vmem:[#allocation8 + $0x10] sm:$0xff]
    %v7740 = vld [vmem:[%s33] sm:$0xff]
    %v7741 = vld [vmem:[%s33 + $0x8] sm:$0xff]
    %v7742 = vld [vmem:[%s33 + $0x10] sm:$0xff]
    %v7743 = vld [vmem:[%s33 + $0x18] sm:$0xff]
    %v7744 = vld [vmem:[%s33 + $0x20] sm:$0xff]
    %v7745 = vld [vmem:[%s33 + $0x28] sm:$0xff]
    %v7746 = vld [vmem:[%s33 + $0x30] sm:$0xff]
    %v7747 = vld [vmem:[%s33 + $0x38] sm:$0xff]
    %v7748 = vld [vmem:[%s33 + $0x40] sm:$0xff]
    %v7749 = vld [vmem:[%s33 + $0x48] sm:$0xff]
    %v7750 = vld [vmem:[%s33 + $0x50] sm:$0xff]
    %v7751 = vld [vmem:[%s33 + $0x58] sm:$0xff]
    %v7752 = vld [vmem:[%s33 + $0x60] sm:$0xff]
    %v7753 = vld [vmem:[%s33 + $0x68] sm:$0xff]
    %v7754 = vld [vmem:[%s33 + $0x70] sm:$0xff]
    %v7755 = vld [vmem:[%s33 + $0x78] sm:$0xff]
    %v7756 = vld [vmem:[%s33 + $0x80] sm:$0xff]
    %v7757 = vld [vmem:[%s33 + $0x88] sm:$0xff]
    %v7758 = vld [vmem:[%s33 + $0x90] sm:$0xff]
    %v7759 = vld [vmem:[%s33 + $0x98] sm:$0xff]
    %v7760 = vld [vmem:[%s33 + $0xa0] sm:$0xff]
    %v7761 = vld [vmem:[%s33 + $0xa8] sm:$0xff]
    %v7762 = vld [vmem:[%s33 + $0xb0] sm:$0xff]
    %v7763 = vld [vmem:[%s33 + $0xb8] sm:$0xff]
    %v7764 = vld [vmem:[%s33 + $0xc0] sm:$0xff]
    %v7765 = vld [vmem:[%s33 + $0xc8] sm:$0xff]
    %v7766 = vld [vmem:[%s33 + $0xd0] sm:$0xff]
    %v7767 = vld [vmem:[%s33 + $0xd8] sm:$0xff]
    %v7768 = vld [vmem:[%s33 + $0xe0] sm:$0xff]
    %v7769 = vld [vmem:[%s33 + $0xe8] sm:$0xff]
    %v7770 = vld [vmem:[%s33 + $0xf0] sm:$0xff]
    %v7771 = vld [vmem:[%s33 + $0xf8] sm:$0xff]
    %v7772 = vld [vmem:[%s33 + $0x100] sm:$0xff]
    %v7773 = vld [vmem:[%s33 + $0x108] sm:$0xff]
    %v7774 = vld [vmem:[%s33 + $0x110] sm:$0xff]
    %v7775 = vld [vmem:[%s33 + $0x118] sm:$0xff]
    %v7776 = vld [vmem:[%s33 + $0x120] sm:$0xff]
    %v7777 = vld [vmem:[%s33 + $0x128] sm:$0xff]
    %v7778 = vld [vmem:[%s33 + $0x130] sm:$0xff]
    %v7779 = vld [vmem:[%s33 + $0x138] sm:$0xff]
    %v7780 = vld [vmem:[%s33 + $0x140] sm:$0xff]
    %v7781 = vld [vmem:[%s33 + $0x148] sm:$0xff]
    %v7782 = vld [vmem:[%s33 + $0x150] sm:$0xff]
    %v7783 = vld [vmem:[%s33 + $0x158] sm:$0xff]
    %v7784 = vld [vmem:[%s33 + $0x160] sm:$0xff]
    %v7785 = vld [vmem:[%s33 + $0x168] sm:$0xff]
    %v7786 = vld [vmem:[%s33 + $0x170] sm:$0xff]
    %v7787 = vld [vmem:[%s33 + $0x178] sm:$0xff]
    %v7788 = vld [vmem:[%s35] sm:$0x1]
    %v7790 = vlaneseq
    %v7791 = vshrl.u32 %v7790, 7
    %v7792 = vsub.s32 0, %v7791
    %v7793 = vrot.slane %v7788, %v7792
    %v7798 = vcombine.high %v7737, %v7737
    %v7800 = vunpack.c.l.s4 1966171168
    %v7801 = vunpack.c.0.s8 %v7800
    %v7802 = vlaneseq
    %v7803 = vshrl.u32 %v7802, 7
    %v7804 = vsub.s32 %v7801, %v7803
    %v7805 = vrot.slane %v7737, %v7804
    %v7807 = vunpack.c.l.s4 1966171168
    %v7808 = vunpack.c.0.s8 %v7807
    %v7809 = vlaneseq
    %v7810 = vshrl.u32 %v7809, 7
    %v7811 = vsub.s32 %v7808, %v7810
    %v7812 = vrot.slane %v7798, %v7811
    %v7813 = vcombine.high %v7805, %v7805
    %v7814 = vcombine.high %v7812, %v7812
    %v7816 = vunpack.c.l.s4 1966171168
    %v7817 = vunpack.c.0.s8 %v7816
    %v7818 = vlaneseq
    %v7819 = vshrl.u32 %v7818, 7
    %v7820 = vsub.s32 %v7817, %v7819
    %v7821 = vrot.slane %v7805, %v7820
    %v7823 = vunpack.c.l.s4 1966171168
    %v7824 = vunpack.c.0.s8 %v7823
    %v7825 = vlaneseq
    %v7826 = vshrl.u32 %v7825, 7
    %v7827 = vsub.s32 %v7824, %v7826
    %v7828 = vrot.slane %v7812, %v7827
    %v7830 = vunpack.c.l.s4 1966171168
    %v7831 = vunpack.c.0.s8 %v7830
    %v7832 = vlaneseq
    %v7833 = vshrl.u32 %v7832, 7
    %v7834 = vsub.s32 %v7831, %v7833
    %v7835 = vrot.slane %v7813, %v7834
    %v7837 = vunpack.c.l.s4 1966171168
    %v7838 = vunpack.c.0.s8 %v7837
    %v7839 = vlaneseq
    %v7840 = vshrl.u32 %v7839, 7
    %v7841 = vsub.s32 %v7838, %v7840
    %v7842 = vrot.slane %v7814, %v7841
    %v7843 = vcombine.high %v7821, %v7821
    %v7844 = vcombine.high %v7828, %v7828
    %v7845 = vcombine.high %v7835, %v7835
    %v7846 = vcombine.high %v7842, %v7842
    %v7847 = vcombine.high %v7738, %v7738
    %v7849 = vunpack.c.l.s4 1966171168
    %v7850 = vunpack.c.0.s8 %v7849
    %v7851 = vlaneseq
    %v7852 = vshrl.u32 %v7851, 7
    %v7853 = vsub.s32 %v7850, %v7852
    %v7854 = vrot.slane %v7738, %v7853
    %v7856 = vunpack.c.l.s4 1966171168
    %v7857 = vunpack.c.0.s8 %v7856
    %v7858 = vlaneseq
    %v7859 = vshrl.u32 %v7858, 7
    %v7860 = vsub.s32 %v7857, %v7859
    %v7861 = vrot.slane %v7847, %v7860
    %v7862 = vcombine.high %v7854, %v7854
    %v7863 = vcombine.high %v7861, %v7861
    %v7865 = vunpack.c.l.s4 1966171168
    %v7866 = vunpack.c.0.s8 %v7865
    %v7867 = vlaneseq
    %v7868 = vshrl.u32 %v7867, 7
    %v7869 = vsub.s32 %v7866, %v7868
    %v7870 = vrot.slane %v7854, %v7869
    %v7872 = vunpack.c.l.s4 1966171168
    %v7873 = vunpack.c.0.s8 %v7872
    %v7874 = vlaneseq
    %v7875 = vshrl.u32 %v7874, 7
    %v7876 = vsub.s32 %v7873, %v7875
    %v7877 = vrot.slane %v7861, %v7876
    %v7879 = vunpack.c.l.s4 1966171168
    %v7880 = vunpack.c.0.s8 %v7879
    %v7881 = vlaneseq
    %v7882 = vshrl.u32 %v7881, 7
    %v7883 = vsub.s32 %v7880, %v7882
    %v7884 = vrot.slane %v7862, %v7883
    %v7886 = vunpack.c.l.s4 1966171168
    %v7887 = vunpack.c.0.s8 %v7886
    %v7888 = vlaneseq
    %v7889 = vshrl.u32 %v7888, 7
    %v7890 = vsub.s32 %v7887, %v7889
    %v7891 = vrot.slane %v7863, %v7890
    %v7892 = vcombine.high %v7870, %v7870
    %v7893 = vcombine.high %v7877, %v7877
    %v7894 = vcombine.high %v7884, %v7884
    %v7895 = vcombine.high %v7891, %v7891
    %v7896 = vcombine.high %v7739, %v7739
    %v7898 = vunpack.c.l.s4 1966171168
    %v7899 = vunpack.c.0.s8 %v7898
    %v7900 = vlaneseq
    %v7901 = vshrl.u32 %v7900, 7
    %v7902 = vsub.s32 %v7899, %v7901
    %v7903 = vrot.slane %v7739, %v7902
    %v7905 = vunpack.c.l.s4 1966171168
    %v7906 = vunpack.c.0.s8 %v7905
    %v7907 = vlaneseq
    %v7908 = vshrl.u32 %v7907, 7
    %v7909 = vsub.s32 %v7906, %v7908
    %v7910 = vrot.slane %v7896, %v7909
    %v7911 = vcombine.high %v7903, %v7903
    %v7912 = vcombine.high %v7910, %v7910
    %v7914 = vunpack.c.l.s4 1966171168
    %v7915 = vunpack.c.0.s8 %v7914
    %v7916 = vlaneseq
    %v7917 = vshrl.u32 %v7916, 7
    %v7918 = vsub.s32 %v7915, %v7917
    %v7919 = vrot.slane %v7903, %v7918
    %v7921 = vunpack.c.l.s4 1966171168
    %v7922 = vunpack.c.0.s8 %v7921
    %v7923 = vlaneseq
    %v7924 = vshrl.u32 %v7923, 7
    %v7925 = vsub.s32 %v7922, %v7924
    %v7926 = vrot.slane %v7910, %v7925
    %v7928 = vunpack.c.l.s4 1966171168
    %v7929 = vunpack.c.0.s8 %v7928
    %v7930 = vlaneseq
    %v7931 = vshrl.u32 %v7930, 7
    %v7932 = vsub.s32 %v7929, %v7931
    %v7933 = vrot.slane %v7911, %v7932
    %v7935 = vunpack.c.l.s4 1966171168
    %v7936 = vunpack.c.0.s8 %v7935
    %v7937 = vlaneseq
    %v7938 = vshrl.u32 %v7937, 7
    %v7939 = vsub.s32 %v7936, %v7938
    %v7940 = vrot.slane %v7912, %v7939
    %v7941 = vcombine.high %v7919, %v7919
    %v7942 = vcombine.high %v7926, %v7926
    %v7943 = vcombine.high %v7933, %v7933
    %v7944 = vcombine.high %v7940, %v7940
    %v8017 = vunpack.c.l.b16 %v7740
    %v8018 = vunpack.c.h.b16 %v7740
    %v8019 = vunpack.c.l.b16 %v7741
    %v8020 = vunpack.c.h.b16 %v7741
    %v8021 = vunpack.c.l.b16 %v7742
    %v8022 = vunpack.c.h.b16 %v7742
    %v8023 = vunpack.c.l.b16 %v7743
    %v8024 = vunpack.c.h.b16 %v7743
    %v8025 = vunpack.c.l.b16 %v7744
    %v8026 = vunpack.c.h.b16 %v7744
    %v8027 = vunpack.c.l.b16 %v7745
    %v8028 = vunpack.c.h.b16 %v7745
    %v8029 = vunpack.c.l.b16 %v7746
    %v8030 = vunpack.c.h.b16 %v7746
    %v8031 = vunpack.c.l.b16 %v7747
    %v8032 = vunpack.c.h.b16 %v7747
    %v8033 = vunpack.c.l.b16 %v7748
    %v8034 = vunpack.c.h.b16 %v7748
    %v8035 = vunpack.c.l.b16 %v7749
    %v8036 = vunpack.c.h.b16 %v7749
    %v8037 = vunpack.c.l.b16 %v7750
    %v8038 = vunpack.c.h.b16 %v7750
    %v8039 = vunpack.c.l.b16 %v7751
    %v8040 = vunpack.c.h.b16 %v7751
    %v8041 = vunpack.c.l.b16 %v7752
    %v8042 = vunpack.c.h.b16 %v7752
    %v8043 = vunpack.c.l.b16 %v7753
    %v8044 = vunpack.c.h.b16 %v7753
    %v8045 = vunpack.c.l.b16 %v7754
    %v8046 = vunpack.c.h.b16 %v7754
    %v8047 = vunpack.c.l.b16 %v7755
    %v8048 = vunpack.c.h.b16 %v7755
    %v8049 = vunpack.c.l.b16 %v7756
    %v8050 = vunpack.c.h.b16 %v7756
    %v8051 = vunpack.c.l.b16 %v7757
    %v8052 = vunpack.c.h.b16 %v7757
    %v8053 = vunpack.c.l.b16 %v7758
    %v8054 = vunpack.c.h.b16 %v7758
    %v8055 = vunpack.c.l.b16 %v7759
    %v8056 = vunpack.c.h.b16 %v7759
    %v8057 = vunpack.c.l.b16 %v7760
    %v8058 = vunpack.c.h.b16 %v7760
    %v8059 = vunpack.c.l.b16 %v7761
    %v8060 = vunpack.c.h.b16 %v7761
    %v8061 = vunpack.c.l.b16 %v7762
    %v8062 = vunpack.c.h.b16 %v7762
    %v8063 = vunpack.c.l.b16 %v7763
    %v8064 = vunpack.c.h.b16 %v7763
    %v8065 = vunpack.c.l.b16 %v7764
    %v8066 = vunpack.c.h.b16 %v7764
    %v8067 = vunpack.c.l.b16 %v7765
    %v8068 = vunpack.c.h.b16 %v7765
    %v8069 = vunpack.c.l.b16 %v7766
    %v8070 = vunpack.c.h.b16 %v7766
    %v8071 = vunpack.c.l.b16 %v7767
    %v8072 = vunpack.c.h.b16 %v7767
    %v8073 = vunpack.c.l.b16 %v7768
    %v8074 = vunpack.c.h.b16 %v7768
    %v8075 = vunpack.c.l.b16 %v7769
    %v8076 = vunpack.c.h.b16 %v7769
    %v8077 = vunpack.c.l.b16 %v7770
    %v8078 = vunpack.c.h.b16 %v7770
    %v8079 = vunpack.c.l.b16 %v7771
    %v8080 = vunpack.c.h.b16 %v7771
    %v8081 = vunpack.c.l.b16 %v7772
    %v8082 = vunpack.c.h.b16 %v7772
    %v8083 = vunpack.c.l.b16 %v7773
    %v8084 = vunpack.c.h.b16 %v7773
    %v8085 = vunpack.c.l.b16 %v7774
    %v8086 = vunpack.c.h.b16 %v7774
    %v8087 = vunpack.c.l.b16 %v7775
    %v8088 = vunpack.c.h.b16 %v7775
    %v8089 = vunpack.c.l.b16 %v7776
    %v8090 = vunpack.c.h.b16 %v7776
    %v8091 = vunpack.c.l.b16 %v7777
    %v8092 = vunpack.c.h.b16 %v7777
    %v8093 = vunpack.c.l.b16 %v7778
    %v8094 = vunpack.c.h.b16 %v7778
    %v8095 = vunpack.c.l.b16 %v7779
    %v8096 = vunpack.c.h.b16 %v7779
    %v8097 = vunpack.c.l.b16 %v7780
    %v8098 = vunpack.c.h.b16 %v7780
    %v8099 = vunpack.c.l.b16 %v7781
    %v8100 = vunpack.c.h.b16 %v7781
    %v8101 = vunpack.c.l.b16 %v7782
    %v8102 = vunpack.c.h.b16 %v7782
    %v8103 = vunpack.c.l.b16 %v7783
    %v8104 = vunpack.c.h.b16 %v7783
    %v8105 = vunpack.c.l.b16 %v7784
    %v8106 = vunpack.c.h.b16 %v7784
    %v8107 = vunpack.c.l.b16 %v7785
    %v8108 = vunpack.c.h.b16 %v7785
    %v8109 = vunpack.c.l.b16 %v7786
    %v8110 = vunpack.c.h.b16 %v7786
    %v8111 = vunpack.c.l.b16 %v7787
    %v8112 = vunpack.c.h.b16 %v7787
    %v8113 = vpack.c.b16 %v8041, %v8017
    %v8114 = vpack.c.b16 %v8042, %v8018
    %v8115 = vpack.c.b16 %v8043, %v8019
    %v8116 = vpack.c.b16 %v8044, %v8020
    %v8117 = vpack.c.b16 %v8045, %v8021
    %v8118 = vpack.c.b16 %v8046, %v8022
    %v8119 = vpack.c.b16 %v8047, %v8023
    %v8120 = vpack.c.b16 %v8048, %v8024
    %v8121 = vpack.c.b16 %v8049, %v8025
    %v8122 = vpack.c.b16 %v8050, %v8026
    %v8123 = vpack.c.b16 %v8051, %v8027
    %v8124 = vpack.c.b16 %v8052, %v8028
    %v8125 = vpack.c.b16 %v8053, %v8029
    %v8126 = vpack.c.b16 %v8054, %v8030
    %v8127 = vpack.c.b16 %v8055, %v8031
    %v8128 = vpack.c.b16 %v8056, %v8032
    %v8129 = vpack.c.b16 %v8057, %v8033
    %v8130 = vpack.c.b16 %v8058, %v8034
    %v8131 = vpack.c.b16 %v8059, %v8035
    %v8132 = vpack.c.b16 %v8060, %v8036
    %v8133 = vpack.c.b16 %v8061, %v8037
    %v8134 = vpack.c.b16 %v8062, %v8038
    %v8135 = vpack.c.b16 %v8063, %v8039
    %v8136 = vpack.c.b16 %v8064, %v8040
    %v8137 = vpack.c.b16 %v8089, %v8065
    %v8138 = vpack.c.b16 %v8090, %v8066
    %v8139 = vpack.c.b16 %v8091, %v8067
    %v8140 = vpack.c.b16 %v8092, %v8068
    %v8141 = vpack.c.b16 %v8093, %v8069
    %v8142 = vpack.c.b16 %v8094, %v8070
    %v8143 = vpack.c.b16 %v8095, %v8071
    %v8144 = vpack.c.b16 %v8096, %v8072
    %v8145 = vpack.c.b16 %v8097, %v8073
    %v8146 = vpack.c.b16 %v8098, %v8074
    %v8147 = vpack.c.b16 %v8099, %v8075
    %v8148 = vpack.c.b16 %v8100, %v8076
    %v8149 = vpack.c.b16 %v8101, %v8077
    %v8150 = vpack.c.b16 %v8102, %v8078
    %v8151 = vpack.c.b16 %v8103, %v8079
    %v8152 = vpack.c.b16 %v8104, %v8080
    %v8153 = vpack.c.b16 %v8105, %v8081
    %v8154 = vpack.c.b16 %v8106, %v8082
    %v8155 = vpack.c.b16 %v8107, %v8083
    %v8156 = vpack.c.b16 %v8108, %v8084
    %v8157 = vpack.c.b16 %v8109, %v8085
    %v8158 = vpack.c.b16 %v8110, %v8086
    %v8159 = vpack.c.b16 %v8111, %v8087
    %v8160 = vpack.c.b16 %v8112, %v8088
    %8209 = vmatprep.subr.bf16.mxu0 %v8114
    %8210 = vmatpush1.bf16.xpose.msra.mxu0 %v8113
    %8211 = vmatprep.subr.bf16.mxu0 %v8138
    %8212 = vmatpush1.bf16.xpose.msra.mxu0 %v8137
    %8213 = vmatprep.subr.bf16.mxu0 0
    %8214 = vmatpush1.bf16.xpose.msra.mxu0 0
    %8215 = vmatprep.subr.bf16.mxu0 0
    %8216 = vmatpush1.bf16.xpose.msra.mxu0 0
    %8217 = vmatprep.subr.bf16.mxu0 0
    %8218 = vmatpush1.bf16.xpose.msra.mxu0 0
    %8219 = vmatprep.subr.bf16.mxu0 0
    %8220 = vmatpush1.bf16.xpose.msra.mxu0 0
    %8221 = vmatprep.subr.bf16.mxu0 0
    %8222 = vmatpush1.bf16.xpose.msra.mxu0 0
    %8223 = vmatprep.subr.bf16.mxu0 0
    %8224 = vmatpush1.bf16.xpose.msra.mxu0 0
    %8225 = vmatprep.subr.bf16.mxu0 0
    %8226 = vmatpush1.bf16.xpose.msra.mxu0 0
    %8227 = vmatprep.subr.bf16.mxu0 0
    %8228 = vmatpush1.bf16.xpose.msra.mxu0 0
    %8229 = vmatprep.subr.bf16.mxu0 0
    %8230 = vmatpush1.bf16.xpose.msra.mxu0 0
    %8231 = vmatprep.subr.bf16.mxu0 0
    %8232 = vmatpush1.bf16.xpose.msra.mxu0 0
    %8233 = vmatprep.subr.bf16.mxu0 0
    %8234 = vmatpush1.bf16.xpose.msra.mxu0 0
    %8235 = vmatprep.subr.bf16.mxu0 0
    %8236 = vmatpush1.bf16.xpose.msra.mxu0 0
    %8237 = vmatprep.subr.bf16.mxu0 0
    %8238 = vmatpush1.bf16.xpose.msra.mxu0 0
    %8239 = vmatprep.subr.bf16.mxu0 0
    %8240 = vmatpush1.bf16.xpose.msra.mxu0 0
    %8241 = vmatprep.mubr.bf16.mxu0 %v7835
    %8242 = vmatmul.mubr.bf16.gmra.mrb[0].mxu0 %v7821
    %v8243 = vpop.f32.mrb[0].mxu0
    %v8244 = vadd.f32 %v7793, %v8243
    %v8245 = vpop.f32.mrb[0].mxu0
    %v8246 = vpop.f32.mrb[0].mxu0
    %v8247 = vpop.f32.mrb[0].mxu0
    %8248 = vdwg.mxu0
    %8249 = vmatprep.subr.bf16.mxu0 %v8116
    %8250 = vmatpush1.bf16.xpose.msra.mxu0 %v8115
    %8251 = vmatprep.subr.bf16.mxu0 %v8140
    %8252 = vmatpush1.bf16.xpose.msra.mxu0 %v8139
    %8253 = vmatprep.subr.bf16.mxu0 0
    %8254 = vmatpush1.bf16.xpose.msra.mxu0 0
    %8255 = vmatprep.subr.bf16.mxu0 0
    %8256 = vmatpush1.bf16.xpose.msra.mxu0 0
    %8257 = vmatprep.subr.bf16.mxu0 0
    %8258 = vmatpush1.bf16.xpose.msra.mxu0 0
    %8259 = vmatprep.subr.bf16.mxu0 0
    %8260 = vmatpush1.bf16.xpose.msra.mxu0 0
    %8261 = vmatprep.subr.bf16.mxu0 0
    %8262 = vmatpush1.bf16.xpose.msra.mxu0 0
    %8263 = vmatprep.subr.bf16.mxu0 0
    %8264 = vmatpush1.bf16.xpose.msra.mxu0 0
    %8265 = vmatprep.subr.bf16.mxu0 0
    %8266 = vmatpush1.bf16.xpose.msra.mxu0 0
    %8267 = vmatprep.subr.bf16.mxu0 0
    %8268 = vmatpush1.bf16.xpose.msra.mxu0 0
    %8269 = vmatprep.subr.bf16.mxu0 0
    %8270 = vmatpush1.bf16.xpose.msra.mxu0 0
    %8271 = vmatprep.subr.bf16.mxu0 0
    %8272 = vmatpush1.bf16.xpose.msra.mxu0 0
    %8273 = vmatprep.subr.bf16.mxu0 0
    %8274 = vmatpush1.bf16.xpose.msra.mxu0 0
    %8275 = vmatprep.subr.bf16.mxu0 0
    %8276 = vmatpush1.bf16.xpose.msra.mxu0 0
    %8277 = vmatprep.subr.bf16.mxu0 0
    %8278 = vmatpush1.bf16.xpose.msra.mxu0 0
    %8279 = vmatprep.subr.bf16.mxu0 0
    %8280 = vmatpush1.bf16.xpose.msra.mxu0 0
    %8281 = vmatprep.mubr.bf16.mxu0 %v7845
    %8282 = vmatmul.mubr.bf16.gmra.mrb[0].mxu0 %v7843
    %v8283 = vpop.f32.mrb[0].mxu0
    %v8284 = vadd.f32 %v8244, %v8283
    %v8285 = vpop.f32.mrb[0].mxu0
    %v8286 = vpop.f32.mrb[0].mxu0
    %v8287 = vpop.f32.mrb[0].mxu0
    %8288 = vdwg.mxu0
    %8289 = vmatprep.subr.bf16.mxu0 %v8118
    %8290 = vmatpush1.bf16.xpose.msra.mxu0 %v8117
    %8291 = vmatprep.subr.bf16.mxu0 %v8142
    %8292 = vmatpush1.bf16.xpose.msra.mxu0 %v8141
    %8293 = vmatprep.subr.bf16.mxu0 0
    %8294 = vmatpush1.bf16.xpose.msra.mxu0 0
    %8295 = vmatprep.subr.bf16.mxu0 0
    %8296 = vmatpush1.bf16.xpose.msra.mxu0 0
    %8297 = vmatprep.subr.bf16.mxu0 0
    %8298 = vmatpush1.bf16.xpose.msra.mxu0 0
    %8299 = vmatprep.subr.bf16.mxu0 0
    %8300 = vmatpush1.bf16.xpose.msra.mxu0 0
    %8301 = vmatprep.subr.bf16.mxu0 0
    %8302 = vmatpush1.bf16.xpose.msra.mxu0 0
    %8303 = vmatprep.subr.bf16.mxu0 0
    %8304 = vmatpush1.bf16.xpose.msra.mxu0 0
    %8305 = vmatprep.subr.bf16.mxu0 0
    %8306 = vmatpush1.bf16.xpose.msra.mxu0 0
    %8307 = vmatprep.subr.bf16.mxu0 0
    %8308 = vmatpush1.bf16.xpose.msra.mxu0 0
    %8309 = vmatprep.subr.bf16.mxu0 0
    %8310 = vmatpush1.bf16.xpose.msra.mxu0 0
    %8311 = vmatprep.subr.bf16.mxu0 0
    %8312 = vmatpush1.bf16.xpose.msra.mxu0 0
    %8313 = vmatprep.subr.bf16.mxu0 0
    %8314 = vmatpush1.bf16.xpose.msra.mxu0 0
    %8315 = vmatprep.subr.bf16.mxu0 0
    %8316 = vmatpush1.bf16.xpose.msra.mxu0 0
    %8317 = vmatprep.subr.bf16.mxu0 0
    %8318 = vmatpush1.bf16.xpose.msra.mxu0 0
    %8319 = vmatprep.subr.bf16.mxu0 0
    %8320 = vmatpush1.bf16.xpose.msra.mxu0 0
    %8321 = vmatprep.mubr.bf16.mxu0 %v7842
    %8322 = vmatmul.mubr.bf16.gmra.mrb[0].mxu0 %v7828
    %v8323 = vpop.f32.mrb[0].mxu0
    %v8324 = vadd.f32 %v8284, %v8323
    %v8325 = vpop.f32.mrb[0].mxu0
    %v8326 = vpop.f32.mrb[0].mxu0
    %v8327 = vpop.f32.mrb[0].mxu0
    %8328 = vdwg.mxu0
    %8329 = vmatprep.subr.bf16.mxu0 %v8120
    %8330 = vmatpush1.bf16.xpose.msra.mxu0 %v8119
    %8331 = vmatprep.subr.bf16.mxu0 %v8144
    %8332 = vmatpush1.bf16.xpose.msra.mxu0 %v8143
    %8333 = vmatprep.subr.bf16.mxu0 0
    %8334 = vmatpush1.bf16.xpose.msra.mxu0 0
    %8335 = vmatprep.subr.bf16.mxu0 0
    %8336 = vmatpush1.bf16.xpose.msra.mxu0 0
    %8337 = vmatprep.subr.bf16.mxu0 0
    %8338 = vmatpush1.bf16.xpose.msra.mxu0 0
    %8339 = vmatprep.subr.bf16.mxu0 0
    %8340 = vmatpush1.bf16.xpose.msra.mxu0 0
    %8341 = vmatprep.subr.bf16.mxu0 0
    %8342 = vmatpush1.bf16.xpose.msra.mxu0 0
    %8343 = vmatprep.subr.bf16.mxu0 0
    %8344 = vmatpush1.bf16.xpose.msra.mxu0 0
    %8345 = vmatprep.subr.bf16.mxu0 0
    %8346 = vmatpush1.bf16.xpose.msra.mxu0 0
    %8347 = vmatprep.subr.bf16.mxu0 0
    %8348 = vmatpush1.bf16.xpose.msra.mxu0 0
    %8349 = vmatprep.subr.bf16.mxu0 0
    %8350 = vmatpush1.bf16.xpose.msra.mxu0 0
    %8351 = vmatprep.subr.bf16.mxu0 0
    %8352 = vmatpush1.bf16.xpose.msra.mxu0 0
    %8353 = vmatprep.subr.bf16.mxu0 0
    %8354 = vmatpush1.bf16.xpose.msra.mxu0 0
    %8355 = vmatprep.subr.bf16.mxu0 0
    %8356 = vmatpush1.bf16.xpose.msra.mxu0 0
    %8357 = vmatprep.subr.bf16.mxu0 0
    %8358 = vmatpush1.bf16.xpose.msra.mxu0 0
    %8359 = vmatprep.subr.bf16.mxu0 0
    %8360 = vmatpush1.bf16.xpose.msra.mxu0 0
    %8361 = vmatprep.mubr.bf16.mxu0 %v7846
    %8362 = vmatmul.mubr.bf16.gmra.mrb[0].mxu0 %v7844
    %v8363 = vpop.f32.mrb[0].mxu0
    %v8364 = vadd.f32 %v8324, %v8363
    %v8365 = vpop.f32.mrb[0].mxu0
    %v8366 = vpop.f32.mrb[0].mxu0
    %v8367 = vpop.f32.mrb[0].mxu0
    %8368 = vdwg.mxu0
    %8369 = vmatprep.subr.bf16.mxu0 %v8122
    %8370 = vmatpush1.bf16.xpose.msra.mxu0 %v8121
    %8371 = vmatprep.subr.bf16.mxu0 %v8146
    %8372 = vmatpush1.bf16.xpose.msra.mxu0 %v8145
    %8373 = vmatprep.subr.bf16.mxu0 0
    %8374 = vmatpush1.bf16.xpose.msra.mxu0 0
    %8375 = vmatprep.subr.bf16.mxu0 0
    %8376 = vmatpush1.bf16.xpose.msra.mxu0 0
    %8377 = vmatprep.subr.bf16.mxu0 0
    %8378 = vmatpush1.bf16.xpose.msra.mxu0 0
    %8379 = vmatprep.subr.bf16.mxu0 0
    %8380 = vmatpush1.bf16.xpose.msra.mxu0 0
    %8381 = vmatprep.subr.bf16.mxu0 0
    %8382 = vmatpush1.bf16.xpose.msra.mxu0 0
    %8383 = vmatprep.subr.bf16.mxu0 0
    %8384 = vmatpush1.bf16.xpose.msra.mxu0 0
    %8385 = vmatprep.subr.bf16.mxu0 0
    %8386 = vmatpush1.bf16.xpose.msra.mxu0 0
    %8387 = vmatprep.subr.bf16.mxu0 0
    %8388 = vmatpush1.bf16.xpose.msra.mxu0 0
    %8389 = vmatprep.subr.bf16.mxu0 0
    %8390 = vmatpush1.bf16.xpose.msra.mxu0 0
    %8391 = vmatprep.subr.bf16.mxu0 0
    %8392 = vmatpush1.bf16.xpose.msra.mxu0 0
    %8393 = vmatprep.subr.bf16.mxu0 0
    %8394 = vmatpush1.bf16.xpose.msra.mxu0 0
    %8395 = vmatprep.subr.bf16.mxu0 0
    %8396 = vmatpush1.bf16.xpose.msra.mxu0 0
    %8397 = vmatprep.subr.bf16.mxu0 0
    %8398 = vmatpush1.bf16.xpose.msra.mxu0 0
    %8399 = vmatprep.subr.bf16.mxu0 0
    %8400 = vmatpush1.bf16.xpose.msra.mxu0 0
    %8401 = vmatprep.mubr.bf16.mxu0 %v7884
    %8402 = vmatmul.mubr.bf16.gmra.mrb[0].mxu0 %v7870
    %v8403 = vpop.f32.mrb[0].mxu0
    %v8404 = vadd.f32 %v8364, %v8403
    %v8405 = vpop.f32.mrb[0].mxu0
    %v8406 = vpop.f32.mrb[0].mxu0
    %v8407 = vpop.f32.mrb[0].mxu0
    %8408 = vdwg.mxu0
    %8409 = vmatprep.subr.bf16.mxu0 %v8124
    %8410 = vmatpush1.bf16.xpose.msra.mxu0 %v8123
    %8411 = vmatprep.subr.bf16.mxu0 %v8148
    %8412 = vmatpush1.bf16.xpose.msra.mxu0 %v8147
    %8413 = vmatprep.subr.bf16.mxu0 0
    %8414 = vmatpush1.bf16.xpose.msra.mxu0 0
    %8415 = vmatprep.subr.bf16.mxu0 0
    %8416 = vmatpush1.bf16.xpose.msra.mxu0 0
    %8417 = vmatprep.subr.bf16.mxu0 0
    %8418 = vmatpush1.bf16.xpose.msra.mxu0 0
    %8419 = vmatprep.subr.bf16.mxu0 0
    %8420 = vmatpush1.bf16.xpose.msra.mxu0 0
    %8421 = vmatprep.subr.bf16.mxu0 0
    %8422 = vmatpush1.bf16.xpose.msra.mxu0 0
    %8423 = vmatprep.subr.bf16.mxu0 0
    %8424 = vmatpush1.bf16.xpose.msra.mxu0 0
    %8425 = vmatprep.subr.bf16.mxu0 0
    %8426 = vmatpush1.bf16.xpose.msra.mxu0 0
    %8427 = vmatprep.subr.bf16.mxu0 0
    %8428 = vmatpush1.bf16.xpose.msra.mxu0 0
    %8429 = vmatprep.subr.bf16.mxu0 0
    %8430 = vmatpush1.bf16.xpose.msra.mxu0 0
    %8431 = vmatprep.subr.bf16.mxu0 0
    %8432 = vmatpush1.bf16.xpose.msra.mxu0 0
    %8433 = vmatprep.subr.bf16.mxu0 0
    %8434 = vmatpush1.bf16.xpose.msra.mxu0 0
    %8435 = vmatprep.subr.bf16.mxu0 0
    %8436 = vmatpush1.bf16.xpose.msra.mxu0 0
    %8437 = vmatprep.subr.bf16.mxu0 0
    %8438 = vmatpush1.bf16.xpose.msra.mxu0 0
    %8439 = vmatprep.subr.bf16.mxu0 0
    %8440 = vmatpush1.bf16.xpose.msra.mxu0 0
    %8441 = vmatprep.mubr.bf16.mxu0 %v7894
    %8442 = vmatmul.mubr.bf16.gmra.mrb[0].mxu0 %v7892
    %v8443 = vpop.f32.mrb[0].mxu0
    %v8444 = vadd.f32 %v8404, %v8443
    %v8445 = vpop.f32.mrb[0].mxu0
    %v8446 = vpop.f32.mrb[0].mxu0
    %v8447 = vpop.f32.mrb[0].mxu0
    %8448 = vdwg.mxu0
    %8449 = vmatprep.subr.bf16.mxu0 %v8126
    %8450 = vmatpush1.bf16.xpose.msra.mxu0 %v8125
    %8451 = vmatprep.subr.bf16.mxu0 %v8150
    %8452 = vmatpush1.bf16.xpose.msra.mxu0 %v8149
    %8453 = vmatprep.subr.bf16.mxu0 0
    %8454 = vmatpush1.bf16.xpose.msra.mxu0 0
    %8455 = vmatprep.subr.bf16.mxu0 0
    %8456 = vmatpush1.bf16.xpose.msra.mxu0 0
    %8457 = vmatprep.subr.bf16.mxu0 0
    %8458 = vmatpush1.bf16.xpose.msra.mxu0 0
    %8459 = vmatprep.subr.bf16.mxu0 0
    %8460 = vmatpush1.bf16.xpose.msra.mxu0 0
    %8461 = vmatprep.subr.bf16.mxu0 0
    %8462 = vmatpush1.bf16.xpose.msra.mxu0 0
    %8463 = vmatprep.subr.bf16.mxu0 0
    %8464 = vmatpush1.bf16.xpose.msra.mxu0 0
    %8465 = vmatprep.subr.bf16.mxu0 0
    %8466 = vmatpush1.bf16.xpose.msra.mxu0 0
    %8467 = vmatprep.subr.bf16.mxu0 0
    %8468 = vmatpush1.bf16.xpose.msra.mxu0 0
    %8469 = vmatprep.subr.bf16.mxu0 0
    %8470 = vmatpush1.bf16.xpose.msra.mxu0 0
    %8471 = vmatprep.subr.bf16.mxu0 0
    %8472 = vmatpush1.bf16.xpose.msra.mxu0 0
    %8473 = vmatprep.subr.bf16.mxu0 0
    %8474 = vmatpush1.bf16.xpose.msra.mxu0 0
    %8475 = vmatprep.subr.bf16.mxu0 0
    %8476 = vmatpush1.bf16.xpose.msra.mxu0 0
    %8477 = vmatprep.subr.bf16.mxu0 0
    %8478 = vmatpush1.bf16.xpose.msra.mxu0 0
    %8479 = vmatprep.subr.bf16.mxu0 0
    %8480 = vmatpush1.bf16.xpose.msra.mxu0 0
    %8481 = vmatprep.mubr.bf16.mxu0 %v7891
    %8482 = vmatmul.mubr.bf16.gmra.mrb[0].mxu0 %v7877
    %v8483 = vpop.f32.mrb[0].mxu0
    %v8484 = vadd.f32 %v8444, %v8483
    %v8485 = vpop.f32.mrb[0].mxu0
    %v8486 = vpop.f32.mrb[0].mxu0
    %v8487 = vpop.f32.mrb[0].mxu0
    %8488 = vdwg.mxu0
    %8489 = vmatprep.subr.bf16.mxu0 %v8128
    %8490 = vmatpush1.bf16.xpose.msra.mxu0 %v8127
    %8491 = vmatprep.subr.bf16.mxu0 %v8152
    %8492 = vmatpush1.bf16.xpose.msra.mxu0 %v8151
    %8493 = vmatprep.subr.bf16.mxu0 0
    %8494 = vmatpush1.bf16.xpose.msra.mxu0 0
    %8495 = vmatprep.subr.bf16.mxu0 0
    %8496 = vmatpush1.bf16.xpose.msra.mxu0 0
    %8497 = vmatprep.subr.bf16.mxu0 0
    %8498 = vmatpush1.bf16.xpose.msra.mxu0 0
    %8499 = vmatprep.subr.bf16.mxu0 0
    %8500 = vmatpush1.bf16.xpose.msra.mxu0 0
    %8501 = vmatprep.subr.bf16.mxu0 0
    %8502 = vmatpush1.bf16.xpose.msra.mxu0 0
    %8503 = vmatprep.subr.bf16.mxu0 0
    %8504 = vmatpush1.bf16.xpose.msra.mxu0 0
    %8505 = vmatprep.subr.bf16.mxu0 0
    %8506 = vmatpush1.bf16.xpose.msra.mxu0 0
    %8507 = vmatprep.subr.bf16.mxu0 0
    %8508 = vmatpush1.bf16.xpose.msra.mxu0 0
    %8509 = vmatprep.subr.bf16.mxu0 0
    %8510 = vmatpush1.bf16.xpose.msra.mxu0 0
    %8511 = vmatprep.subr.bf16.mxu0 0
    %8512 = vmatpush1.bf16.xpose.msra.mxu0 0
    %8513 = vmatprep.subr.bf16.mxu0 0
    %8514 = vmatpush1.bf16.xpose.msra.mxu0 0
    %8515 = vmatprep.subr.bf16.mxu0 0
    %8516 = vmatpush1.bf16.xpose.msra.mxu0 0
    %8517 = vmatprep.subr.bf16.mxu0 0
    %8518 = vmatpush1.bf16.xpose.msra.mxu0 0
    %8519 = vmatprep.subr.bf16.mxu0 0
    %8520 = vmatpush1.bf16.xpose.msra.mxu0 0
    %8521 = vmatprep.mubr.bf16.mxu0 %v7895
    %8522 = vmatmul.mubr.bf16.gmra.mrb[0].mxu0 %v7893
    %v8523 = vpop.f32.mrb[0].mxu0
    %v8524 = vadd.f32 %v8484, %v8523
    %v8525 = vpop.f32.mrb[0].mxu0
    %v8526 = vpop.f32.mrb[0].mxu0
    %v8527 = vpop.f32.mrb[0].mxu0
    %8528 = vdwg.mxu0
    %8529 = vmatprep.subr.bf16.mxu0 %v8130
    %8530 = vmatpush1.bf16.xpose.msra.mxu0 %v8129
    %8531 = vmatprep.subr.bf16.mxu0 %v8154
    %8532 = vmatpush1.bf16.xpose.msra.mxu0 %v8153
    %8533 = vmatprep.subr.bf16.mxu0 0
    %8534 = vmatpush1.bf16.xpose.msra.mxu0 0
    %8535 = vmatprep.subr.bf16.mxu0 0
    %8536 = vmatpush1.bf16.xpose.msra.mxu0 0
    %8537 = vmatprep.subr.bf16.mxu0 0
    %8538 = vmatpush1.bf16.xpose.msra.mxu0 0
    %8539 = vmatprep.subr.bf16.mxu0 0
    %8540 = vmatpush1.bf16.xpose.msra.mxu0 0
    %8541 = vmatprep.subr.bf16.mxu0 0
    %8542 = vmatpush1.bf16.xpose.msra.mxu0 0
    %8543 = vmatprep.subr.bf16.mxu0 0
    %8544 = vmatpush1.bf16.xpose.msra.mxu0 0
    %8545 = vmatprep.subr.bf16.mxu0 0
    %8546 = vmatpush1.bf16.xpose.msra.mxu0 0
    %8547 = vmatprep.subr.bf16.mxu0 0
    %8548 = vmatpush1.bf16.xpose.msra.mxu0 0
    %8549 = vmatprep.subr.bf16.mxu0 0
    %8550 = vmatpush1.bf16.xpose.msra.mxu0 0
    %8551 = vmatprep.subr.bf16.mxu0 0
    %8552 = vmatpush1.bf16.xpose.msra.mxu0 0
    %8553 = vmatprep.subr.bf16.mxu0 0
    %8554 = vmatpush1.bf16.xpose.msra.mxu0 0
    %8555 = vmatprep.subr.bf16.mxu0 0
    %8556 = vmatpush1.bf16.xpose.msra.mxu0 0
    %8557 = vmatprep.subr.bf16.mxu0 0
    %8558 = vmatpush1.bf16.xpose.msra.mxu0 0
    %8559 = vmatprep.subr.bf16.mxu0 0
    %8560 = vmatpush1.bf16.xpose.msra.mxu0 0
    %8561 = vmatprep.mubr.bf16.mxu0 %v7933
    %8562 = vmatmul.mubr.bf16.gmra.mrb[0].mxu0 %v7919
    %v8563 = vpop.f32.mrb[0].mxu0
    %v8564 = vadd.f32 %v8524, %v8563
    %v8565 = vpop.f32.mrb[0].mxu0
    %v8566 = vpop.f32.mrb[0].mxu0
    %v8567 = vpop.f32.mrb[0].mxu0
    %8568 = vdwg.mxu0
    %8569 = vmatprep.subr.bf16.mxu0 %v8132
    %8570 = vmatpush1.bf16.xpose.msra.mxu0 %v8131
    %8571 = vmatprep.subr.bf16.mxu0 %v8156
    %8572 = vmatpush1.bf16.xpose.msra.mxu0 %v8155
    %8573 = vmatprep.subr.bf16.mxu0 0
    %8574 = vmatpush1.bf16.xpose.msra.mxu0 0
    %8575 = vmatprep.subr.bf16.mxu0 0
    %8576 = vmatpush1.bf16.xpose.msra.mxu0 0
    %8577 = vmatprep.subr.bf16.mxu0 0
    %8578 = vmatpush1.bf16.xpose.msra.mxu0 0
    %8579 = vmatprep.subr.bf16.mxu0 0
    %8580 = vmatpush1.bf16.xpose.msra.mxu0 0
    %8581 = vmatprep.subr.bf16.mxu0 0
    %8582 = vmatpush1.bf16.xpose.msra.mxu0 0
    %8583 = vmatprep.subr.bf16.mxu0 0
    %8584 = vmatpush1.bf16.xpose.msra.mxu0 0
    %8585 = vmatprep.subr.bf16.mxu0 0
    %8586 = vmatpush1.bf16.xpose.msra.mxu0 0
    %8587 = vmatprep.subr.bf16.mxu0 0
    %8588 = vmatpush1.bf16.xpose.msra.mxu0 0
    %8589 = vmatprep.subr.bf16.mxu0 0
    %8590 = vmatpush1.bf16.xpose.msra.mxu0 0
    %8591 = vmatprep.subr.bf16.mxu0 0
    %8592 = vmatpush1.bf16.xpose.msra.mxu0 0
    %8593 = vmatprep.subr.bf16.mxu0 0
    %8594 = vmatpush1.bf16.xpose.msra.mxu0 0
    %8595 = vmatprep.subr.bf16.mxu0 0
    %8596 = vmatpush1.bf16.xpose.msra.mxu0 0
    %8597 = vmatprep.subr.bf16.mxu0 0
    %8598 = vmatpush1.bf16.xpose.msra.mxu0 0
    %8599 = vmatprep.subr.bf16.mxu0 0
    %8600 = vmatpush1.bf16.xpose.msra.mxu0 0
    %8601 = vmatprep.mubr.bf16.mxu0 %v7943
    %8602 = vmatmul.mubr.bf16.gmra.mrb[0].mxu0 %v7941
    %v8603 = vpop.f32.mrb[0].mxu0
    %v8604 = vadd.f32 %v8564, %v8603
    %v8605 = vpop.f32.mrb[0].mxu0
    %v8606 = vpop.f32.mrb[0].mxu0
    %v8607 = vpop.f32.mrb[0].mxu0
    %8608 = vdwg.mxu0
    %8609 = vmatprep.subr.bf16.mxu0 %v8134
    %8610 = vmatpush1.bf16.xpose.msra.mxu0 %v8133
    %8611 = vmatprep.subr.bf16.mxu0 %v8158
    %8612 = vmatpush1.bf16.xpose.msra.mxu0 %v8157
    %8613 = vmatprep.subr.bf16.mxu0 0
    %8614 = vmatpush1.bf16.xpose.msra.mxu0 0
    %8615 = vmatprep.subr.bf16.mxu0 0
    %8616 = vmatpush1.bf16.xpose.msra.mxu0 0
    %8617 = vmatprep.subr.bf16.mxu0 0
    %8618 = vmatpush1.bf16.xpose.msra.mxu0 0
    %8619 = vmatprep.subr.bf16.mxu0 0
    %8620 = vmatpush1.bf16.xpose.msra.mxu0 0
    %8621 = vmatprep.subr.bf16.mxu0 0
    %8622 = vmatpush1.bf16.xpose.msra.mxu0 0
    %8623 = vmatprep.subr.bf16.mxu0 0
    %8624 = vmatpush1.bf16.xpose.msra.mxu0 0
    %8625 = vmatprep.subr.bf16.mxu0 0
    %8626 = vmatpush1.bf16.xpose.msra.mxu0 0
    %8627 = vmatprep.subr.bf16.mxu0 0
    %8628 = vmatpush1.bf16.xpose.msra.mxu0 0
    %8629 = vmatprep.subr.bf16.mxu0 0
    %8630 = vmatpush1.bf16.xpose.msra.mxu0 0
    %8631 = vmatprep.subr.bf16.mxu0 0
    %8632 = vmatpush1.bf16.xpose.msra.mxu0 0
    %8633 = vmatprep.subr.bf16.mxu0 0
    %8634 = vmatpush1.bf16.xpose.msra.mxu0 0
    %8635 = vmatprep.subr.bf16.mxu0 0
    %8636 = vmatpush1.bf16.xpose.msra.mxu0 0
    %8637 = vmatprep.subr.bf16.mxu0 0
    %8638 = vmatpush1.bf16.xpose.msra.mxu0 0
    %8639 = vmatprep.subr.bf16.mxu0 0
    %8640 = vmatpush1.bf16.xpose.msra.mxu0 0
    %8641 = vmatprep.mubr.bf16.mxu0 %v7940
    %8642 = vmatmul.mubr.bf16.gmra.mrb[0].mxu0 %v7926
    %v8643 = vpop.f32.mrb[0].mxu0
    %v8644 = vadd.f32 %v8604, %v8643
    %v8645 = vpop.f32.mrb[0].mxu0
    %v8646 = vpop.f32.mrb[0].mxu0
    %v8647 = vpop.f32.mrb[0].mxu0
    %8648 = vdwg.mxu0
    %8649 = vmatprep.subr.bf16.mxu0 %v8136
    %8650 = vmatpush1.bf16.xpose.msra.mxu0 %v8135
    %8651 = vmatprep.subr.bf16.mxu0 %v8160
    %8652 = vmatpush1.bf16.xpose.msra.mxu0 %v8159
    %8653 = vmatprep.subr.bf16.mxu0 0
    %8654 = vmatpush1.bf16.xpose.msra.mxu0 0
    %8655 = vmatprep.subr.bf16.mxu0 0
    %8656 = vmatpush1.bf16.xpose.msra.mxu0 0
    %8657 = vmatprep.subr.bf16.mxu0 0
    %8658 = vmatpush1.bf16.xpose.msra.mxu0 0
    %8659 = vmatprep.subr.bf16.mxu0 0
    %8660 = vmatpush1.bf16.xpose.msra.mxu0 0
    %8661 = vmatprep.subr.bf16.mxu0 0
    %8662 = vmatpush1.bf16.xpose.msra.mxu0 0
    %8663 = vmatprep.subr.bf16.mxu0 0
    %8664 = vmatpush1.bf16.xpose.msra.mxu0 0
    %8665 = vmatprep.subr.bf16.mxu0 0
    %8666 = vmatpush1.bf16.xpose.msra.mxu0 0
    %8667 = vmatprep.subr.bf16.mxu0 0
    %8668 = vmatpush1.bf16.xpose.msra.mxu0 0
    %8669 = vmatprep.subr.bf16.mxu0 0
    %8670 = vmatpush1.bf16.xpose.msra.mxu0 0
    %8671 = vmatprep.subr.bf16.mxu0 0
    %8672 = vmatpush1.bf16.xpose.msra.mxu0 0
    %8673 = vmatprep.subr.bf16.mxu0 0
    %8674 = vmatpush1.bf16.xpose.msra.mxu0 0
    %8675 = vmatprep.subr.bf16.mxu0 0
    %8676 = vmatpush1.bf16.xpose.msra.mxu0 0
    %8677 = vmatprep.subr.bf16.mxu0 0
    %8678 = vmatpush1.bf16.xpose.msra.mxu0 0
    %8679 = vmatprep.subr.bf16.mxu0 0
    %8680 = vmatpush1.bf16.xpose.msra.mxu0 0
    %8681 = vmatprep.mubr.bf16.mxu0 %v7944
    %8682 = vmatmul.mubr.bf16.gmra.mrb[0].mxu0 %v7942
    %v8683 = vpop.f32.mrb[0].mxu0
    %v8684 = vadd.f32 %v8644, %v8683
    %v8685 = vpop.f32.mrb[0].mxu0
    %v8686 = vpop.f32.mrb[0].mxu0
    %v8687 = vpop.f32.mrb[0].mxu0
    %8688 = vdwg.mxu0
    %v8691 = vrot.slane %v7736, 7
    %vm8692 = vcmask 1041409
    %v8693 = vsel %vm8692, %v8691, %v7735
    %8696 = vrot.lane.b32.xlu0 %v8684, 32
    %v8697 = vpop.permute.xlu0 %8696
    %v8699 = vsel %vm359, %v8693, %v8697
    %v8700 = vld [vmem:[%s37] sm:$0x1]
    %v8701 = vld [vmem:[#allocation22] sm:$0x1]
    %vm8702 = vcmask 517120
    %v8703 = vsel %vm8702, %v8699, 0.0
    %8704 = vadd.xlane.f32.xlu0 %v8703
    %v8705 = vpop.xlane.xlu0 %8704
    %v8706 = vrcp.pop 64.0
    %v8707 = vmul.f32 %v8705, %v8706
    %v8708 = vsub.f32 %v8699, %v8707
    %v8709 = vmul.f32 %v8708, %v8708
    %v8710 = vsel %vm8702, %v8709, 0.0
    %8711 = vadd.xlane.f32.xlu0 %v8710
    %v8712 = vpop.xlane.xlu0 %8711
    %v8713 = vmul.f32 %v8712, %v8706
    %v8714 = vadd.f32 %v8713, 1e-05
    %v8715 = vrsqrt.pop %v8714
    %v8716 = vmul.f32 %v8708, %v8715
    %v8718 = vlaneseq
    %v8719 = vshrl.u32 %v8718, 7
    %v8720 = vsub.s32 0, %v8719
    %v8721 = vrot.slane %v8700, %v8720
    %v8723 = vmul.f32 %v8716, %v8721
    %v8725 = vlaneseq
    %v8726 = vshrl.u32 %v8725, 7
    %v8727 = vsub.s32 0, %v8726
    %v8728 = vrot.slane %v8701, %v8727
    %v8730 = vadd.f32 %v8723, %v8728
    %v8731 = vld [vmem:[#allocation23] sm:$0xff]
    %v8732 = vld [vmem:[#allocation23 + $0x8] sm:$0xff]
    %v8733 = vld [vmem:[#allocation23 + $0x10] sm:$0xff]
    %v8734 = vld [vmem:[#allocation23 + $0x18] sm:$0xff]
    %v8735 = vld [vmem:[#allocation23 + $0x20] sm:$0xff]
    %v8736 = vld [vmem:[#allocation23 + $0x28] sm:$0xff]
    %v8737 = vld [vmem:[#allocation23 + $0x30] sm:$0xff]
    %v8738 = vld [vmem:[#allocation23 + $0x38] sm:$0xff]
    %v8739 = vld [vmem:[#allocation25] sm:$0x1]
    %v8741 = vlaneseq
    %v8742 = vshrl.u32 %v8741, 7
    %v8743 = vsub.s32 0, %v8742
    %v8744 = vrot.slane %v8739, %v8743
    %v8747 = vsel %vm2107, %v8730, 0
    %8749 = vmatprep.subr.mxu0 0.0
    %8750 = vmatpush1.msra.mxu0 %v8731
    %8751 = vmatprep.subr.mxu0 0.0
    %8752 = vmatpush1.msra.mxu0 %v8732
    %8753 = vmatprep.subr.mxu0 0.0
    %8754 = vmatpush1.msra.mxu0 %v8733
    %8755 = vmatprep.subr.mxu0 0.0
    %8756 = vmatpush1.msra.mxu0 %v8734
    %8757 = vmatprep.subr.mxu0 0.0
    %8758 = vmatpush1.msra.mxu0 %v8735
    %8759 = vmatprep.subr.mxu0 0.0
    %8760 = vmatpush1.msra.mxu0 %v8736
    %8761 = vmatprep.subr.mxu0 0.0
    %8762 = vmatpush1.msra.mxu0 %v8737
    %8763 = vmatprep.subr.mxu0 0.0
    %8764 = vmatpush1.msra.mxu0 %v8738
    %8765 = vmatprep.subr.mxu0 0.0
    %8766 = vmatpush1.msra.mxu0 0.0
    %8767 = vmatprep.subr.mxu0 0.0
    %8768 = vmatpush1.msra.mxu0 0.0
    %8769 = vmatprep.subr.mxu0 0.0
    %8770 = vmatpush1.msra.mxu0 0.0
    %8771 = vmatprep.subr.mxu0 0.0
    %8772 = vmatpush1.msra.mxu0 0.0
    %8773 = vmatprep.subr.mxu0 0.0
    %8774 = vmatpush1.msra.mxu0 0.0
    %8775 = vmatprep.subr.mxu0 0.0
    %8776 = vmatpush1.msra.mxu0 0.0
    %8777 = vmatprep.subr.mxu0 0.0
    %8778 = vmatpush1.msra.mxu0 0.0
    %8779 = vmatprep.subr.mxu0 0.0
    %8780 = vmatpush1.msra.mxu0 0.0
    %8781 = vmatprep.subr.mxu0 0.0
    %8782 = vmatpush1.msra.mxu0 0.0
    %8783 = vmatprep.subr.mxu0 0.0
    %8784 = vmatpush1.msra.mxu0 0.0
    %8785 = vmatprep.subr.mxu0 0.0
    %8786 = vmatpush1.msra.mxu0 0.0
    %8787 = vmatprep.subr.mxu0 0.0
    %8788 = vmatpush1.msra.mxu0 0.0
    %8789 = vmatprep.subr.mxu0 0.0
    %8790 = vmatpush1.msra.mxu0 0.0
    %8791 = vmatprep.subr.mxu0 0.0
    %8792 = vmatpush1.msra.mxu0 0.0
    %8793 = vmatprep.subr.mxu0 0.0
    %8794 = vmatpush1.msra.mxu0 0.0
    %8795 = vmatprep.subr.mxu0 0.0
    %8796 = vmatpush1.msra.mxu0 0.0
    %8797 = vmatprep.subr.mxu0 0.0
    %8798 = vmatpush1.msra.mxu0 0.0
    %8799 = vmatprep.subr.mxu0 0.0
    %8800 = vmatpush1.msra.mxu0 0.0
    %8801 = vmatprep.subr.mxu0 0.0
    %8802 = vmatpush1.msra.mxu0 0.0
    %8803 = vmatprep.subr.mxu0 0.0
    %8804 = vmatpush1.msra.mxu0 0.0
    %8805 = vmatprep.subr.mxu0 0.0
    %8806 = vmatpush1.msra.mxu0 0.0
    %8807 = vmatprep.subr.mxu0 0.0
    %8808 = vmatpush1.msra.mxu0 0.0
    %8809 = vmatprep.subr.mxu0 0.0
    %8810 = vmatpush1.msra.mxu0 0.0
    %8811 = vmatprep.subr.mxu0 0.0
    %8812 = vmatpush1.msra.mxu0 0.0
    %8813 = vmatprep.mubr.f32.mxu0 0.0
    %8814 = vmatmul.mubr.f32.gmra.mrb[0].mxu0 %v8747
    %v8815 = vpop.f32.mrb[0].mxu0
    %v8816 = vadd.f32 %v8744, %v8815
    %v8817 = vpop.f32.mrb[0].mxu0
    %8818 = vdwg.mxu0
    %vm8819 = vcmp.gt.f32.partialorder %v8816, 0.0
    %v8820 = vmul.f32 %v8816, 0.01
    %v8821 = vsel %vm8819, %v8816, %v8820
    %v8822 = vld [vmem:[#allocation26] sm:$0x1]
    %v8823 = vld [vmem:[#allocation28] sm:$0x1]
    %vm8824 = vcmask 1041408
    %v8825 = vsel %vm8824, %v8821, 0.0
    %8826 = vadd.xlane.f32.xlu0 %v8825
    %v8827 = vpop.xlane.xlu0 %8826
    %v8828 = vrcp.pop 128.0
    %v8829 = vmul.f32 %v8827, %v8828
    %v8830 = vsub.f32 %v8821, %v8829
    %v8831 = vmul.f32 %v8830, %v8830
    %v8832 = vsel %vm8824, %v8831, 0.0
    %8833 = vadd.xlane.f32.xlu0 %v8832
    %v8834 = vpop.xlane.xlu0 %8833
    %v8835 = vmul.f32 %v8834, %v8828
    %v8836 = vadd.f32 %v8835, 1e-05
    %v8837 = vrsqrt.pop %v8836
    %v8838 = vmul.f32 %v8830, %v8837
    %v8840 = vlaneseq
    %v8841 = vshrl.u32 %v8840, 7
    %v8842 = vsub.s32 0, %v8841
    %v8843 = vrot.slane %v8822, %v8842
    %v8845 = vmul.f32 %v8838, %v8843
    %v8847 = vlaneseq
    %v8848 = vshrl.u32 %v8847, 7
    %v8849 = vsub.s32 0, %v8848
    %v8850 = vrot.slane %v8823, %v8849
    %v8852 = vadd.f32 %v8845, %v8850
    %v8853 = vld [vmem:[%s49] sm:$0xff]
    %v8854 = vld [vmem:[%s49 + $0x8] sm:$0xff]
    %v8855 = vld [vmem:[%s49 + $0x10] sm:$0xff]
    %v8856 = vld [vmem:[%s49 + $0x18] sm:$0xff]
    %v8857 = vld [vmem:[%s49 + $0x20] sm:$0xff]
    %v8858 = vld [vmem:[%s49 + $0x28] sm:$0xff]
    %v8859 = vld [vmem:[%s49 + $0x30] sm:$0xff]
    %v8860 = vld [vmem:[%s49 + $0x38] sm:$0xff]
    %v8861 = vld [vmem:[%s49 + $0x40] sm:$0xff]
    %v8862 = vld [vmem:[%s49 + $0x48] sm:$0xff]
    %v8863 = vld [vmem:[%s49 + $0x50] sm:$0xff]
    %v8864 = vld [vmem:[%s49 + $0x58] sm:$0xff]
    %v8865 = vld [vmem:[%s49 + $0x60] sm:$0xff]
    %v8866 = vld [vmem:[%s49 + $0x68] sm:$0xff]
    %v8867 = vld [vmem:[%s49 + $0x70] sm:$0xff]
    %v8868 = vld [vmem:[%s49 + $0x78] sm:$0xff]
    %v8869 = vld [vmem:[#allocation29] sm:$0x1]
    %v8871 = vlaneseq
    %v8872 = vshrl.u32 %v8871, 7
    %v8873 = vsub.s32 0, %v8872
    %v8874 = vrot.slane %v8869, %v8873
    %8876 = vmatprep.subr.mxu0 0.0
    %8877 = vmatpush1.msra.mxu0 %v8853
    %8878 = vmatprep.subr.mxu0 0.0
    %8879 = vmatpush1.msra.mxu0 %v8854
    %8880 = vmatprep.subr.mxu0 0.0
    %8881 = vmatpush1.msra.mxu0 %v8855
    %8882 = vmatprep.subr.mxu0 0.0
    %8883 = vmatpush1.msra.mxu0 %v8856
    %8884 = vmatprep.subr.mxu0 0.0
    %8885 = vmatpush1.msra.mxu0 %v8857
    %8886 = vmatprep.subr.mxu0 0.0
    %8887 = vmatpush1.msra.mxu0 %v8858
    %8888 = vmatprep.subr.mxu0 0.0
    %8889 = vmatpush1.msra.mxu0 %v8859
    %8890 = vmatprep.subr.mxu0 0.0
    %8891 = vmatpush1.msra.mxu0 %v8860
    %8892 = vmatprep.subr.mxu0 0.0
    %8893 = vmatpush1.msra.mxu0 %v8861
    %8894 = vmatprep.subr.mxu0 0.0
    %8895 = vmatpush1.msra.mxu0 %v8862
    %8896 = vmatprep.subr.mxu0 0.0
    %8897 = vmatpush1.msra.mxu0 %v8863
    %8898 = vmatprep.subr.mxu0 0.0
    %8899 = vmatpush1.msra.mxu0 %v8864
    %8900 = vmatprep.subr.mxu0 0.0
    %8901 = vmatpush1.msra.mxu0 %v8865
    %8902 = vmatprep.subr.mxu0 0.0
    %8903 = vmatpush1.msra.mxu0 %v8866
    %8904 = vmatprep.subr.mxu0 0.0
    %8905 = vmatpush1.msra.mxu0 %v8867
    %8906 = vmatprep.subr.mxu0 0.0
    %8907 = vmatpush1.msra.mxu0 %v8868
    %8908 = vmatprep.subr.mxu0 0.0
    %8909 = vmatpush1.msra.mxu0 0.0
    %8910 = vmatprep.subr.mxu0 0.0
    %8911 = vmatpush1.msra.mxu0 0.0
    %8912 = vmatprep.subr.mxu0 0.0
    %8913 = vmatpush1.msra.mxu0 0.0
    %8914 = vmatprep.subr.mxu0 0.0
    %8915 = vmatpush1.msra.mxu0 0.0
    %8916 = vmatprep.subr.mxu0 0.0
    %8917 = vmatpush1.msra.mxu0 0.0
    %8918 = vmatprep.subr.mxu0 0.0
    %8919 = vmatpush1.msra.mxu0 0.0
    %8920 = vmatprep.subr.mxu0 0.0
    %8921 = vmatpush1.msra.mxu0 0.0
    %8922 = vmatprep.subr.mxu0 0.0
    %8923 = vmatpush1.msra.mxu0 0.0
    %8924 = vmatprep.subr.mxu0 0.0
    %8925 = vmatpush1.msra.mxu0 0.0
    %8926 = vmatprep.subr.mxu0 0.0
    %8927 = vmatpush1.msra.mxu0 0.0
    %8928 = vmatprep.subr.mxu0 0.0
    %8929 = vmatpush1.msra.mxu0 0.0
    %8930 = vmatprep.subr.mxu0 0.0
    %8931 = vmatpush1.msra.mxu0 0.0
    %8932 = vmatprep.subr.mxu0 0.0
    %8933 = vmatpush1.msra.mxu0 0.0
    %8934 = vmatprep.subr.mxu0 0.0
    %8935 = vmatpush1.msra.mxu0 0.0
    %8936 = vmatprep.subr.mxu0 0.0
    %8937 = vmatpush1.msra.mxu0 0.0
    %8938 = vmatprep.subr.mxu0 0.0
    %8939 = vmatpush1.msra.mxu0 0.0
    %8940 = vmatprep.mubr.f32.mxu0 0.0
    %8941 = vmatmul.mubr.f32.gmra.mrb[0].mxu0 %v8852
    %v8942 = vpop.f32.mrb[0].mxu0
    %v8943 = vadd.f32 %v8874, %v8942
    %v8944 = vpop.f32.mrb[0].mxu0
    %8945 = vdwg.mxu0
    %vm8946 = vcmp.gt.f32.partialorder %v8943, 0.0
    %v8947 = vmul.f32 %v8943, 0.01
    %v8948 = vsel %vm8946, %v8943, %v8947
    %v8949 = vld [vmem:[%s53] sm:$0x1]
    %v8950 = vld [vmem:[%s55] sm:$0x1]
    %v8951 = vsel %vm8702, %v8948, 0.0
    %8952 = vadd.xlane.f32.xlu0 %v8951
    %v8953 = vpop.xlane.xlu0 %8952
    %v8954 = vmul.f32 %v8953, %v8706
    %v8955 = vsub.f32 %v8948, %v8954
    %v8956 = vmul.f32 %v8955, %v8955
    %v8957 = vsel %vm8702, %v8956, 0.0
    %8958 = vadd.xlane.f32.xlu0 %v8957
    %v8959 = vpop.xlane.xlu0 %8958
    %v8960 = vmul.f32 %v8959, %v8706
    %v8961 = vadd.f32 %v8960, 1e-05
    %v8962 = vrsqrt.pop %v8961
    %v8963 = vmul.f32 %v8955, %v8962
    %v8965 = vlaneseq
    %v8966 = vshrl.u32 %v8965, 7
    %v8967 = vsub.s32 0, %v8966
    %v8968 = vrot.slane %v8949, %v8967
    %v8970 = vmul.f32 %v8963, %v8968
    %v8972 = vlaneseq
    %v8973 = vshrl.u32 %v8972, 7
    %v8974 = vsub.s32 0, %v8973
    %v8975 = vrot.slane %v8950, %v8974
    %v8977 = vadd.f32 %v8970, %v8975
    %v8978 = vld [vmem:[%s57] sm:$0xff]
    %v8979 = vld [vmem:[%s57 + $0x8] sm:$0xff]
    %v8980 = vld [vmem:[%s57 + $0x10] sm:$0xff]
    %v8981 = vld [vmem:[%s57 + $0x18] sm:$0xff]
    %v8982 = vld [vmem:[%s57 + $0x20] sm:$0xff]
    %v8983 = vld [vmem:[%s57 + $0x28] sm:$0xff]
    %v8984 = vld [vmem:[%s57 + $0x30] sm:$0xff]
    %v8985 = vld [vmem:[%s57 + $0x38] sm:$0xff]
    %v8986 = vld [vmem:[%s59] sm:$0x1]
    %v8988 = vlaneseq
    %v8989 = vshrl.u32 %v8988, 7
    %v8990 = vsub.s32 0, %v8989
    %v8991 = vrot.slane %v8986, %v8990
    %v8994 = vsel %vm2107, %v8977, 0
    %8996 = vmatprep.subr.mxu0 0.0
    %8997 = vmatpush1.msra.mxu0 %v8978
    %8998 = vmatprep.subr.mxu0 0.0
    %8999 = vmatpush1.msra.mxu0 %v8979
    %9000 = vmatprep.subr.mxu0 0.0
    %9001 = vmatpush1.msra.mxu0 %v8980
    %9002 = vmatprep.subr.mxu0 0.0
    %9003 = vmatpush1.msra.mxu0 %v8981
    %9004 = vmatprep.subr.mxu0 0.0
    %9005 = vmatpush1.msra.mxu0 %v8982
    %9006 = vmatprep.subr.mxu0 0.0
    %9007 = vmatpush1.msra.mxu0 %v8983
    %9008 = vmatprep.subr.mxu0 0.0
    %9009 = vmatpush1.msra.mxu0 %v8984
    %9010 = vmatprep.subr.mxu0 0.0
    %9011 = vmatpush1.msra.mxu0 %v8985
    %9012 = vmatprep.subr.mxu0 0.0
    %9013 = vmatpush1.msra.mxu0 0.0
    %9014 = vmatprep.subr.mxu0 0.0
    %9015 = vmatpush1.msra.mxu0 0.0
    %9016 = vmatprep.subr.mxu0 0.0
    %9017 = vmatpush1.msra.mxu0 0.0
    %9018 = vmatprep.subr.mxu0 0.0
    %9019 = vmatpush1.msra.mxu0 0.0
    %9020 = vmatprep.subr.mxu0 0.0
    %9021 = vmatpush1.msra.mxu0 0.0
    %9022 = vmatprep.subr.mxu0 0.0
    %9023 = vmatpush1.msra.mxu0 0.0
    %9024 = vmatprep.subr.mxu0 0.0
    %9025 = vmatpush1.msra.mxu0 0.0
    %9026 = vmatprep.subr.mxu0 0.0
    %9027 = vmatpush1.msra.mxu0 0.0
    %9028 = vmatprep.subr.mxu0 0.0
    %9029 = vmatpush1.msra.mxu0 0.0
    %9030 = vmatprep.subr.mxu0 0.0
    %9031 = vmatpush1.msra.mxu0 0.0
    %9032 = vmatprep.subr.mxu0 0.0
    %9033 = vmatpush1.msra.mxu0 0.0
    %9034 = vmatprep.subr.mxu0 0.0
    %9035 = vmatpush1.msra.mxu0 0.0
    %9036 = vmatprep.subr.mxu0 0.0
    %9037 = vmatpush1.msra.mxu0 0.0
    %9038 = vmatprep.subr.mxu0 0.0
    %9039 = vmatpush1.msra.mxu0 0.0
    %9040 = vmatprep.subr.mxu0 0.0
    %9041 = vmatpush1.msra.mxu0 0.0
    %9042 = vmatprep.subr.mxu0 0.0
    %9043 = vmatpush1.msra.mxu0 0.0
    %9044 = vmatprep.subr.mxu0 0.0
    %9045 = vmatpush1.msra.mxu0 0.0
    %9046 = vmatprep.subr.mxu0 0.0
    %9047 = vmatpush1.msra.mxu0 0.0
    %9048 = vmatprep.subr.mxu0 0.0
    %9049 = vmatpush1.msra.mxu0 0.0
    %9050 = vmatprep.subr.mxu0 0.0
    %9051 = vmatpush1.msra.mxu0 0.0
    %9052 = vmatprep.subr.mxu0 0.0
    %9053 = vmatpush1.msra.mxu0 0.0
    %9054 = vmatprep.subr.mxu0 0.0
    %9055 = vmatpush1.msra.mxu0 0.0
    %9056 = vmatprep.subr.mxu0 0.0
    %9057 = vmatpush1.msra.mxu0 0.0
    %9058 = vmatprep.subr.mxu0 0.0
    %9059 = vmatpush1.msra.mxu0 0.0
    %9060 = vmatprep.mubr.f32.mxu0 0.0
    %9061 = vmatmul.mubr.f32.gmra.mrb[0].mxu0 %v8994
    %v9062 = vpop.f32.mrb[0].mxu0
    %v9063 = vadd.f32 %v8991, %v9062
    %v9064 = vpop.f32.mrb[0].mxu0
    %9065 = vdwg.mxu0
    %vm9066 = vcmp.gt.f32.partialorder %v9063, 0.0
    %v9067 = vmul.f32 %v9063, 0.01
    %v9068 = vsel %vm9066, %v9063, %v9067
    %vm9069 = vcmask 254976
    %9070 = vst.msk [vmem:[#allocation31] sm:$0x3] %vm9069, %v9068
    %v9071 = vld [vmem:[%s61] sm:$0xff]
    %v9072 = vld [vmem:[%s61 + $0x8] sm:$0xff]
    %v9073 = vld [vmem:[%s61 + $0x10] sm:$0xff]
    %v9074 = vld [vmem:[%s61 + $0x18] sm:$0xff]
    %v9075 = vld [vmem:[%s63] sm:$0x1]
    %v9077 = vlaneseq
    %v9078 = vshrl.u32 %v9077, 7
    %v9079 = vsub.s32 0, %v9078
    %v9080 = vrot.slane %v9075, %v9079
    %v9083 = vsel %vm359, %v9068, 0
    %9085 = vmatprep.subr.mxu0 0.0
    %9086 = vmatpush1.msra.mxu0 %v9071
    %9087 = vmatprep.subr.mxu0 0.0
    %9088 = vmatpush1.msra.mxu0 %v9072
    %9089 = vmatprep.subr.mxu0 0.0
    %9090 = vmatpush1.msra.mxu0 %v9073
    %9091 = vmatprep.subr.mxu0 0.0
    %9092 = vmatpush1.msra.mxu0 %v9074
    %9093 = vmatprep.subr.mxu0 0.0
    %9094 = vmatpush1.msra.mxu0 0.0
    %9095 = vmatprep.subr.mxu0 0.0
    %9096 = vmatpush1.msra.mxu0 0.0
    %9097 = vmatprep.subr.mxu0 0.0
    %9098 = vmatpush1.msra.mxu0 0.0
    %9099 = vmatprep.subr.mxu0 0.0
    %9100 = vmatpush1.msra.mxu0 0.0
    %9101 = vmatprep.subr.mxu0 0.0
    %9102 = vmatpush1.msra.mxu0 0.0
    %9103 = vmatprep.subr.mxu0 0.0
    %9104 = vmatpush1.msra.mxu0 0.0
    %9105 = vmatprep.subr.mxu0 0.0
    %9106 = vmatpush1.msra.mxu0 0.0
    %9107 = vmatprep.subr.mxu0 0.0
    %9108 = vmatpush1.msra.mxu0 0.0
    %9109 = vmatprep.subr.mxu0 0.0
    %9110 = vmatpush1.msra.mxu0 0.0
    %9111 = vmatprep.subr.mxu0 0.0
    %9112 = vmatpush1.msra.mxu0 0.0
    %9113 = vmatprep.subr.mxu0 0.0
    %9114 = vmatpush1.msra.mxu0 0.0
    %9115 = vmatprep.subr.mxu0 0.0
    %9116 = vmatpush1.msra.mxu0 0.0
    %9117 = vmatprep.subr.mxu0 0.0
    %9118 = vmatpush1.msra.mxu0 0.0
    %9119 = vmatprep.subr.mxu0 0.0
    %9120 = vmatpush1.msra.mxu0 0.0
    %9121 = vmatprep.subr.mxu0 0.0
    %9122 = vmatpush1.msra.mxu0 0.0
    %9123 = vmatprep.subr.mxu0 0.0
    %9124 = vmatpush1.msra.mxu0 0.0
    %9125 = vmatprep.subr.mxu0 0.0
    %9126 = vmatpush1.msra.mxu0 0.0
    %9127 = vmatprep.subr.mxu0 0.0
    %9128 = vmatpush1.msra.mxu0 0.0
    %9129 = vmatprep.subr.mxu0 0.0
    %9130 = vmatpush1.msra.mxu0 0.0
    %9131 = vmatprep.subr.mxu0 0.0
    %9132 = vmatpush1.msra.mxu0 0.0
    %9133 = vmatprep.subr.mxu0 0.0
    %9134 = vmatpush1.msra.mxu0 0.0
    %9135 = vmatprep.subr.mxu0 0.0
    %9136 = vmatpush1.msra.mxu0 0.0
    %9137 = vmatprep.subr.mxu0 0.0
    %9138 = vmatpush1.msra.mxu0 0.0
    %9139 = vmatprep.subr.mxu0 0.0
    %9140 = vmatpush1.msra.mxu0 0.0
    %9141 = vmatprep.subr.mxu0 0.0
    %9142 = vmatpush1.msra.mxu0 0.0
    %9143 = vmatprep.subr.mxu0 0.0
    %9144 = vmatpush1.msra.mxu0 0.0
    %9145 = vmatprep.subr.mxu0 0.0
    %9146 = vmatpush1.msra.mxu0 0.0
    %9147 = vmatprep.subr.mxu0 0.0
    %9148 = vmatpush1.msra.mxu0 0.0
    %9149 = vmatprep.mubr.f32.mxu0 0.0
    %9150 = vmatmul.mubr.f32.gmra.mrb[0].mxu0 %v9083
    %v9151 = vpop.f32.mrb[0].mxu0
    %v9152 = vadd.f32 %v9080, %v9151
    %v9153 = vpop.f32.mrb[0].mxu0
    %9154 = vdwg.mxu0
    %vm9155 = vcmask 33792
    %9156 = vst.msk [vmem:[#allocation32] sm:$0x3] %vm9155, %v9152
    // Predicated region
    $region198: #{tpu_custom_call.1} parent=1 // pred_check
      _
    $region199: #{tpu_custom_call.1} parent=1 // pred_check_branch
      %9158 = sbr.rel (0) target = $region201
    $region200: #{tpu_custom_call.1} parent=1 // pred_region
      %s9160 = ssub.s32 32, 32
      %9161 = vsyncadd [#allocation5], %s9160
      %s9163 = sshll.u32 [#allocation31], 4
      %s9164 = int_to_ptr.vmem [resolvable:$true] %s9163
      %9166 = dma.vmem_to_hbm [thread:$0]  %s9164, 32, %s65, [#allocation5]
    $region201: #{tpu_custom_call.1} parent=1 // pred_fallthru
      _
    // Predicated region
    $region202: #{tpu_custom_call.1} parent=1 // pred_check
      _
    $region203: #{tpu_custom_call.1} parent=1 // pred_check_branch
      %9168 = sbr.rel (0) target = $region205
    $region204: #{tpu_custom_call.1} parent=1 // pred_region
      %s9170 = ssub.s32 32, 32
      %9171 = vsyncadd [#allocation33], %s9170
      %s9173 = sshll.u32 [#allocation32], 4
      %s9174 = int_to_ptr.vmem [resolvable:$true] %s9173
      %9176 = dma.vmem_to_hbm [thread:$0]  %s9174, 32, %s67, [#allocation33]
    $region205: #{tpu_custom_call.1} parent=1 // pred_fallthru
      _
    // Predicated region
    $region206: #{tpu_custom_call.1} parent=1 // pred_check
      _
    $region207: #{tpu_custom_call.1} parent=1 // pred_check_branch
      %9178 = sbr.rel (0) target = $region209
    $region208: #{tpu_custom_call.1} parent=1 // pred_region
      %9179 = dma.done [#allocation5], 32
    $region209: #{tpu_custom_call.1} parent=1 // pred_fallthru
      _
    // Predicated region
    $region210: #{tpu_custom_call.1} parent=1 // pred_check
      _
    $region211: #{tpu_custom_call.1} parent=1 // pred_check_branch
      %9181 = sbr.rel (0) target = $region213
    $region212: #{tpu_custom_call.1} parent=1 // pred_region
      %9182 = dma.done [#allocation33], 32
    $region213: #{tpu_custom_call.1} parent=1 // pred_fallthru
      _
    %9183 = vsyncpa [#allocation4], 1
    %9184 = vsyncpa [#allocation9], 1
    %9185 = vsyncpa [#allocation12], 1
    %9186 = vsyncpa [#allocation15], 1
    %9187 = vsyncpa [#allocation18], 1
    %9188 = vsyncpa [#allocation21], 1
    %9189 = vsyncpa [#allocation24], 1
    %9190 = vsyncpa [#allocation27], 1
    %9191 = vsyncpa [#allocation30], 1
    %9192 = vsyncpa [#allocation5], 1
    %9193 = vsyncpa [#allocation33], 1
    %9194 = vsyncpa [#allocation6], 1

</llo_original>
